<compile_context>
chip_gen: v7x
topology: tpu7x:2x2x1
jax: 0.10.0
libtpu: 0.0.40
codegen_flags: <defaults>
</compile_context>

<pallas_src>
import numpy as np
import jax
import jax.numpy as jnp
from jax import lax
from jax.experimental import pallas as pl
from jax.experimental.pallas import tpu as pltpu


# -----------------------------------------------------------------------------
# Phase-selection tables.
#
# For one axis, PyTorch's x2 trilinear upsample (align_corners=False) of x,
# written on the edge-replicated padded signal xp (xp[j] = x[clamp(j-1)]), is
#     E[m] = up[2m]   = 0.25*xp[m]   + 0.75*xp[m+1]      (even phase)
#     O[m] = up[2m+1] = 0.75*xp[m+1] + 0.25*xp[m+2]      (odd  phase)
# A 3-tap conv (padding=1) on `up` at output 2m+p only needs E/O at original
# offsets {-1,0,+1}; the conv's zero padding of `up` becomes zero padding of
# E/O at the original resolution.
# _phase_tap_table()[p, k, s, j] = 1 iff conv tap k of output phase p reads
# source phase s (0=E, 1=O) at offset j-1.
# -----------------------------------------------------------------------------
def _phase_tap_table() -> np.ndarray:
    T = np.zeros((2, 3, 2, 3), dtype=np.float32)
    T[0, 0, 1, 0] = 1.0   # p=0, k=0 -> O[m-1]
    T[0, 1, 0, 1] = 1.0   # p=0, k=1 -> E[m]
    T[0, 2, 1, 1] = 1.0   # p=0, k=2 -> O[m]
    T[1, 0, 0, 1] = 1.0   # p=1, k=0 -> E[m]
    T[1, 1, 1, 1] = 1.0   # p=1, k=1 -> O[m]
    T[1, 2, 0, 2] = 1.0   # p=1, k=2 -> E[m+1]
    return T


def _depth_tap_table() -> np.ndarray:
    # Output depth 2m+p, conv tap k reads the depth-lerped plane t = p + k,
    # where t=0..3 indexes the upsampled depths 2m-1 .. 2m+2.
    TD = np.zeros((2, 3, 4), dtype=np.float32)
    for p in range(2):
        for k in range(3):
            TD[p, k, p + k] = 1.0
    return TD


# --------------------------------- kernel ------------------------------------
def _fused_up_conv_kernel(x_ref, wh_ref, wl_ref, b_ref, o_ref):
    # x_ref : (1, D+2, H+2, W+2, Cin)   f32 edge-padded original-resolution input
    # wh_ref: (144*Cin, 8*Coutp)        bf16 hi half of folded weights
    # wl_ref: (144*Cin, 8*Coutp)        bf16 lo half (wf - hi)
    # b_ref : (1, 8*Coutp)              f32 bias tiled over the 8 output phases
    # o_ref : (1, D*H*W, 8*Coutp)       f32 (cols: (ph, pw, pd, co), rows: (m,h,w))
    D = x_ref.shape[1] - 2
    H = x_ref.shape[2] - 2
    W = x_ref.shape[3] - 2
    Cin = x_ref.shape[4]

    xp = x_ref[0]                                        # (D+2, H+2, W+2, Cin)

    # --- depth: the 4 up-depth planes 2m-1..2m+2 per output super-slab m -----
    # Out-of-range planes (up-depth -1 and 2D) are the conv's zero padding.
    zpl = jnp.zeros((1, H + 2, W + 2, Cin), jnp.float32)
    t0 = jnp.concatenate([zpl, 0.75 * xp[1:D] + 0.25 * xp[2:D + 1]], axis=0)
    t1 = 0.25 * xp[0:D] + 0.75 * xp[1:D + 1]
    t2 = 0.75 * xp[1:D + 1] + 0.25 * xp[2:D + 2]
    t3 = jnp.concatenate([0.25 * xp[1:D] + 0.75 * xp[2:D + 1], zpl], axis=0)
    A = jnp.concatenate([t0, t1, t2, t3], axis=-1)       # (D, H+2, W+2, 4Cin)

    # --- width / height upsample phases, kept at the original resolution -----
    w_e = 0.25 * A[:, :, 0:W] + 0.75 * A[:, :, 1:W + 1]
    w_o = 0.75 * A[:, :, 1:W + 1] + 0.25 * A[:, :, 2:W + 2]
    WP = jnp.concatenate([w_e, w_o], axis=-1)            # (D, H+2, W, 8Cin)

    h_e = 0.25 * WP[:, 0:H] + 0.75 * WP[:, 1:H + 1]
    h_o = 0.75 * WP[:, 1:H + 1] + 0.25 * WP[:, 2:H + 2]
    G = jnp.concatenate([h_e, h_o], axis=-1)             # (D, H, W, 16Cin)

    # --- conv zero padding (of the *upsampled* tensor) in H and W ------------
    kc = G.shape[-1]
    zr = jnp.zeros((D, 1, W, kc), jnp.float32)
    Gp = jnp.concatenate([zr, G, zr], axis=1)            # (D, H+2, W, 16Cin)
    zc = jnp.zeros((D, H + 2, 1, kc), jnp.float32)
    Gp = jnp.concatenate([zc, Gp, zc], axis=2)           # (D, H+2, W+2, 16Cin)

    # --- fold the 3x3 spatial conv taps into K (im2col) -> ONE fat matmul ----
    Wcat = jnp.concatenate(
        [Gp[:, :, 0:W], Gp[:, :, 1:W + 1], Gp[:, :, 2:W + 2]], axis=-1)
    Hcat = jnp.concatenate(
        [Wcat[:, 0:H], Wcat[:, 1:H + 1], Wcat[:, 2:H + 2]], axis=-1)
    act = Hcat.reshape(D * H * W, 9 * kc)                # (M, K) = (D*H*W, 144Cin)

    # --- bf16_3x matmul (explicit Precision.HIGH): 3 single-pass bf16 dots ---
    a_hi = act.astype(jnp.bfloat16)
    a_lo = (act - a_hi.astype(jnp.float32)).astype(jnp.bfloat16)
    acc = jnp.dot(a_hi, wh_ref[...], preferred_element_type=jnp.float32)
    acc = acc + jnp.dot(a_lo, wh_ref[...], preferred_element_type=jnp.float32)
    acc = acc + jnp.dot(a_hi, wl_ref[...], preferred_element_type=jnp.float32)
    acc = acc + b_ref[...]

    o_ref[0] = acc.astype(o_ref.dtype)


# --------------------------------- wrapper -----------------------------------
def upsampling_block3d(x, weight, bias):
    """x: (N, Cin, D, H, W) -> (N, Cout, 2D, 2H, 2W).  PyTorch semantics."""
    N, Cin, D, H, W = x.shape
    Cout = weight.shape[0]
    # Pad Cout so the matmul width 8*coutp is a multiple of 128: lane-dense
    # (unmasked) output stores + a fully used MXU result column block.
    coutp = -(-Cout // 16) * 16

    # channels-last + edge-replicated halo of 1 in D/H/W (this supplies the
    # align_corners=False boundary clamping of the upsample).
    x_cl = jnp.transpose(x, (0, 2, 3, 4, 1)).astype(jnp.float32)
    xe = jnp.pad(x_cl, ((0, 0), (1, 1), (1, 1), (1, 1), (0, 0)), mode="edge")

    # Fold the per-axis phase selections AND the 3x3 spatial tap offsets into
    # the conv weights:  K = (jh, jw, sh, sw, t, ci),  Ncol = (ph, pw, pd, co).
    w_p = jnp.pad(weight.astype(jnp.float32),
                  ((0, coutp - Cout), (0, 0), (0, 0), (0, 0), (0, 0)))
    T = jnp.asarray(_phase_tap_table())
    TD = jnp.asarray(_depth_tap_table())
    wf = jnp.einsum("oidab,pdt,qasx,rbuy->xysutiqrpo", w_p, TD, T, T,
                    precision=lax.Precision.HIGHEST)
    wf = wf.reshape(9 * 16 * Cin, 8 * coutp)
    # hi/lo bf16 split of the folded weight (bf16_3x, done once in the wrapper).
    wf_hi = wf.astype(jnp.bfloat16)
    wf_lo = (wf - wf_hi.astype(jnp.float32)).astype(jnp.bfloat16)

    b_p = jnp.pad(bias.astype(jnp.float32), (0, coutp - Cout))
    b8 = jnp.tile(b_p, 8).reshape(1, 8 * coutp)

    out_raw = pl.pallas_call(
        _fused_up_conv_kernel,
        out_shape=jax.ShapeDtypeStruct((N, D * H * W, 8 * coutp), jnp.float32),
        grid=(N,),
        in_specs=[
            # whole padded volume for one batch element: read exactly once
            pl.BlockSpec((1, D + 2, H + 2, W + 2, Cin),
                         lambda n: (n, 0, 0, 0, 0)),
            # constant-index weight/bias blocks: fetched once, reused every step
            pl.BlockSpec((9 * 16 * Cin, 8 * coutp), lambda n: (0, 0)),
            pl.BlockSpec((9 * 16 * Cin, 8 * coutp), lambda n: (0, 0)),
            pl.BlockSpec((1, 8 * coutp), lambda n: (0, 0)),
        ],
        out_specs=pl.BlockSpec((1, D * H * W, 8 * coutp),
                               lambda n: (n, 0, 0)),
        compiler_params=pltpu.CompilerParams(
            dimension_semantics=("parallel",),          # megacore / v7x 2 TCs
            vmem_limit_bytes=48 * 1024 * 1024),
    )(xe, wf_hi, wf_lo, b8)

    # (n, (m,h,w), (ph,pw,pd,co)) -> (N, Cout, 2D, 2H, 2W)
    # TODO(synk): fold this phase interleave into the kernel's store to drop the
    # one remaining XLA copy of the 8x-upsampled output.
    out = out_raw.reshape(N, D, H, W, 2, 2, 2, coutp)[..., :Cout]
    out = jnp.transpose(out, (0, 7, 1, 6, 2, 4, 3, 5))
    return out.reshape(N, Cout, 2 * D, 2 * H, 2 * W)


# --------------------------- pure-JAX reference -------------------------------
def _interp_matrix(size: int) -> jnp.ndarray:
    """(size, 2*size) matrix replicating torch's trilinear x2 upsample
    (align_corners=False) along one axis:  out = in @ U."""
    U = np.zeros((size, 2 * size), dtype=np.float32)
    for o in range(2 * size):
        src = max(o * 0.5 - 0.25, 0.0)
        i0 = min(int(np.floor(src)), size - 1)
        i1 = min(i0 + 1, size - 1)
        lam = src - i0
        U[i0, o] += 1.0 - lam
        U[i1, o] += lam
    return jnp.asarray(U)


def reference_forward(x, weight, bias):
    N, C, D, H, W = x.shape
    up = jnp.einsum('ncdhw,dD,hH,wW->ncDHW', x,
                    _interp_matrix(D), _interp_matrix(H), _interp_matrix(W),
                    precision=lax.Precision.HIGHEST)
    out = lax.conv_general_dilated(
        up, weight, window_strides=(1, 1, 1), padding=[(1, 1)] * 3,
        dimension_numbers=('NCDHW', 'OIDHW', 'NCDHW'),
        precision=lax.Precision.HIGHEST)
    return out + bias.reshape(1, -1, 1, 1, 1)


if __name__ == "__main__":
    key = jax.random.PRNGKey(0)
    kx, kw, kb = jax.random.split(key, 3)
    N, Cin, Cout = 2, 4, 8
    D = H = W = 8

    x = jax.random.normal(kx, (N, Cin, D, H, W), dtype=jnp.float32)
    fan_in = Cin * 3 * 3 * 3
    weight = jax.random.normal(kw, (Cout, Cin, 3, 3, 3),
                               dtype=jnp.float32) / np.sqrt(fan_in)
    bias = 0.1 * jax.random.normal(kb, (Cout,), dtype=jnp.float32)

    out = jax.jit(upsampling_block3d)(x, weight, bias)
    out = jax.block_until_ready(out)
    assert out.shape == (N, Cout, 2 * D, 2 * H, 2 * W), out.shape

    ref = reference_forward(x, weight, bias)
    err = float(jnp.max(jnp.abs(out - ref)))
    assert err < 2e-3, f"max abs err {err}"
    print("KERNEL_OK")
</pallas_src>

<mosaic_0001>
module attributes {stable_mosaic.version = 11 : i64} {
  func.func @_fused_up_conv_kernel(%arg0: i32, %arg1: memref<1x10x10x10x4xf32, #tpu.memory_space<vmem>>, %arg2: memref<576x128xbf16, #tpu.memory_space<vmem>>, %arg3: memref<576x128xbf16, #tpu.memory_space<vmem>>, %arg4: memref<1x128xf32, #tpu.memory_space<vmem>>, %arg5: memref<1x512x128xf32, #tpu.memory_space<vmem>>) attributes {dimension_semantics = [#tpu.dimension_semantics<parallel>], iteration_bounds = array<i64: 2>, scalar_prefetch = 0 : i64, scratch_operands = 0 : i64, tpu.core_type = #tpu.core_type<tc>, window_params = [{transform_indices = @transform_0, window_bounds = array<i64: 1, 10, 10, 10, 4>}, {pipeline_mode = #tpu.pipeline_mode<synchronous>, transform_indices = @transform_1, window_bounds = array<i64: 576, 128>}, {pipeline_mode = #tpu.pipeline_mode<synchronous>, transform_indices = @transform_2, window_bounds = array<i64: 576, 128>}, {pipeline_mode = #tpu.pipeline_mode<synchronous>, transform_indices = @transform_3, window_bounds = array<i64: 1, 128>}, {transform_indices = @transform_4, window_bounds = array<i64: 1, 512, 128>}]} {
    %c0 = arith.constant 0 : index
    %c0_0 = arith.constant 0 : index
    %c0_1 = arith.constant 0 : index
    %c0_2 = arith.constant 0 : index
    %c0_3 = arith.constant 0 : index
    %0 = vector.load %arg1[%c0, %c0_0, %c0_1, %c0_2, %c0_3] : memref<1x10x10x10x4xf32, #tpu.memory_space<vmem>>, vector<1x10x10x10x4xf32>
    %1 = vector.shape_cast %0 : vector<1x10x10x10x4xf32> to vector<10x10x10x4xf32>
    %cst = arith.constant 0.000000e+00 : f32
    %2 = vector.broadcast %cst : f32 to vector<1x10x10x4xf32>
    %3 = vector.extract_strided_slice %1 {offsets = [1, 0, 0, 0], sizes = [7, 10, 10, 4], strides = [1, 1, 1, 1]} : vector<10x10x10x4xf32> to vector<7x10x10x4xf32>
    %cst_4 = arith.constant 7.500000e-01 : f32
    %4 = vector.broadcast %cst_4 : f32 to vector<7x10x10x4xf32>
    %5 = arith.mulf %4, %3 : vector<7x10x10x4xf32>
    %6 = vector.extract_strided_slice %1 {offsets = [2, 0, 0, 0], sizes = [7, 10, 10, 4], strides = [1, 1, 1, 1]} : vector<10x10x10x4xf32> to vector<7x10x10x4xf32>
    %cst_5 = arith.constant 2.500000e-01 : f32
    %7 = vector.broadcast %cst_5 : f32 to vector<7x10x10x4xf32>
    %8 = arith.mulf %7, %6 : vector<7x10x10x4xf32>
    %9 = arith.addf %5, %8 : vector<7x10x10x4xf32>
    %10 = tpu.concatenate %2, %9 in 0 : vector<1x10x10x4xf32>, vector<7x10x10x4xf32> -> vector<8x10x10x4xf32>
    %11 = vector.extract_strided_slice %1 {offsets = [0, 0, 0, 0], sizes = [8, 10, 10, 4], strides = [1, 1, 1, 1]} : vector<10x10x10x4xf32> to vector<8x10x10x4xf32>
    %cst_6 = arith.constant 2.500000e-01 : f32
    %12 = vector.broadcast %cst_6 : f32 to vector<8x10x10x4xf32>
    %13 = arith.mulf %12, %11 : vector<8x10x10x4xf32>
    %14 = vector.extract_strided_slice %1 {offsets = [1, 0, 0, 0], sizes = [8, 10, 10, 4], strides = [1, 1, 1, 1]} : vector<10x10x10x4xf32> to vector<8x10x10x4xf32>
    %cst_7 = arith.constant 7.500000e-01 : f32
    %15 = vector.broadcast %cst_7 : f32 to vector<8x10x10x4xf32>
    %16 = arith.mulf %15, %14 : vector<8x10x10x4xf32>
    %17 = arith.addf %13, %16 : vector<8x10x10x4xf32>
    %18 = vector.extract_strided_slice %1 {offsets = [1, 0, 0, 0], sizes = [8, 10, 10, 4], strides = [1, 1, 1, 1]} : vector<10x10x10x4xf32> to vector<8x10x10x4xf32>
    %cst_8 = arith.constant 7.500000e-01 : f32
    %19 = vector.broadcast %cst_8 : f32 to vector<8x10x10x4xf32>
    %20 = arith.mulf %19, %18 : vector<8x10x10x4xf32>
    %21 = vector.extract_strided_slice %1 {offsets = [2, 0, 0, 0], sizes = [8, 10, 10, 4], strides = [1, 1, 1, 1]} : vector<10x10x10x4xf32> to vector<8x10x10x4xf32>
    %cst_9 = arith.constant 2.500000e-01 : f32
    %22 = vector.broadcast %cst_9 : f32 to vector<8x10x10x4xf32>
    %23 = arith.mulf %22, %21 : vector<8x10x10x4xf32>
    %24 = arith.addf %20, %23 : vector<8x10x10x4xf32>
    %25 = vector.extract_strided_slice %1 {offsets = [1, 0, 0, 0], sizes = [7, 10, 10, 4], strides = [1, 1, 1, 1]} : vector<10x10x10x4xf32> to vector<7x10x10x4xf32>
    %cst_10 = arith.constant 2.500000e-01 : f32
    %26 = vector.broadcast %cst_10 : f32 to vector<7x10x10x4xf32>
    %27 = arith.mulf %26, %25 : vector<7x10x10x4xf32>
    %28 = vector.extract_strided_slice %1 {offsets = [2, 0, 0, 0], sizes = [7, 10, 10, 4], strides = [1, 1, 1, 1]} : vector<10x10x10x4xf32> to vector<7x10x10x4xf32>
    %cst_11 = arith.constant 7.500000e-01 : f32
    %29 = vector.broadcast %cst_11 : f32 to vector<7x10x10x4xf32>
    %30 = arith.mulf %29, %28 : vector<7x10x10x4xf32>
    %31 = arith.addf %27, %30 : vector<7x10x10x4xf32>
    %32 = tpu.concatenate %31, %2 in 0 : vector<7x10x10x4xf32>, vector<1x10x10x4xf32> -> vector<8x10x10x4xf32>
    %33 = tpu.concatenate %10, %17, %24, %32 in 3 : vector<8x10x10x4xf32>, vector<8x10x10x4xf32>, vector<8x10x10x4xf32>, vector<8x10x10x4xf32> -> vector<8x10x10x16xf32>
    %34 = vector.extract_strided_slice %33 {offsets = [0, 0, 0, 0], sizes = [8, 10, 8, 16], strides = [1, 1, 1, 1]} : vector<8x10x10x16xf32> to vector<8x10x8x16xf32>
    %cst_12 = arith.constant 2.500000e-01 : f32
    %35 = vector.broadcast %cst_12 : f32 to vector<8x10x8x16xf32>
    %36 = arith.mulf %35, %34 : vector<8x10x8x16xf32>
    %37 = vector.extract_strided_slice %33 {offsets = [0, 0, 1, 0], sizes = [8, 10, 8, 16], strides = [1, 1, 1, 1]} : vector<8x10x10x16xf32> to vector<8x10x8x16xf32>
    %cst_13 = arith.constant 7.500000e-01 : f32
    %38 = vector.broadcast %cst_13 : f32 to vector<8x10x8x16xf32>
    %39 = arith.mulf %38, %37 : vector<8x10x8x16xf32>
    %40 = arith.addf %36, %39 : vector<8x10x8x16xf32>
    %41 = vector.extract_strided_slice %33 {offsets = [0, 0, 1, 0], sizes = [8, 10, 8, 16], strides = [1, 1, 1, 1]} : vector<8x10x10x16xf32> to vector<8x10x8x16xf32>
    %cst_14 = arith.constant 7.500000e-01 : f32
    %42 = vector.broadcast %cst_14 : f32 to vector<8x10x8x16xf32>
    %43 = arith.mulf %42, %41 : vector<8x10x8x16xf32>
    %44 = vector.extract_strided_slice %33 {offsets = [0, 0, 2, 0], sizes = [8, 10, 8, 16], strides = [1, 1, 1, 1]} : vector<8x10x10x16xf32> to vector<8x10x8x16xf32>
    %cst_15 = arith.constant 2.500000e-01 : f32
    %45 = vector.broadcast %cst_15 : f32 to vector<8x10x8x16xf32>
    %46 = arith.mulf %45, %44 : vector<8x10x8x16xf32>
    %47 = arith.addf %43, %46 : vector<8x10x8x16xf32>
    %48 = tpu.concatenate %40, %47 in 3 : vector<8x10x8x16xf32>, vector<8x10x8x16xf32> -> vector<8x10x8x32xf32>
    %49 = vector.extract_strided_slice %48 {offsets = [0, 0, 0, 0], sizes = [8, 8, 8, 32], strides = [1, 1, 1, 1]} : vector<8x10x8x32xf32> to vector<8x8x8x32xf32>
    %cst_16 = arith.constant 2.500000e-01 : f32
    %50 = vector.broadcast %cst_16 : f32 to vector<8x8x8x32xf32>
    %51 = arith.mulf %50, %49 : vector<8x8x8x32xf32>
    %52 = vector.extract_strided_slice %48 {offsets = [0, 1, 0, 0], sizes = [8, 8, 8, 32], strides = [1, 1, 1, 1]} : vector<8x10x8x32xf32> to vector<8x8x8x32xf32>
    %cst_17 = arith.constant 7.500000e-01 : f32
    %53 = vector.broadcast %cst_17 : f32 to vector<8x8x8x32xf32>
    %54 = arith.mulf %53, %52 : vector<8x8x8x32xf32>
    %55 = arith.addf %51, %54 : vector<8x8x8x32xf32>
    %56 = vector.extract_strided_slice %48 {offsets = [0, 1, 0, 0], sizes = [8, 8, 8, 32], strides = [1, 1, 1, 1]} : vector<8x10x8x32xf32> to vector<8x8x8x32xf32>
    %cst_18 = arith.constant 7.500000e-01 : f32
    %57 = vector.broadcast %cst_18 : f32 to vector<8x8x8x32xf32>
    %58 = arith.mulf %57, %56 : vector<8x8x8x32xf32>
    %59 = vector.extract_strided_slice %48 {offsets = [0, 2, 0, 0], sizes = [8, 8, 8, 32], strides = [1, 1, 1, 1]} : vector<8x10x8x32xf32> to vector<8x8x8x32xf32>
    %cst_19 = arith.constant 2.500000e-01 : f32
    %60 = vector.broadcast %cst_19 : f32 to vector<8x8x8x32xf32>
    %61 = arith.mulf %60, %59 : vector<8x8x8x32xf32>
    %62 = arith.addf %58, %61 : vector<8x8x8x32xf32>
    %63 = tpu.concatenate %55, %62 in 3 : vector<8x8x8x32xf32>, vector<8x8x8x32xf32> -> vector<8x8x8x64xf32>
    %cst_20 = arith.constant 0.000000e+00 : f32
    %64 = vector.broadcast %cst_20 : f32 to vector<8x1x8x64xf32>
    %65 = tpu.concatenate %64, %63, %64 in 1 : vector<8x1x8x64xf32>, vector<8x8x8x64xf32>, vector<8x1x8x64xf32> -> vector<8x10x8x64xf32>
    %cst_21 = arith.constant 0.000000e+00 : f32
    %66 = vector.broadcast %cst_21 : f32 to vector<8x10x1x64xf32>
    %67 = tpu.concatenate %66, %65, %66 in 2 : vector<8x10x1x64xf32>, vector<8x10x8x64xf32>, vector<8x10x1x64xf32> -> vector<8x10x10x64xf32>
    %68 = vector.extract_strided_slice %67 {offsets = [0, 0, 0, 0], sizes = [8, 10, 8, 64], strides = [1, 1, 1, 1]} : vector<8x10x10x64xf32> to vector<8x10x8x64xf32>
    %69 = vector.extract_strided_slice %67 {offsets = [0, 0, 1, 0], sizes = [8, 10, 8, 64], strides = [1, 1, 1, 1]} : vector<8x10x10x64xf32> to vector<8x10x8x64xf32>
    %70 = vector.extract_strided_slice %67 {offsets = [0, 0, 2, 0], sizes = [8, 10, 8, 64], strides = [1, 1, 1, 1]} : vector<8x10x10x64xf32> to vector<8x10x8x64xf32>
    %71 = tpu.concatenate %68, %69, %70 in 3 : vector<8x10x8x64xf32>, vector<8x10x8x64xf32>, vector<8x10x8x64xf32> -> vector<8x10x8x192xf32>
    %72 = vector.extract_strided_slice %71 {offsets = [0, 0, 0, 0], sizes = [8, 8, 8, 192], strides = [1, 1, 1, 1]} : vector<8x10x8x192xf32> to vector<8x8x8x192xf32>
    %73 = vector.extract_strided_slice %71 {offsets = [0, 1, 0, 0], sizes = [8, 8, 8, 192], strides = [1, 1, 1, 1]} : vector<8x10x8x192xf32> to vector<8x8x8x192xf32>
    %74 = vector.extract_strided_slice %71 {offsets = [0, 2, 0, 0], sizes = [8, 8, 8, 192], strides = [1, 1, 1, 1]} : vector<8x10x8x192xf32> to vector<8x8x8x192xf32>
    %75 = tpu.concatenate %72, %73, %74 in 3 : vector<8x8x8x192xf32>, vector<8x8x8x192xf32>, vector<8x8x8x192xf32> -> vector<8x8x8x576xf32>
    %76 = vector.shape_cast %75 : vector<8x8x8x576xf32> to vector<512x576xf32>
    %77 = arith.truncf %76 : vector<512x576xf32> to vector<512x576xbf16>
    %78 = arith.extf %77 : vector<512x576xbf16> to vector<512x576xf32>
    %79 = arith.subf %76, %78 : vector<512x576xf32>
    %80 = arith.truncf %79 : vector<512x576xf32> to vector<512x576xbf16>
    %c0_22 = arith.constant 0 : index
    %c0_23 = arith.constant 0 : index
    %81 = vector.load %arg2[%c0_22, %c0_23] : memref<576x128xbf16, #tpu.memory_space<vmem>>, vector<576x128xbf16>
    %cst_24 = arith.constant dense<0.000000e+00> : vector<512x128xf32>
    %82 = tpu.matmul %77, %81, %cst_24 {dimension_numbers = #tpu.dot_dimension_numbers<[1], [0], [0], [1], [0, 0, 1, 1], [], []>} : vector<512x576xbf16>, vector<576x128xbf16>, vector<512x128xf32> -> vector<512x128xf32>
    %c0_25 = arith.constant 0 : index
    %c0_26 = arith.constant 0 : index
    %83 = vector.load %arg2[%c0_25, %c0_26] : memref<576x128xbf16, #tpu.memory_space<vmem>>, vector<576x128xbf16>
    %cst_27 = arith.constant dense<0.000000e+00> : vector<512x128xf32>
    %84 = tpu.matmul %80, %83, %cst_27 {dimension_numbers = #tpu.dot_dimension_numbers<[1], [0], [0], [1], [0, 0, 1, 1], [], []>} : vector<512x576xbf16>, vector<576x128xbf16>, vector<512x128xf32> -> vector<512x128xf32>
    %85 = arith.addf %82, %84 : vector<512x128xf32>
    %c0_28 = arith.constant 0 : index
    %c0_29 = arith.constant 0 : index
    %86 = vector.load %arg3[%c0_28, %c0_29] : memref<576x128xbf16, #tpu.memory_space<vmem>>, vector<576x128xbf16>
    %cst_30 = arith.constant dense<0.000000e+00> : vector<512x128xf32>
    %87 = tpu.matmul %77, %86, %cst_30 {dimension_numbers = #tpu.dot_dimension_numbers<[1], [0], [0], [1], [0, 0, 1, 1], [], []>} : vector<512x576xbf16>, vector<576x128xbf16>, vector<512x128xf32> -> vector<512x128xf32>
    %88 = arith.addf %85, %87 : vector<512x128xf32>
    %c0_31 = arith.constant 0 : index
    %c0_32 = arith.constant 0 : index
    %89 = vector.load %arg4[%c0_31, %c0_32] : memref<1x128xf32, #tpu.memory_space<vmem>>, vector<1x128xf32>
    %90 = vector.broadcast %89 : vector<1x128xf32> to vector<512x128xf32>
    %91 = arith.addf %88, %90 : vector<512x128xf32>
    %c0_33 = arith.constant 0 : index
    %c0_34 = arith.constant 0 : index
    %c0_35 = arith.constant 0 : index
    %92 = vector.load %arg5[%c0_33, %c0_34, %c0_35] : memref<1x512x128xf32, #tpu.memory_space<vmem>>, vector<1x512x128xf32>
    %93 = vector.shape_cast %92 : vector<1x512x128xf32> to vector<512x128xf32>
    %94 = vector.shape_cast %91 : vector<512x128xf32> to vector<1x512x128xf32>
    tpu.vector_store %arg5[%c0_33, %c0_34, %c0_35], %94 {strides = array<i32>} : memref<1x512x128xf32, #tpu.memory_space<vmem>>, vector<1x512x128xf32>,
    return
  }
  func.func @transform_0(%arg0: i32) -> (i32, i32, i32, i32, i32) {
    %c0_i32 = arith.constant 0 : i32
    %c0_i32_0 = arith.constant 0 : i32
    %c0_i32_1 = arith.constant 0 : i32
    %c0_i32_2 = arith.constant 0 : i32
    %c0_i32_3 = arith.constant 0 : i32
    return %arg0, %c0_i32, %c0_i32_0, %c0_i32_1, %c0_i32_2 : i32, i32, i32, i32, i32
  }
  func.func @transform_1(%arg0: i32) -> (i32, i32) {
    %c0_i32 = arith.constant 0 : i32
    %c0_i32_0 = arith.constant 0 : i32
    %c0_i32_1 = arith.constant 0 : i32
    return %c0_i32, %c0_i32_0 : i32, i32
  }
  func.func @transform_2(%arg0: i32) -> (i32, i32) {
    %c0_i32 = arith.constant 0 : i32
    %c0_i32_0 = arith.constant 0 : i32
    %c0_i32_1 = arith.constant 0 : i32
    return %c0_i32, %c0_i32_0 : i32, i32
  }
  func.func @transform_3(%arg0: i32) -> (i32, i32) {
    %c0_i32 = arith.constant 0 : i32
    %c0_i32_0 = arith.constant 0 : i32
    %c0_i32_1 = arith.constant 0 : i32
    return %c0_i32, %c0_i32_0 : i32, i32
  }
  func.func @transform_4(%arg0: i32) -> (i32, i32, i32) {
    %c0_i32 = arith.constant 0 : i32
    %c0_i32_0 = arith.constant 0 : i32
    %c0_i32_1 = arith.constant 0 : i32
    return %arg0, %c0_i32, %c0_i32_0 : i32, i32, i32
  }
}

</mosaic_0001>

<llo_original>
// kernel: tile.8
$region0: #{tile.8}
  #allocation0 [shape = 's32[1]{0}', space=sflag, size = 0x4, scoped, tag = 'scoped memory for tile.8']
  %s0 = inlined_call_operand.vmem [shape: f32[16], index: 0, kind: input, shape index: {}]
  %s1 = inlined_call_operand.vmem [shape: f32[8,16], index: 1, kind: output, shape index: {}]
  // Predicated region
  $region2: #{tile.8} parent=0 // pred_check
    _
  $region3: #{tile.8} parent=0 // pred_check_branch
    %3 = sbr.rel (0) target = $region5
  $region4: #{tile.8} parent=0 // pred_region
    _
  $region5: #{tile.8} parent=0 // pred_fallthru
    _
  %v4 = vld [vmem:[%s0] ss:$0 sm:$0xff]
  %5 = vst [vmem:[%s1] sm:$0xff] %v4

// kernel: tile.9
$region0: #{tile.9}
  %s0 = inlined_call_operand.vmem [shape: f32[8,16], index: 0, kind: input, shape index: {}]
  %s1 = inlined_call_operand.vmem [shape: f32[1,128], index: 1, kind: output, shape index: {}]
  $region1: #{tile.9} parent=0
    #allocation0 [shape = 'u8[4096]{0}', space=vmem, size = 0x1000, scoped, tag = 'scoped mem for output reshape']
    %v2 = vld [vmem:[%s0] sm:$0x1]
    %vm3 = vcmask 130048
    %4 = vst.msk [vmem:[#allocation0] sm:$0x1] %vm3, %v2
    %s5 = scalar_lea.vmem %s0, 7
    %v6 = vld [vmem:[%s5] sm:$0x1]
    %7 = vrot.lane.b32.xlu0 %v6, 112
    %v8 = vpop.permute.xlu0 %7
    %vm9 = vcmask 1048448
    %10 = vst.msk [vmem:[#allocation0] sm:$0x1] %vm9, %v8
    %s11 = scalar_lea.vmem %s0, 6
    %v12 = vld [vmem:[%s11] sm:$0x1]
    %13 = vrot.lane.b32.xlu0 %v12, 96
    %v14 = vpop.permute.xlu0 %13
    %vm15 = vcmask 917248
    %16 = vst.msk [vmem:[#allocation0] sm:$0x1] %vm15, %v14
    %s17 = scalar_lea.vmem %s0, 5
    %v18 = vld [vmem:[%s17] sm:$0x1]
    %19 = vrot.lane.b32.xlu0 %v18, 80
    %v20 = vpop.permute.xlu0 %19
    %vm21 = vcmask 786048
    %22 = vst.msk [vmem:[#allocation0] sm:$0x1] %vm21, %v20
    %s23 = scalar_lea.vmem %s0, 4
    %v24 = vld [vmem:[%s23] sm:$0x1]
    %25 = vrot.lane.b32.xlu0 %v24, 64
    %v26 = vpop.permute.xlu0 %25
    %vm27 = vcmask 654848
    %28 = vst.msk [vmem:[#allocation0] sm:$0x1] %vm27, %v26
    %s29 = scalar_lea.vmem %s0, 3
    %v30 = vld [vmem:[%s29] sm:$0x1]
    %31 = vrot.lane.b32.xlu0 %v30, 48
    %v32 = vpop.permute.xlu0 %31
    %vm33 = vcmask 523648
    %34 = vst.msk [vmem:[#allocation0] sm:$0x1] %vm33, %v32
    %s35 = scalar_lea.vmem %s0, 2
    %v36 = vld [vmem:[%s35] sm:$0x1]
    %37 = vrot.lane.b32.xlu0 %v36, 32
    %v38 = vpop.permute.xlu0 %37
    %vm39 = vcmask 392448
    %40 = vst.msk [vmem:[#allocation0] sm:$0x1] %vm39, %v38
    %s41 = scalar_lea.vmem %s0, 1
    %v42 = vld [vmem:[%s41] sm:$0x1]
    %43 = vrot.lane.b32.xlu0 %v42, 16
    %v44 = vpop.permute.xlu0 %43
    %vm45 = vcmask 261248
    %46 = vst.msk [vmem:[#allocation0] sm:$0x1] %vm45, %v44
    %s48 = sshllo.u32 0, 1
    %v50 = vld [vmem:[#allocation0] sm:%s48]
    %s51 = sshllo.u32 0, 1
    %52 = vst [vmem:[%s1] sm:%s51] %v50

// kernel: upsampling_block3d.1
$region0: #{upsampling_block3d.1}
  #allocation0 [shape = 'u32[]', space=smem, size = 0x4, offset = 0x4, fixed_abs, tag = 'smem constant byte address 0x4 - core index']
  #allocation1 [shape = 'u32[144,128]{1,0:T(1,128)}', space=vmem, size = 0x12000, scoped, tag = 'internal scratch']
  %s0 = inlined_call_operand.vmem [shape: f32[2,10,10,10,4], index: 0, kind: input, shape index: {}]
  %s1 = inlined_call_operand.vmem [shape: bf16[576,128], index: 1, kind: input, shape index: {}]
  %s2 = inlined_call_operand.vmem [shape: bf16[576,128], index: 2, kind: input, shape index: {}]
  %s3 = inlined_call_operand.vmem [shape: f32[1,128], index: 3, kind: input, shape index: {}]
  %s4 = inlined_call_operand.vmem [shape: f32[2,512,128], index: 4, kind: output, shape index: {}]
  %s5 = sld [smem:[#allocation0]]
  $region49: #{upsampling_block3d.1} parent=0
    _
  %s7 = ssub.s32 1, %s5
  %s8 = scalar_select 0, %s7, %s5
  loop: start=0, step=1, limit=4
  $region2: #{upsampling_block3d.1} parent=0 // loop_pre_header
    _
  $region3: #{upsampling_block3d.1} parent=0 // loop_header
    %s10 = sphi 0, %s14
    %p11 = scmp.ge.s32.totalorder %s10, 4
    %s20 = sphi 0, %s22
    %s23 = sphi 0, %s20
    %s24 = sphi 0, %s23
    %s40 = sphi 0, %s24
    %s44 = sphi 0, %s44
    %s46 = sphi 0, %s44
    %s47 = sphi 0, %s46
    %s61 = sphi 0, %s47
    %s65 = sphi 0, %s65
    %s67 = sphi 0, %s65
    %s68 = sphi 0, %s67
    %s82 = sphi 0, %s68
    %s86 = sphi 0, %s86
    %s88 = sphi 0, %s86
    %s89 = sphi 0, %s88
    %s103 = sphi 0, %s89
    %s109 = sphi 0, %s111
    %s112 = sphi 0, %s109
    %s113 = sphi 0, %s112
    %s129 = sphi 0, %s113
  $region4: #{upsampling_block3d.1} parent=0 // loop_header_branch
    %13 = sbr.rel (%p11) target = $region8
  $region5: #{upsampling_block3d.1} parent=0 // loop_body
    %s15 = ssub.s32 %s10, 1
    %s16 = ssub.s32 %s10, 2
    %s17 = sadd.s32 %s10, 1
    %s18 = ssub.s32 %s10, %s17
    %p19 = scmp.eq.s32.totalorder %s18, 0
    %s21 = sadd.s32 %s20, 1
    %s22 = scalar_select %p19, %s20, %s21
    %p25 = pneg %p19
    %p26 = scmp.eq.s32.totalorder %s10, 1
    %p27 = por %p25, %p26
    %p28 = scmp.ne.s32.totalorder %s20, %s23
    %p29 = scmp.eq.s32.totalorder %s10, 0
    %p30 = por %p28, %p29
    %p31 = scmp.ne.s32.totalorder %s20, %s23
    %p32 = scmp.eq.s32.totalorder %s15, 1
    %p33 = por %p31, %p32
    %p34 = scmp.ne.s32.totalorder %s23, %s24
    %p35 = scmp.eq.s32.totalorder %s15, 0
    %p36 = por %p34, %p35
    %p37 = scmp.ne.s32.totalorder %s23, %s24
    %p38 = scmp.eq.s32.totalorder %s16, 1
    %p39 = por %p37, %p38
    %p41 = scmp.ne.s32.totalorder %s24, %s40
    %p42 = scmp.eq.s32.totalorder %s16, 0
    %p43 = por %p41, %p42
    %s45 = sadd.s32 %s44, 1
    %p48 = scmp.eq.s32.totalorder %s10, 1
    %p49 = scmp.ne.s32.totalorder %s44, %s46
    %p50 = scmp.eq.s32.totalorder %s10, 0
    %p51 = por %p49, %p50
    %p52 = scmp.ne.s32.totalorder %s44, %s46
    %p53 = scmp.eq.s32.totalorder %s15, 1
    %p54 = por %p52, %p53
    %p55 = scmp.ne.s32.totalorder %s46, %s47
    %p56 = scmp.eq.s32.totalorder %s15, 0
    %p57 = por %p55, %p56
    %p58 = scmp.ne.s32.totalorder %s46, %s47
    %p59 = scmp.eq.s32.totalorder %s16, 1
    %p60 = por %p58, %p59
    %p62 = scmp.ne.s32.totalorder %s47, %s61
    %p63 = scmp.eq.s32.totalorder %s16, 0
    %p64 = por %p62, %p63
    %s66 = sadd.s32 %s65, 1
    %p69 = scmp.eq.s32.totalorder %s10, 1
    %p70 = scmp.ne.s32.totalorder %s65, %s67
    %p71 = scmp.eq.s32.totalorder %s10, 0
    %p72 = por %p70, %p71
    %p73 = scmp.ne.s32.totalorder %s65, %s67
    %p74 = scmp.eq.s32.totalorder %s15, 1
    %p75 = por %p73, %p74
    %p76 = scmp.ne.s32.totalorder %s67, %s68
    %p77 = scmp.eq.s32.totalorder %s15, 0
    %p78 = por %p76, %p77
    %p79 = scmp.ne.s32.totalorder %s67, %s68
    %p80 = scmp.eq.s32.totalorder %s16, 1
    %p81 = por %p79, %p80
    %p83 = scmp.ne.s32.totalorder %s68, %s82
    %p84 = scmp.eq.s32.totalorder %s16, 0
    %p85 = por %p83, %p84
    %s87 = sadd.s32 %s86, 1
    %p90 = scmp.eq.s32.totalorder %s10, 1
    %p91 = scmp.ne.s32.totalorder %s86, %s88
    %p92 = scmp.eq.s32.totalorder %s10, 0
    %p93 = por %p91, %p92
    %p94 = scmp.ne.s32.totalorder %s86, %s88
    %p95 = scmp.eq.s32.totalorder %s15, 1
    %p96 = por %p94, %p95
    %p97 = scmp.ne.s32.totalorder %s88, %s89
    %p98 = scmp.eq.s32.totalorder %s15, 0
    %p99 = por %p97, %p98
    %p100 = scmp.ne.s32.totalorder %s88, %s89
    %p101 = scmp.eq.s32.totalorder %s16, 1
    %p102 = por %p100, %p101
    %p104 = scmp.ne.s32.totalorder %s89, %s103
    %p105 = scmp.eq.s32.totalorder %s16, 0
    %p106 = por %p104, %p105
    %s107 = ssub.s32 %s10, %s17
    %p108 = scmp.eq.s32.totalorder %s107, 0
    %s110 = sadd.s32 %s109, 1
    %s111 = scalar_select %p108, %s109, %s110
    %p114 = pneg %p108
    %p115 = scmp.eq.s32.totalorder %s10, 1
    %p116 = por %p114, %p115
    %p117 = scmp.ne.s32.totalorder %s109, %s112
    %p118 = scmp.eq.s32.totalorder %s10, 0
    %p119 = por %p117, %p118
    %p120 = scmp.ne.s32.totalorder %s109, %s112
    %p121 = scmp.eq.s32.totalorder %s15, 1
    %p122 = por %p120, %p121
    %p123 = scmp.ne.s32.totalorder %s112, %s113
    %p124 = scmp.eq.s32.totalorder %s15, 0
    %p125 = por %p123, %p124
    %p126 = scmp.ne.s32.totalorder %s112, %s113
    %p127 = scmp.eq.s32.totalorder %s16, 1
    %p128 = por %p126, %p127
    %p130 = scmp.ne.s32.totalorder %s113, %s129
    %p131 = scmp.eq.s32.totalorder %s16, 0
    %p132 = por %p130, %p131
    %p133 = scmp.le.s32.totalorder 1, %s10
    %p134 = scmp.lt.s32.totalorder %s10, 3
    %p135 = pnand %p133, %p134
    %p136 = pneg %p135
    // Predicated region
    $region9: #{upsampling_block3d.1} parent=5 // pred_check
      _
    $region10: #{upsampling_block3d.1} parent=5 // pred_check_branch
      %138 = sbr.rel (%p135) target = $region12
    $region11: #{upsampling_block3d.1} parent=5 // pred_region
      %s139 = ssub.s32 %s10, 1
      // Predicated region
      $region13: #{upsampling_block3d.1} parent=11 // pred_check
        %p140 = pneg %p57
      $region14: #{upsampling_block3d.1} parent=11 // pred_check_branch
        %142 = sbr.rel (%p140) target = $region16
      $region15: #{upsampling_block3d.1} parent=11 // pred_region
        _
      $region16: #{upsampling_block3d.1} parent=11 // pred_fallthru
        _
      // Predicated region
      $region17: #{upsampling_block3d.1} parent=11 // pred_check
        %p143 = pneg %p78
      $region18: #{upsampling_block3d.1} parent=11 // pred_check_branch
        %145 = sbr.rel (%p143) target = $region20
      $region19: #{upsampling_block3d.1} parent=11 // pred_region
        _
      $region20: #{upsampling_block3d.1} parent=11 // pred_fallthru
        _
      // Predicated region
      $region21: #{upsampling_block3d.1} parent=11 // pred_check
        %p146 = pneg %p99
      $region22: #{upsampling_block3d.1} parent=11 // pred_check_branch
        %148 = sbr.rel (%p146) target = $region24
      $region23: #{upsampling_block3d.1} parent=11 // pred_region
        _
      $region24: #{upsampling_block3d.1} parent=11 // pred_fallthru
        _
    $region12: #{upsampling_block3d.1} parent=5 // pred_fallthru
      _
    %p149 = scmp.lt.s32.totalorder %s10, 2
    // Predicated region
    $region25: #{upsampling_block3d.1} parent=5 // pred_check
      %p150 = pneg %p149
    $region26: #{upsampling_block3d.1} parent=5 // pred_check_branch
      %152 = sbr.rel (%p150) target = $region28
    $region27: #{upsampling_block3d.1} parent=5 // pred_region
      // Predicated region
      $region29: #{upsampling_block3d.1} parent=27 // pred_check
        %p153 = pneg %p30
      $region30: #{upsampling_block3d.1} parent=27 // pred_check_branch
        %155 = sbr.rel (%p153) target = $region32
      $region31: #{upsampling_block3d.1} parent=27 // pred_region
        %p156 = scmp.lt.s32.totalorder %s10, 1
        %s157 = scalar_select %p156, %s10, 1
        %s158 = smul.addr %s157, 200
        %s159 = smul.addr %s158, 8
        %s160 = scalar_lea.vmem %s0, %s159
      $region32: #{upsampling_block3d.1} parent=27 // pred_fallthru
        _
    $region28: #{upsampling_block3d.1} parent=5 // pred_fallthru
      _
    %p161 = scmp.le.s32.totalorder 1, %s10
    %p162 = scmp.lt.s32.totalorder %s10, 3
    %p163 = pnand %p161, %p162
    %p164 = pneg %p163
    // Predicated region
    $region33: #{upsampling_block3d.1} parent=5 // pred_check
      _
    $region34: #{upsampling_block3d.1} parent=5 // pred_check_branch
      %166 = sbr.rel (%p163) target = $region36
    $region35: #{upsampling_block3d.1} parent=5 // pred_region
      %s167 = ssub.s32 %s10, 1
      %p168 = scmp.lt.s32.totalorder %s15, 1
      %s169 = scalar_select %p168, %s15, 1
      %s170 = smul.addr %s169, 200
      %s171 = smul.addr %s170, 8
      %s172 = scalar_lea.vmem %s0, %s171
      %p173 = pneg %p36
      %p174 = pneg %p33
      %p175 = pneg %p57
      %p176 = pneg %p54
      %p177 = pneg %p78
      %p178 = pneg %p75
      %p179 = pneg %p99
      %p180 = pneg %p96
      %p181 = pneg %p125
      %p182 = pneg %p122
      %p183 = scmp.lt.s32.totalorder %s15, 1
      %s184 = scalar_select %p183, %s15, 1
      %s185 = smul.addr %s184, 64
      %s186 = smul.addr %s185, 8
      %s187 = scalar_lea.vmem %s4, %s186
      %p188 = scmp.lt.s32.totalorder %s15, 1
      %s189 = scalar_select %p188, %s15, 1
      %s190 = smul.addr %s189, 200
      %s191 = smul.addr %s190, 8
      %s192 = scalar_lea.vmem %s0, %s191
      %p193 = scmp.lt.s32.totalorder %s15, 1
      %s194 = scalar_select %p193, %s15, 1
      %s195 = smul.addr %s194, 64
      %s196 = smul.addr %s195, 8
      %s197 = scalar_lea.vmem %s4, %s196
      %v199 = vld [vmem:[%s192] sm:$0xff]
      %v200 = vld [vmem:[%s192 + $0x8] sm:$0x3]
      %v201 = vld [vmem:[%s192 + $0x10] sm:$0xff]
      %v202 = vld [vmem:[%s192 + $0x18] sm:$0x3]
      %v203 = vld [vmem:[%s192 + $0x20] sm:$0xff]
      %v204 = vld [vmem:[%s192 + $0x28] sm:$0x3]
      %v205 = vld [vmem:[%s192 + $0x30] sm:$0xff]
      %v206 = vld [vmem:[%s192 + $0x38] sm:$0x3]
      %v207 = vld [vmem:[%s192 + $0x40] sm:$0xff]
      %v208 = vld [vmem:[%s192 + $0x48] sm:$0x3]
      %v209 = vld [vmem:[%s192 + $0x50] sm:$0xff]
      %v210 = vld [vmem:[%s192 + $0x58] sm:$0x3]
      %v211 = vld [vmem:[%s192 + $0x60] sm:$0xff]
      %v212 = vld [vmem:[%s192 + $0x68] sm:$0x3]
      %v213 = vld [vmem:[%s192 + $0x70] sm:$0xff]
      %v214 = vld [vmem:[%s192 + $0x78] sm:$0x3]
      %v215 = vld [vmem:[%s192 + $0x80] sm:$0xff]
      %v216 = vld [vmem:[%s192 + $0x88] sm:$0x3]
      %v217 = vld [vmem:[%s192 + $0x90] sm:$0xff]
      %v218 = vld [vmem:[%s192 + $0x98] sm:$0x3]
      %v219 = vld [vmem:[%s192 + $0xa0] sm:$0xff]
      %v220 = vld [vmem:[%s192 + $0xa8] sm:$0x3]
      %v221 = vld [vmem:[%s192 + $0xb0] sm:$0xff]
      %v222 = vld [vmem:[%s192 + $0xb8] sm:$0x3]
      %v223 = vld [vmem:[%s192 + $0xc0] sm:$0xff]
      %v224 = vld [vmem:[%s192 + $0xc8] sm:$0x3]
      %v225 = vld [vmem:[%s192 + $0xd0] sm:$0xff]
      %v226 = vld [vmem:[%s192 + $0xd8] sm:$0x3]
      %v227 = vld [vmem:[%s192 + $0xe0] sm:$0xff]
      %v228 = vld [vmem:[%s192 + $0xe8] sm:$0x3]
      %v229 = vld [vmem:[%s192 + $0xf0] sm:$0xff]
      %v230 = vld [vmem:[%s192 + $0xf8] sm:$0x3]
      %v231 = vld [vmem:[%s192 + $0x100] sm:$0xff]
      %v232 = vld [vmem:[%s192 + $0x108] sm:$0x3]
      %v233 = vld [vmem:[%s192 + $0x110] sm:$0xff]
      %v234 = vld [vmem:[%s192 + $0x118] sm:$0x3]
      %v235 = vld [vmem:[%s192 + $0x120] sm:$0xff]
      %v236 = vld [vmem:[%s192 + $0x128] sm:$0x3]
      %v237 = vld [vmem:[%s192 + $0x130] sm:$0xff]
      %v238 = vld [vmem:[%s192 + $0x138] sm:$0x3]
      %v239 = vld [vmem:[%s192 + $0x140] sm:$0xff]
      %v240 = vld [vmem:[%s192 + $0x148] sm:$0x3]
      %v241 = vld [vmem:[%s192 + $0x150] sm:$0xff]
      %v242 = vld [vmem:[%s192 + $0x158] sm:$0x3]
      %v243 = vld [vmem:[%s192 + $0x160] sm:$0xff]
      %v244 = vld [vmem:[%s192 + $0x168] sm:$0x3]
      %v245 = vld [vmem:[%s192 + $0x170] sm:$0xff]
      %v246 = vld [vmem:[%s192 + $0x178] sm:$0x3]
      %v247 = vld [vmem:[%s192 + $0x180] sm:$0xff]
      %v248 = vld [vmem:[%s192 + $0x188] sm:$0x3]
      %v249 = vld [vmem:[%s192 + $0x190] sm:$0xff]
      %v250 = vld [vmem:[%s192 + $0x198] sm:$0x3]
      %v251 = vld [vmem:[%s192 + $0x1a0] sm:$0xff]
      %v252 = vld [vmem:[%s192 + $0x1a8] sm:$0x3]
      %v253 = vld [vmem:[%s192 + $0x1b0] sm:$0xff]
      %v254 = vld [vmem:[%s192 + $0x1b8] sm:$0x3]
      %v255 = vld [vmem:[%s192 + $0x1c0] sm:$0xff]
      %v256 = vld [vmem:[%s192 + $0x1c8] sm:$0x3]
      %v257 = vld [vmem:[%s192 + $0x1d0] sm:$0xff]
      %v258 = vld [vmem:[%s192 + $0x1d8] sm:$0x3]
      %v259 = vld [vmem:[%s192 + $0x1e0] sm:$0xff]
      %v260 = vld [vmem:[%s192 + $0x1e8] sm:$0x3]
      %v261 = vld [vmem:[%s192 + $0x1f0] sm:$0xff]
      %v262 = vld [vmem:[%s192 + $0x1f8] sm:$0x3]
      %v263 = vld [vmem:[%s192 + $0x200] sm:$0xff]
      %v264 = vld [vmem:[%s192 + $0x208] sm:$0x3]
      %v265 = vld [vmem:[%s192 + $0x210] sm:$0xff]
      %v266 = vld [vmem:[%s192 + $0x218] sm:$0x3]
      %v267 = vld [vmem:[%s192 + $0x220] sm:$0xff]
      %v268 = vld [vmem:[%s192 + $0x228] sm:$0x3]
      %v269 = vld [vmem:[%s192 + $0x230] sm:$0xff]
      %v270 = vld [vmem:[%s192 + $0x238] sm:$0x3]
      %v271 = vld [vmem:[%s192 + $0x240] sm:$0xff]
      %v272 = vld [vmem:[%s192 + $0x248] sm:$0x3]
      %v273 = vld [vmem:[%s192 + $0x250] sm:$0xff]
      %v274 = vld [vmem:[%s192 + $0x258] sm:$0x3]
      %v275 = vld [vmem:[%s192 + $0x260] sm:$0xff]
      %v276 = vld [vmem:[%s192 + $0x268] sm:$0x3]
      %v277 = vld [vmem:[%s192 + $0x270] sm:$0xff]
      %v278 = vld [vmem:[%s192 + $0x278] sm:$0x3]
      %v279 = vld [vmem:[%s192 + $0x280] sm:$0xff]
      %v280 = vld [vmem:[%s192 + $0x288] sm:$0x3]
      %v281 = vld [vmem:[%s192 + $0x290] sm:$0xff]
      %v282 = vld [vmem:[%s192 + $0x298] sm:$0x3]
      %v283 = vld [vmem:[%s192 + $0x2a0] sm:$0xff]
      %v284 = vld [vmem:[%s192 + $0x2a8] sm:$0x3]
      %v285 = vld [vmem:[%s192 + $0x2b0] sm:$0xff]
      %v286 = vld [vmem:[%s192 + $0x2b8] sm:$0x3]
      %v287 = vld [vmem:[%s192 + $0x2c0] sm:$0xff]
      %v288 = vld [vmem:[%s192 + $0x2c8] sm:$0x3]
      %v289 = vld [vmem:[%s192 + $0x2d0] sm:$0xff]
      %v290 = vld [vmem:[%s192 + $0x2d8] sm:$0x3]
      %v291 = vld [vmem:[%s192 + $0x2e0] sm:$0xff]
      %v292 = vld [vmem:[%s192 + $0x2e8] sm:$0x3]
      %v293 = vld [vmem:[%s192 + $0x2f0] sm:$0xff]
      %v294 = vld [vmem:[%s192 + $0x2f8] sm:$0x3]
      %v295 = vld [vmem:[%s192 + $0x300] sm:$0xff]
      %v296 = vld [vmem:[%s192 + $0x308] sm:$0x3]
      %v297 = vld [vmem:[%s192 + $0x310] sm:$0xff]
      %v298 = vld [vmem:[%s192 + $0x318] sm:$0x3]
      %v299 = vld [vmem:[%s192 + $0x320] sm:$0xff]
      %v300 = vld [vmem:[%s192 + $0x328] sm:$0x3]
      %v301 = vld [vmem:[%s192 + $0x330] sm:$0xff]
      %v302 = vld [vmem:[%s192 + $0x338] sm:$0x3]
      %v303 = vld [vmem:[%s192 + $0x340] sm:$0xff]
      %v304 = vld [vmem:[%s192 + $0x348] sm:$0x3]
      %v305 = vld [vmem:[%s192 + $0x350] sm:$0xff]
      %v306 = vld [vmem:[%s192 + $0x358] sm:$0x3]
      %v307 = vld [vmem:[%s192 + $0x360] sm:$0xff]
      %v308 = vld [vmem:[%s192 + $0x368] sm:$0x3]
      %v309 = vld [vmem:[%s192 + $0x370] sm:$0xff]
      %v310 = vld [vmem:[%s192 + $0x378] sm:$0x3]
      %v311 = vld [vmem:[%s192 + $0x380] sm:$0xff]
      %v312 = vld [vmem:[%s192 + $0x388] sm:$0x3]
      %v313 = vld [vmem:[%s192 + $0x390] sm:$0xff]
      %v314 = vld [vmem:[%s192 + $0x398] sm:$0x3]
      %v315 = vld [vmem:[%s192 + $0x3a0] sm:$0xff]
      %v316 = vld [vmem:[%s192 + $0x3a8] sm:$0x3]
      %v317 = vld [vmem:[%s192 + $0x3b0] sm:$0xff]
      %v318 = vld [vmem:[%s192 + $0x3b8] sm:$0x3]
      %v319 = vld [vmem:[%s192 + $0x3c0] sm:$0xff]
      %v320 = vld [vmem:[%s192 + $0x3c8] sm:$0x3]
      %v321 = vld [vmem:[%s192 + $0x3d0] sm:$0xff]
      %v322 = vld [vmem:[%s192 + $0x3d8] sm:$0x3]
      %v323 = vld [vmem:[%s192 + $0x3e0] sm:$0xff]
      %v324 = vld [vmem:[%s192 + $0x3e8] sm:$0x3]
      %v325 = vld [vmem:[%s192 + $0x3f0] sm:$0xff]
      %v326 = vld [vmem:[%s192 + $0x3f8] sm:$0x3]
      %v327 = vld [vmem:[%s192 + $0x400] sm:$0xff]
      %v328 = vld [vmem:[%s192 + $0x408] sm:$0x3]
      %v329 = vld [vmem:[%s192 + $0x410] sm:$0xff]
      %v330 = vld [vmem:[%s192 + $0x418] sm:$0x3]
      %v331 = vld [vmem:[%s192 + $0x420] sm:$0xff]
      %v332 = vld [vmem:[%s192 + $0x428] sm:$0x3]
      %v333 = vld [vmem:[%s192 + $0x430] sm:$0xff]
      %v334 = vld [vmem:[%s192 + $0x438] sm:$0x3]
      %v335 = vld [vmem:[%s192 + $0x440] sm:$0xff]
      %v336 = vld [vmem:[%s192 + $0x448] sm:$0x3]
      %v337 = vld [vmem:[%s192 + $0x450] sm:$0xff]
      %v338 = vld [vmem:[%s192 + $0x458] sm:$0x3]
      %v339 = vld [vmem:[%s192 + $0x460] sm:$0xff]
      %v340 = vld [vmem:[%s192 + $0x468] sm:$0x3]
      %v341 = vld [vmem:[%s192 + $0x470] sm:$0xff]
      %v342 = vld [vmem:[%s192 + $0x478] sm:$0x3]
      %v343 = vld [vmem:[%s192 + $0x480] sm:$0xff]
      %v344 = vld [vmem:[%s192 + $0x488] sm:$0x3]
      %v345 = vld [vmem:[%s192 + $0x490] sm:$0xff]
      %v346 = vld [vmem:[%s192 + $0x498] sm:$0x3]
      %v347 = vld [vmem:[%s192 + $0x4a0] sm:$0xff]
      %v348 = vld [vmem:[%s192 + $0x4a8] sm:$0x3]
      %v349 = vld [vmem:[%s192 + $0x4b0] sm:$0xff]
      %v350 = vld [vmem:[%s192 + $0x4b8] sm:$0x3]
      %v351 = vld [vmem:[%s192 + $0x4c0] sm:$0xff]
      %v352 = vld [vmem:[%s192 + $0x4c8] sm:$0x3]
      %v353 = vld [vmem:[%s192 + $0x4d0] sm:$0xff]
      %v354 = vld [vmem:[%s192 + $0x4d8] sm:$0x3]
      %v355 = vld [vmem:[%s192 + $0x4e0] sm:$0xff]
      %v356 = vld [vmem:[%s192 + $0x4e8] sm:$0x3]
      %v357 = vld [vmem:[%s192 + $0x4f0] sm:$0xff]
      %v358 = vld [vmem:[%s192 + $0x4f8] sm:$0x3]
      %v359 = vld [vmem:[%s192 + $0x500] sm:$0xff]
      %v360 = vld [vmem:[%s192 + $0x508] sm:$0x3]
      %v361 = vld [vmem:[%s192 + $0x510] sm:$0xff]
      %v362 = vld [vmem:[%s192 + $0x518] sm:$0x3]
      %v363 = vld [vmem:[%s192 + $0x520] sm:$0xff]
      %v364 = vld [vmem:[%s192 + $0x528] sm:$0x3]
      %v365 = vld [vmem:[%s192 + $0x530] sm:$0xff]
      %v366 = vld [vmem:[%s192 + $0x538] sm:$0x3]
      %v367 = vld [vmem:[%s192 + $0x540] sm:$0xff]
      %v368 = vld [vmem:[%s192 + $0x548] sm:$0x3]
      %v369 = vld [vmem:[%s192 + $0x550] sm:$0xff]
      %v370 = vld [vmem:[%s192 + $0x558] sm:$0x3]
      %v371 = vld [vmem:[%s192 + $0x560] sm:$0xff]
      %v372 = vld [vmem:[%s192 + $0x568] sm:$0x3]
      %v373 = vld [vmem:[%s192 + $0x570] sm:$0xff]
      %v374 = vld [vmem:[%s192 + $0x578] sm:$0x3]
      %v375 = vld [vmem:[%s192 + $0x580] sm:$0xff]
      %v376 = vld [vmem:[%s192 + $0x588] sm:$0x3]
      %v377 = vld [vmem:[%s192 + $0x590] sm:$0xff]
      %v378 = vld [vmem:[%s192 + $0x598] sm:$0x3]
      %v379 = vld [vmem:[%s192 + $0x5a0] sm:$0xff]
      %v380 = vld [vmem:[%s192 + $0x5a8] sm:$0x3]
      %v381 = vld [vmem:[%s192 + $0x5b0] sm:$0xff]
      %v382 = vld [vmem:[%s192 + $0x5b8] sm:$0x3]
      %v383 = vld [vmem:[%s192 + $0x5c0] sm:$0xff]
      %v384 = vld [vmem:[%s192 + $0x5c8] sm:$0x3]
      %v385 = vld [vmem:[%s192 + $0x5d0] sm:$0xff]
      %v386 = vld [vmem:[%s192 + $0x5d8] sm:$0x3]
      %v387 = vld [vmem:[%s192 + $0x5e0] sm:$0xff]
      %v388 = vld [vmem:[%s192 + $0x5e8] sm:$0x3]
      %v389 = vld [vmem:[%s192 + $0x5f0] sm:$0xff]
      %v390 = vld [vmem:[%s192 + $0x5f8] sm:$0x3]
      %v391 = vld [vmem:[%s192 + $0x600] sm:$0xff]
      %v392 = vld [vmem:[%s192 + $0x608] sm:$0x3]
      %v393 = vld [vmem:[%s192 + $0x610] sm:$0xff]
      %v394 = vld [vmem:[%s192 + $0x618] sm:$0x3]
      %v395 = vld [vmem:[%s192 + $0x620] sm:$0xff]
      %v396 = vld [vmem:[%s192 + $0x628] sm:$0x3]
      %v397 = vld [vmem:[%s192 + $0x630] sm:$0xff]
      %v398 = vld [vmem:[%s192 + $0x638] sm:$0x3]
      %v399 = vmul.f32 %v219, 0.75
      %v400 = vmul.f32 %v220, 0.75
      %v401 = vmul.f32 %v221, 0.75
      %v402 = vmul.f32 %v222, 0.75
      %v403 = vmul.f32 %v223, 0.75
      %v404 = vmul.f32 %v224, 0.75
      %v405 = vmul.f32 %v225, 0.75
      %v406 = vmul.f32 %v226, 0.75
      %v407 = vmul.f32 %v227, 0.75
      %v408 = vmul.f32 %v228, 0.75
      %v409 = vmul.f32 %v229, 0.75
      %v410 = vmul.f32 %v230, 0.75
      %v411 = vmul.f32 %v231, 0.75
      %v412 = vmul.f32 %v232, 0.75
      %v413 = vmul.f32 %v233, 0.75
      %v414 = vmul.f32 %v234, 0.75
      %v415 = vmul.f32 %v235, 0.75
      %v416 = vmul.f32 %v236, 0.75
      %v417 = vmul.f32 %v237, 0.75
      %v418 = vmul.f32 %v238, 0.75
      %v419 = vmul.f32 %v239, 0.75
      %v420 = vmul.f32 %v240, 0.75
      %v421 = vmul.f32 %v241, 0.75
      %v422 = vmul.f32 %v242, 0.75
      %v423 = vmul.f32 %v243, 0.75
      %v424 = vmul.f32 %v244, 0.75
      %v425 = vmul.f32 %v245, 0.75
      %v426 = vmul.f32 %v246, 0.75
      %v427 = vmul.f32 %v247, 0.75
      %v428 = vmul.f32 %v248, 0.75
      %v429 = vmul.f32 %v249, 0.75
      %v430 = vmul.f32 %v250, 0.75
      %v431 = vmul.f32 %v251, 0.75
      %v432 = vmul.f32 %v252, 0.75
      %v433 = vmul.f32 %v253, 0.75
      %v434 = vmul.f32 %v254, 0.75
      %v435 = vmul.f32 %v255, 0.75
      %v436 = vmul.f32 %v256, 0.75
      %v437 = vmul.f32 %v257, 0.75
      %v438 = vmul.f32 %v258, 0.75
      %v439 = vmul.f32 %v259, 0.75
      %v440 = vmul.f32 %v260, 0.75
      %v441 = vmul.f32 %v261, 0.75
      %v442 = vmul.f32 %v262, 0.75
      %v443 = vmul.f32 %v263, 0.75
      %v444 = vmul.f32 %v264, 0.75
      %v445 = vmul.f32 %v265, 0.75
      %v446 = vmul.f32 %v266, 0.75
      %v447 = vmul.f32 %v267, 0.75
      %v448 = vmul.f32 %v268, 0.75
      %v449 = vmul.f32 %v269, 0.75
      %v450 = vmul.f32 %v270, 0.75
      %v451 = vmul.f32 %v271, 0.75
      %v452 = vmul.f32 %v272, 0.75
      %v453 = vmul.f32 %v273, 0.75
      %v454 = vmul.f32 %v274, 0.75
      %v455 = vmul.f32 %v275, 0.75
      %v456 = vmul.f32 %v276, 0.75
      %v457 = vmul.f32 %v277, 0.75
      %v458 = vmul.f32 %v278, 0.75
      %v459 = vmul.f32 %v279, 0.75
      %v460 = vmul.f32 %v280, 0.75
      %v461 = vmul.f32 %v281, 0.75
      %v462 = vmul.f32 %v282, 0.75
      %v463 = vmul.f32 %v283, 0.75
      %v464 = vmul.f32 %v284, 0.75
      %v465 = vmul.f32 %v285, 0.75
      %v466 = vmul.f32 %v286, 0.75
      %v467 = vmul.f32 %v287, 0.75
      %v468 = vmul.f32 %v288, 0.75
      %v469 = vmul.f32 %v289, 0.75
      %v470 = vmul.f32 %v290, 0.75
      %v471 = vmul.f32 %v291, 0.75
      %v472 = vmul.f32 %v292, 0.75
      %v473 = vmul.f32 %v293, 0.75
      %v474 = vmul.f32 %v294, 0.75
      %v475 = vmul.f32 %v295, 0.75
      %v476 = vmul.f32 %v296, 0.75
      %v477 = vmul.f32 %v297, 0.75
      %v478 = vmul.f32 %v298, 0.75
      %v479 = vmul.f32 %v299, 0.75
      %v480 = vmul.f32 %v300, 0.75
      %v481 = vmul.f32 %v301, 0.75
      %v482 = vmul.f32 %v302, 0.75
      %v483 = vmul.f32 %v303, 0.75
      %v484 = vmul.f32 %v304, 0.75
      %v485 = vmul.f32 %v305, 0.75
      %v486 = vmul.f32 %v306, 0.75
      %v487 = vmul.f32 %v307, 0.75
      %v488 = vmul.f32 %v308, 0.75
      %v489 = vmul.f32 %v309, 0.75
      %v490 = vmul.f32 %v310, 0.75
      %v491 = vmul.f32 %v311, 0.75
      %v492 = vmul.f32 %v312, 0.75
      %v493 = vmul.f32 %v313, 0.75
      %v494 = vmul.f32 %v314, 0.75
      %v495 = vmul.f32 %v315, 0.75
      %v496 = vmul.f32 %v316, 0.75
      %v497 = vmul.f32 %v317, 0.75
      %v498 = vmul.f32 %v318, 0.75
      %v499 = vmul.f32 %v319, 0.75
      %v500 = vmul.f32 %v320, 0.75
      %v501 = vmul.f32 %v321, 0.75
      %v502 = vmul.f32 %v322, 0.75
      %v503 = vmul.f32 %v323, 0.75
      %v504 = vmul.f32 %v324, 0.75
      %v505 = vmul.f32 %v325, 0.75
      %v506 = vmul.f32 %v326, 0.75
      %v507 = vmul.f32 %v327, 0.75
      %v508 = vmul.f32 %v328, 0.75
      %v509 = vmul.f32 %v329, 0.75
      %v510 = vmul.f32 %v330, 0.75
      %v511 = vmul.f32 %v331, 0.75
      %v512 = vmul.f32 %v332, 0.75
      %v513 = vmul.f32 %v333, 0.75
      %v514 = vmul.f32 %v334, 0.75
      %v515 = vmul.f32 %v335, 0.75
      %v516 = vmul.f32 %v336, 0.75
      %v517 = vmul.f32 %v337, 0.75
      %v518 = vmul.f32 %v338, 0.75
      %v519 = vmul.f32 %v339, 0.75
      %v520 = vmul.f32 %v340, 0.75
      %v521 = vmul.f32 %v341, 0.75
      %v522 = vmul.f32 %v342, 0.75
      %v523 = vmul.f32 %v343, 0.75
      %v524 = vmul.f32 %v344, 0.75
      %v525 = vmul.f32 %v345, 0.75
      %v526 = vmul.f32 %v346, 0.75
      %v527 = vmul.f32 %v347, 0.75
      %v528 = vmul.f32 %v348, 0.75
      %v529 = vmul.f32 %v349, 0.75
      %v530 = vmul.f32 %v350, 0.75
      %v531 = vmul.f32 %v351, 0.75
      %v532 = vmul.f32 %v352, 0.75
      %v533 = vmul.f32 %v353, 0.75
      %v534 = vmul.f32 %v354, 0.75
      %v535 = vmul.f32 %v355, 0.75
      %v536 = vmul.f32 %v356, 0.75
      %v537 = vmul.f32 %v357, 0.75
      %v538 = vmul.f32 %v358, 0.75
      %v539 = vmul.f32 %v239, 0.25
      %v540 = vmul.f32 %v240, 0.25
      %v541 = vmul.f32 %v241, 0.25
      %v542 = vmul.f32 %v242, 0.25
      %v543 = vmul.f32 %v243, 0.25
      %v544 = vmul.f32 %v244, 0.25
      %v545 = vmul.f32 %v245, 0.25
      %v546 = vmul.f32 %v246, 0.25
      %v547 = vmul.f32 %v247, 0.25
      %v548 = vmul.f32 %v248, 0.25
      %v549 = vmul.f32 %v249, 0.25
      %v550 = vmul.f32 %v250, 0.25
      %v551 = vmul.f32 %v251, 0.25
      %v552 = vmul.f32 %v252, 0.25
      %v553 = vmul.f32 %v253, 0.25
      %v554 = vmul.f32 %v254, 0.25
      %v555 = vmul.f32 %v255, 0.25
      %v556 = vmul.f32 %v256, 0.25
      %v557 = vmul.f32 %v257, 0.25
      %v558 = vmul.f32 %v258, 0.25
      %v559 = vmul.f32 %v259, 0.25
      %v560 = vmul.f32 %v260, 0.25
      %v561 = vmul.f32 %v261, 0.25
      %v562 = vmul.f32 %v262, 0.25
      %v563 = vmul.f32 %v263, 0.25
      %v564 = vmul.f32 %v264, 0.25
      %v565 = vmul.f32 %v265, 0.25
      %v566 = vmul.f32 %v266, 0.25
      %v567 = vmul.f32 %v267, 0.25
      %v568 = vmul.f32 %v268, 0.25
      %v569 = vmul.f32 %v269, 0.25
      %v570 = vmul.f32 %v270, 0.25
      %v571 = vmul.f32 %v271, 0.25
      %v572 = vmul.f32 %v272, 0.25
      %v573 = vmul.f32 %v273, 0.25
      %v574 = vmul.f32 %v274, 0.25
      %v575 = vmul.f32 %v275, 0.25
      %v576 = vmul.f32 %v276, 0.25
      %v577 = vmul.f32 %v277, 0.25
      %v578 = vmul.f32 %v278, 0.25
      %v579 = vmul.f32 %v279, 0.25
      %v580 = vmul.f32 %v280, 0.25
      %v581 = vmul.f32 %v281, 0.25
      %v582 = vmul.f32 %v282, 0.25
      %v583 = vmul.f32 %v283, 0.25
      %v584 = vmul.f32 %v284, 0.25
      %v585 = vmul.f32 %v285, 0.25
      %v586 = vmul.f32 %v286, 0.25
      %v587 = vmul.f32 %v287, 0.25
      %v588 = vmul.f32 %v288, 0.25
      %v589 = vmul.f32 %v289, 0.25
      %v590 = vmul.f32 %v290, 0.25
      %v591 = vmul.f32 %v291, 0.25
      %v592 = vmul.f32 %v292, 0.25
      %v593 = vmul.f32 %v293, 0.25
      %v594 = vmul.f32 %v294, 0.25
      %v595 = vmul.f32 %v295, 0.25
      %v596 = vmul.f32 %v296, 0.25
      %v597 = vmul.f32 %v297, 0.25
      %v598 = vmul.f32 %v298, 0.25
      %v599 = vmul.f32 %v299, 0.25
      %v600 = vmul.f32 %v300, 0.25
      %v601 = vmul.f32 %v301, 0.25
      %v602 = vmul.f32 %v302, 0.25
      %v603 = vmul.f32 %v303, 0.25
      %v604 = vmul.f32 %v304, 0.25
      %v605 = vmul.f32 %v305, 0.25
      %v606 = vmul.f32 %v306, 0.25
      %v607 = vmul.f32 %v307, 0.25
      %v608 = vmul.f32 %v308, 0.25
      %v609 = vmul.f32 %v309, 0.25
      %v610 = vmul.f32 %v310, 0.25
      %v611 = vmul.f32 %v311, 0.25
      %v612 = vmul.f32 %v312, 0.25
      %v613 = vmul.f32 %v313, 0.25
      %v614 = vmul.f32 %v314, 0.25
      %v615 = vmul.f32 %v315, 0.25
      %v616 = vmul.f32 %v316, 0.25
      %v617 = vmul.f32 %v317, 0.25
      %v618 = vmul.f32 %v318, 0.25
      %v619 = vmul.f32 %v319, 0.25
      %v620 = vmul.f32 %v320, 0.25
      %v621 = vmul.f32 %v321, 0.25
      %v622 = vmul.f32 %v322, 0.25
      %v623 = vmul.f32 %v323, 0.25
      %v624 = vmul.f32 %v324, 0.25
      %v625 = vmul.f32 %v325, 0.25
      %v626 = vmul.f32 %v326, 0.25
      %v627 = vmul.f32 %v327, 0.25
      %v628 = vmul.f32 %v328, 0.25
      %v629 = vmul.f32 %v329, 0.25
      %v630 = vmul.f32 %v330, 0.25
      %v631 = vmul.f32 %v331, 0.25
      %v632 = vmul.f32 %v332, 0.25
      %v633 = vmul.f32 %v333, 0.25
      %v634 = vmul.f32 %v334, 0.25
      %v635 = vmul.f32 %v335, 0.25
      %v636 = vmul.f32 %v336, 0.25
      %v637 = vmul.f32 %v337, 0.25
      %v638 = vmul.f32 %v338, 0.25
      %v639 = vmul.f32 %v339, 0.25
      %v640 = vmul.f32 %v340, 0.25
      %v641 = vmul.f32 %v341, 0.25
      %v642 = vmul.f32 %v342, 0.25
      %v643 = vmul.f32 %v343, 0.25
      %v644 = vmul.f32 %v344, 0.25
      %v645 = vmul.f32 %v345, 0.25
      %v646 = vmul.f32 %v346, 0.25
      %v647 = vmul.f32 %v347, 0.25
      %v648 = vmul.f32 %v348, 0.25
      %v649 = vmul.f32 %v349, 0.25
      %v650 = vmul.f32 %v350, 0.25
      %v651 = vmul.f32 %v351, 0.25
      %v652 = vmul.f32 %v352, 0.25
      %v653 = vmul.f32 %v353, 0.25
      %v654 = vmul.f32 %v354, 0.25
      %v655 = vmul.f32 %v355, 0.25
      %v656 = vmul.f32 %v356, 0.25
      %v657 = vmul.f32 %v357, 0.25
      %v658 = vmul.f32 %v358, 0.25
      %v659 = vmul.f32 %v359, 0.25
      %v660 = vmul.f32 %v360, 0.25
      %v661 = vmul.f32 %v361, 0.25
      %v662 = vmul.f32 %v362, 0.25
      %v663 = vmul.f32 %v363, 0.25
      %v664 = vmul.f32 %v364, 0.25
      %v665 = vmul.f32 %v365, 0.25
      %v666 = vmul.f32 %v366, 0.25
      %v667 = vmul.f32 %v367, 0.25
      %v668 = vmul.f32 %v368, 0.25
      %v669 = vmul.f32 %v369, 0.25
      %v670 = vmul.f32 %v370, 0.25
      %v671 = vmul.f32 %v371, 0.25
      %v672 = vmul.f32 %v372, 0.25
      %v673 = vmul.f32 %v373, 0.25
      %v674 = vmul.f32 %v374, 0.25
      %v675 = vmul.f32 %v375, 0.25
      %v676 = vmul.f32 %v376, 0.25
      %v677 = vmul.f32 %v377, 0.25
      %v678 = vmul.f32 %v378, 0.25
      %v679 = vadd.f32 %v399, %v539
      %v680 = vadd.f32 %v400, %v540
      %v681 = vadd.f32 %v401, %v541
      %v682 = vadd.f32 %v402, %v542
      %v683 = vadd.f32 %v403, %v543
      %v684 = vadd.f32 %v404, %v544
      %v685 = vadd.f32 %v405, %v545
      %v686 = vadd.f32 %v406, %v546
      %v687 = vadd.f32 %v407, %v547
      %v688 = vadd.f32 %v408, %v548
      %v689 = vadd.f32 %v409, %v549
      %v690 = vadd.f32 %v410, %v550
      %v691 = vadd.f32 %v411, %v551
      %v692 = vadd.f32 %v412, %v552
      %v693 = vadd.f32 %v413, %v553
      %v694 = vadd.f32 %v414, %v554
      %v695 = vadd.f32 %v415, %v555
      %v696 = vadd.f32 %v416, %v556
      %v697 = vadd.f32 %v417, %v557
      %v698 = vadd.f32 %v418, %v558
      %v699 = vadd.f32 %v419, %v559
      %v700 = vadd.f32 %v420, %v560
      %v701 = vadd.f32 %v421, %v561
      %v702 = vadd.f32 %v422, %v562
      %v703 = vadd.f32 %v423, %v563
      %v704 = vadd.f32 %v424, %v564
      %v705 = vadd.f32 %v425, %v565
      %v706 = vadd.f32 %v426, %v566
      %v707 = vadd.f32 %v427, %v567
      %v708 = vadd.f32 %v428, %v568
      %v709 = vadd.f32 %v429, %v569
      %v710 = vadd.f32 %v430, %v570
      %v711 = vadd.f32 %v431, %v571
      %v712 = vadd.f32 %v432, %v572
      %v713 = vadd.f32 %v433, %v573
      %v714 = vadd.f32 %v434, %v574
      %v715 = vadd.f32 %v435, %v575
      %v716 = vadd.f32 %v436, %v576
      %v717 = vadd.f32 %v437, %v577
      %v718 = vadd.f32 %v438, %v578
      %v719 = vadd.f32 %v439, %v579
      %v720 = vadd.f32 %v440, %v580
      %v721 = vadd.f32 %v441, %v581
      %v722 = vadd.f32 %v442, %v582
      %v723 = vadd.f32 %v443, %v583
      %v724 = vadd.f32 %v444, %v584
      %v725 = vadd.f32 %v445, %v585
      %v726 = vadd.f32 %v446, %v586
      %v727 = vadd.f32 %v447, %v587
      %v728 = vadd.f32 %v448, %v588
      %v729 = vadd.f32 %v449, %v589
      %v730 = vadd.f32 %v450, %v590
      %v731 = vadd.f32 %v451, %v591
      %v732 = vadd.f32 %v452, %v592
      %v733 = vadd.f32 %v453, %v593
      %v734 = vadd.f32 %v454, %v594
      %v735 = vadd.f32 %v455, %v595
      %v736 = vadd.f32 %v456, %v596
      %v737 = vadd.f32 %v457, %v597
      %v738 = vadd.f32 %v458, %v598
      %v739 = vadd.f32 %v459, %v599
      %v740 = vadd.f32 %v460, %v600
      %v741 = vadd.f32 %v461, %v601
      %v742 = vadd.f32 %v462, %v602
      %v743 = vadd.f32 %v463, %v603
      %v744 = vadd.f32 %v464, %v604
      %v745 = vadd.f32 %v465, %v605
      %v746 = vadd.f32 %v466, %v606
      %v747 = vadd.f32 %v467, %v607
      %v748 = vadd.f32 %v468, %v608
      %v749 = vadd.f32 %v469, %v609
      %v750 = vadd.f32 %v470, %v610
      %v751 = vadd.f32 %v471, %v611
      %v752 = vadd.f32 %v472, %v612
      %v753 = vadd.f32 %v473, %v613
      %v754 = vadd.f32 %v474, %v614
      %v755 = vadd.f32 %v475, %v615
      %v756 = vadd.f32 %v476, %v616
      %v757 = vadd.f32 %v477, %v617
      %v758 = vadd.f32 %v478, %v618
      %v759 = vadd.f32 %v479, %v619
      %v760 = vadd.f32 %v480, %v620
      %v761 = vadd.f32 %v481, %v621
      %v762 = vadd.f32 %v482, %v622
      %v763 = vadd.f32 %v483, %v623
      %v764 = vadd.f32 %v484, %v624
      %v765 = vadd.f32 %v485, %v625
      %v766 = vadd.f32 %v486, %v626
      %v767 = vadd.f32 %v487, %v627
      %v768 = vadd.f32 %v488, %v628
      %v769 = vadd.f32 %v489, %v629
      %v770 = vadd.f32 %v490, %v630
      %v771 = vadd.f32 %v491, %v631
      %v772 = vadd.f32 %v492, %v632
      %v773 = vadd.f32 %v493, %v633
      %v774 = vadd.f32 %v494, %v634
      %v775 = vadd.f32 %v495, %v635
      %v776 = vadd.f32 %v496, %v636
      %v777 = vadd.f32 %v497, %v637
      %v778 = vadd.f32 %v498, %v638
      %v779 = vadd.f32 %v499, %v639
      %v780 = vadd.f32 %v500, %v640
      %v781 = vadd.f32 %v501, %v641
      %v782 = vadd.f32 %v502, %v642
      %v783 = vadd.f32 %v503, %v643
      %v784 = vadd.f32 %v504, %v644
      %v785 = vadd.f32 %v505, %v645
      %v786 = vadd.f32 %v506, %v646
      %v787 = vadd.f32 %v507, %v647
      %v788 = vadd.f32 %v508, %v648
      %v789 = vadd.f32 %v509, %v649
      %v790 = vadd.f32 %v510, %v650
      %v791 = vadd.f32 %v511, %v651
      %v792 = vadd.f32 %v512, %v652
      %v793 = vadd.f32 %v513, %v653
      %v794 = vadd.f32 %v514, %v654
      %v795 = vadd.f32 %v515, %v655
      %v796 = vadd.f32 %v516, %v656
      %v797 = vadd.f32 %v517, %v657
      %v798 = vadd.f32 %v518, %v658
      %v799 = vadd.f32 %v519, %v659
      %v800 = vadd.f32 %v520, %v660
      %v801 = vadd.f32 %v521, %v661
      %v802 = vadd.f32 %v522, %v662
      %v803 = vadd.f32 %v523, %v663
      %v804 = vadd.f32 %v524, %v664
      %v805 = vadd.f32 %v525, %v665
      %v806 = vadd.f32 %v526, %v666
      %v807 = vadd.f32 %v527, %v667
      %v808 = vadd.f32 %v528, %v668
      %v809 = vadd.f32 %v529, %v669
      %v810 = vadd.f32 %v530, %v670
      %v811 = vadd.f32 %v531, %v671
      %v812 = vadd.f32 %v532, %v672
      %v813 = vadd.f32 %v533, %v673
      %v814 = vadd.f32 %v534, %v674
      %v815 = vadd.f32 %v535, %v675
      %v816 = vadd.f32 %v536, %v676
      %v817 = vadd.f32 %v537, %v677
      %v818 = vadd.f32 %v538, %v678
      %v819 = vmul.f32 %v199, 0.25
      %v820 = vmul.f32 %v200, 0.25
      %v821 = vmul.f32 %v201, 0.25
      %v822 = vmul.f32 %v202, 0.25
      %v823 = vmul.f32 %v203, 0.25
      %v824 = vmul.f32 %v204, 0.25
      %v825 = vmul.f32 %v205, 0.25
      %v826 = vmul.f32 %v206, 0.25
      %v827 = vmul.f32 %v207, 0.25
      %v828 = vmul.f32 %v208, 0.25
      %v829 = vmul.f32 %v209, 0.25
      %v830 = vmul.f32 %v210, 0.25
      %v831 = vmul.f32 %v211, 0.25
      %v832 = vmul.f32 %v212, 0.25
      %v833 = vmul.f32 %v213, 0.25
      %v834 = vmul.f32 %v214, 0.25
      %v835 = vmul.f32 %v215, 0.25
      %v836 = vmul.f32 %v216, 0.25
      %v837 = vmul.f32 %v217, 0.25
      %v838 = vmul.f32 %v218, 0.25
      %v839 = vmul.f32 %v219, 0.25
      %v840 = vmul.f32 %v220, 0.25
      %v841 = vmul.f32 %v221, 0.25
      %v842 = vmul.f32 %v222, 0.25
      %v843 = vmul.f32 %v223, 0.25
      %v844 = vmul.f32 %v224, 0.25
      %v845 = vmul.f32 %v225, 0.25
      %v846 = vmul.f32 %v226, 0.25
      %v847 = vmul.f32 %v227, 0.25
      %v848 = vmul.f32 %v228, 0.25
      %v849 = vmul.f32 %v229, 0.25
      %v850 = vmul.f32 %v230, 0.25
      %v851 = vmul.f32 %v231, 0.25
      %v852 = vmul.f32 %v232, 0.25
      %v853 = vmul.f32 %v233, 0.25
      %v854 = vmul.f32 %v234, 0.25
      %v855 = vmul.f32 %v235, 0.25
      %v856 = vmul.f32 %v236, 0.25
      %v857 = vmul.f32 %v237, 0.25
      %v858 = vmul.f32 %v238, 0.25
      %v859 = vmul.f32 %v359, 0.75
      %v860 = vmul.f32 %v360, 0.75
      %v861 = vmul.f32 %v361, 0.75
      %v862 = vmul.f32 %v362, 0.75
      %v863 = vmul.f32 %v363, 0.75
      %v864 = vmul.f32 %v364, 0.75
      %v865 = vmul.f32 %v365, 0.75
      %v866 = vmul.f32 %v366, 0.75
      %v867 = vmul.f32 %v367, 0.75
      %v868 = vmul.f32 %v368, 0.75
      %v869 = vmul.f32 %v369, 0.75
      %v870 = vmul.f32 %v370, 0.75
      %v871 = vmul.f32 %v371, 0.75
      %v872 = vmul.f32 %v372, 0.75
      %v873 = vmul.f32 %v373, 0.75
      %v874 = vmul.f32 %v374, 0.75
      %v875 = vmul.f32 %v375, 0.75
      %v876 = vmul.f32 %v376, 0.75
      %v877 = vmul.f32 %v377, 0.75
      %v878 = vmul.f32 %v378, 0.75
      %v879 = vadd.f32 %v819, %v399
      %v880 = vadd.f32 %v820, %v400
      %v881 = vadd.f32 %v821, %v401
      %v882 = vadd.f32 %v822, %v402
      %v883 = vadd.f32 %v823, %v403
      %v884 = vadd.f32 %v824, %v404
      %v885 = vadd.f32 %v825, %v405
      %v886 = vadd.f32 %v826, %v406
      %v887 = vadd.f32 %v827, %v407
      %v888 = vadd.f32 %v828, %v408
      %v889 = vadd.f32 %v829, %v409
      %v890 = vadd.f32 %v830, %v410
      %v891 = vadd.f32 %v831, %v411
      %v892 = vadd.f32 %v832, %v412
      %v893 = vadd.f32 %v833, %v413
      %v894 = vadd.f32 %v834, %v414
      %v895 = vadd.f32 %v835, %v415
      %v896 = vadd.f32 %v836, %v416
      %v897 = vadd.f32 %v837, %v417
      %v898 = vadd.f32 %v838, %v418
      %v899 = vadd.f32 %v839, %v419
      %v900 = vadd.f32 %v840, %v420
      %v901 = vadd.f32 %v841, %v421
      %v902 = vadd.f32 %v842, %v422
      %v903 = vadd.f32 %v843, %v423
      %v904 = vadd.f32 %v844, %v424
      %v905 = vadd.f32 %v845, %v425
      %v906 = vadd.f32 %v846, %v426
      %v907 = vadd.f32 %v847, %v427
      %v908 = vadd.f32 %v848, %v428
      %v909 = vadd.f32 %v849, %v429
      %v910 = vadd.f32 %v850, %v430
      %v911 = vadd.f32 %v851, %v431
      %v912 = vadd.f32 %v852, %v432
      %v913 = vadd.f32 %v853, %v433
      %v914 = vadd.f32 %v854, %v434
      %v915 = vadd.f32 %v855, %v435
      %v916 = vadd.f32 %v856, %v436
      %v917 = vadd.f32 %v857, %v437
      %v918 = vadd.f32 %v858, %v438
      %v919 = vadd.f32 %v539, %v439
      %v920 = vadd.f32 %v540, %v440
      %v921 = vadd.f32 %v541, %v441
      %v922 = vadd.f32 %v542, %v442
      %v923 = vadd.f32 %v543, %v443
      %v924 = vadd.f32 %v544, %v444
      %v925 = vadd.f32 %v545, %v445
      %v926 = vadd.f32 %v546, %v446
      %v927 = vadd.f32 %v547, %v447
      %v928 = vadd.f32 %v548, %v448
      %v929 = vadd.f32 %v549, %v449
      %v930 = vadd.f32 %v550, %v450
      %v931 = vadd.f32 %v551, %v451
      %v932 = vadd.f32 %v552, %v452
      %v933 = vadd.f32 %v553, %v453
      %v934 = vadd.f32 %v554, %v454
      %v935 = vadd.f32 %v555, %v455
      %v936 = vadd.f32 %v556, %v456
      %v937 = vadd.f32 %v557, %v457
      %v938 = vadd.f32 %v558, %v458
      %v939 = vadd.f32 %v559, %v459
      %v940 = vadd.f32 %v560, %v460
      %v941 = vadd.f32 %v561, %v461
      %v942 = vadd.f32 %v562, %v462
      %v943 = vadd.f32 %v563, %v463
      %v944 = vadd.f32 %v564, %v464
      %v945 = vadd.f32 %v565, %v465
      %v946 = vadd.f32 %v566, %v466
      %v947 = vadd.f32 %v567, %v467
      %v948 = vadd.f32 %v568, %v468
      %v949 = vadd.f32 %v569, %v469
      %v950 = vadd.f32 %v570, %v470
      %v951 = vadd.f32 %v571, %v471
      %v952 = vadd.f32 %v572, %v472
      %v953 = vadd.f32 %v573, %v473
      %v954 = vadd.f32 %v574, %v474
      %v955 = vadd.f32 %v575, %v475
      %v956 = vadd.f32 %v576, %v476
      %v957 = vadd.f32 %v577, %v477
      %v958 = vadd.f32 %v578, %v478
      %v959 = vadd.f32 %v579, %v479
      %v960 = vadd.f32 %v580, %v480
      %v961 = vadd.f32 %v581, %v481
      %v962 = vadd.f32 %v582, %v482
      %v963 = vadd.f32 %v583, %v483
      %v964 = vadd.f32 %v584, %v484
      %v965 = vadd.f32 %v585, %v485
      %v966 = vadd.f32 %v586, %v486
      %v967 = vadd.f32 %v587, %v487
      %v968 = vadd.f32 %v588, %v488
      %v969 = vadd.f32 %v589, %v489
      %v970 = vadd.f32 %v590, %v490
      %v971 = vadd.f32 %v591, %v491
      %v972 = vadd.f32 %v592, %v492
      %v973 = vadd.f32 %v593, %v493
      %v974 = vadd.f32 %v594, %v494
      %v975 = vadd.f32 %v595, %v495
      %v976 = vadd.f32 %v596, %v496
      %v977 = vadd.f32 %v597, %v497
      %v978 = vadd.f32 %v598, %v498
      %v979 = vadd.f32 %v599, %v499
      %v980 = vadd.f32 %v600, %v500
      %v981 = vadd.f32 %v601, %v501
      %v982 = vadd.f32 %v602, %v502
      %v983 = vadd.f32 %v603, %v503
      %v984 = vadd.f32 %v604, %v504
      %v985 = vadd.f32 %v605, %v505
      %v986 = vadd.f32 %v606, %v506
      %v987 = vadd.f32 %v607, %v507
      %v988 = vadd.f32 %v608, %v508
      %v989 = vadd.f32 %v609, %v509
      %v990 = vadd.f32 %v610, %v510
      %v991 = vadd.f32 %v611, %v511
      %v992 = vadd.f32 %v612, %v512
      %v993 = vadd.f32 %v613, %v513
      %v994 = vadd.f32 %v614, %v514
      %v995 = vadd.f32 %v615, %v515
      %v996 = vadd.f32 %v616, %v516
      %v997 = vadd.f32 %v617, %v517
      %v998 = vadd.f32 %v618, %v518
      %v999 = vadd.f32 %v619, %v519
      %v1000 = vadd.f32 %v620, %v520
      %v1001 = vadd.f32 %v621, %v521
      %v1002 = vadd.f32 %v622, %v522
      %v1003 = vadd.f32 %v623, %v523
      %v1004 = vadd.f32 %v624, %v524
      %v1005 = vadd.f32 %v625, %v525
      %v1006 = vadd.f32 %v626, %v526
      %v1007 = vadd.f32 %v627, %v527
      %v1008 = vadd.f32 %v628, %v528
      %v1009 = vadd.f32 %v629, %v529
      %v1010 = vadd.f32 %v630, %v530
      %v1011 = vadd.f32 %v631, %v531
      %v1012 = vadd.f32 %v632, %v532
      %v1013 = vadd.f32 %v633, %v533
      %v1014 = vadd.f32 %v634, %v534
      %v1015 = vadd.f32 %v635, %v535
      %v1016 = vadd.f32 %v636, %v536
      %v1017 = vadd.f32 %v637, %v537
      %v1018 = vadd.f32 %v638, %v538
      %v1019 = vadd.f32 %v639, %v859
      %v1020 = vadd.f32 %v640, %v860
      %v1021 = vadd.f32 %v641, %v861
      %v1022 = vadd.f32 %v642, %v862
      %v1023 = vadd.f32 %v643, %v863
      %v1024 = vadd.f32 %v644, %v864
      %v1025 = vadd.f32 %v645, %v865
      %v1026 = vadd.f32 %v646, %v866
      %v1027 = vadd.f32 %v647, %v867
      %v1028 = vadd.f32 %v648, %v868
      %v1029 = vadd.f32 %v649, %v869
      %v1030 = vadd.f32 %v650, %v870
      %v1031 = vadd.f32 %v651, %v871
      %v1032 = vadd.f32 %v652, %v872
      %v1033 = vadd.f32 %v653, %v873
      %v1034 = vadd.f32 %v654, %v874
      %v1035 = vadd.f32 %v655, %v875
      %v1036 = vadd.f32 %v656, %v876
      %v1037 = vadd.f32 %v657, %v877
      %v1038 = vadd.f32 %v658, %v878
      %v1039 = vmul.f32 %v379, 0.25
      %v1040 = vmul.f32 %v380, 0.25
      %v1041 = vmul.f32 %v381, 0.25
      %v1042 = vmul.f32 %v382, 0.25
      %v1043 = vmul.f32 %v383, 0.25
      %v1044 = vmul.f32 %v384, 0.25
      %v1045 = vmul.f32 %v385, 0.25
      %v1046 = vmul.f32 %v386, 0.25
      %v1047 = vmul.f32 %v387, 0.25
      %v1048 = vmul.f32 %v388, 0.25
      %v1049 = vmul.f32 %v389, 0.25
      %v1050 = vmul.f32 %v390, 0.25
      %v1051 = vmul.f32 %v391, 0.25
      %v1052 = vmul.f32 %v392, 0.25
      %v1053 = vmul.f32 %v393, 0.25
      %v1054 = vmul.f32 %v394, 0.25
      %v1055 = vmul.f32 %v395, 0.25
      %v1056 = vmul.f32 %v396, 0.25
      %v1057 = vmul.f32 %v397, 0.25
      %v1058 = vmul.f32 %v398, 0.25
      %v1059 = vadd.f32 %v859, %v1039
      %v1060 = vadd.f32 %v860, %v1040
      %v1061 = vadd.f32 %v861, %v1041
      %v1062 = vadd.f32 %v862, %v1042
      %v1063 = vadd.f32 %v863, %v1043
      %v1064 = vadd.f32 %v864, %v1044
      %v1065 = vadd.f32 %v865, %v1045
      %v1066 = vadd.f32 %v866, %v1046
      %v1067 = vadd.f32 %v867, %v1047
      %v1068 = vadd.f32 %v868, %v1048
      %v1069 = vadd.f32 %v869, %v1049
      %v1070 = vadd.f32 %v870, %v1050
      %v1071 = vadd.f32 %v871, %v1051
      %v1072 = vadd.f32 %v872, %v1052
      %v1073 = vadd.f32 %v873, %v1053
      %v1074 = vadd.f32 %v874, %v1054
      %v1075 = vadd.f32 %v875, %v1055
      %v1076 = vadd.f32 %v876, %v1056
      %v1077 = vadd.f32 %v877, %v1057
      %v1078 = vadd.f32 %v878, %v1058
      %1239 = vrot.lane.b32.xlu0 %v879, 4
      %v1240 = vpop.permute.xlu0 %1239
      %1241 = vrot.lane.b32.xlu0 %v880, 4
      %v1242 = vpop.permute.xlu0 %1241
      %1243 = vrot.lane.b32.xlu0 %v881, 4
      %v1244 = vpop.permute.xlu0 %1243
      %1245 = vrot.lane.b32.xlu0 %v882, 4
      %v1246 = vpop.permute.xlu0 %1245
      %1247 = vrot.lane.b32.xlu0 %v883, 4
      %v1248 = vpop.permute.xlu0 %1247
      %1249 = vrot.lane.b32.xlu0 %v884, 4
      %v1250 = vpop.permute.xlu0 %1249
      %1251 = vrot.lane.b32.xlu0 %v885, 4
      %v1252 = vpop.permute.xlu0 %1251
      %1253 = vrot.lane.b32.xlu0 %v886, 4
      %v1254 = vpop.permute.xlu0 %1253
      %1255 = vrot.lane.b32.xlu0 %v887, 4
      %v1256 = vpop.permute.xlu0 %1255
      %1257 = vrot.lane.b32.xlu0 %v888, 4
      %v1258 = vpop.permute.xlu0 %1257
      %1259 = vrot.lane.b32.xlu0 %v889, 4
      %v1260 = vpop.permute.xlu0 %1259
      %1261 = vrot.lane.b32.xlu0 %v890, 4
      %v1262 = vpop.permute.xlu0 %1261
      %1263 = vrot.lane.b32.xlu0 %v891, 4
      %v1264 = vpop.permute.xlu0 %1263
      %1265 = vrot.lane.b32.xlu0 %v892, 4
      %v1266 = vpop.permute.xlu0 %1265
      %1267 = vrot.lane.b32.xlu0 %v893, 4
      %v1268 = vpop.permute.xlu0 %1267
      %1269 = vrot.lane.b32.xlu0 %v894, 4
      %v1270 = vpop.permute.xlu0 %1269
      %1271 = vrot.lane.b32.xlu0 %v895, 4
      %v1272 = vpop.permute.xlu0 %1271
      %1273 = vrot.lane.b32.xlu0 %v896, 4
      %v1274 = vpop.permute.xlu0 %1273
      %1275 = vrot.lane.b32.xlu0 %v897, 4
      %v1276 = vpop.permute.xlu0 %1275
      %1277 = vrot.lane.b32.xlu0 %v898, 4
      %v1278 = vpop.permute.xlu0 %1277
      %1279 = vrot.lane.b32.xlu0 %v899, 4
      %v1280 = vpop.permute.xlu0 %1279
      %1281 = vrot.lane.b32.xlu0 %v900, 4
      %v1282 = vpop.permute.xlu0 %1281
      %1283 = vrot.lane.b32.xlu0 %v901, 4
      %v1284 = vpop.permute.xlu0 %1283
      %1285 = vrot.lane.b32.xlu0 %v902, 4
      %v1286 = vpop.permute.xlu0 %1285
      %1287 = vrot.lane.b32.xlu0 %v903, 4
      %v1288 = vpop.permute.xlu0 %1287
      %1289 = vrot.lane.b32.xlu0 %v904, 4
      %v1290 = vpop.permute.xlu0 %1289
      %1291 = vrot.lane.b32.xlu0 %v905, 4
      %v1292 = vpop.permute.xlu0 %1291
      %1293 = vrot.lane.b32.xlu0 %v906, 4
      %v1294 = vpop.permute.xlu0 %1293
      %1295 = vrot.lane.b32.xlu0 %v907, 4
      %v1296 = vpop.permute.xlu0 %1295
      %1297 = vrot.lane.b32.xlu0 %v908, 4
      %v1298 = vpop.permute.xlu0 %1297
      %1299 = vrot.lane.b32.xlu0 %v909, 4
      %v1300 = vpop.permute.xlu0 %1299
      %1301 = vrot.lane.b32.xlu0 %v910, 4
      %v1302 = vpop.permute.xlu0 %1301
      %1303 = vrot.lane.b32.xlu0 %v911, 4
      %v1304 = vpop.permute.xlu0 %1303
      %1305 = vrot.lane.b32.xlu0 %v912, 4
      %v1306 = vpop.permute.xlu0 %1305
      %1307 = vrot.lane.b32.xlu0 %v913, 4
      %v1308 = vpop.permute.xlu0 %1307
      %1309 = vrot.lane.b32.xlu0 %v914, 4
      %v1310 = vpop.permute.xlu0 %1309
      %1311 = vrot.lane.b32.xlu0 %v915, 4
      %v1312 = vpop.permute.xlu0 %1311
      %1313 = vrot.lane.b32.xlu0 %v916, 4
      %v1314 = vpop.permute.xlu0 %1313
      %1315 = vrot.lane.b32.xlu0 %v917, 4
      %v1316 = vpop.permute.xlu0 %1315
      %1317 = vrot.lane.b32.xlu0 %v918, 4
      %v1318 = vpop.permute.xlu0 %1317
      %1319 = vrot.lane.b32.xlu0 %v919, 4
      %v1320 = vpop.permute.xlu0 %1319
      %1321 = vrot.lane.b32.xlu0 %v920, 4
      %v1322 = vpop.permute.xlu0 %1321
      %1323 = vrot.lane.b32.xlu0 %v921, 4
      %v1324 = vpop.permute.xlu0 %1323
      %1325 = vrot.lane.b32.xlu0 %v922, 4
      %v1326 = vpop.permute.xlu0 %1325
      %1327 = vrot.lane.b32.xlu0 %v923, 4
      %v1328 = vpop.permute.xlu0 %1327
      %1329 = vrot.lane.b32.xlu0 %v924, 4
      %v1330 = vpop.permute.xlu0 %1329
      %1331 = vrot.lane.b32.xlu0 %v925, 4
      %v1332 = vpop.permute.xlu0 %1331
      %1333 = vrot.lane.b32.xlu0 %v926, 4
      %v1334 = vpop.permute.xlu0 %1333
      %1335 = vrot.lane.b32.xlu0 %v927, 4
      %v1336 = vpop.permute.xlu0 %1335
      %1337 = vrot.lane.b32.xlu0 %v928, 4
      %v1338 = vpop.permute.xlu0 %1337
      %1339 = vrot.lane.b32.xlu0 %v929, 4
      %v1340 = vpop.permute.xlu0 %1339
      %1341 = vrot.lane.b32.xlu0 %v930, 4
      %v1342 = vpop.permute.xlu0 %1341
      %1343 = vrot.lane.b32.xlu0 %v931, 4
      %v1344 = vpop.permute.xlu0 %1343
      %1345 = vrot.lane.b32.xlu0 %v932, 4
      %v1346 = vpop.permute.xlu0 %1345
      %1347 = vrot.lane.b32.xlu0 %v933, 4
      %v1348 = vpop.permute.xlu0 %1347
      %1349 = vrot.lane.b32.xlu0 %v934, 4
      %v1350 = vpop.permute.xlu0 %1349
      %1351 = vrot.lane.b32.xlu0 %v935, 4
      %v1352 = vpop.permute.xlu0 %1351
      %1353 = vrot.lane.b32.xlu0 %v936, 4
      %v1354 = vpop.permute.xlu0 %1353
      %1355 = vrot.lane.b32.xlu0 %v937, 4
      %v1356 = vpop.permute.xlu0 %1355
      %1357 = vrot.lane.b32.xlu0 %v938, 4
      %v1358 = vpop.permute.xlu0 %1357
      %1359 = vrot.lane.b32.xlu0 %v939, 4
      %v1360 = vpop.permute.xlu0 %1359
      %1361 = vrot.lane.b32.xlu0 %v940, 4
      %v1362 = vpop.permute.xlu0 %1361
      %1363 = vrot.lane.b32.xlu0 %v941, 4
      %v1364 = vpop.permute.xlu0 %1363
      %1365 = vrot.lane.b32.xlu0 %v942, 4
      %v1366 = vpop.permute.xlu0 %1365
      %1367 = vrot.lane.b32.xlu0 %v943, 4
      %v1368 = vpop.permute.xlu0 %1367
      %1369 = vrot.lane.b32.xlu0 %v944, 4
      %v1370 = vpop.permute.xlu0 %1369
      %1371 = vrot.lane.b32.xlu0 %v945, 4
      %v1372 = vpop.permute.xlu0 %1371
      %1373 = vrot.lane.b32.xlu0 %v946, 4
      %v1374 = vpop.permute.xlu0 %1373
      %1375 = vrot.lane.b32.xlu0 %v947, 4
      %v1376 = vpop.permute.xlu0 %1375
      %1377 = vrot.lane.b32.xlu0 %v948, 4
      %v1378 = vpop.permute.xlu0 %1377
      %1379 = vrot.lane.b32.xlu0 %v949, 4
      %v1380 = vpop.permute.xlu0 %1379
      %1381 = vrot.lane.b32.xlu0 %v950, 4
      %v1382 = vpop.permute.xlu0 %1381
      %1383 = vrot.lane.b32.xlu0 %v951, 4
      %v1384 = vpop.permute.xlu0 %1383
      %1385 = vrot.lane.b32.xlu0 %v952, 4
      %v1386 = vpop.permute.xlu0 %1385
      %1387 = vrot.lane.b32.xlu0 %v953, 4
      %v1388 = vpop.permute.xlu0 %1387
      %1389 = vrot.lane.b32.xlu0 %v954, 4
      %v1390 = vpop.permute.xlu0 %1389
      %1391 = vrot.lane.b32.xlu0 %v955, 4
      %v1392 = vpop.permute.xlu0 %1391
      %1393 = vrot.lane.b32.xlu0 %v956, 4
      %v1394 = vpop.permute.xlu0 %1393
      %1395 = vrot.lane.b32.xlu0 %v957, 4
      %v1396 = vpop.permute.xlu0 %1395
      %1397 = vrot.lane.b32.xlu0 %v958, 4
      %v1398 = vpop.permute.xlu0 %1397
      %1399 = vrot.lane.b32.xlu0 %v959, 4
      %v1400 = vpop.permute.xlu0 %1399
      %1401 = vrot.lane.b32.xlu0 %v960, 4
      %v1402 = vpop.permute.xlu0 %1401
      %1403 = vrot.lane.b32.xlu0 %v961, 4
      %v1404 = vpop.permute.xlu0 %1403
      %1405 = vrot.lane.b32.xlu0 %v962, 4
      %v1406 = vpop.permute.xlu0 %1405
      %1407 = vrot.lane.b32.xlu0 %v963, 4
      %v1408 = vpop.permute.xlu0 %1407
      %1409 = vrot.lane.b32.xlu0 %v964, 4
      %v1410 = vpop.permute.xlu0 %1409
      %1411 = vrot.lane.b32.xlu0 %v965, 4
      %v1412 = vpop.permute.xlu0 %1411
      %1413 = vrot.lane.b32.xlu0 %v966, 4
      %v1414 = vpop.permute.xlu0 %1413
      %1415 = vrot.lane.b32.xlu0 %v967, 4
      %v1416 = vpop.permute.xlu0 %1415
      %1417 = vrot.lane.b32.xlu0 %v968, 4
      %v1418 = vpop.permute.xlu0 %1417
      %1419 = vrot.lane.b32.xlu0 %v969, 4
      %v1420 = vpop.permute.xlu0 %1419
      %1421 = vrot.lane.b32.xlu0 %v970, 4
      %v1422 = vpop.permute.xlu0 %1421
      %1423 = vrot.lane.b32.xlu0 %v971, 4
      %v1424 = vpop.permute.xlu0 %1423
      %1425 = vrot.lane.b32.xlu0 %v972, 4
      %v1426 = vpop.permute.xlu0 %1425
      %1427 = vrot.lane.b32.xlu0 %v973, 4
      %v1428 = vpop.permute.xlu0 %1427
      %1429 = vrot.lane.b32.xlu0 %v974, 4
      %v1430 = vpop.permute.xlu0 %1429
      %1431 = vrot.lane.b32.xlu0 %v975, 4
      %v1432 = vpop.permute.xlu0 %1431
      %1433 = vrot.lane.b32.xlu0 %v976, 4
      %v1434 = vpop.permute.xlu0 %1433
      %1435 = vrot.lane.b32.xlu0 %v977, 4
      %v1436 = vpop.permute.xlu0 %1435
      %1437 = vrot.lane.b32.xlu0 %v978, 4
      %v1438 = vpop.permute.xlu0 %1437
      %1439 = vrot.lane.b32.xlu0 %v979, 4
      %v1440 = vpop.permute.xlu0 %1439
      %1441 = vrot.lane.b32.xlu0 %v980, 4
      %v1442 = vpop.permute.xlu0 %1441
      %1443 = vrot.lane.b32.xlu0 %v981, 4
      %v1444 = vpop.permute.xlu0 %1443
      %1445 = vrot.lane.b32.xlu0 %v982, 4
      %v1446 = vpop.permute.xlu0 %1445
      %1447 = vrot.lane.b32.xlu0 %v983, 4
      %v1448 = vpop.permute.xlu0 %1447
      %1449 = vrot.lane.b32.xlu0 %v984, 4
      %v1450 = vpop.permute.xlu0 %1449
      %1451 = vrot.lane.b32.xlu0 %v985, 4
      %v1452 = vpop.permute.xlu0 %1451
      %1453 = vrot.lane.b32.xlu0 %v986, 4
      %v1454 = vpop.permute.xlu0 %1453
      %1455 = vrot.lane.b32.xlu0 %v987, 4
      %v1456 = vpop.permute.xlu0 %1455
      %1457 = vrot.lane.b32.xlu0 %v988, 4
      %v1458 = vpop.permute.xlu0 %1457
      %1459 = vrot.lane.b32.xlu0 %v989, 4
      %v1460 = vpop.permute.xlu0 %1459
      %1461 = vrot.lane.b32.xlu0 %v990, 4
      %v1462 = vpop.permute.xlu0 %1461
      %1463 = vrot.lane.b32.xlu0 %v991, 4
      %v1464 = vpop.permute.xlu0 %1463
      %1465 = vrot.lane.b32.xlu0 %v992, 4
      %v1466 = vpop.permute.xlu0 %1465
      %1467 = vrot.lane.b32.xlu0 %v993, 4
      %v1468 = vpop.permute.xlu0 %1467
      %1469 = vrot.lane.b32.xlu0 %v994, 4
      %v1470 = vpop.permute.xlu0 %1469
      %1471 = vrot.lane.b32.xlu0 %v995, 4
      %v1472 = vpop.permute.xlu0 %1471
      %1473 = vrot.lane.b32.xlu0 %v996, 4
      %v1474 = vpop.permute.xlu0 %1473
      %1475 = vrot.lane.b32.xlu0 %v997, 4
      %v1476 = vpop.permute.xlu0 %1475
      %1477 = vrot.lane.b32.xlu0 %v998, 4
      %v1478 = vpop.permute.xlu0 %1477
      %1479 = vrot.lane.b32.xlu0 %v999, 4
      %v1480 = vpop.permute.xlu0 %1479
      %1481 = vrot.lane.b32.xlu0 %v1000, 4
      %v1482 = vpop.permute.xlu0 %1481
      %1483 = vrot.lane.b32.xlu0 %v1001, 4
      %v1484 = vpop.permute.xlu0 %1483
      %1485 = vrot.lane.b32.xlu0 %v1002, 4
      %v1486 = vpop.permute.xlu0 %1485
      %1487 = vrot.lane.b32.xlu0 %v1003, 4
      %v1488 = vpop.permute.xlu0 %1487
      %1489 = vrot.lane.b32.xlu0 %v1004, 4
      %v1490 = vpop.permute.xlu0 %1489
      %1491 = vrot.lane.b32.xlu0 %v1005, 4
      %v1492 = vpop.permute.xlu0 %1491
      %1493 = vrot.lane.b32.xlu0 %v1006, 4
      %v1494 = vpop.permute.xlu0 %1493
      %1495 = vrot.lane.b32.xlu0 %v1007, 4
      %v1496 = vpop.permute.xlu0 %1495
      %1497 = vrot.lane.b32.xlu0 %v1008, 4
      %v1498 = vpop.permute.xlu0 %1497
      %1499 = vrot.lane.b32.xlu0 %v1009, 4
      %v1500 = vpop.permute.xlu0 %1499
      %1501 = vrot.lane.b32.xlu0 %v1010, 4
      %v1502 = vpop.permute.xlu0 %1501
      %1503 = vrot.lane.b32.xlu0 %v1011, 4
      %v1504 = vpop.permute.xlu0 %1503
      %1505 = vrot.lane.b32.xlu0 %v1012, 4
      %v1506 = vpop.permute.xlu0 %1505
      %1507 = vrot.lane.b32.xlu0 %v1013, 4
      %v1508 = vpop.permute.xlu0 %1507
      %1509 = vrot.lane.b32.xlu0 %v1014, 4
      %v1510 = vpop.permute.xlu0 %1509
      %1511 = vrot.lane.b32.xlu0 %v1015, 4
      %v1512 = vpop.permute.xlu0 %1511
      %1513 = vrot.lane.b32.xlu0 %v1016, 4
      %v1514 = vpop.permute.xlu0 %1513
      %1515 = vrot.lane.b32.xlu0 %v1017, 4
      %v1516 = vpop.permute.xlu0 %1515
      %1517 = vrot.lane.b32.xlu0 %v1018, 4
      %v1518 = vpop.permute.xlu0 %1517
      %1519 = vrot.lane.b32.xlu0 %v1019, 4
      %v1520 = vpop.permute.xlu0 %1519
      %1521 = vrot.lane.b32.xlu0 %v1020, 4
      %v1522 = vpop.permute.xlu0 %1521
      %1523 = vrot.lane.b32.xlu0 %v1021, 4
      %v1524 = vpop.permute.xlu0 %1523
      %1525 = vrot.lane.b32.xlu0 %v1022, 4
      %v1526 = vpop.permute.xlu0 %1525
      %1527 = vrot.lane.b32.xlu0 %v1023, 4
      %v1528 = vpop.permute.xlu0 %1527
      %1529 = vrot.lane.b32.xlu0 %v1024, 4
      %v1530 = vpop.permute.xlu0 %1529
      %1531 = vrot.lane.b32.xlu0 %v1025, 4
      %v1532 = vpop.permute.xlu0 %1531
      %1533 = vrot.lane.b32.xlu0 %v1026, 4
      %v1534 = vpop.permute.xlu0 %1533
      %1535 = vrot.lane.b32.xlu0 %v1027, 4
      %v1536 = vpop.permute.xlu0 %1535
      %1537 = vrot.lane.b32.xlu0 %v1028, 4
      %v1538 = vpop.permute.xlu0 %1537
      %1539 = vrot.lane.b32.xlu0 %v1029, 4
      %v1540 = vpop.permute.xlu0 %1539
      %1541 = vrot.lane.b32.xlu0 %v1030, 4
      %v1542 = vpop.permute.xlu0 %1541
      %1543 = vrot.lane.b32.xlu0 %v1031, 4
      %v1544 = vpop.permute.xlu0 %1543
      %1545 = vrot.lane.b32.xlu0 %v1032, 4
      %v1546 = vpop.permute.xlu0 %1545
      %1547 = vrot.lane.b32.xlu0 %v1033, 4
      %v1548 = vpop.permute.xlu0 %1547
      %1549 = vrot.lane.b32.xlu0 %v1034, 4
      %v1550 = vpop.permute.xlu0 %1549
      %1551 = vrot.lane.b32.xlu0 %v1035, 4
      %v1552 = vpop.permute.xlu0 %1551
      %1553 = vrot.lane.b32.xlu0 %v1036, 4
      %v1554 = vpop.permute.xlu0 %1553
      %1555 = vrot.lane.b32.xlu0 %v1037, 4
      %v1556 = vpop.permute.xlu0 %1555
      %1557 = vrot.lane.b32.xlu0 %v1038, 4
      %v1558 = vpop.permute.xlu0 %1557
      %1879 = vrot.lane.b32.xlu0 %v679, 8
      %v1880 = vpop.permute.xlu0 %1879
      %1881 = vrot.lane.b32.xlu0 %v680, 8
      %v1882 = vpop.permute.xlu0 %1881
      %1883 = vrot.lane.b32.xlu0 %v681, 8
      %v1884 = vpop.permute.xlu0 %1883
      %1885 = vrot.lane.b32.xlu0 %v682, 8
      %v1886 = vpop.permute.xlu0 %1885
      %1887 = vrot.lane.b32.xlu0 %v683, 8
      %v1888 = vpop.permute.xlu0 %1887
      %1889 = vrot.lane.b32.xlu0 %v684, 8
      %v1890 = vpop.permute.xlu0 %1889
      %1891 = vrot.lane.b32.xlu0 %v685, 8
      %v1892 = vpop.permute.xlu0 %1891
      %1893 = vrot.lane.b32.xlu0 %v686, 8
      %v1894 = vpop.permute.xlu0 %1893
      %1895 = vrot.lane.b32.xlu0 %v687, 8
      %v1896 = vpop.permute.xlu0 %1895
      %1897 = vrot.lane.b32.xlu0 %v688, 8
      %v1898 = vpop.permute.xlu0 %1897
      %1899 = vrot.lane.b32.xlu0 %v689, 8
      %v1900 = vpop.permute.xlu0 %1899
      %1901 = vrot.lane.b32.xlu0 %v690, 8
      %v1902 = vpop.permute.xlu0 %1901
      %1903 = vrot.lane.b32.xlu0 %v691, 8
      %v1904 = vpop.permute.xlu0 %1903
      %1905 = vrot.lane.b32.xlu0 %v692, 8
      %v1906 = vpop.permute.xlu0 %1905
      %1907 = vrot.lane.b32.xlu0 %v693, 8
      %v1908 = vpop.permute.xlu0 %1907
      %1909 = vrot.lane.b32.xlu0 %v694, 8
      %v1910 = vpop.permute.xlu0 %1909
      %1911 = vrot.lane.b32.xlu0 %v695, 8
      %v1912 = vpop.permute.xlu0 %1911
      %1913 = vrot.lane.b32.xlu0 %v696, 8
      %v1914 = vpop.permute.xlu0 %1913
      %1915 = vrot.lane.b32.xlu0 %v697, 8
      %v1916 = vpop.permute.xlu0 %1915
      %1917 = vrot.lane.b32.xlu0 %v698, 8
      %v1918 = vpop.permute.xlu0 %1917
      %1919 = vrot.lane.b32.xlu0 %v699, 8
      %v1920 = vpop.permute.xlu0 %1919
      %1921 = vrot.lane.b32.xlu0 %v700, 8
      %v1922 = vpop.permute.xlu0 %1921
      %1923 = vrot.lane.b32.xlu0 %v701, 8
      %v1924 = vpop.permute.xlu0 %1923
      %1925 = vrot.lane.b32.xlu0 %v702, 8
      %v1926 = vpop.permute.xlu0 %1925
      %1927 = vrot.lane.b32.xlu0 %v703, 8
      %v1928 = vpop.permute.xlu0 %1927
      %1929 = vrot.lane.b32.xlu0 %v704, 8
      %v1930 = vpop.permute.xlu0 %1929
      %1931 = vrot.lane.b32.xlu0 %v705, 8
      %v1932 = vpop.permute.xlu0 %1931
      %1933 = vrot.lane.b32.xlu0 %v706, 8
      %v1934 = vpop.permute.xlu0 %1933
      %1935 = vrot.lane.b32.xlu0 %v707, 8
      %v1936 = vpop.permute.xlu0 %1935
      %1937 = vrot.lane.b32.xlu0 %v708, 8
      %v1938 = vpop.permute.xlu0 %1937
      %1939 = vrot.lane.b32.xlu0 %v709, 8
      %v1940 = vpop.permute.xlu0 %1939
      %1941 = vrot.lane.b32.xlu0 %v710, 8
      %v1942 = vpop.permute.xlu0 %1941
      %1943 = vrot.lane.b32.xlu0 %v711, 8
      %v1944 = vpop.permute.xlu0 %1943
      %1945 = vrot.lane.b32.xlu0 %v712, 8
      %v1946 = vpop.permute.xlu0 %1945
      %1947 = vrot.lane.b32.xlu0 %v713, 8
      %v1948 = vpop.permute.xlu0 %1947
      %1949 = vrot.lane.b32.xlu0 %v714, 8
      %v1950 = vpop.permute.xlu0 %1949
      %1951 = vrot.lane.b32.xlu0 %v715, 8
      %v1952 = vpop.permute.xlu0 %1951
      %1953 = vrot.lane.b32.xlu0 %v716, 8
      %v1954 = vpop.permute.xlu0 %1953
      %1955 = vrot.lane.b32.xlu0 %v717, 8
      %v1956 = vpop.permute.xlu0 %1955
      %1957 = vrot.lane.b32.xlu0 %v718, 8
      %v1958 = vpop.permute.xlu0 %1957
      %1959 = vrot.lane.b32.xlu0 %v719, 8
      %v1960 = vpop.permute.xlu0 %1959
      %1961 = vrot.lane.b32.xlu0 %v720, 8
      %v1962 = vpop.permute.xlu0 %1961
      %1963 = vrot.lane.b32.xlu0 %v721, 8
      %v1964 = vpop.permute.xlu0 %1963
      %1965 = vrot.lane.b32.xlu0 %v722, 8
      %v1966 = vpop.permute.xlu0 %1965
      %1967 = vrot.lane.b32.xlu0 %v723, 8
      %v1968 = vpop.permute.xlu0 %1967
      %1969 = vrot.lane.b32.xlu0 %v724, 8
      %v1970 = vpop.permute.xlu0 %1969
      %1971 = vrot.lane.b32.xlu0 %v725, 8
      %v1972 = vpop.permute.xlu0 %1971
      %1973 = vrot.lane.b32.xlu0 %v726, 8
      %v1974 = vpop.permute.xlu0 %1973
      %1975 = vrot.lane.b32.xlu0 %v727, 8
      %v1976 = vpop.permute.xlu0 %1975
      %1977 = vrot.lane.b32.xlu0 %v728, 8
      %v1978 = vpop.permute.xlu0 %1977
      %1979 = vrot.lane.b32.xlu0 %v729, 8
      %v1980 = vpop.permute.xlu0 %1979
      %1981 = vrot.lane.b32.xlu0 %v730, 8
      %v1982 = vpop.permute.xlu0 %1981
      %1983 = vrot.lane.b32.xlu0 %v731, 8
      %v1984 = vpop.permute.xlu0 %1983
      %1985 = vrot.lane.b32.xlu0 %v732, 8
      %v1986 = vpop.permute.xlu0 %1985
      %1987 = vrot.lane.b32.xlu0 %v733, 8
      %v1988 = vpop.permute.xlu0 %1987
      %1989 = vrot.lane.b32.xlu0 %v734, 8
      %v1990 = vpop.permute.xlu0 %1989
      %1991 = vrot.lane.b32.xlu0 %v735, 8
      %v1992 = vpop.permute.xlu0 %1991
      %1993 = vrot.lane.b32.xlu0 %v736, 8
      %v1994 = vpop.permute.xlu0 %1993
      %1995 = vrot.lane.b32.xlu0 %v737, 8
      %v1996 = vpop.permute.xlu0 %1995
      %1997 = vrot.lane.b32.xlu0 %v738, 8
      %v1998 = vpop.permute.xlu0 %1997
      %1999 = vrot.lane.b32.xlu0 %v739, 8
      %v2000 = vpop.permute.xlu0 %1999
      %2001 = vrot.lane.b32.xlu0 %v740, 8
      %v2002 = vpop.permute.xlu0 %2001
      %2003 = vrot.lane.b32.xlu0 %v741, 8
      %v2004 = vpop.permute.xlu0 %2003
      %2005 = vrot.lane.b32.xlu0 %v742, 8
      %v2006 = vpop.permute.xlu0 %2005
      %2007 = vrot.lane.b32.xlu0 %v743, 8
      %v2008 = vpop.permute.xlu0 %2007
      %2009 = vrot.lane.b32.xlu0 %v744, 8
      %v2010 = vpop.permute.xlu0 %2009
      %2011 = vrot.lane.b32.xlu0 %v745, 8
      %v2012 = vpop.permute.xlu0 %2011
      %2013 = vrot.lane.b32.xlu0 %v746, 8
      %v2014 = vpop.permute.xlu0 %2013
      %2015 = vrot.lane.b32.xlu0 %v747, 8
      %v2016 = vpop.permute.xlu0 %2015
      %2017 = vrot.lane.b32.xlu0 %v748, 8
      %v2018 = vpop.permute.xlu0 %2017
      %2019 = vrot.lane.b32.xlu0 %v749, 8
      %v2020 = vpop.permute.xlu0 %2019
      %2021 = vrot.lane.b32.xlu0 %v750, 8
      %v2022 = vpop.permute.xlu0 %2021
      %2023 = vrot.lane.b32.xlu0 %v751, 8
      %v2024 = vpop.permute.xlu0 %2023
      %2025 = vrot.lane.b32.xlu0 %v752, 8
      %v2026 = vpop.permute.xlu0 %2025
      %2027 = vrot.lane.b32.xlu0 %v753, 8
      %v2028 = vpop.permute.xlu0 %2027
      %2029 = vrot.lane.b32.xlu0 %v754, 8
      %v2030 = vpop.permute.xlu0 %2029
      %2031 = vrot.lane.b32.xlu0 %v755, 8
      %v2032 = vpop.permute.xlu0 %2031
      %2033 = vrot.lane.b32.xlu0 %v756, 8
      %v2034 = vpop.permute.xlu0 %2033
      %2035 = vrot.lane.b32.xlu0 %v757, 8
      %v2036 = vpop.permute.xlu0 %2035
      %2037 = vrot.lane.b32.xlu0 %v758, 8
      %v2038 = vpop.permute.xlu0 %2037
      %2039 = vrot.lane.b32.xlu0 %v759, 8
      %v2040 = vpop.permute.xlu0 %2039
      %2041 = vrot.lane.b32.xlu0 %v760, 8
      %v2042 = vpop.permute.xlu0 %2041
      %2043 = vrot.lane.b32.xlu0 %v761, 8
      %v2044 = vpop.permute.xlu0 %2043
      %2045 = vrot.lane.b32.xlu0 %v762, 8
      %v2046 = vpop.permute.xlu0 %2045
      %2047 = vrot.lane.b32.xlu0 %v763, 8
      %v2048 = vpop.permute.xlu0 %2047
      %2049 = vrot.lane.b32.xlu0 %v764, 8
      %v2050 = vpop.permute.xlu0 %2049
      %2051 = vrot.lane.b32.xlu0 %v765, 8
      %v2052 = vpop.permute.xlu0 %2051
      %2053 = vrot.lane.b32.xlu0 %v766, 8
      %v2054 = vpop.permute.xlu0 %2053
      %2055 = vrot.lane.b32.xlu0 %v767, 8
      %v2056 = vpop.permute.xlu0 %2055
      %2057 = vrot.lane.b32.xlu0 %v768, 8
      %v2058 = vpop.permute.xlu0 %2057
      %2059 = vrot.lane.b32.xlu0 %v769, 8
      %v2060 = vpop.permute.xlu0 %2059
      %2061 = vrot.lane.b32.xlu0 %v770, 8
      %v2062 = vpop.permute.xlu0 %2061
      %2063 = vrot.lane.b32.xlu0 %v771, 8
      %v2064 = vpop.permute.xlu0 %2063
      %2065 = vrot.lane.b32.xlu0 %v772, 8
      %v2066 = vpop.permute.xlu0 %2065
      %2067 = vrot.lane.b32.xlu0 %v773, 8
      %v2068 = vpop.permute.xlu0 %2067
      %2069 = vrot.lane.b32.xlu0 %v774, 8
      %v2070 = vpop.permute.xlu0 %2069
      %2071 = vrot.lane.b32.xlu0 %v775, 8
      %v2072 = vpop.permute.xlu0 %2071
      %2073 = vrot.lane.b32.xlu0 %v776, 8
      %v2074 = vpop.permute.xlu0 %2073
      %2075 = vrot.lane.b32.xlu0 %v777, 8
      %v2076 = vpop.permute.xlu0 %2075
      %2077 = vrot.lane.b32.xlu0 %v778, 8
      %v2078 = vpop.permute.xlu0 %2077
      %2079 = vrot.lane.b32.xlu0 %v779, 8
      %v2080 = vpop.permute.xlu0 %2079
      %2081 = vrot.lane.b32.xlu0 %v780, 8
      %v2082 = vpop.permute.xlu0 %2081
      %2083 = vrot.lane.b32.xlu0 %v781, 8
      %v2084 = vpop.permute.xlu0 %2083
      %2085 = vrot.lane.b32.xlu0 %v782, 8
      %v2086 = vpop.permute.xlu0 %2085
      %2087 = vrot.lane.b32.xlu0 %v783, 8
      %v2088 = vpop.permute.xlu0 %2087
      %2089 = vrot.lane.b32.xlu0 %v784, 8
      %v2090 = vpop.permute.xlu0 %2089
      %2091 = vrot.lane.b32.xlu0 %v785, 8
      %v2092 = vpop.permute.xlu0 %2091
      %2093 = vrot.lane.b32.xlu0 %v786, 8
      %v2094 = vpop.permute.xlu0 %2093
      %2095 = vrot.lane.b32.xlu0 %v787, 8
      %v2096 = vpop.permute.xlu0 %2095
      %2097 = vrot.lane.b32.xlu0 %v788, 8
      %v2098 = vpop.permute.xlu0 %2097
      %2099 = vrot.lane.b32.xlu0 %v789, 8
      %v2100 = vpop.permute.xlu0 %2099
      %2101 = vrot.lane.b32.xlu0 %v790, 8
      %v2102 = vpop.permute.xlu0 %2101
      %2103 = vrot.lane.b32.xlu0 %v791, 8
      %v2104 = vpop.permute.xlu0 %2103
      %2105 = vrot.lane.b32.xlu0 %v792, 8
      %v2106 = vpop.permute.xlu0 %2105
      %2107 = vrot.lane.b32.xlu0 %v793, 8
      %v2108 = vpop.permute.xlu0 %2107
      %2109 = vrot.lane.b32.xlu0 %v794, 8
      %v2110 = vpop.permute.xlu0 %2109
      %2111 = vrot.lane.b32.xlu0 %v795, 8
      %v2112 = vpop.permute.xlu0 %2111
      %2113 = vrot.lane.b32.xlu0 %v796, 8
      %v2114 = vpop.permute.xlu0 %2113
      %2115 = vrot.lane.b32.xlu0 %v797, 8
      %v2116 = vpop.permute.xlu0 %2115
      %2117 = vrot.lane.b32.xlu0 %v798, 8
      %v2118 = vpop.permute.xlu0 %2117
      %2119 = vrot.lane.b32.xlu0 %v799, 8
      %v2120 = vpop.permute.xlu0 %2119
      %2121 = vrot.lane.b32.xlu0 %v800, 8
      %v2122 = vpop.permute.xlu0 %2121
      %2123 = vrot.lane.b32.xlu0 %v801, 8
      %v2124 = vpop.permute.xlu0 %2123
      %2125 = vrot.lane.b32.xlu0 %v802, 8
      %v2126 = vpop.permute.xlu0 %2125
      %2127 = vrot.lane.b32.xlu0 %v803, 8
      %v2128 = vpop.permute.xlu0 %2127
      %2129 = vrot.lane.b32.xlu0 %v804, 8
      %v2130 = vpop.permute.xlu0 %2129
      %2131 = vrot.lane.b32.xlu0 %v805, 8
      %v2132 = vpop.permute.xlu0 %2131
      %2133 = vrot.lane.b32.xlu0 %v806, 8
      %v2134 = vpop.permute.xlu0 %2133
      %2135 = vrot.lane.b32.xlu0 %v807, 8
      %v2136 = vpop.permute.xlu0 %2135
      %2137 = vrot.lane.b32.xlu0 %v808, 8
      %v2138 = vpop.permute.xlu0 %2137
      %2139 = vrot.lane.b32.xlu0 %v809, 8
      %v2140 = vpop.permute.xlu0 %2139
      %2141 = vrot.lane.b32.xlu0 %v810, 8
      %v2142 = vpop.permute.xlu0 %2141
      %2143 = vrot.lane.b32.xlu0 %v811, 8
      %v2144 = vpop.permute.xlu0 %2143
      %2145 = vrot.lane.b32.xlu0 %v812, 8
      %v2146 = vpop.permute.xlu0 %2145
      %2147 = vrot.lane.b32.xlu0 %v813, 8
      %v2148 = vpop.permute.xlu0 %2147
      %2149 = vrot.lane.b32.xlu0 %v814, 8
      %v2150 = vpop.permute.xlu0 %2149
      %2151 = vrot.lane.b32.xlu0 %v815, 8
      %v2152 = vpop.permute.xlu0 %2151
      %2153 = vrot.lane.b32.xlu0 %v816, 8
      %v2154 = vpop.permute.xlu0 %2153
      %2155 = vrot.lane.b32.xlu0 %v817, 8
      %v2156 = vpop.permute.xlu0 %2155
      %2157 = vrot.lane.b32.xlu0 %v818, 8
      %v2158 = vpop.permute.xlu0 %2157
      %2159 = vrot.lane.b32.xlu0 %v1059, 8
      %v2160 = vpop.permute.xlu0 %2159
      %2161 = vrot.lane.b32.xlu0 %v1060, 8
      %v2162 = vpop.permute.xlu0 %2161
      %2163 = vrot.lane.b32.xlu0 %v1061, 8
      %v2164 = vpop.permute.xlu0 %2163
      %2165 = vrot.lane.b32.xlu0 %v1062, 8
      %v2166 = vpop.permute.xlu0 %2165
      %2167 = vrot.lane.b32.xlu0 %v1063, 8
      %v2168 = vpop.permute.xlu0 %2167
      %2169 = vrot.lane.b32.xlu0 %v1064, 8
      %v2170 = vpop.permute.xlu0 %2169
      %2171 = vrot.lane.b32.xlu0 %v1065, 8
      %v2172 = vpop.permute.xlu0 %2171
      %2173 = vrot.lane.b32.xlu0 %v1066, 8
      %v2174 = vpop.permute.xlu0 %2173
      %2175 = vrot.lane.b32.xlu0 %v1067, 8
      %v2176 = vpop.permute.xlu0 %2175
      %2177 = vrot.lane.b32.xlu0 %v1068, 8
      %v2178 = vpop.permute.xlu0 %2177
      %2179 = vrot.lane.b32.xlu0 %v1069, 8
      %v2180 = vpop.permute.xlu0 %2179
      %2181 = vrot.lane.b32.xlu0 %v1070, 8
      %v2182 = vpop.permute.xlu0 %2181
      %2183 = vrot.lane.b32.xlu0 %v1071, 8
      %v2184 = vpop.permute.xlu0 %2183
      %2185 = vrot.lane.b32.xlu0 %v1072, 8
      %v2186 = vpop.permute.xlu0 %2185
      %2187 = vrot.lane.b32.xlu0 %v1073, 8
      %v2188 = vpop.permute.xlu0 %2187
      %2189 = vrot.lane.b32.xlu0 %v1074, 8
      %v2190 = vpop.permute.xlu0 %2189
      %2191 = vrot.lane.b32.xlu0 %v1075, 8
      %v2192 = vpop.permute.xlu0 %2191
      %2193 = vrot.lane.b32.xlu0 %v1076, 8
      %v2194 = vpop.permute.xlu0 %2193
      %2195 = vrot.lane.b32.xlu0 %v1077, 8
      %v2196 = vpop.permute.xlu0 %2195
      %2197 = vrot.lane.b32.xlu0 %v1078, 8
      %v2198 = vpop.permute.xlu0 %2197
      %2360 = vrot.lane.b32.xlu0 %v899, 12
      %v2361 = vpop.permute.xlu0 %2360
      %2362 = vrot.lane.b32.xlu0 %v900, 12
      %v2363 = vpop.permute.xlu0 %2362
      %2364 = vrot.lane.b32.xlu0 %v901, 12
      %v2365 = vpop.permute.xlu0 %2364
      %2366 = vrot.lane.b32.xlu0 %v902, 12
      %v2367 = vpop.permute.xlu0 %2366
      %2368 = vrot.lane.b32.xlu0 %v903, 12
      %v2369 = vpop.permute.xlu0 %2368
      %2370 = vrot.lane.b32.xlu0 %v904, 12
      %v2371 = vpop.permute.xlu0 %2370
      %2372 = vrot.lane.b32.xlu0 %v905, 12
      %v2373 = vpop.permute.xlu0 %2372
      %2374 = vrot.lane.b32.xlu0 %v906, 12
      %v2375 = vpop.permute.xlu0 %2374
      %2376 = vrot.lane.b32.xlu0 %v907, 12
      %v2377 = vpop.permute.xlu0 %2376
      %2378 = vrot.lane.b32.xlu0 %v908, 12
      %v2379 = vpop.permute.xlu0 %2378
      %2380 = vrot.lane.b32.xlu0 %v909, 12
      %v2381 = vpop.permute.xlu0 %2380
      %2382 = vrot.lane.b32.xlu0 %v910, 12
      %v2383 = vpop.permute.xlu0 %2382
      %2384 = vrot.lane.b32.xlu0 %v911, 12
      %v2385 = vpop.permute.xlu0 %2384
      %2386 = vrot.lane.b32.xlu0 %v912, 12
      %v2387 = vpop.permute.xlu0 %2386
      %2388 = vrot.lane.b32.xlu0 %v913, 12
      %v2389 = vpop.permute.xlu0 %2388
      %2390 = vrot.lane.b32.xlu0 %v914, 12
      %v2391 = vpop.permute.xlu0 %2390
      %2392 = vrot.lane.b32.xlu0 %v915, 12
      %v2393 = vpop.permute.xlu0 %2392
      %2394 = vrot.lane.b32.xlu0 %v916, 12
      %v2395 = vpop.permute.xlu0 %2394
      %2396 = vrot.lane.b32.xlu0 %v917, 12
      %v2397 = vpop.permute.xlu0 %2396
      %2398 = vrot.lane.b32.xlu0 %v918, 12
      %v2399 = vpop.permute.xlu0 %2398
      %2400 = vrot.lane.b32.xlu0 %v919, 12
      %v2401 = vpop.permute.xlu0 %2400
      %2402 = vrot.lane.b32.xlu0 %v920, 12
      %v2403 = vpop.permute.xlu0 %2402
      %2404 = vrot.lane.b32.xlu0 %v921, 12
      %v2405 = vpop.permute.xlu0 %2404
      %2406 = vrot.lane.b32.xlu0 %v922, 12
      %v2407 = vpop.permute.xlu0 %2406
      %2408 = vrot.lane.b32.xlu0 %v923, 12
      %v2409 = vpop.permute.xlu0 %2408
      %2410 = vrot.lane.b32.xlu0 %v924, 12
      %v2411 = vpop.permute.xlu0 %2410
      %2412 = vrot.lane.b32.xlu0 %v925, 12
      %v2413 = vpop.permute.xlu0 %2412
      %2414 = vrot.lane.b32.xlu0 %v926, 12
      %v2415 = vpop.permute.xlu0 %2414
      %2416 = vrot.lane.b32.xlu0 %v927, 12
      %v2417 = vpop.permute.xlu0 %2416
      %2418 = vrot.lane.b32.xlu0 %v928, 12
      %v2419 = vpop.permute.xlu0 %2418
      %2420 = vrot.lane.b32.xlu0 %v929, 12
      %v2421 = vpop.permute.xlu0 %2420
      %2422 = vrot.lane.b32.xlu0 %v930, 12
      %v2423 = vpop.permute.xlu0 %2422
      %2424 = vrot.lane.b32.xlu0 %v931, 12
      %v2425 = vpop.permute.xlu0 %2424
      %2426 = vrot.lane.b32.xlu0 %v932, 12
      %v2427 = vpop.permute.xlu0 %2426
      %2428 = vrot.lane.b32.xlu0 %v933, 12
      %v2429 = vpop.permute.xlu0 %2428
      %2430 = vrot.lane.b32.xlu0 %v934, 12
      %v2431 = vpop.permute.xlu0 %2430
      %2432 = vrot.lane.b32.xlu0 %v935, 12
      %v2433 = vpop.permute.xlu0 %2432
      %2434 = vrot.lane.b32.xlu0 %v936, 12
      %v2435 = vpop.permute.xlu0 %2434
      %2436 = vrot.lane.b32.xlu0 %v937, 12
      %v2437 = vpop.permute.xlu0 %2436
      %2438 = vrot.lane.b32.xlu0 %v938, 12
      %v2439 = vpop.permute.xlu0 %2438
      %2440 = vrot.lane.b32.xlu0 %v939, 12
      %v2441 = vpop.permute.xlu0 %2440
      %2442 = vrot.lane.b32.xlu0 %v940, 12
      %v2443 = vpop.permute.xlu0 %2442
      %2444 = vrot.lane.b32.xlu0 %v941, 12
      %v2445 = vpop.permute.xlu0 %2444
      %2446 = vrot.lane.b32.xlu0 %v942, 12
      %v2447 = vpop.permute.xlu0 %2446
      %2448 = vrot.lane.b32.xlu0 %v943, 12
      %v2449 = vpop.permute.xlu0 %2448
      %2450 = vrot.lane.b32.xlu0 %v944, 12
      %v2451 = vpop.permute.xlu0 %2450
      %2452 = vrot.lane.b32.xlu0 %v945, 12
      %v2453 = vpop.permute.xlu0 %2452
      %2454 = vrot.lane.b32.xlu0 %v946, 12
      %v2455 = vpop.permute.xlu0 %2454
      %2456 = vrot.lane.b32.xlu0 %v947, 12
      %v2457 = vpop.permute.xlu0 %2456
      %2458 = vrot.lane.b32.xlu0 %v948, 12
      %v2459 = vpop.permute.xlu0 %2458
      %2460 = vrot.lane.b32.xlu0 %v949, 12
      %v2461 = vpop.permute.xlu0 %2460
      %2462 = vrot.lane.b32.xlu0 %v950, 12
      %v2463 = vpop.permute.xlu0 %2462
      %2464 = vrot.lane.b32.xlu0 %v951, 12
      %v2465 = vpop.permute.xlu0 %2464
      %2466 = vrot.lane.b32.xlu0 %v952, 12
      %v2467 = vpop.permute.xlu0 %2466
      %2468 = vrot.lane.b32.xlu0 %v953, 12
      %v2469 = vpop.permute.xlu0 %2468
      %2470 = vrot.lane.b32.xlu0 %v954, 12
      %v2471 = vpop.permute.xlu0 %2470
      %2472 = vrot.lane.b32.xlu0 %v955, 12
      %v2473 = vpop.permute.xlu0 %2472
      %2474 = vrot.lane.b32.xlu0 %v956, 12
      %v2475 = vpop.permute.xlu0 %2474
      %2476 = vrot.lane.b32.xlu0 %v957, 12
      %v2477 = vpop.permute.xlu0 %2476
      %2478 = vrot.lane.b32.xlu0 %v958, 12
      %v2479 = vpop.permute.xlu0 %2478
      %2480 = vrot.lane.b32.xlu0 %v959, 12
      %v2481 = vpop.permute.xlu0 %2480
      %2482 = vrot.lane.b32.xlu0 %v960, 12
      %v2483 = vpop.permute.xlu0 %2482
      %2484 = vrot.lane.b32.xlu0 %v961, 12
      %v2485 = vpop.permute.xlu0 %2484
      %2486 = vrot.lane.b32.xlu0 %v962, 12
      %v2487 = vpop.permute.xlu0 %2486
      %2488 = vrot.lane.b32.xlu0 %v963, 12
      %v2489 = vpop.permute.xlu0 %2488
      %2490 = vrot.lane.b32.xlu0 %v964, 12
      %v2491 = vpop.permute.xlu0 %2490
      %2492 = vrot.lane.b32.xlu0 %v965, 12
      %v2493 = vpop.permute.xlu0 %2492
      %2494 = vrot.lane.b32.xlu0 %v966, 12
      %v2495 = vpop.permute.xlu0 %2494
      %2496 = vrot.lane.b32.xlu0 %v967, 12
      %v2497 = vpop.permute.xlu0 %2496
      %2498 = vrot.lane.b32.xlu0 %v968, 12
      %v2499 = vpop.permute.xlu0 %2498
      %2500 = vrot.lane.b32.xlu0 %v969, 12
      %v2501 = vpop.permute.xlu0 %2500
      %2502 = vrot.lane.b32.xlu0 %v970, 12
      %v2503 = vpop.permute.xlu0 %2502
      %2504 = vrot.lane.b32.xlu0 %v971, 12
      %v2505 = vpop.permute.xlu0 %2504
      %2506 = vrot.lane.b32.xlu0 %v972, 12
      %v2507 = vpop.permute.xlu0 %2506
      %2508 = vrot.lane.b32.xlu0 %v973, 12
      %v2509 = vpop.permute.xlu0 %2508
      %2510 = vrot.lane.b32.xlu0 %v974, 12
      %v2511 = vpop.permute.xlu0 %2510
      %2512 = vrot.lane.b32.xlu0 %v975, 12
      %v2513 = vpop.permute.xlu0 %2512
      %2514 = vrot.lane.b32.xlu0 %v976, 12
      %v2515 = vpop.permute.xlu0 %2514
      %2516 = vrot.lane.b32.xlu0 %v977, 12
      %v2517 = vpop.permute.xlu0 %2516
      %2518 = vrot.lane.b32.xlu0 %v978, 12
      %v2519 = vpop.permute.xlu0 %2518
      %2520 = vrot.lane.b32.xlu0 %v979, 12
      %v2521 = vpop.permute.xlu0 %2520
      %2522 = vrot.lane.b32.xlu0 %v980, 12
      %v2523 = vpop.permute.xlu0 %2522
      %2524 = vrot.lane.b32.xlu0 %v981, 12
      %v2525 = vpop.permute.xlu0 %2524
      %2526 = vrot.lane.b32.xlu0 %v982, 12
      %v2527 = vpop.permute.xlu0 %2526
      %2528 = vrot.lane.b32.xlu0 %v983, 12
      %v2529 = vpop.permute.xlu0 %2528
      %2530 = vrot.lane.b32.xlu0 %v984, 12
      %v2531 = vpop.permute.xlu0 %2530
      %2532 = vrot.lane.b32.xlu0 %v985, 12
      %v2533 = vpop.permute.xlu0 %2532
      %2534 = vrot.lane.b32.xlu0 %v986, 12
      %v2535 = vpop.permute.xlu0 %2534
      %2536 = vrot.lane.b32.xlu0 %v987, 12
      %v2537 = vpop.permute.xlu0 %2536
      %2538 = vrot.lane.b32.xlu0 %v988, 12
      %v2539 = vpop.permute.xlu0 %2538
      %2540 = vrot.lane.b32.xlu0 %v989, 12
      %v2541 = vpop.permute.xlu0 %2540
      %2542 = vrot.lane.b32.xlu0 %v990, 12
      %v2543 = vpop.permute.xlu0 %2542
      %2544 = vrot.lane.b32.xlu0 %v991, 12
      %v2545 = vpop.permute.xlu0 %2544
      %2546 = vrot.lane.b32.xlu0 %v992, 12
      %v2547 = vpop.permute.xlu0 %2546
      %2548 = vrot.lane.b32.xlu0 %v993, 12
      %v2549 = vpop.permute.xlu0 %2548
      %2550 = vrot.lane.b32.xlu0 %v994, 12
      %v2551 = vpop.permute.xlu0 %2550
      %2552 = vrot.lane.b32.xlu0 %v995, 12
      %v2553 = vpop.permute.xlu0 %2552
      %2554 = vrot.lane.b32.xlu0 %v996, 12
      %v2555 = vpop.permute.xlu0 %2554
      %2556 = vrot.lane.b32.xlu0 %v997, 12
      %v2557 = vpop.permute.xlu0 %2556
      %2558 = vrot.lane.b32.xlu0 %v998, 12
      %v2559 = vpop.permute.xlu0 %2558
      %2560 = vrot.lane.b32.xlu0 %v999, 12
      %v2561 = vpop.permute.xlu0 %2560
      %2562 = vrot.lane.b32.xlu0 %v1000, 12
      %v2563 = vpop.permute.xlu0 %2562
      %2564 = vrot.lane.b32.xlu0 %v1001, 12
      %v2565 = vpop.permute.xlu0 %2564
      %2566 = vrot.lane.b32.xlu0 %v1002, 12
      %v2567 = vpop.permute.xlu0 %2566
      %2568 = vrot.lane.b32.xlu0 %v1003, 12
      %v2569 = vpop.permute.xlu0 %2568
      %2570 = vrot.lane.b32.xlu0 %v1004, 12
      %v2571 = vpop.permute.xlu0 %2570
      %2572 = vrot.lane.b32.xlu0 %v1005, 12
      %v2573 = vpop.permute.xlu0 %2572
      %2574 = vrot.lane.b32.xlu0 %v1006, 12
      %v2575 = vpop.permute.xlu0 %2574
      %2576 = vrot.lane.b32.xlu0 %v1007, 12
      %v2577 = vpop.permute.xlu0 %2576
      %2578 = vrot.lane.b32.xlu0 %v1008, 12
      %v2579 = vpop.permute.xlu0 %2578
      %2580 = vrot.lane.b32.xlu0 %v1009, 12
      %v2581 = vpop.permute.xlu0 %2580
      %2582 = vrot.lane.b32.xlu0 %v1010, 12
      %v2583 = vpop.permute.xlu0 %2582
      %2584 = vrot.lane.b32.xlu0 %v1011, 12
      %v2585 = vpop.permute.xlu0 %2584
      %2586 = vrot.lane.b32.xlu0 %v1012, 12
      %v2587 = vpop.permute.xlu0 %2586
      %2588 = vrot.lane.b32.xlu0 %v1013, 12
      %v2589 = vpop.permute.xlu0 %2588
      %2590 = vrot.lane.b32.xlu0 %v1014, 12
      %v2591 = vpop.permute.xlu0 %2590
      %2592 = vrot.lane.b32.xlu0 %v1015, 12
      %v2593 = vpop.permute.xlu0 %2592
      %2594 = vrot.lane.b32.xlu0 %v1016, 12
      %v2595 = vpop.permute.xlu0 %2594
      %2596 = vrot.lane.b32.xlu0 %v1017, 12
      %v2597 = vpop.permute.xlu0 %2596
      %2598 = vrot.lane.b32.xlu0 %v1018, 12
      %v2599 = vpop.permute.xlu0 %2598
      %2600 = vrot.lane.b32.xlu0 %v1019, 12
      %v2601 = vpop.permute.xlu0 %2600
      %2602 = vrot.lane.b32.xlu0 %v1020, 12
      %v2603 = vpop.permute.xlu0 %2602
      %2604 = vrot.lane.b32.xlu0 %v1021, 12
      %v2605 = vpop.permute.xlu0 %2604
      %2606 = vrot.lane.b32.xlu0 %v1022, 12
      %v2607 = vpop.permute.xlu0 %2606
      %2608 = vrot.lane.b32.xlu0 %v1023, 12
      %v2609 = vpop.permute.xlu0 %2608
      %2610 = vrot.lane.b32.xlu0 %v1024, 12
      %v2611 = vpop.permute.xlu0 %2610
      %2612 = vrot.lane.b32.xlu0 %v1025, 12
      %v2613 = vpop.permute.xlu0 %2612
      %2614 = vrot.lane.b32.xlu0 %v1026, 12
      %v2615 = vpop.permute.xlu0 %2614
      %2616 = vrot.lane.b32.xlu0 %v1027, 12
      %v2617 = vpop.permute.xlu0 %2616
      %2618 = vrot.lane.b32.xlu0 %v1028, 12
      %v2619 = vpop.permute.xlu0 %2618
      %2620 = vrot.lane.b32.xlu0 %v1029, 12
      %v2621 = vpop.permute.xlu0 %2620
      %2622 = vrot.lane.b32.xlu0 %v1030, 12
      %v2623 = vpop.permute.xlu0 %2622
      %2624 = vrot.lane.b32.xlu0 %v1031, 12
      %v2625 = vpop.permute.xlu0 %2624
      %2626 = vrot.lane.b32.xlu0 %v1032, 12
      %v2627 = vpop.permute.xlu0 %2626
      %2628 = vrot.lane.b32.xlu0 %v1033, 12
      %v2629 = vpop.permute.xlu0 %2628
      %2630 = vrot.lane.b32.xlu0 %v1034, 12
      %v2631 = vpop.permute.xlu0 %2630
      %2632 = vrot.lane.b32.xlu0 %v1035, 12
      %v2633 = vpop.permute.xlu0 %2632
      %2634 = vrot.lane.b32.xlu0 %v1036, 12
      %v2635 = vpop.permute.xlu0 %2634
      %2636 = vrot.lane.b32.xlu0 %v1037, 12
      %v2637 = vpop.permute.xlu0 %2636
      %2638 = vrot.lane.b32.xlu0 %v1038, 12
      %v2639 = vpop.permute.xlu0 %2638
      %2640 = vrot.lane.b32.xlu0 0.0, 12
      %v2641 = vpop.permute.xlu0 %2640
      %vm2783 = vcmask 31744
      %v2784 = vsel %vm2783, 0.0, %v1240
      %v2785 = vsel %vm2783, 0.0, %v1242
      %v2786 = vsel %vm2783, 0.0, %v1244
      %v2787 = vsel %vm2783, 0.0, %v1246
      %v2788 = vsel %vm2783, 0.0, %v1248
      %v2789 = vsel %vm2783, 0.0, %v1250
      %v2790 = vsel %vm2783, 0.0, %v1252
      %v2791 = vsel %vm2783, 0.0, %v1254
      %v2792 = vsel %vm2783, 0.0, %v1256
      %v2793 = vsel %vm2783, 0.0, %v1258
      %v2794 = vsel %vm2783, 0.0, %v1260
      %v2795 = vsel %vm2783, 0.0, %v1262
      %v2796 = vsel %vm2783, 0.0, %v1264
      %v2797 = vsel %vm2783, 0.0, %v1266
      %v2798 = vsel %vm2783, 0.0, %v1268
      %v2799 = vsel %vm2783, 0.0, %v1270
      %v2800 = vsel %vm2783, 0.0, %v1272
      %v2801 = vsel %vm2783, 0.0, %v1274
      %v2802 = vsel %vm2783, 0.0, %v1276
      %v2803 = vsel %vm2783, 0.0, %v1278
      %v2804 = vsel %vm2783, %v679, %v1280
      %v2805 = vsel %vm2783, %v680, %v1282
      %v2806 = vsel %vm2783, %v681, %v1284
      %v2807 = vsel %vm2783, %v682, %v1286
      %v2808 = vsel %vm2783, %v683, %v1288
      %v2809 = vsel %vm2783, %v684, %v1290
      %v2810 = vsel %vm2783, %v685, %v1292
      %v2811 = vsel %vm2783, %v686, %v1294
      %v2812 = vsel %vm2783, %v687, %v1296
      %v2813 = vsel %vm2783, %v688, %v1298
      %v2814 = vsel %vm2783, %v689, %v1300
      %v2815 = vsel %vm2783, %v690, %v1302
      %v2816 = vsel %vm2783, %v691, %v1304
      %v2817 = vsel %vm2783, %v692, %v1306
      %v2818 = vsel %vm2783, %v693, %v1308
      %v2819 = vsel %vm2783, %v694, %v1310
      %v2820 = vsel %vm2783, %v695, %v1312
      %v2821 = vsel %vm2783, %v696, %v1314
      %v2822 = vsel %vm2783, %v697, %v1316
      %v2823 = vsel %vm2783, %v698, %v1318
      %v2824 = vsel %vm2783, %v699, %v1320
      %v2825 = vsel %vm2783, %v700, %v1322
      %v2826 = vsel %vm2783, %v701, %v1324
      %v2827 = vsel %vm2783, %v702, %v1326
      %v2828 = vsel %vm2783, %v703, %v1328
      %v2829 = vsel %vm2783, %v704, %v1330
      %v2830 = vsel %vm2783, %v705, %v1332
      %v2831 = vsel %vm2783, %v706, %v1334
      %v2832 = vsel %vm2783, %v707, %v1336
      %v2833 = vsel %vm2783, %v708, %v1338
      %v2834 = vsel %vm2783, %v709, %v1340
      %v2835 = vsel %vm2783, %v710, %v1342
      %v2836 = vsel %vm2783, %v711, %v1344
      %v2837 = vsel %vm2783, %v712, %v1346
      %v2838 = vsel %vm2783, %v713, %v1348
      %v2839 = vsel %vm2783, %v714, %v1350
      %v2840 = vsel %vm2783, %v715, %v1352
      %v2841 = vsel %vm2783, %v716, %v1354
      %v2842 = vsel %vm2783, %v717, %v1356
      %v2843 = vsel %vm2783, %v718, %v1358
      %v2844 = vsel %vm2783, %v719, %v1360
      %v2845 = vsel %vm2783, %v720, %v1362
      %v2846 = vsel %vm2783, %v721, %v1364
      %v2847 = vsel %vm2783, %v722, %v1366
      %v2848 = vsel %vm2783, %v723, %v1368
      %v2849 = vsel %vm2783, %v724, %v1370
      %v2850 = vsel %vm2783, %v725, %v1372
      %v2851 = vsel %vm2783, %v726, %v1374
      %v2852 = vsel %vm2783, %v727, %v1376
      %v2853 = vsel %vm2783, %v728, %v1378
      %v2854 = vsel %vm2783, %v729, %v1380
      %v2855 = vsel %vm2783, %v730, %v1382
      %v2856 = vsel %vm2783, %v731, %v1384
      %v2857 = vsel %vm2783, %v732, %v1386
      %v2858 = vsel %vm2783, %v733, %v1388
      %v2859 = vsel %vm2783, %v734, %v1390
      %v2860 = vsel %vm2783, %v735, %v1392
      %v2861 = vsel %vm2783, %v736, %v1394
      %v2862 = vsel %vm2783, %v737, %v1396
      %v2863 = vsel %vm2783, %v738, %v1398
      %v2864 = vsel %vm2783, %v739, %v1400
      %v2865 = vsel %vm2783, %v740, %v1402
      %v2866 = vsel %vm2783, %v741, %v1404
      %v2867 = vsel %vm2783, %v742, %v1406
      %v2868 = vsel %vm2783, %v743, %v1408
      %v2869 = vsel %vm2783, %v744, %v1410
      %v2870 = vsel %vm2783, %v745, %v1412
      %v2871 = vsel %vm2783, %v746, %v1414
      %v2872 = vsel %vm2783, %v747, %v1416
      %v2873 = vsel %vm2783, %v748, %v1418
      %v2874 = vsel %vm2783, %v749, %v1420
      %v2875 = vsel %vm2783, %v750, %v1422
      %v2876 = vsel %vm2783, %v751, %v1424
      %v2877 = vsel %vm2783, %v752, %v1426
      %v2878 = vsel %vm2783, %v753, %v1428
      %v2879 = vsel %vm2783, %v754, %v1430
      %v2880 = vsel %vm2783, %v755, %v1432
      %v2881 = vsel %vm2783, %v756, %v1434
      %v2882 = vsel %vm2783, %v757, %v1436
      %v2883 = vsel %vm2783, %v758, %v1438
      %v2884 = vsel %vm2783, %v759, %v1440
      %v2885 = vsel %vm2783, %v760, %v1442
      %v2886 = vsel %vm2783, %v761, %v1444
      %v2887 = vsel %vm2783, %v762, %v1446
      %v2888 = vsel %vm2783, %v763, %v1448
      %v2889 = vsel %vm2783, %v764, %v1450
      %v2890 = vsel %vm2783, %v765, %v1452
      %v2891 = vsel %vm2783, %v766, %v1454
      %v2892 = vsel %vm2783, %v767, %v1456
      %v2893 = vsel %vm2783, %v768, %v1458
      %v2894 = vsel %vm2783, %v769, %v1460
      %v2895 = vsel %vm2783, %v770, %v1462
      %v2896 = vsel %vm2783, %v771, %v1464
      %v2897 = vsel %vm2783, %v772, %v1466
      %v2898 = vsel %vm2783, %v773, %v1468
      %v2899 = vsel %vm2783, %v774, %v1470
      %v2900 = vsel %vm2783, %v775, %v1472
      %v2901 = vsel %vm2783, %v776, %v1474
      %v2902 = vsel %vm2783, %v777, %v1476
      %v2903 = vsel %vm2783, %v778, %v1478
      %v2904 = vsel %vm2783, %v779, %v1480
      %v2905 = vsel %vm2783, %v780, %v1482
      %v2906 = vsel %vm2783, %v781, %v1484
      %v2907 = vsel %vm2783, %v782, %v1486
      %v2908 = vsel %vm2783, %v783, %v1488
      %v2909 = vsel %vm2783, %v784, %v1490
      %v2910 = vsel %vm2783, %v785, %v1492
      %v2911 = vsel %vm2783, %v786, %v1494
      %v2912 = vsel %vm2783, %v787, %v1496
      %v2913 = vsel %vm2783, %v788, %v1498
      %v2914 = vsel %vm2783, %v789, %v1500
      %v2915 = vsel %vm2783, %v790, %v1502
      %v2916 = vsel %vm2783, %v791, %v1504
      %v2917 = vsel %vm2783, %v792, %v1506
      %v2918 = vsel %vm2783, %v793, %v1508
      %v2919 = vsel %vm2783, %v794, %v1510
      %v2920 = vsel %vm2783, %v795, %v1512
      %v2921 = vsel %vm2783, %v796, %v1514
      %v2922 = vsel %vm2783, %v797, %v1516
      %v2923 = vsel %vm2783, %v798, %v1518
      %v2924 = vsel %vm2783, %v799, %v1520
      %v2925 = vsel %vm2783, %v800, %v1522
      %v2926 = vsel %vm2783, %v801, %v1524
      %v2927 = vsel %vm2783, %v802, %v1526
      %v2928 = vsel %vm2783, %v803, %v1528
      %v2929 = vsel %vm2783, %v804, %v1530
      %v2930 = vsel %vm2783, %v805, %v1532
      %v2931 = vsel %vm2783, %v806, %v1534
      %v2932 = vsel %vm2783, %v807, %v1536
      %v2933 = vsel %vm2783, %v808, %v1538
      %v2934 = vsel %vm2783, %v809, %v1540
      %v2935 = vsel %vm2783, %v810, %v1542
      %v2936 = vsel %vm2783, %v811, %v1544
      %v2937 = vsel %vm2783, %v812, %v1546
      %v2938 = vsel %vm2783, %v813, %v1548
      %v2939 = vsel %vm2783, %v814, %v1550
      %v2940 = vsel %vm2783, %v815, %v1552
      %v2941 = vsel %vm2783, %v816, %v1554
      %v2942 = vsel %vm2783, %v817, %v1556
      %v2943 = vsel %vm2783, %v818, %v1558
      %vm2944 = vcmask 64512
      %v2945 = vsel %vm2944, %v2784, %v1880
      %v2946 = vsel %vm2944, %v2785, %v1882
      %v2947 = vsel %vm2944, %v2786, %v1884
      %v2948 = vsel %vm2944, %v2787, %v1886
      %v2949 = vsel %vm2944, %v2788, %v1888
      %v2950 = vsel %vm2944, %v2789, %v1890
      %v2951 = vsel %vm2944, %v2790, %v1892
      %v2952 = vsel %vm2944, %v2791, %v1894
      %v2953 = vsel %vm2944, %v2792, %v1896
      %v2954 = vsel %vm2944, %v2793, %v1898
      %v2955 = vsel %vm2944, %v2794, %v1900
      %v2956 = vsel %vm2944, %v2795, %v1902
      %v2957 = vsel %vm2944, %v2796, %v1904
      %v2958 = vsel %vm2944, %v2797, %v1906
      %v2959 = vsel %vm2944, %v2798, %v1908
      %v2960 = vsel %vm2944, %v2799, %v1910
      %v2961 = vsel %vm2944, %v2800, %v1912
      %v2962 = vsel %vm2944, %v2801, %v1914
      %v2963 = vsel %vm2944, %v2802, %v1916
      %v2964 = vsel %vm2944, %v2803, %v1918
      %v2965 = vsel %vm2944, %v2804, %v1920
      %v2966 = vsel %vm2944, %v2805, %v1922
      %v2967 = vsel %vm2944, %v2806, %v1924
      %v2968 = vsel %vm2944, %v2807, %v1926
      %v2969 = vsel %vm2944, %v2808, %v1928
      %v2970 = vsel %vm2944, %v2809, %v1930
      %v2971 = vsel %vm2944, %v2810, %v1932
      %v2972 = vsel %vm2944, %v2811, %v1934
      %v2973 = vsel %vm2944, %v2812, %v1936
      %v2974 = vsel %vm2944, %v2813, %v1938
      %v2975 = vsel %vm2944, %v2814, %v1940
      %v2976 = vsel %vm2944, %v2815, %v1942
      %v2977 = vsel %vm2944, %v2816, %v1944
      %v2978 = vsel %vm2944, %v2817, %v1946
      %v2979 = vsel %vm2944, %v2818, %v1948
      %v2980 = vsel %vm2944, %v2819, %v1950
      %v2981 = vsel %vm2944, %v2820, %v1952
      %v2982 = vsel %vm2944, %v2821, %v1954
      %v2983 = vsel %vm2944, %v2822, %v1956
      %v2984 = vsel %vm2944, %v2823, %v1958
      %v2985 = vsel %vm2944, %v2824, %v1960
      %v2986 = vsel %vm2944, %v2825, %v1962
      %v2987 = vsel %vm2944, %v2826, %v1964
      %v2988 = vsel %vm2944, %v2827, %v1966
      %v2989 = vsel %vm2944, %v2828, %v1968
      %v2990 = vsel %vm2944, %v2829, %v1970
      %v2991 = vsel %vm2944, %v2830, %v1972
      %v2992 = vsel %vm2944, %v2831, %v1974
      %v2993 = vsel %vm2944, %v2832, %v1976
      %v2994 = vsel %vm2944, %v2833, %v1978
      %v2995 = vsel %vm2944, %v2834, %v1980
      %v2996 = vsel %vm2944, %v2835, %v1982
      %v2997 = vsel %vm2944, %v2836, %v1984
      %v2998 = vsel %vm2944, %v2837, %v1986
      %v2999 = vsel %vm2944, %v2838, %v1988
      %v3000 = vsel %vm2944, %v2839, %v1990
      %v3001 = vsel %vm2944, %v2840, %v1992
      %v3002 = vsel %vm2944, %v2841, %v1994
      %v3003 = vsel %vm2944, %v2842, %v1996
      %v3004 = vsel %vm2944, %v2843, %v1998
      %v3005 = vsel %vm2944, %v2844, %v2000
      %v3006 = vsel %vm2944, %v2845, %v2002
      %v3007 = vsel %vm2944, %v2846, %v2004
      %v3008 = vsel %vm2944, %v2847, %v2006
      %v3009 = vsel %vm2944, %v2848, %v2008
      %v3010 = vsel %vm2944, %v2849, %v2010
      %v3011 = vsel %vm2944, %v2850, %v2012
      %v3012 = vsel %vm2944, %v2851, %v2014
      %v3013 = vsel %vm2944, %v2852, %v2016
      %v3014 = vsel %vm2944, %v2853, %v2018
      %v3015 = vsel %vm2944, %v2854, %v2020
      %v3016 = vsel %vm2944, %v2855, %v2022
      %v3017 = vsel %vm2944, %v2856, %v2024
      %v3018 = vsel %vm2944, %v2857, %v2026
      %v3019 = vsel %vm2944, %v2858, %v2028
      %v3020 = vsel %vm2944, %v2859, %v2030
      %v3021 = vsel %vm2944, %v2860, %v2032
      %v3022 = vsel %vm2944, %v2861, %v2034
      %v3023 = vsel %vm2944, %v2862, %v2036
      %v3024 = vsel %vm2944, %v2863, %v2038
      %v3025 = vsel %vm2944, %v2864, %v2040
      %v3026 = vsel %vm2944, %v2865, %v2042
      %v3027 = vsel %vm2944, %v2866, %v2044
      %v3028 = vsel %vm2944, %v2867, %v2046
      %v3029 = vsel %vm2944, %v2868, %v2048
      %v3030 = vsel %vm2944, %v2869, %v2050
      %v3031 = vsel %vm2944, %v2870, %v2052
      %v3032 = vsel %vm2944, %v2871, %v2054
      %v3033 = vsel %vm2944, %v2872, %v2056
      %v3034 = vsel %vm2944, %v2873, %v2058
      %v3035 = vsel %vm2944, %v2874, %v2060
      %v3036 = vsel %vm2944, %v2875, %v2062
      %v3037 = vsel %vm2944, %v2876, %v2064
      %v3038 = vsel %vm2944, %v2877, %v2066
      %v3039 = vsel %vm2944, %v2878, %v2068
      %v3040 = vsel %vm2944, %v2879, %v2070
      %v3041 = vsel %vm2944, %v2880, %v2072
      %v3042 = vsel %vm2944, %v2881, %v2074
      %v3043 = vsel %vm2944, %v2882, %v2076
      %v3044 = vsel %vm2944, %v2883, %v2078
      %v3045 = vsel %vm2944, %v2884, %v2080
      %v3046 = vsel %vm2944, %v2885, %v2082
      %v3047 = vsel %vm2944, %v2886, %v2084
      %v3048 = vsel %vm2944, %v2887, %v2086
      %v3049 = vsel %vm2944, %v2888, %v2088
      %v3050 = vsel %vm2944, %v2889, %v2090
      %v3051 = vsel %vm2944, %v2890, %v2092
      %v3052 = vsel %vm2944, %v2891, %v2094
      %v3053 = vsel %vm2944, %v2892, %v2096
      %v3054 = vsel %vm2944, %v2893, %v2098
      %v3055 = vsel %vm2944, %v2894, %v2100
      %v3056 = vsel %vm2944, %v2895, %v2102
      %v3057 = vsel %vm2944, %v2896, %v2104
      %v3058 = vsel %vm2944, %v2897, %v2106
      %v3059 = vsel %vm2944, %v2898, %v2108
      %v3060 = vsel %vm2944, %v2899, %v2110
      %v3061 = vsel %vm2944, %v2900, %v2112
      %v3062 = vsel %vm2944, %v2901, %v2114
      %v3063 = vsel %vm2944, %v2902, %v2116
      %v3064 = vsel %vm2944, %v2903, %v2118
      %v3065 = vsel %vm2944, %v2904, %v2120
      %v3066 = vsel %vm2944, %v2905, %v2122
      %v3067 = vsel %vm2944, %v2906, %v2124
      %v3068 = vsel %vm2944, %v2907, %v2126
      %v3069 = vsel %vm2944, %v2908, %v2128
      %v3070 = vsel %vm2944, %v2909, %v2130
      %v3071 = vsel %vm2944, %v2910, %v2132
      %v3072 = vsel %vm2944, %v2911, %v2134
      %v3073 = vsel %vm2944, %v2912, %v2136
      %v3074 = vsel %vm2944, %v2913, %v2138
      %v3075 = vsel %vm2944, %v2914, %v2140
      %v3076 = vsel %vm2944, %v2915, %v2142
      %v3077 = vsel %vm2944, %v2916, %v2144
      %v3078 = vsel %vm2944, %v2917, %v2146
      %v3079 = vsel %vm2944, %v2918, %v2148
      %v3080 = vsel %vm2944, %v2919, %v2150
      %v3081 = vsel %vm2944, %v2920, %v2152
      %v3082 = vsel %vm2944, %v2921, %v2154
      %v3083 = vsel %vm2944, %v2922, %v2156
      %v3084 = vsel %vm2944, %v2923, %v2158
      %v3085 = vsel %vm2944, %v2924, %v2160
      %v3086 = vsel %vm2944, %v2925, %v2162
      %v3087 = vsel %vm2944, %v2926, %v2164
      %v3088 = vsel %vm2944, %v2927, %v2166
      %v3089 = vsel %vm2944, %v2928, %v2168
      %v3090 = vsel %vm2944, %v2929, %v2170
      %v3091 = vsel %vm2944, %v2930, %v2172
      %v3092 = vsel %vm2944, %v2931, %v2174
      %v3093 = vsel %vm2944, %v2932, %v2176
      %v3094 = vsel %vm2944, %v2933, %v2178
      %v3095 = vsel %vm2944, %v2934, %v2180
      %v3096 = vsel %vm2944, %v2935, %v2182
      %v3097 = vsel %vm2944, %v2936, %v2184
      %v3098 = vsel %vm2944, %v2937, %v2186
      %v3099 = vsel %vm2944, %v2938, %v2188
      %v3100 = vsel %vm2944, %v2939, %v2190
      %v3101 = vsel %vm2944, %v2940, %v2192
      %v3102 = vsel %vm2944, %v2941, %v2194
      %v3103 = vsel %vm2944, %v2942, %v2196
      %v3104 = vsel %vm2944, %v2943, %v2198
      %vm3105 = vcmask 97280
      %v3106 = vsel %vm3105, %v2945, %v2361
      %v3107 = vsel %vm3105, %v2946, %v2363
      %v3108 = vsel %vm3105, %v2947, %v2365
      %v3109 = vsel %vm3105, %v2948, %v2367
      %v3110 = vsel %vm3105, %v2949, %v2369
      %v3111 = vsel %vm3105, %v2950, %v2371
      %v3112 = vsel %vm3105, %v2951, %v2373
      %v3113 = vsel %vm3105, %v2952, %v2375
      %v3114 = vsel %vm3105, %v2953, %v2377
      %v3115 = vsel %vm3105, %v2954, %v2379
      %v3116 = vsel %vm3105, %v2955, %v2381
      %v3117 = vsel %vm3105, %v2956, %v2383
      %v3118 = vsel %vm3105, %v2957, %v2385
      %v3119 = vsel %vm3105, %v2958, %v2387
      %v3120 = vsel %vm3105, %v2959, %v2389
      %v3121 = vsel %vm3105, %v2960, %v2391
      %v3122 = vsel %vm3105, %v2961, %v2393
      %v3123 = vsel %vm3105, %v2962, %v2395
      %v3124 = vsel %vm3105, %v2963, %v2397
      %v3125 = vsel %vm3105, %v2964, %v2399
      %v3126 = vsel %vm3105, %v2965, %v2401
      %v3127 = vsel %vm3105, %v2966, %v2403
      %v3128 = vsel %vm3105, %v2967, %v2405
      %v3129 = vsel %vm3105, %v2968, %v2407
      %v3130 = vsel %vm3105, %v2969, %v2409
      %v3131 = vsel %vm3105, %v2970, %v2411
      %v3132 = vsel %vm3105, %v2971, %v2413
      %v3133 = vsel %vm3105, %v2972, %v2415
      %v3134 = vsel %vm3105, %v2973, %v2417
      %v3135 = vsel %vm3105, %v2974, %v2419
      %v3136 = vsel %vm3105, %v2975, %v2421
      %v3137 = vsel %vm3105, %v2976, %v2423
      %v3138 = vsel %vm3105, %v2977, %v2425
      %v3139 = vsel %vm3105, %v2978, %v2427
      %v3140 = vsel %vm3105, %v2979, %v2429
      %v3141 = vsel %vm3105, %v2980, %v2431
      %v3142 = vsel %vm3105, %v2981, %v2433
      %v3143 = vsel %vm3105, %v2982, %v2435
      %v3144 = vsel %vm3105, %v2983, %v2437
      %v3145 = vsel %vm3105, %v2984, %v2439
      %v3146 = vsel %vm3105, %v2985, %v2441
      %v3147 = vsel %vm3105, %v2986, %v2443
      %v3148 = vsel %vm3105, %v2987, %v2445
      %v3149 = vsel %vm3105, %v2988, %v2447
      %v3150 = vsel %vm3105, %v2989, %v2449
      %v3151 = vsel %vm3105, %v2990, %v2451
      %v3152 = vsel %vm3105, %v2991, %v2453
      %v3153 = vsel %vm3105, %v2992, %v2455
      %v3154 = vsel %vm3105, %v2993, %v2457
      %v3155 = vsel %vm3105, %v2994, %v2459
      %v3156 = vsel %vm3105, %v2995, %v2461
      %v3157 = vsel %vm3105, %v2996, %v2463
      %v3158 = vsel %vm3105, %v2997, %v2465
      %v3159 = vsel %vm3105, %v2998, %v2467
      %v3160 = vsel %vm3105, %v2999, %v2469
      %v3161 = vsel %vm3105, %v3000, %v2471
      %v3162 = vsel %vm3105, %v3001, %v2473
      %v3163 = vsel %vm3105, %v3002, %v2475
      %v3164 = vsel %vm3105, %v3003, %v2477
      %v3165 = vsel %vm3105, %v3004, %v2479
      %v3166 = vsel %vm3105, %v3005, %v2481
      %v3167 = vsel %vm3105, %v3006, %v2483
      %v3168 = vsel %vm3105, %v3007, %v2485
      %v3169 = vsel %vm3105, %v3008, %v2487
      %v3170 = vsel %vm3105, %v3009, %v2489
      %v3171 = vsel %vm3105, %v3010, %v2491
      %v3172 = vsel %vm3105, %v3011, %v2493
      %v3173 = vsel %vm3105, %v3012, %v2495
      %v3174 = vsel %vm3105, %v3013, %v2497
      %v3175 = vsel %vm3105, %v3014, %v2499
      %v3176 = vsel %vm3105, %v3015, %v2501
      %v3177 = vsel %vm3105, %v3016, %v2503
      %v3178 = vsel %vm3105, %v3017, %v2505
      %v3179 = vsel %vm3105, %v3018, %v2507
      %v3180 = vsel %vm3105, %v3019, %v2509
      %v3181 = vsel %vm3105, %v3020, %v2511
      %v3182 = vsel %vm3105, %v3021, %v2513
      %v3183 = vsel %vm3105, %v3022, %v2515
      %v3184 = vsel %vm3105, %v3023, %v2517
      %v3185 = vsel %vm3105, %v3024, %v2519
      %v3186 = vsel %vm3105, %v3025, %v2521
      %v3187 = vsel %vm3105, %v3026, %v2523
      %v3188 = vsel %vm3105, %v3027, %v2525
      %v3189 = vsel %vm3105, %v3028, %v2527
      %v3190 = vsel %vm3105, %v3029, %v2529
      %v3191 = vsel %vm3105, %v3030, %v2531
      %v3192 = vsel %vm3105, %v3031, %v2533
      %v3193 = vsel %vm3105, %v3032, %v2535
      %v3194 = vsel %vm3105, %v3033, %v2537
      %v3195 = vsel %vm3105, %v3034, %v2539
      %v3196 = vsel %vm3105, %v3035, %v2541
      %v3197 = vsel %vm3105, %v3036, %v2543
      %v3198 = vsel %vm3105, %v3037, %v2545
      %v3199 = vsel %vm3105, %v3038, %v2547
      %v3200 = vsel %vm3105, %v3039, %v2549
      %v3201 = vsel %vm3105, %v3040, %v2551
      %v3202 = vsel %vm3105, %v3041, %v2553
      %v3203 = vsel %vm3105, %v3042, %v2555
      %v3204 = vsel %vm3105, %v3043, %v2557
      %v3205 = vsel %vm3105, %v3044, %v2559
      %v3206 = vsel %vm3105, %v3045, %v2561
      %v3207 = vsel %vm3105, %v3046, %v2563
      %v3208 = vsel %vm3105, %v3047, %v2565
      %v3209 = vsel %vm3105, %v3048, %v2567
      %v3210 = vsel %vm3105, %v3049, %v2569
      %v3211 = vsel %vm3105, %v3050, %v2571
      %v3212 = vsel %vm3105, %v3051, %v2573
      %v3213 = vsel %vm3105, %v3052, %v2575
      %v3214 = vsel %vm3105, %v3053, %v2577
      %v3215 = vsel %vm3105, %v3054, %v2579
      %v3216 = vsel %vm3105, %v3055, %v2581
      %v3217 = vsel %vm3105, %v3056, %v2583
      %v3218 = vsel %vm3105, %v3057, %v2585
      %v3219 = vsel %vm3105, %v3058, %v2587
      %v3220 = vsel %vm3105, %v3059, %v2589
      %v3221 = vsel %vm3105, %v3060, %v2591
      %v3222 = vsel %vm3105, %v3061, %v2593
      %v3223 = vsel %vm3105, %v3062, %v2595
      %v3224 = vsel %vm3105, %v3063, %v2597
      %v3225 = vsel %vm3105, %v3064, %v2599
      %v3226 = vsel %vm3105, %v3065, %v2601
      %v3227 = vsel %vm3105, %v3066, %v2603
      %v3228 = vsel %vm3105, %v3067, %v2605
      %v3229 = vsel %vm3105, %v3068, %v2607
      %v3230 = vsel %vm3105, %v3069, %v2609
      %v3231 = vsel %vm3105, %v3070, %v2611
      %v3232 = vsel %vm3105, %v3071, %v2613
      %v3233 = vsel %vm3105, %v3072, %v2615
      %v3234 = vsel %vm3105, %v3073, %v2617
      %v3235 = vsel %vm3105, %v3074, %v2619
      %v3236 = vsel %vm3105, %v3075, %v2621
      %v3237 = vsel %vm3105, %v3076, %v2623
      %v3238 = vsel %vm3105, %v3077, %v2625
      %v3239 = vsel %vm3105, %v3078, %v2627
      %v3240 = vsel %vm3105, %v3079, %v2629
      %v3241 = vsel %vm3105, %v3080, %v2631
      %v3242 = vsel %vm3105, %v3081, %v2633
      %v3243 = vsel %vm3105, %v3082, %v2635
      %v3244 = vsel %vm3105, %v3083, %v2637
      %v3245 = vsel %vm3105, %v3084, %v2639
      %v3246 = vsel %vm3105, %v3085, %v2641
      %v3247 = vsel %vm3105, %v3086, %v2641
      %v3248 = vsel %vm3105, %v3087, %v2641
      %v3249 = vsel %vm3105, %v3088, %v2641
      %v3250 = vsel %vm3105, %v3089, %v2641
      %v3251 = vsel %vm3105, %v3090, %v2641
      %v3252 = vsel %vm3105, %v3091, %v2641
      %v3253 = vsel %vm3105, %v3092, %v2641
      %v3254 = vsel %vm3105, %v3093, %v2641
      %v3255 = vsel %vm3105, %v3094, %v2641
      %v3256 = vsel %vm3105, %v3095, %v2641
      %v3257 = vsel %vm3105, %v3096, %v2641
      %v3258 = vsel %vm3105, %v3097, %v2641
      %v3259 = vsel %vm3105, %v3098, %v2641
      %v3260 = vsel %vm3105, %v3099, %v2641
      %v3261 = vsel %vm3105, %v3100, %v2641
      %v3262 = vsel %vm3105, %v3101, %v2641
      %v3263 = vsel %vm3105, %v3102, %v2641
      %v3264 = vsel %vm3105, %v3103, %v2641
      %v3265 = vsel %vm3105, %v3104, %v2641
      %v3266 = vmul.f32 %v3106, 0.25
      %v3267 = vmul.f32 %v3108, 0.25
      %v3268 = vmul.f32 %v3110, 0.25
      %v3269 = vmul.f32 %v3112, 0.25
      %v3270 = vmul.f32 %v3114, 0.25
      %v3271 = vmul.f32 %v3116, 0.25
      %v3272 = vmul.f32 %v3118, 0.25
      %v3273 = vmul.f32 %v3120, 0.25
      %v3274 = vmul.f32 %v3122, 0.25
      %v3275 = vmul.f32 %v3124, 0.25
      %v3276 = vmul.f32 %v3126, 0.25
      %v3277 = vmul.f32 %v3128, 0.25
      %v3278 = vmul.f32 %v3130, 0.25
      %v3279 = vmul.f32 %v3132, 0.25
      %v3280 = vmul.f32 %v3134, 0.25
      %v3281 = vmul.f32 %v3136, 0.25
      %v3282 = vmul.f32 %v3138, 0.25
      %v3283 = vmul.f32 %v3140, 0.25
      %v3284 = vmul.f32 %v3142, 0.25
      %v3285 = vmul.f32 %v3144, 0.25
      %v3286 = vmul.f32 %v3146, 0.25
      %v3287 = vmul.f32 %v3148, 0.25
      %v3288 = vmul.f32 %v3150, 0.25
      %v3289 = vmul.f32 %v3152, 0.25
      %v3290 = vmul.f32 %v3154, 0.25
      %v3291 = vmul.f32 %v3156, 0.25
      %v3292 = vmul.f32 %v3158, 0.25
      %v3293 = vmul.f32 %v3160, 0.25
      %v3294 = vmul.f32 %v3162, 0.25
      %v3295 = vmul.f32 %v3164, 0.25
      %v3296 = vmul.f32 %v3166, 0.25
      %v3297 = vmul.f32 %v3168, 0.25
      %v3298 = vmul.f32 %v3170, 0.25
      %v3299 = vmul.f32 %v3172, 0.25
      %v3300 = vmul.f32 %v3174, 0.25
      %v3301 = vmul.f32 %v3176, 0.25
      %v3302 = vmul.f32 %v3178, 0.25
      %v3303 = vmul.f32 %v3180, 0.25
      %v3304 = vmul.f32 %v3182, 0.25
      %v3305 = vmul.f32 %v3184, 0.25
      %v3306 = vmul.f32 %v3186, 0.25
      %v3307 = vmul.f32 %v3188, 0.25
      %v3308 = vmul.f32 %v3190, 0.25
      %v3309 = vmul.f32 %v3192, 0.25
      %v3310 = vmul.f32 %v3194, 0.25
      %v3311 = vmul.f32 %v3196, 0.25
      %v3312 = vmul.f32 %v3198, 0.25
      %v3313 = vmul.f32 %v3200, 0.25
      %v3314 = vmul.f32 %v3202, 0.25
      %v3315 = vmul.f32 %v3204, 0.25
      %v3316 = vmul.f32 %v3206, 0.25
      %v3317 = vmul.f32 %v3208, 0.25
      %v3318 = vmul.f32 %v3210, 0.25
      %v3319 = vmul.f32 %v3212, 0.25
      %v3320 = vmul.f32 %v3214, 0.25
      %v3321 = vmul.f32 %v3216, 0.25
      %v3322 = vmul.f32 %v3218, 0.25
      %v3323 = vmul.f32 %v3220, 0.25
      %v3324 = vmul.f32 %v3222, 0.25
      %v3325 = vmul.f32 %v3224, 0.25
      %v3326 = vmul.f32 %v3226, 0.25
      %v3327 = vmul.f32 %v3228, 0.25
      %v3328 = vmul.f32 %v3230, 0.25
      %v3329 = vmul.f32 %v3232, 0.25
      %v3330 = vmul.f32 %v3234, 0.25
      %v3331 = vmul.f32 %v3236, 0.25
      %v3332 = vmul.f32 %v3238, 0.25
      %v3333 = vmul.f32 %v3240, 0.25
      %v3334 = vmul.f32 %v3242, 0.25
      %v3335 = vmul.f32 %v3244, 0.25
      %v3336 = vmul.f32 %v3246, 0.25
      %v3337 = vmul.f32 %v3248, 0.25
      %v3338 = vmul.f32 %v3250, 0.25
      %v3339 = vmul.f32 %v3252, 0.25
      %v3340 = vmul.f32 %v3254, 0.25
      %v3341 = vmul.f32 %v3256, 0.25
      %v3342 = vmul.f32 %v3258, 0.25
      %v3343 = vmul.f32 %v3260, 0.25
      %v3344 = vmul.f32 %v3262, 0.25
      %v3345 = vmul.f32 %v3264, 0.25
      %v3346 = vmul.f32 %v3106, 0.75
      %v3347 = vmul.f32 %v3107, 0.75
      %v3348 = vmul.f32 %v3108, 0.75
      %v3349 = vmul.f32 %v3109, 0.75
      %v3350 = vmul.f32 %v3110, 0.75
      %v3351 = vmul.f32 %v3111, 0.75
      %v3352 = vmul.f32 %v3112, 0.75
      %v3353 = vmul.f32 %v3113, 0.75
      %v3354 = vmul.f32 %v3114, 0.75
      %v3355 = vmul.f32 %v3115, 0.75
      %v3356 = vmul.f32 %v3116, 0.75
      %v3357 = vmul.f32 %v3117, 0.75
      %v3358 = vmul.f32 %v3118, 0.75
      %v3359 = vmul.f32 %v3119, 0.75
      %v3360 = vmul.f32 %v3120, 0.75
      %v3361 = vmul.f32 %v3121, 0.75
      %v3362 = vmul.f32 %v3122, 0.75
      %v3363 = vmul.f32 %v3123, 0.75
      %v3364 = vmul.f32 %v3124, 0.75
      %v3365 = vmul.f32 %v3125, 0.75
      %v3366 = vmul.f32 %v3126, 0.75
      %v3367 = vmul.f32 %v3127, 0.75
      %v3368 = vmul.f32 %v3128, 0.75
      %v3369 = vmul.f32 %v3129, 0.75
      %v3370 = vmul.f32 %v3130, 0.75
      %v3371 = vmul.f32 %v3131, 0.75
      %v3372 = vmul.f32 %v3132, 0.75
      %v3373 = vmul.f32 %v3133, 0.75
      %v3374 = vmul.f32 %v3134, 0.75
      %v3375 = vmul.f32 %v3135, 0.75
      %v3376 = vmul.f32 %v3136, 0.75
      %v3377 = vmul.f32 %v3137, 0.75
      %v3378 = vmul.f32 %v3138, 0.75
      %v3379 = vmul.f32 %v3139, 0.75
      %v3380 = vmul.f32 %v3140, 0.75
      %v3381 = vmul.f32 %v3141, 0.75
      %v3382 = vmul.f32 %v3142, 0.75
      %v3383 = vmul.f32 %v3143, 0.75
      %v3384 = vmul.f32 %v3144, 0.75
      %v3385 = vmul.f32 %v3145, 0.75
      %v3386 = vmul.f32 %v3146, 0.75
      %v3387 = vmul.f32 %v3147, 0.75
      %v3388 = vmul.f32 %v3148, 0.75
      %v3389 = vmul.f32 %v3149, 0.75
      %v3390 = vmul.f32 %v3150, 0.75
      %v3391 = vmul.f32 %v3151, 0.75
      %v3392 = vmul.f32 %v3152, 0.75
      %v3393 = vmul.f32 %v3153, 0.75
      %v3394 = vmul.f32 %v3154, 0.75
      %v3395 = vmul.f32 %v3155, 0.75
      %v3396 = vmul.f32 %v3156, 0.75
      %v3397 = vmul.f32 %v3157, 0.75
      %v3398 = vmul.f32 %v3158, 0.75
      %v3399 = vmul.f32 %v3159, 0.75
      %v3400 = vmul.f32 %v3160, 0.75
      %v3401 = vmul.f32 %v3161, 0.75
      %v3402 = vmul.f32 %v3162, 0.75
      %v3403 = vmul.f32 %v3163, 0.75
      %v3404 = vmul.f32 %v3164, 0.75
      %v3405 = vmul.f32 %v3165, 0.75
      %v3406 = vmul.f32 %v3166, 0.75
      %v3407 = vmul.f32 %v3167, 0.75
      %v3408 = vmul.f32 %v3168, 0.75
      %v3409 = vmul.f32 %v3169, 0.75
      %v3410 = vmul.f32 %v3170, 0.75
      %v3411 = vmul.f32 %v3171, 0.75
      %v3412 = vmul.f32 %v3172, 0.75
      %v3413 = vmul.f32 %v3173, 0.75
      %v3414 = vmul.f32 %v3174, 0.75
      %v3415 = vmul.f32 %v3175, 0.75
      %v3416 = vmul.f32 %v3176, 0.75
      %v3417 = vmul.f32 %v3177, 0.75
      %v3418 = vmul.f32 %v3178, 0.75
      %v3419 = vmul.f32 %v3179, 0.75
      %v3420 = vmul.f32 %v3180, 0.75
      %v3421 = vmul.f32 %v3181, 0.75
      %v3422 = vmul.f32 %v3182, 0.75
      %v3423 = vmul.f32 %v3183, 0.75
      %v3424 = vmul.f32 %v3184, 0.75
      %v3425 = vmul.f32 %v3185, 0.75
      %v3426 = vmul.f32 %v3186, 0.75
      %v3427 = vmul.f32 %v3187, 0.75
      %v3428 = vmul.f32 %v3188, 0.75
      %v3429 = vmul.f32 %v3189, 0.75
      %v3430 = vmul.f32 %v3190, 0.75
      %v3431 = vmul.f32 %v3191, 0.75
      %v3432 = vmul.f32 %v3192, 0.75
      %v3433 = vmul.f32 %v3193, 0.75
      %v3434 = vmul.f32 %v3194, 0.75
      %v3435 = vmul.f32 %v3195, 0.75
      %v3436 = vmul.f32 %v3196, 0.75
      %v3437 = vmul.f32 %v3197, 0.75
      %v3438 = vmul.f32 %v3198, 0.75
      %v3439 = vmul.f32 %v3199, 0.75
      %v3440 = vmul.f32 %v3200, 0.75
      %v3441 = vmul.f32 %v3201, 0.75
      %v3442 = vmul.f32 %v3202, 0.75
      %v3443 = vmul.f32 %v3203, 0.75
      %v3444 = vmul.f32 %v3204, 0.75
      %v3445 = vmul.f32 %v3205, 0.75
      %v3446 = vmul.f32 %v3206, 0.75
      %v3447 = vmul.f32 %v3207, 0.75
      %v3448 = vmul.f32 %v3208, 0.75
      %v3449 = vmul.f32 %v3209, 0.75
      %v3450 = vmul.f32 %v3210, 0.75
      %v3451 = vmul.f32 %v3211, 0.75
      %v3452 = vmul.f32 %v3212, 0.75
      %v3453 = vmul.f32 %v3213, 0.75
      %v3454 = vmul.f32 %v3214, 0.75
      %v3455 = vmul.f32 %v3215, 0.75
      %v3456 = vmul.f32 %v3216, 0.75
      %v3457 = vmul.f32 %v3217, 0.75
      %v3458 = vmul.f32 %v3218, 0.75
      %v3459 = vmul.f32 %v3219, 0.75
      %v3460 = vmul.f32 %v3220, 0.75
      %v3461 = vmul.f32 %v3221, 0.75
      %v3462 = vmul.f32 %v3222, 0.75
      %v3463 = vmul.f32 %v3223, 0.75
      %v3464 = vmul.f32 %v3224, 0.75
      %v3465 = vmul.f32 %v3225, 0.75
      %v3466 = vmul.f32 %v3226, 0.75
      %v3467 = vmul.f32 %v3227, 0.75
      %v3468 = vmul.f32 %v3228, 0.75
      %v3469 = vmul.f32 %v3229, 0.75
      %v3470 = vmul.f32 %v3230, 0.75
      %v3471 = vmul.f32 %v3231, 0.75
      %v3472 = vmul.f32 %v3232, 0.75
      %v3473 = vmul.f32 %v3233, 0.75
      %v3474 = vmul.f32 %v3234, 0.75
      %v3475 = vmul.f32 %v3235, 0.75
      %v3476 = vmul.f32 %v3236, 0.75
      %v3477 = vmul.f32 %v3237, 0.75
      %v3478 = vmul.f32 %v3238, 0.75
      %v3479 = vmul.f32 %v3239, 0.75
      %v3480 = vmul.f32 %v3240, 0.75
      %v3481 = vmul.f32 %v3241, 0.75
      %v3482 = vmul.f32 %v3242, 0.75
      %v3483 = vmul.f32 %v3243, 0.75
      %v3484 = vmul.f32 %v3244, 0.75
      %v3485 = vmul.f32 %v3245, 0.75
      %v3486 = vmul.f32 %v3246, 0.75
      %v3487 = vmul.f32 %v3247, 0.75
      %v3488 = vmul.f32 %v3248, 0.75
      %v3489 = vmul.f32 %v3249, 0.75
      %v3490 = vmul.f32 %v3250, 0.75
      %v3491 = vmul.f32 %v3251, 0.75
      %v3492 = vmul.f32 %v3252, 0.75
      %v3493 = vmul.f32 %v3253, 0.75
      %v3494 = vmul.f32 %v3254, 0.75
      %v3495 = vmul.f32 %v3255, 0.75
      %v3496 = vmul.f32 %v3256, 0.75
      %v3497 = vmul.f32 %v3257, 0.75
      %v3498 = vmul.f32 %v3258, 0.75
      %v3499 = vmul.f32 %v3259, 0.75
      %v3500 = vmul.f32 %v3260, 0.75
      %v3501 = vmul.f32 %v3261, 0.75
      %v3502 = vmul.f32 %v3262, 0.75
      %v3503 = vmul.f32 %v3263, 0.75
      %v3504 = vmul.f32 %v3264, 0.75
      %v3505 = vmul.f32 %v3265, 0.75
      %vm3666 = vcmask 1046528
      %v3667 = vrot.slane %v3346, 1
      %v3668 = vrot.slane %v3347, 1
      %v3669 = vsel %vm3666, %v3667, %v3668
      %v3670 = vrot.slane %v3348, 1
      %v3671 = vrot.slane %v3349, 1
      %v3672 = vsel %vm3666, %v3670, %v3671
      %v3673 = vrot.slane %v3350, 1
      %v3674 = vrot.slane %v3351, 1
      %v3675 = vsel %vm3666, %v3673, %v3674
      %v3676 = vrot.slane %v3352, 1
      %v3677 = vrot.slane %v3353, 1
      %v3678 = vsel %vm3666, %v3676, %v3677
      %v3679 = vrot.slane %v3354, 1
      %v3680 = vrot.slane %v3355, 1
      %v3681 = vsel %vm3666, %v3679, %v3680
      %v3682 = vrot.slane %v3356, 1
      %v3683 = vrot.slane %v3357, 1
      %v3684 = vsel %vm3666, %v3682, %v3683
      %v3685 = vrot.slane %v3358, 1
      %v3686 = vrot.slane %v3359, 1
      %v3687 = vsel %vm3666, %v3685, %v3686
      %v3688 = vrot.slane %v3360, 1
      %v3689 = vrot.slane %v3361, 1
      %v3690 = vsel %vm3666, %v3688, %v3689
      %v3691 = vrot.slane %v3362, 1
      %v3692 = vrot.slane %v3363, 1
      %v3693 = vsel %vm3666, %v3691, %v3692
      %v3694 = vrot.slane %v3364, 1
      %v3695 = vrot.slane %v3365, 1
      %v3696 = vsel %vm3666, %v3694, %v3695
      %v3697 = vrot.slane %v3366, 1
      %v3698 = vrot.slane %v3367, 1
      %v3699 = vsel %vm3666, %v3697, %v3698
      %v3700 = vrot.slane %v3368, 1
      %v3701 = vrot.slane %v3369, 1
      %v3702 = vsel %vm3666, %v3700, %v3701
      %v3703 = vrot.slane %v3370, 1
      %v3704 = vrot.slane %v3371, 1
      %v3705 = vsel %vm3666, %v3703, %v3704
      %v3706 = vrot.slane %v3372, 1
      %v3707 = vrot.slane %v3373, 1
      %v3708 = vsel %vm3666, %v3706, %v3707
      %v3709 = vrot.slane %v3374, 1
      %v3710 = vrot.slane %v3375, 1
      %v3711 = vsel %vm3666, %v3709, %v3710
      %v3712 = vrot.slane %v3376, 1
      %v3713 = vrot.slane %v3377, 1
      %v3714 = vsel %vm3666, %v3712, %v3713
      %v3715 = vrot.slane %v3378, 1
      %v3716 = vrot.slane %v3379, 1
      %v3717 = vsel %vm3666, %v3715, %v3716
      %v3718 = vrot.slane %v3380, 1
      %v3719 = vrot.slane %v3381, 1
      %v3720 = vsel %vm3666, %v3718, %v3719
      %v3721 = vrot.slane %v3382, 1
      %v3722 = vrot.slane %v3383, 1
      %v3723 = vsel %vm3666, %v3721, %v3722
      %v3724 = vrot.slane %v3384, 1
      %v3725 = vrot.slane %v3385, 1
      %v3726 = vsel %vm3666, %v3724, %v3725
      %v3727 = vrot.slane %v3386, 1
      %v3728 = vrot.slane %v3387, 1
      %v3729 = vsel %vm3666, %v3727, %v3728
      %v3730 = vrot.slane %v3388, 1
      %v3731 = vrot.slane %v3389, 1
      %v3732 = vsel %vm3666, %v3730, %v3731
      %v3733 = vrot.slane %v3390, 1
      %v3734 = vrot.slane %v3391, 1
      %v3735 = vsel %vm3666, %v3733, %v3734
      %v3736 = vrot.slane %v3392, 1
      %v3737 = vrot.slane %v3393, 1
      %v3738 = vsel %vm3666, %v3736, %v3737
      %v3739 = vrot.slane %v3394, 1
      %v3740 = vrot.slane %v3395, 1
      %v3741 = vsel %vm3666, %v3739, %v3740
      %v3742 = vrot.slane %v3396, 1
      %v3743 = vrot.slane %v3397, 1
      %v3744 = vsel %vm3666, %v3742, %v3743
      %v3745 = vrot.slane %v3398, 1
      %v3746 = vrot.slane %v3399, 1
      %v3747 = vsel %vm3666, %v3745, %v3746
      %v3748 = vrot.slane %v3400, 1
      %v3749 = vrot.slane %v3401, 1
      %v3750 = vsel %vm3666, %v3748, %v3749
      %v3751 = vrot.slane %v3402, 1
      %v3752 = vrot.slane %v3403, 1
      %v3753 = vsel %vm3666, %v3751, %v3752
      %v3754 = vrot.slane %v3404, 1
      %v3755 = vrot.slane %v3405, 1
      %v3756 = vsel %vm3666, %v3754, %v3755
      %v3757 = vrot.slane %v3406, 1
      %v3758 = vrot.slane %v3407, 1
      %v3759 = vsel %vm3666, %v3757, %v3758
      %v3760 = vrot.slane %v3408, 1
      %v3761 = vrot.slane %v3409, 1
      %v3762 = vsel %vm3666, %v3760, %v3761
      %v3763 = vrot.slane %v3410, 1
      %v3764 = vrot.slane %v3411, 1
      %v3765 = vsel %vm3666, %v3763, %v3764
      %v3766 = vrot.slane %v3412, 1
      %v3767 = vrot.slane %v3413, 1
      %v3768 = vsel %vm3666, %v3766, %v3767
      %v3769 = vrot.slane %v3414, 1
      %v3770 = vrot.slane %v3415, 1
      %v3771 = vsel %vm3666, %v3769, %v3770
      %v3772 = vrot.slane %v3416, 1
      %v3773 = vrot.slane %v3417, 1
      %v3774 = vsel %vm3666, %v3772, %v3773
      %v3775 = vrot.slane %v3418, 1
      %v3776 = vrot.slane %v3419, 1
      %v3777 = vsel %vm3666, %v3775, %v3776
      %v3778 = vrot.slane %v3420, 1
      %v3779 = vrot.slane %v3421, 1
      %v3780 = vsel %vm3666, %v3778, %v3779
      %v3781 = vrot.slane %v3422, 1
      %v3782 = vrot.slane %v3423, 1
      %v3783 = vsel %vm3666, %v3781, %v3782
      %v3784 = vrot.slane %v3424, 1
      %v3785 = vrot.slane %v3425, 1
      %v3786 = vsel %vm3666, %v3784, %v3785
      %v3787 = vrot.slane %v3426, 1
      %v3788 = vrot.slane %v3427, 1
      %v3789 = vsel %vm3666, %v3787, %v3788
      %v3790 = vrot.slane %v3428, 1
      %v3791 = vrot.slane %v3429, 1
      %v3792 = vsel %vm3666, %v3790, %v3791
      %v3793 = vrot.slane %v3430, 1
      %v3794 = vrot.slane %v3431, 1
      %v3795 = vsel %vm3666, %v3793, %v3794
      %v3796 = vrot.slane %v3432, 1
      %v3797 = vrot.slane %v3433, 1
      %v3798 = vsel %vm3666, %v3796, %v3797
      %v3799 = vrot.slane %v3434, 1
      %v3800 = vrot.slane %v3435, 1
      %v3801 = vsel %vm3666, %v3799, %v3800
      %v3802 = vrot.slane %v3436, 1
      %v3803 = vrot.slane %v3437, 1
      %v3804 = vsel %vm3666, %v3802, %v3803
      %v3805 = vrot.slane %v3438, 1
      %v3806 = vrot.slane %v3439, 1
      %v3807 = vsel %vm3666, %v3805, %v3806
      %v3808 = vrot.slane %v3440, 1
      %v3809 = vrot.slane %v3441, 1
      %v3810 = vsel %vm3666, %v3808, %v3809
      %v3811 = vrot.slane %v3442, 1
      %v3812 = vrot.slane %v3443, 1
      %v3813 = vsel %vm3666, %v3811, %v3812
      %v3814 = vrot.slane %v3444, 1
      %v3815 = vrot.slane %v3445, 1
      %v3816 = vsel %vm3666, %v3814, %v3815
      %v3817 = vrot.slane %v3446, 1
      %v3818 = vrot.slane %v3447, 1
      %v3819 = vsel %vm3666, %v3817, %v3818
      %v3820 = vrot.slane %v3448, 1
      %v3821 = vrot.slane %v3449, 1
      %v3822 = vsel %vm3666, %v3820, %v3821
      %v3823 = vrot.slane %v3450, 1
      %v3824 = vrot.slane %v3451, 1
      %v3825 = vsel %vm3666, %v3823, %v3824
      %v3826 = vrot.slane %v3452, 1
      %v3827 = vrot.slane %v3453, 1
      %v3828 = vsel %vm3666, %v3826, %v3827
      %v3829 = vrot.slane %v3454, 1
      %v3830 = vrot.slane %v3455, 1
      %v3831 = vsel %vm3666, %v3829, %v3830
      %v3832 = vrot.slane %v3456, 1
      %v3833 = vrot.slane %v3457, 1
      %v3834 = vsel %vm3666, %v3832, %v3833
      %v3835 = vrot.slane %v3458, 1
      %v3836 = vrot.slane %v3459, 1
      %v3837 = vsel %vm3666, %v3835, %v3836
      %v3838 = vrot.slane %v3460, 1
      %v3839 = vrot.slane %v3461, 1
      %v3840 = vsel %vm3666, %v3838, %v3839
      %v3841 = vrot.slane %v3462, 1
      %v3842 = vrot.slane %v3463, 1
      %v3843 = vsel %vm3666, %v3841, %v3842
      %v3844 = vrot.slane %v3464, 1
      %v3845 = vrot.slane %v3465, 1
      %v3846 = vsel %vm3666, %v3844, %v3845
      %v3847 = vrot.slane %v3466, 1
      %v3848 = vrot.slane %v3467, 1
      %v3849 = vsel %vm3666, %v3847, %v3848
      %v3850 = vrot.slane %v3468, 1
      %v3851 = vrot.slane %v3469, 1
      %v3852 = vsel %vm3666, %v3850, %v3851
      %v3853 = vrot.slane %v3470, 1
      %v3854 = vrot.slane %v3471, 1
      %v3855 = vsel %vm3666, %v3853, %v3854
      %v3856 = vrot.slane %v3472, 1
      %v3857 = vrot.slane %v3473, 1
      %v3858 = vsel %vm3666, %v3856, %v3857
      %v3859 = vrot.slane %v3474, 1
      %v3860 = vrot.slane %v3475, 1
      %v3861 = vsel %vm3666, %v3859, %v3860
      %v3862 = vrot.slane %v3476, 1
      %v3863 = vrot.slane %v3477, 1
      %v3864 = vsel %vm3666, %v3862, %v3863
      %v3865 = vrot.slane %v3478, 1
      %v3866 = vrot.slane %v3479, 1
      %v3867 = vsel %vm3666, %v3865, %v3866
      %v3868 = vrot.slane %v3480, 1
      %v3869 = vrot.slane %v3481, 1
      %v3870 = vsel %vm3666, %v3868, %v3869
      %v3871 = vrot.slane %v3482, 1
      %v3872 = vrot.slane %v3483, 1
      %v3873 = vsel %vm3666, %v3871, %v3872
      %v3874 = vrot.slane %v3484, 1
      %v3875 = vrot.slane %v3485, 1
      %v3876 = vsel %vm3666, %v3874, %v3875
      %v3877 = vrot.slane %v3486, 1
      %v3878 = vrot.slane %v3487, 1
      %v3879 = vsel %vm3666, %v3877, %v3878
      %v3880 = vrot.slane %v3488, 1
      %v3881 = vrot.slane %v3489, 1
      %v3882 = vsel %vm3666, %v3880, %v3881
      %v3883 = vrot.slane %v3490, 1
      %v3884 = vrot.slane %v3491, 1
      %v3885 = vsel %vm3666, %v3883, %v3884
      %v3886 = vrot.slane %v3492, 1
      %v3887 = vrot.slane %v3493, 1
      %v3888 = vsel %vm3666, %v3886, %v3887
      %v3889 = vrot.slane %v3494, 1
      %v3890 = vrot.slane %v3495, 1
      %v3891 = vsel %vm3666, %v3889, %v3890
      %v3892 = vrot.slane %v3496, 1
      %v3893 = vrot.slane %v3497, 1
      %v3894 = vsel %vm3666, %v3892, %v3893
      %v3895 = vrot.slane %v3498, 1
      %v3896 = vrot.slane %v3499, 1
      %v3897 = vsel %vm3666, %v3895, %v3896
      %v3898 = vrot.slane %v3500, 1
      %v3899 = vrot.slane %v3501, 1
      %v3900 = vsel %vm3666, %v3898, %v3899
      %v3901 = vrot.slane %v3502, 1
      %v3902 = vrot.slane %v3503, 1
      %v3903 = vsel %vm3666, %v3901, %v3902
      %v3904 = vrot.slane %v3504, 1
      %v3905 = vrot.slane %v3505, 1
      %v3906 = vsel %vm3666, %v3904, %v3905
      %v3987 = vadd.f32 %v3266, %v3669
      %v3988 = vadd.f32 %v3267, %v3672
      %v3989 = vadd.f32 %v3268, %v3675
      %v3990 = vadd.f32 %v3269, %v3678
      %v3991 = vadd.f32 %v3270, %v3681
      %v3992 = vadd.f32 %v3271, %v3684
      %v3993 = vadd.f32 %v3272, %v3687
      %v3994 = vadd.f32 %v3273, %v3690
      %v3995 = vadd.f32 %v3274, %v3693
      %v3996 = vadd.f32 %v3275, %v3696
      %v3997 = vadd.f32 %v3276, %v3699
      %v3998 = vadd.f32 %v3277, %v3702
      %v3999 = vadd.f32 %v3278, %v3705
      %v4000 = vadd.f32 %v3279, %v3708
      %v4001 = vadd.f32 %v3280, %v3711
      %v4002 = vadd.f32 %v3281, %v3714
      %v4003 = vadd.f32 %v3282, %v3717
      %v4004 = vadd.f32 %v3283, %v3720
      %v4005 = vadd.f32 %v3284, %v3723
      %v4006 = vadd.f32 %v3285, %v3726
      %v4007 = vadd.f32 %v3286, %v3729
      %v4008 = vadd.f32 %v3287, %v3732
      %v4009 = vadd.f32 %v3288, %v3735
      %v4010 = vadd.f32 %v3289, %v3738
      %v4011 = vadd.f32 %v3290, %v3741
      %v4012 = vadd.f32 %v3291, %v3744
      %v4013 = vadd.f32 %v3292, %v3747
      %v4014 = vadd.f32 %v3293, %v3750
      %v4015 = vadd.f32 %v3294, %v3753
      %v4016 = vadd.f32 %v3295, %v3756
      %v4017 = vadd.f32 %v3296, %v3759
      %v4018 = vadd.f32 %v3297, %v3762
      %v4019 = vadd.f32 %v3298, %v3765
      %v4020 = vadd.f32 %v3299, %v3768
      %v4021 = vadd.f32 %v3300, %v3771
      %v4022 = vadd.f32 %v3301, %v3774
      %v4023 = vadd.f32 %v3302, %v3777
      %v4024 = vadd.f32 %v3303, %v3780
      %v4025 = vadd.f32 %v3304, %v3783
      %v4026 = vadd.f32 %v3305, %v3786
      %v4027 = vadd.f32 %v3306, %v3789
      %v4028 = vadd.f32 %v3307, %v3792
      %v4029 = vadd.f32 %v3308, %v3795
      %v4030 = vadd.f32 %v3309, %v3798
      %v4031 = vadd.f32 %v3310, %v3801
      %v4032 = vadd.f32 %v3311, %v3804
      %v4033 = vadd.f32 %v3312, %v3807
      %v4034 = vadd.f32 %v3313, %v3810
      %v4035 = vadd.f32 %v3314, %v3813
      %v4036 = vadd.f32 %v3315, %v3816
      %v4037 = vadd.f32 %v3316, %v3819
      %v4038 = vadd.f32 %v3317, %v3822
      %v4039 = vadd.f32 %v3318, %v3825
      %v4040 = vadd.f32 %v3319, %v3828
      %v4041 = vadd.f32 %v3320, %v3831
      %v4042 = vadd.f32 %v3321, %v3834
      %v4043 = vadd.f32 %v3322, %v3837
      %v4044 = vadd.f32 %v3323, %v3840
      %v4045 = vadd.f32 %v3324, %v3843
      %v4046 = vadd.f32 %v3325, %v3846
      %v4047 = vadd.f32 %v3326, %v3849
      %v4048 = vadd.f32 %v3327, %v3852
      %v4049 = vadd.f32 %v3328, %v3855
      %v4050 = vadd.f32 %v3329, %v3858
      %v4051 = vadd.f32 %v3330, %v3861
      %v4052 = vadd.f32 %v3331, %v3864
      %v4053 = vadd.f32 %v3332, %v3867
      %v4054 = vadd.f32 %v3333, %v3870
      %v4055 = vadd.f32 %v3334, %v3873
      %v4056 = vadd.f32 %v3335, %v3876
      %v4057 = vadd.f32 %v3336, %v3879
      %v4058 = vadd.f32 %v3337, %v3882
      %v4059 = vadd.f32 %v3338, %v3885
      %v4060 = vadd.f32 %v3339, %v3888
      %v4061 = vadd.f32 %v3340, %v3891
      %v4062 = vadd.f32 %v3341, %v3894
      %v4063 = vadd.f32 %v3342, %v3897
      %v4064 = vadd.f32 %v3343, %v3900
      %v4065 = vadd.f32 %v3344, %v3903
      %v4066 = vadd.f32 %v3345, %v3906
      %v4067 = vmul.f32 %v3107, 0.25
      %v4068 = vmul.f32 %v3109, 0.25
      %v4069 = vmul.f32 %v3111, 0.25
      %v4070 = vmul.f32 %v3113, 0.25
      %v4071 = vmul.f32 %v3115, 0.25
      %v4072 = vmul.f32 %v3117, 0.25
      %v4073 = vmul.f32 %v3119, 0.25
      %v4074 = vmul.f32 %v3121, 0.25
      %v4075 = vmul.f32 %v3123, 0.25
      %v4076 = vmul.f32 %v3125, 0.25
      %v4077 = vmul.f32 %v3127, 0.25
      %v4078 = vmul.f32 %v3129, 0.25
      %v4079 = vmul.f32 %v3131, 0.25
      %v4080 = vmul.f32 %v3133, 0.25
      %v4081 = vmul.f32 %v3135, 0.25
      %v4082 = vmul.f32 %v3137, 0.25
      %v4083 = vmul.f32 %v3139, 0.25
      %v4084 = vmul.f32 %v3141, 0.25
      %v4085 = vmul.f32 %v3143, 0.25
      %v4086 = vmul.f32 %v3145, 0.25
      %v4087 = vmul.f32 %v3147, 0.25
      %v4088 = vmul.f32 %v3149, 0.25
      %v4089 = vmul.f32 %v3151, 0.25
      %v4090 = vmul.f32 %v3153, 0.25
      %v4091 = vmul.f32 %v3155, 0.25
      %v4092 = vmul.f32 %v3157, 0.25
      %v4093 = vmul.f32 %v3159, 0.25
      %v4094 = vmul.f32 %v3161, 0.25
      %v4095 = vmul.f32 %v3163, 0.25
      %v4096 = vmul.f32 %v3165, 0.25
      %v4097 = vmul.f32 %v3167, 0.25
      %v4098 = vmul.f32 %v3169, 0.25
      %v4099 = vmul.f32 %v3171, 0.25
      %v4100 = vmul.f32 %v3173, 0.25
      %v4101 = vmul.f32 %v3175, 0.25
      %v4102 = vmul.f32 %v3177, 0.25
      %v4103 = vmul.f32 %v3179, 0.25
      %v4104 = vmul.f32 %v3181, 0.25
      %v4105 = vmul.f32 %v3183, 0.25
      %v4106 = vmul.f32 %v3185, 0.25
      %v4107 = vmul.f32 %v3187, 0.25
      %v4108 = vmul.f32 %v3189, 0.25
      %v4109 = vmul.f32 %v3191, 0.25
      %v4110 = vmul.f32 %v3193, 0.25
      %v4111 = vmul.f32 %v3195, 0.25
      %v4112 = vmul.f32 %v3197, 0.25
      %v4113 = vmul.f32 %v3199, 0.25
      %v4114 = vmul.f32 %v3201, 0.25
      %v4115 = vmul.f32 %v3203, 0.25
      %v4116 = vmul.f32 %v3205, 0.25
      %v4117 = vmul.f32 %v3207, 0.25
      %v4118 = vmul.f32 %v3209, 0.25
      %v4119 = vmul.f32 %v3211, 0.25
      %v4120 = vmul.f32 %v3213, 0.25
      %v4121 = vmul.f32 %v3215, 0.25
      %v4122 = vmul.f32 %v3217, 0.25
      %v4123 = vmul.f32 %v3219, 0.25
      %v4124 = vmul.f32 %v3221, 0.25
      %v4125 = vmul.f32 %v3223, 0.25
      %v4126 = vmul.f32 %v3225, 0.25
      %v4127 = vmul.f32 %v3227, 0.25
      %v4128 = vmul.f32 %v3229, 0.25
      %v4129 = vmul.f32 %v3231, 0.25
      %v4130 = vmul.f32 %v3233, 0.25
      %v4131 = vmul.f32 %v3235, 0.25
      %v4132 = vmul.f32 %v3237, 0.25
      %v4133 = vmul.f32 %v3239, 0.25
      %v4134 = vmul.f32 %v3241, 0.25
      %v4135 = vmul.f32 %v3243, 0.25
      %v4136 = vmul.f32 %v3245, 0.25
      %v4137 = vmul.f32 %v3247, 0.25
      %v4138 = vmul.f32 %v3249, 0.25
      %v4139 = vmul.f32 %v3251, 0.25
      %v4140 = vmul.f32 %v3253, 0.25
      %v4141 = vmul.f32 %v3255, 0.25
      %v4142 = vmul.f32 %v3257, 0.25
      %v4143 = vmul.f32 %v3259, 0.25
      %v4144 = vmul.f32 %v3261, 0.25
      %v4145 = vmul.f32 %v3263, 0.25
      %v4146 = vmul.f32 %v3265, 0.25
      %v4307 = vrot.slane %v3266, 1
      %v4308 = vrot.slane %v4067, 1
      %v4309 = vsel %vm3666, %v4307, %v4308
      %v4310 = vrot.slane %v3267, 1
      %v4311 = vrot.slane %v4068, 1
      %v4312 = vsel %vm3666, %v4310, %v4311
      %v4313 = vrot.slane %v3268, 1
      %v4314 = vrot.slane %v4069, 1
      %v4315 = vsel %vm3666, %v4313, %v4314
      %v4316 = vrot.slane %v3269, 1
      %v4317 = vrot.slane %v4070, 1
      %v4318 = vsel %vm3666, %v4316, %v4317
      %v4319 = vrot.slane %v3270, 1
      %v4320 = vrot.slane %v4071, 1
      %v4321 = vsel %vm3666, %v4319, %v4320
      %v4322 = vrot.slane %v3271, 1
      %v4323 = vrot.slane %v4072, 1
      %v4324 = vsel %vm3666, %v4322, %v4323
      %v4325 = vrot.slane %v3272, 1
      %v4326 = vrot.slane %v4073, 1
      %v4327 = vsel %vm3666, %v4325, %v4326
      %v4328 = vrot.slane %v3273, 1
      %v4329 = vrot.slane %v4074, 1
      %v4330 = vsel %vm3666, %v4328, %v4329
      %v4331 = vrot.slane %v3274, 1
      %v4332 = vrot.slane %v4075, 1
      %v4333 = vsel %vm3666, %v4331, %v4332
      %v4334 = vrot.slane %v3275, 1
      %v4335 = vrot.slane %v4076, 1
      %v4336 = vsel %vm3666, %v4334, %v4335
      %v4337 = vrot.slane %v3276, 1
      %v4338 = vrot.slane %v4077, 1
      %v4339 = vsel %vm3666, %v4337, %v4338
      %v4340 = vrot.slane %v3277, 1
      %v4341 = vrot.slane %v4078, 1
      %v4342 = vsel %vm3666, %v4340, %v4341
      %v4343 = vrot.slane %v3278, 1
      %v4344 = vrot.slane %v4079, 1
      %v4345 = vsel %vm3666, %v4343, %v4344
      %v4346 = vrot.slane %v3279, 1
      %v4347 = vrot.slane %v4080, 1
      %v4348 = vsel %vm3666, %v4346, %v4347
      %v4349 = vrot.slane %v3280, 1
      %v4350 = vrot.slane %v4081, 1
      %v4351 = vsel %vm3666, %v4349, %v4350
      %v4352 = vrot.slane %v3281, 1
      %v4353 = vrot.slane %v4082, 1
      %v4354 = vsel %vm3666, %v4352, %v4353
      %v4355 = vrot.slane %v3282, 1
      %v4356 = vrot.slane %v4083, 1
      %v4357 = vsel %vm3666, %v4355, %v4356
      %v4358 = vrot.slane %v3283, 1
      %v4359 = vrot.slane %v4084, 1
      %v4360 = vsel %vm3666, %v4358, %v4359
      %v4361 = vrot.slane %v3284, 1
      %v4362 = vrot.slane %v4085, 1
      %v4363 = vsel %vm3666, %v4361, %v4362
      %v4364 = vrot.slane %v3285, 1
      %v4365 = vrot.slane %v4086, 1
      %v4366 = vsel %vm3666, %v4364, %v4365
      %v4367 = vrot.slane %v3286, 1
      %v4368 = vrot.slane %v4087, 1
      %v4369 = vsel %vm3666, %v4367, %v4368
      %v4370 = vrot.slane %v3287, 1
      %v4371 = vrot.slane %v4088, 1
      %v4372 = vsel %vm3666, %v4370, %v4371
      %v4373 = vrot.slane %v3288, 1
      %v4374 = vrot.slane %v4089, 1
      %v4375 = vsel %vm3666, %v4373, %v4374
      %v4376 = vrot.slane %v3289, 1
      %v4377 = vrot.slane %v4090, 1
      %v4378 = vsel %vm3666, %v4376, %v4377
      %v4379 = vrot.slane %v3290, 1
      %v4380 = vrot.slane %v4091, 1
      %v4381 = vsel %vm3666, %v4379, %v4380
      %v4382 = vrot.slane %v3291, 1
      %v4383 = vrot.slane %v4092, 1
      %v4384 = vsel %vm3666, %v4382, %v4383
      %v4385 = vrot.slane %v3292, 1
      %v4386 = vrot.slane %v4093, 1
      %v4387 = vsel %vm3666, %v4385, %v4386
      %v4388 = vrot.slane %v3293, 1
      %v4389 = vrot.slane %v4094, 1
      %v4390 = vsel %vm3666, %v4388, %v4389
      %v4391 = vrot.slane %v3294, 1
      %v4392 = vrot.slane %v4095, 1
      %v4393 = vsel %vm3666, %v4391, %v4392
      %v4394 = vrot.slane %v3295, 1
      %v4395 = vrot.slane %v4096, 1
      %v4396 = vsel %vm3666, %v4394, %v4395
      %v4397 = vrot.slane %v3296, 1
      %v4398 = vrot.slane %v4097, 1
      %v4399 = vsel %vm3666, %v4397, %v4398
      %v4400 = vrot.slane %v3297, 1
      %v4401 = vrot.slane %v4098, 1
      %v4402 = vsel %vm3666, %v4400, %v4401
      %v4403 = vrot.slane %v3298, 1
      %v4404 = vrot.slane %v4099, 1
      %v4405 = vsel %vm3666, %v4403, %v4404
      %v4406 = vrot.slane %v3299, 1
      %v4407 = vrot.slane %v4100, 1
      %v4408 = vsel %vm3666, %v4406, %v4407
      %v4409 = vrot.slane %v3300, 1
      %v4410 = vrot.slane %v4101, 1
      %v4411 = vsel %vm3666, %v4409, %v4410
      %v4412 = vrot.slane %v3301, 1
      %v4413 = vrot.slane %v4102, 1
      %v4414 = vsel %vm3666, %v4412, %v4413
      %v4415 = vrot.slane %v3302, 1
      %v4416 = vrot.slane %v4103, 1
      %v4417 = vsel %vm3666, %v4415, %v4416
      %v4418 = vrot.slane %v3303, 1
      %v4419 = vrot.slane %v4104, 1
      %v4420 = vsel %vm3666, %v4418, %v4419
      %v4421 = vrot.slane %v3304, 1
      %v4422 = vrot.slane %v4105, 1
      %v4423 = vsel %vm3666, %v4421, %v4422
      %v4424 = vrot.slane %v3305, 1
      %v4425 = vrot.slane %v4106, 1
      %v4426 = vsel %vm3666, %v4424, %v4425
      %v4427 = vrot.slane %v3306, 1
      %v4428 = vrot.slane %v4107, 1
      %v4429 = vsel %vm3666, %v4427, %v4428
      %v4430 = vrot.slane %v3307, 1
      %v4431 = vrot.slane %v4108, 1
      %v4432 = vsel %vm3666, %v4430, %v4431
      %v4433 = vrot.slane %v3308, 1
      %v4434 = vrot.slane %v4109, 1
      %v4435 = vsel %vm3666, %v4433, %v4434
      %v4436 = vrot.slane %v3309, 1
      %v4437 = vrot.slane %v4110, 1
      %v4438 = vsel %vm3666, %v4436, %v4437
      %v4439 = vrot.slane %v3310, 1
      %v4440 = vrot.slane %v4111, 1
      %v4441 = vsel %vm3666, %v4439, %v4440
      %v4442 = vrot.slane %v3311, 1
      %v4443 = vrot.slane %v4112, 1
      %v4444 = vsel %vm3666, %v4442, %v4443
      %v4445 = vrot.slane %v3312, 1
      %v4446 = vrot.slane %v4113, 1
      %v4447 = vsel %vm3666, %v4445, %v4446
      %v4448 = vrot.slane %v3313, 1
      %v4449 = vrot.slane %v4114, 1
      %v4450 = vsel %vm3666, %v4448, %v4449
      %v4451 = vrot.slane %v3314, 1
      %v4452 = vrot.slane %v4115, 1
      %v4453 = vsel %vm3666, %v4451, %v4452
      %v4454 = vrot.slane %v3315, 1
      %v4455 = vrot.slane %v4116, 1
      %v4456 = vsel %vm3666, %v4454, %v4455
      %v4457 = vrot.slane %v3316, 1
      %v4458 = vrot.slane %v4117, 1
      %v4459 = vsel %vm3666, %v4457, %v4458
      %v4460 = vrot.slane %v3317, 1
      %v4461 = vrot.slane %v4118, 1
      %v4462 = vsel %vm3666, %v4460, %v4461
      %v4463 = vrot.slane %v3318, 1
      %v4464 = vrot.slane %v4119, 1
      %v4465 = vsel %vm3666, %v4463, %v4464
      %v4466 = vrot.slane %v3319, 1
      %v4467 = vrot.slane %v4120, 1
      %v4468 = vsel %vm3666, %v4466, %v4467
      %v4469 = vrot.slane %v3320, 1
      %v4470 = vrot.slane %v4121, 1
      %v4471 = vsel %vm3666, %v4469, %v4470
      %v4472 = vrot.slane %v3321, 1
      %v4473 = vrot.slane %v4122, 1
      %v4474 = vsel %vm3666, %v4472, %v4473
      %v4475 = vrot.slane %v3322, 1
      %v4476 = vrot.slane %v4123, 1
      %v4477 = vsel %vm3666, %v4475, %v4476
      %v4478 = vrot.slane %v3323, 1
      %v4479 = vrot.slane %v4124, 1
      %v4480 = vsel %vm3666, %v4478, %v4479
      %v4481 = vrot.slane %v3324, 1
      %v4482 = vrot.slane %v4125, 1
      %v4483 = vsel %vm3666, %v4481, %v4482
      %v4484 = vrot.slane %v3325, 1
      %v4485 = vrot.slane %v4126, 1
      %v4486 = vsel %vm3666, %v4484, %v4485
      %v4487 = vrot.slane %v3326, 1
      %v4488 = vrot.slane %v4127, 1
      %v4489 = vsel %vm3666, %v4487, %v4488
      %v4490 = vrot.slane %v3327, 1
      %v4491 = vrot.slane %v4128, 1
      %v4492 = vsel %vm3666, %v4490, %v4491
      %v4493 = vrot.slane %v3328, 1
      %v4494 = vrot.slane %v4129, 1
      %v4495 = vsel %vm3666, %v4493, %v4494
      %v4496 = vrot.slane %v3329, 1
      %v4497 = vrot.slane %v4130, 1
      %v4498 = vsel %vm3666, %v4496, %v4497
      %v4499 = vrot.slane %v3330, 1
      %v4500 = vrot.slane %v4131, 1
      %v4501 = vsel %vm3666, %v4499, %v4500
      %v4502 = vrot.slane %v3331, 1
      %v4503 = vrot.slane %v4132, 1
      %v4504 = vsel %vm3666, %v4502, %v4503
      %v4505 = vrot.slane %v3332, 1
      %v4506 = vrot.slane %v4133, 1
      %v4507 = vsel %vm3666, %v4505, %v4506
      %v4508 = vrot.slane %v3333, 1
      %v4509 = vrot.slane %v4134, 1
      %v4510 = vsel %vm3666, %v4508, %v4509
      %v4511 = vrot.slane %v3334, 1
      %v4512 = vrot.slane %v4135, 1
      %v4513 = vsel %vm3666, %v4511, %v4512
      %v4514 = vrot.slane %v3335, 1
      %v4515 = vrot.slane %v4136, 1
      %v4516 = vsel %vm3666, %v4514, %v4515
      %v4517 = vrot.slane %v3336, 1
      %v4518 = vrot.slane %v4137, 1
      %v4519 = vsel %vm3666, %v4517, %v4518
      %v4520 = vrot.slane %v3337, 1
      %v4521 = vrot.slane %v4138, 1
      %v4522 = vsel %vm3666, %v4520, %v4521
      %v4523 = vrot.slane %v3338, 1
      %v4524 = vrot.slane %v4139, 1
      %v4525 = vsel %vm3666, %v4523, %v4524
      %v4526 = vrot.slane %v3339, 1
      %v4527 = vrot.slane %v4140, 1
      %v4528 = vsel %vm3666, %v4526, %v4527
      %v4529 = vrot.slane %v3340, 1
      %v4530 = vrot.slane %v4141, 1
      %v4531 = vsel %vm3666, %v4529, %v4530
      %v4532 = vrot.slane %v3341, 1
      %v4533 = vrot.slane %v4142, 1
      %v4534 = vsel %vm3666, %v4532, %v4533
      %v4535 = vrot.slane %v3342, 1
      %v4536 = vrot.slane %v4143, 1
      %v4537 = vsel %vm3666, %v4535, %v4536
      %v4538 = vrot.slane %v3343, 1
      %v4539 = vrot.slane %v4144, 1
      %v4540 = vsel %vm3666, %v4538, %v4539
      %v4541 = vrot.slane %v3344, 1
      %v4542 = vrot.slane %v4145, 1
      %v4543 = vsel %vm3666, %v4541, %v4542
      %v4544 = vrot.slane %v3345, 1
      %v4545 = vrot.slane %v4146, 1
      %v4546 = vsel %vm3666, %v4544, %v4545
      %v4707 = vadd.f32 %v3346, %v4309
      %v4708 = vadd.f32 %v3347, %v4308
      %v4709 = vadd.f32 %v3348, %v4312
      %v4710 = vadd.f32 %v3349, %v4311
      %v4711 = vadd.f32 %v3350, %v4315
      %v4712 = vadd.f32 %v3351, %v4314
      %v4713 = vadd.f32 %v3352, %v4318
      %v4714 = vadd.f32 %v3353, %v4317
      %v4715 = vadd.f32 %v3354, %v4321
      %v4716 = vadd.f32 %v3355, %v4320
      %v4717 = vadd.f32 %v3356, %v4324
      %v4718 = vadd.f32 %v3357, %v4323
      %v4719 = vadd.f32 %v3358, %v4327
      %v4720 = vadd.f32 %v3359, %v4326
      %v4721 = vadd.f32 %v3360, %v4330
      %v4722 = vadd.f32 %v3361, %v4329
      %v4723 = vadd.f32 %v3362, %v4333
      %v4724 = vadd.f32 %v3363, %v4332
      %v4725 = vadd.f32 %v3364, %v4336
      %v4726 = vadd.f32 %v3365, %v4335
      %v4727 = vadd.f32 %v3366, %v4339
      %v4728 = vadd.f32 %v3367, %v4338
      %v4729 = vadd.f32 %v3368, %v4342
      %v4730 = vadd.f32 %v3369, %v4341
      %v4731 = vadd.f32 %v3370, %v4345
      %v4732 = vadd.f32 %v3371, %v4344
      %v4733 = vadd.f32 %v3372, %v4348
      %v4734 = vadd.f32 %v3373, %v4347
      %v4735 = vadd.f32 %v3374, %v4351
      %v4736 = vadd.f32 %v3375, %v4350
      %v4737 = vadd.f32 %v3376, %v4354
      %v4738 = vadd.f32 %v3377, %v4353
      %v4739 = vadd.f32 %v3378, %v4357
      %v4740 = vadd.f32 %v3379, %v4356
      %v4741 = vadd.f32 %v3380, %v4360
      %v4742 = vadd.f32 %v3381, %v4359
      %v4743 = vadd.f32 %v3382, %v4363
      %v4744 = vadd.f32 %v3383, %v4362
      %v4745 = vadd.f32 %v3384, %v4366
      %v4746 = vadd.f32 %v3385, %v4365
      %v4747 = vadd.f32 %v3386, %v4369
      %v4748 = vadd.f32 %v3387, %v4368
      %v4749 = vadd.f32 %v3388, %v4372
      %v4750 = vadd.f32 %v3389, %v4371
      %v4751 = vadd.f32 %v3390, %v4375
      %v4752 = vadd.f32 %v3391, %v4374
      %v4753 = vadd.f32 %v3392, %v4378
      %v4754 = vadd.f32 %v3393, %v4377
      %v4755 = vadd.f32 %v3394, %v4381
      %v4756 = vadd.f32 %v3395, %v4380
      %v4757 = vadd.f32 %v3396, %v4384
      %v4758 = vadd.f32 %v3397, %v4383
      %v4759 = vadd.f32 %v3398, %v4387
      %v4760 = vadd.f32 %v3399, %v4386
      %v4761 = vadd.f32 %v3400, %v4390
      %v4762 = vadd.f32 %v3401, %v4389
      %v4763 = vadd.f32 %v3402, %v4393
      %v4764 = vadd.f32 %v3403, %v4392
      %v4765 = vadd.f32 %v3404, %v4396
      %v4766 = vadd.f32 %v3405, %v4395
      %v4767 = vadd.f32 %v3406, %v4399
      %v4768 = vadd.f32 %v3407, %v4398
      %v4769 = vadd.f32 %v3408, %v4402
      %v4770 = vadd.f32 %v3409, %v4401
      %v4771 = vadd.f32 %v3410, %v4405
      %v4772 = vadd.f32 %v3411, %v4404
      %v4773 = vadd.f32 %v3412, %v4408
      %v4774 = vadd.f32 %v3413, %v4407
      %v4775 = vadd.f32 %v3414, %v4411
      %v4776 = vadd.f32 %v3415, %v4410
      %v4777 = vadd.f32 %v3416, %v4414
      %v4778 = vadd.f32 %v3417, %v4413
      %v4779 = vadd.f32 %v3418, %v4417
      %v4780 = vadd.f32 %v3419, %v4416
      %v4781 = vadd.f32 %v3420, %v4420
      %v4782 = vadd.f32 %v3421, %v4419
      %v4783 = vadd.f32 %v3422, %v4423
      %v4784 = vadd.f32 %v3423, %v4422
      %v4785 = vadd.f32 %v3424, %v4426
      %v4786 = vadd.f32 %v3425, %v4425
      %v4787 = vadd.f32 %v3426, %v4429
      %v4788 = vadd.f32 %v3427, %v4428
      %v4789 = vadd.f32 %v3428, %v4432
      %v4790 = vadd.f32 %v3429, %v4431
      %v4791 = vadd.f32 %v3430, %v4435
      %v4792 = vadd.f32 %v3431, %v4434
      %v4793 = vadd.f32 %v3432, %v4438
      %v4794 = vadd.f32 %v3433, %v4437
      %v4795 = vadd.f32 %v3434, %v4441
      %v4796 = vadd.f32 %v3435, %v4440
      %v4797 = vadd.f32 %v3436, %v4444
      %v4798 = vadd.f32 %v3437, %v4443
      %v4799 = vadd.f32 %v3438, %v4447
      %v4800 = vadd.f32 %v3439, %v4446
      %v4801 = vadd.f32 %v3440, %v4450
      %v4802 = vadd.f32 %v3441, %v4449
      %v4803 = vadd.f32 %v3442, %v4453
      %v4804 = vadd.f32 %v3443, %v4452
      %v4805 = vadd.f32 %v3444, %v4456
      %v4806 = vadd.f32 %v3445, %v4455
      %v4807 = vadd.f32 %v3446, %v4459
      %v4808 = vadd.f32 %v3447, %v4458
      %v4809 = vadd.f32 %v3448, %v4462
      %v4810 = vadd.f32 %v3449, %v4461
      %v4811 = vadd.f32 %v3450, %v4465
      %v4812 = vadd.f32 %v3451, %v4464
      %v4813 = vadd.f32 %v3452, %v4468
      %v4814 = vadd.f32 %v3453, %v4467
      %v4815 = vadd.f32 %v3454, %v4471
      %v4816 = vadd.f32 %v3455, %v4470
      %v4817 = vadd.f32 %v3456, %v4474
      %v4818 = vadd.f32 %v3457, %v4473
      %v4819 = vadd.f32 %v3458, %v4477
      %v4820 = vadd.f32 %v3459, %v4476
      %v4821 = vadd.f32 %v3460, %v4480
      %v4822 = vadd.f32 %v3461, %v4479
      %v4823 = vadd.f32 %v3462, %v4483
      %v4824 = vadd.f32 %v3463, %v4482
      %v4825 = vadd.f32 %v3464, %v4486
      %v4826 = vadd.f32 %v3465, %v4485
      %v4827 = vadd.f32 %v3466, %v4489
      %v4828 = vadd.f32 %v3467, %v4488
      %v4829 = vadd.f32 %v3468, %v4492
      %v4830 = vadd.f32 %v3469, %v4491
      %v4831 = vadd.f32 %v3470, %v4495
      %v4832 = vadd.f32 %v3471, %v4494
      %v4833 = vadd.f32 %v3472, %v4498
      %v4834 = vadd.f32 %v3473, %v4497
      %v4835 = vadd.f32 %v3474, %v4501
      %v4836 = vadd.f32 %v3475, %v4500
      %v4837 = vadd.f32 %v3476, %v4504
      %v4838 = vadd.f32 %v3477, %v4503
      %v4839 = vadd.f32 %v3478, %v4507
      %v4840 = vadd.f32 %v3479, %v4506
      %v4841 = vadd.f32 %v3480, %v4510
      %v4842 = vadd.f32 %v3481, %v4509
      %v4843 = vadd.f32 %v3482, %v4513
      %v4844 = vadd.f32 %v3483, %v4512
      %v4845 = vadd.f32 %v3484, %v4516
      %v4846 = vadd.f32 %v3485, %v4515
      %v4847 = vadd.f32 %v3486, %v4519
      %v4848 = vadd.f32 %v3487, %v4518
      %v4849 = vadd.f32 %v3488, %v4522
      %v4850 = vadd.f32 %v3489, %v4521
      %v4851 = vadd.f32 %v3490, %v4525
      %v4852 = vadd.f32 %v3491, %v4524
      %v4853 = vadd.f32 %v3492, %v4528
      %v4854 = vadd.f32 %v3493, %v4527
      %v4855 = vadd.f32 %v3494, %v4531
      %v4856 = vadd.f32 %v3495, %v4530
      %v4857 = vadd.f32 %v3496, %v4534
      %v4858 = vadd.f32 %v3497, %v4533
      %v4859 = vadd.f32 %v3498, %v4537
      %v4860 = vadd.f32 %v3499, %v4536
      %v4861 = vadd.f32 %v3500, %v4540
      %v4862 = vadd.f32 %v3501, %v4539
      %v4863 = vadd.f32 %v3502, %v4543
      %v4864 = vadd.f32 %v3503, %v4542
      %v4865 = vadd.f32 %v3504, %v4546
      %v4866 = vadd.f32 %v3505, %v4545
      %v5027 = vrot.slane %v4707, 1
      %v5028 = vrot.slane %v4708, 1
      %v5029 = vsel %vm3666, %v5027, %v5028
      %v5030 = vrot.slane %v4709, 1
      %v5031 = vrot.slane %v4710, 1
      %v5032 = vsel %vm3666, %v5030, %v5031
      %v5033 = vrot.slane %v4711, 1
      %v5034 = vrot.slane %v4712, 1
      %v5035 = vsel %vm3666, %v5033, %v5034
      %v5036 = vrot.slane %v4713, 1
      %v5037 = vrot.slane %v4714, 1
      %v5038 = vsel %vm3666, %v5036, %v5037
      %v5039 = vrot.slane %v4715, 1
      %v5040 = vrot.slane %v4716, 1
      %v5041 = vsel %vm3666, %v5039, %v5040
      %v5042 = vrot.slane %v4717, 1
      %v5043 = vrot.slane %v4718, 1
      %v5044 = vsel %vm3666, %v5042, %v5043
      %v5045 = vrot.slane %v4719, 1
      %v5046 = vrot.slane %v4720, 1
      %v5047 = vsel %vm3666, %v5045, %v5046
      %v5048 = vrot.slane %v4721, 1
      %v5049 = vrot.slane %v4722, 1
      %v5050 = vsel %vm3666, %v5048, %v5049
      %v5051 = vrot.slane %v4723, 1
      %v5052 = vrot.slane %v4724, 1
      %v5053 = vsel %vm3666, %v5051, %v5052
      %v5054 = vrot.slane %v4725, 1
      %v5055 = vrot.slane %v4726, 1
      %v5056 = vsel %vm3666, %v5054, %v5055
      %v5057 = vrot.slane %v4727, 1
      %v5058 = vrot.slane %v4728, 1
      %v5059 = vsel %vm3666, %v5057, %v5058
      %v5060 = vrot.slane %v4729, 1
      %v5061 = vrot.slane %v4730, 1
      %v5062 = vsel %vm3666, %v5060, %v5061
      %v5063 = vrot.slane %v4731, 1
      %v5064 = vrot.slane %v4732, 1
      %v5065 = vsel %vm3666, %v5063, %v5064
      %v5066 = vrot.slane %v4733, 1
      %v5067 = vrot.slane %v4734, 1
      %v5068 = vsel %vm3666, %v5066, %v5067
      %v5069 = vrot.slane %v4735, 1
      %v5070 = vrot.slane %v4736, 1
      %v5071 = vsel %vm3666, %v5069, %v5070
      %v5072 = vrot.slane %v4737, 1
      %v5073 = vrot.slane %v4738, 1
      %v5074 = vsel %vm3666, %v5072, %v5073
      %v5075 = vrot.slane %v4739, 1
      %v5076 = vrot.slane %v4740, 1
      %v5077 = vsel %vm3666, %v5075, %v5076
      %v5078 = vrot.slane %v4741, 1
      %v5079 = vrot.slane %v4742, 1
      %v5080 = vsel %vm3666, %v5078, %v5079
      %v5081 = vrot.slane %v4743, 1
      %v5082 = vrot.slane %v4744, 1
      %v5083 = vsel %vm3666, %v5081, %v5082
      %v5084 = vrot.slane %v4745, 1
      %v5085 = vrot.slane %v4746, 1
      %v5086 = vsel %vm3666, %v5084, %v5085
      %v5087 = vrot.slane %v4747, 1
      %v5088 = vrot.slane %v4748, 1
      %v5089 = vsel %vm3666, %v5087, %v5088
      %v5090 = vrot.slane %v4749, 1
      %v5091 = vrot.slane %v4750, 1
      %v5092 = vsel %vm3666, %v5090, %v5091
      %v5093 = vrot.slane %v4751, 1
      %v5094 = vrot.slane %v4752, 1
      %v5095 = vsel %vm3666, %v5093, %v5094
      %v5096 = vrot.slane %v4753, 1
      %v5097 = vrot.slane %v4754, 1
      %v5098 = vsel %vm3666, %v5096, %v5097
      %v5099 = vrot.slane %v4755, 1
      %v5100 = vrot.slane %v4756, 1
      %v5101 = vsel %vm3666, %v5099, %v5100
      %v5102 = vrot.slane %v4757, 1
      %v5103 = vrot.slane %v4758, 1
      %v5104 = vsel %vm3666, %v5102, %v5103
      %v5105 = vrot.slane %v4759, 1
      %v5106 = vrot.slane %v4760, 1
      %v5107 = vsel %vm3666, %v5105, %v5106
      %v5108 = vrot.slane %v4761, 1
      %v5109 = vrot.slane %v4762, 1
      %v5110 = vsel %vm3666, %v5108, %v5109
      %v5111 = vrot.slane %v4763, 1
      %v5112 = vrot.slane %v4764, 1
      %v5113 = vsel %vm3666, %v5111, %v5112
      %v5114 = vrot.slane %v4765, 1
      %v5115 = vrot.slane %v4766, 1
      %v5116 = vsel %vm3666, %v5114, %v5115
      %v5117 = vrot.slane %v4767, 1
      %v5118 = vrot.slane %v4768, 1
      %v5119 = vsel %vm3666, %v5117, %v5118
      %v5120 = vrot.slane %v4769, 1
      %v5121 = vrot.slane %v4770, 1
      %v5122 = vsel %vm3666, %v5120, %v5121
      %v5123 = vrot.slane %v4771, 1
      %v5124 = vrot.slane %v4772, 1
      %v5125 = vsel %vm3666, %v5123, %v5124
      %v5126 = vrot.slane %v4773, 1
      %v5127 = vrot.slane %v4774, 1
      %v5128 = vsel %vm3666, %v5126, %v5127
      %v5129 = vrot.slane %v4775, 1
      %v5130 = vrot.slane %v4776, 1
      %v5131 = vsel %vm3666, %v5129, %v5130
      %v5132 = vrot.slane %v4777, 1
      %v5133 = vrot.slane %v4778, 1
      %v5134 = vsel %vm3666, %v5132, %v5133
      %v5135 = vrot.slane %v4779, 1
      %v5136 = vrot.slane %v4780, 1
      %v5137 = vsel %vm3666, %v5135, %v5136
      %v5138 = vrot.slane %v4781, 1
      %v5139 = vrot.slane %v4782, 1
      %v5140 = vsel %vm3666, %v5138, %v5139
      %v5141 = vrot.slane %v4783, 1
      %v5142 = vrot.slane %v4784, 1
      %v5143 = vsel %vm3666, %v5141, %v5142
      %v5144 = vrot.slane %v4785, 1
      %v5145 = vrot.slane %v4786, 1
      %v5146 = vsel %vm3666, %v5144, %v5145
      %v5147 = vrot.slane %v4787, 1
      %v5148 = vrot.slane %v4788, 1
      %v5149 = vsel %vm3666, %v5147, %v5148
      %v5150 = vrot.slane %v4789, 1
      %v5151 = vrot.slane %v4790, 1
      %v5152 = vsel %vm3666, %v5150, %v5151
      %v5153 = vrot.slane %v4791, 1
      %v5154 = vrot.slane %v4792, 1
      %v5155 = vsel %vm3666, %v5153, %v5154
      %v5156 = vrot.slane %v4793, 1
      %v5157 = vrot.slane %v4794, 1
      %v5158 = vsel %vm3666, %v5156, %v5157
      %v5159 = vrot.slane %v4795, 1
      %v5160 = vrot.slane %v4796, 1
      %v5161 = vsel %vm3666, %v5159, %v5160
      %v5162 = vrot.slane %v4797, 1
      %v5163 = vrot.slane %v4798, 1
      %v5164 = vsel %vm3666, %v5162, %v5163
      %v5165 = vrot.slane %v4799, 1
      %v5166 = vrot.slane %v4800, 1
      %v5167 = vsel %vm3666, %v5165, %v5166
      %v5168 = vrot.slane %v4801, 1
      %v5169 = vrot.slane %v4802, 1
      %v5170 = vsel %vm3666, %v5168, %v5169
      %v5171 = vrot.slane %v4803, 1
      %v5172 = vrot.slane %v4804, 1
      %v5173 = vsel %vm3666, %v5171, %v5172
      %v5174 = vrot.slane %v4805, 1
      %v5175 = vrot.slane %v4806, 1
      %v5176 = vsel %vm3666, %v5174, %v5175
      %v5177 = vrot.slane %v4807, 1
      %v5178 = vrot.slane %v4808, 1
      %v5179 = vsel %vm3666, %v5177, %v5178
      %v5180 = vrot.slane %v4809, 1
      %v5181 = vrot.slane %v4810, 1
      %v5182 = vsel %vm3666, %v5180, %v5181
      %v5183 = vrot.slane %v4811, 1
      %v5184 = vrot.slane %v4812, 1
      %v5185 = vsel %vm3666, %v5183, %v5184
      %v5186 = vrot.slane %v4813, 1
      %v5187 = vrot.slane %v4814, 1
      %v5188 = vsel %vm3666, %v5186, %v5187
      %v5189 = vrot.slane %v4815, 1
      %v5190 = vrot.slane %v4816, 1
      %v5191 = vsel %vm3666, %v5189, %v5190
      %v5192 = vrot.slane %v4817, 1
      %v5193 = vrot.slane %v4818, 1
      %v5194 = vsel %vm3666, %v5192, %v5193
      %v5195 = vrot.slane %v4819, 1
      %v5196 = vrot.slane %v4820, 1
      %v5197 = vsel %vm3666, %v5195, %v5196
      %v5198 = vrot.slane %v4821, 1
      %v5199 = vrot.slane %v4822, 1
      %v5200 = vsel %vm3666, %v5198, %v5199
      %v5201 = vrot.slane %v4823, 1
      %v5202 = vrot.slane %v4824, 1
      %v5203 = vsel %vm3666, %v5201, %v5202
      %v5204 = vrot.slane %v4825, 1
      %v5205 = vrot.slane %v4826, 1
      %v5206 = vsel %vm3666, %v5204, %v5205
      %v5207 = vrot.slane %v4827, 1
      %v5208 = vrot.slane %v4828, 1
      %v5209 = vsel %vm3666, %v5207, %v5208
      %v5210 = vrot.slane %v4829, 1
      %v5211 = vrot.slane %v4830, 1
      %v5212 = vsel %vm3666, %v5210, %v5211
      %v5213 = vrot.slane %v4831, 1
      %v5214 = vrot.slane %v4832, 1
      %v5215 = vsel %vm3666, %v5213, %v5214
      %v5216 = vrot.slane %v4833, 1
      %v5217 = vrot.slane %v4834, 1
      %v5218 = vsel %vm3666, %v5216, %v5217
      %v5219 = vrot.slane %v4835, 1
      %v5220 = vrot.slane %v4836, 1
      %v5221 = vsel %vm3666, %v5219, %v5220
      %v5222 = vrot.slane %v4837, 1
      %v5223 = vrot.slane %v4838, 1
      %v5224 = vsel %vm3666, %v5222, %v5223
      %v5225 = vrot.slane %v4839, 1
      %v5226 = vrot.slane %v4840, 1
      %v5227 = vsel %vm3666, %v5225, %v5226
      %v5228 = vrot.slane %v4841, 1
      %v5229 = vrot.slane %v4842, 1
      %v5230 = vsel %vm3666, %v5228, %v5229
      %v5231 = vrot.slane %v4843, 1
      %v5232 = vrot.slane %v4844, 1
      %v5233 = vsel %vm3666, %v5231, %v5232
      %v5234 = vrot.slane %v4845, 1
      %v5235 = vrot.slane %v4846, 1
      %v5236 = vsel %vm3666, %v5234, %v5235
      %v5237 = vrot.slane %v4847, 1
      %v5238 = vrot.slane %v4848, 1
      %v5239 = vsel %vm3666, %v5237, %v5238
      %v5240 = vrot.slane %v4849, 1
      %v5241 = vrot.slane %v4850, 1
      %v5242 = vsel %vm3666, %v5240, %v5241
      %v5243 = vrot.slane %v4851, 1
      %v5244 = vrot.slane %v4852, 1
      %v5245 = vsel %vm3666, %v5243, %v5244
      %v5246 = vrot.slane %v4853, 1
      %v5247 = vrot.slane %v4854, 1
      %v5248 = vsel %vm3666, %v5246, %v5247
      %v5249 = vrot.slane %v4855, 1
      %v5250 = vrot.slane %v4856, 1
      %v5251 = vsel %vm3666, %v5249, %v5250
      %v5252 = vrot.slane %v4857, 1
      %v5253 = vrot.slane %v4858, 1
      %v5254 = vsel %vm3666, %v5252, %v5253
      %v5255 = vrot.slane %v4859, 1
      %v5256 = vrot.slane %v4860, 1
      %v5257 = vsel %vm3666, %v5255, %v5256
      %v5258 = vrot.slane %v4861, 1
      %v5259 = vrot.slane %v4862, 1
      %v5260 = vsel %vm3666, %v5258, %v5259
      %v5261 = vrot.slane %v4863, 1
      %v5262 = vrot.slane %v4864, 1
      %v5263 = vsel %vm3666, %v5261, %v5262
      %v5264 = vrot.slane %v4865, 1
      %v5265 = vrot.slane %v4866, 1
      %v5266 = vsel %vm3666, %v5264, %v5265
      %5267 = vrot.lane.b32.xlu0 %v5029, 16
      %v5268 = vpop.permute.xlu0 %5267
      %5269 = vrot.lane.b32.xlu0 %v5032, 16
      %v5270 = vpop.permute.xlu0 %5269
      %5271 = vrot.lane.b32.xlu0 %v5035, 16
      %v5272 = vpop.permute.xlu0 %5271
      %5273 = vrot.lane.b32.xlu0 %v5038, 16
      %v5274 = vpop.permute.xlu0 %5273
      %5275 = vrot.lane.b32.xlu0 %v5041, 16
      %v5276 = vpop.permute.xlu0 %5275
      %5277 = vrot.lane.b32.xlu0 %v5044, 16
      %v5278 = vpop.permute.xlu0 %5277
      %5279 = vrot.lane.b32.xlu0 %v5047, 16
      %v5280 = vpop.permute.xlu0 %5279
      %5281 = vrot.lane.b32.xlu0 %v5050, 16
      %v5282 = vpop.permute.xlu0 %5281
      %5283 = vrot.lane.b32.xlu0 %v5053, 16
      %v5284 = vpop.permute.xlu0 %5283
      %5285 = vrot.lane.b32.xlu0 %v5056, 16
      %v5286 = vpop.permute.xlu0 %5285
      %5287 = vrot.lane.b32.xlu0 %v5059, 16
      %v5288 = vpop.permute.xlu0 %5287
      %5289 = vrot.lane.b32.xlu0 %v5062, 16
      %v5290 = vpop.permute.xlu0 %5289
      %5291 = vrot.lane.b32.xlu0 %v5065, 16
      %v5292 = vpop.permute.xlu0 %5291
      %5293 = vrot.lane.b32.xlu0 %v5068, 16
      %v5294 = vpop.permute.xlu0 %5293
      %5295 = vrot.lane.b32.xlu0 %v5071, 16
      %v5296 = vpop.permute.xlu0 %5295
      %5297 = vrot.lane.b32.xlu0 %v5074, 16
      %v5298 = vpop.permute.xlu0 %5297
      %5299 = vrot.lane.b32.xlu0 %v5077, 16
      %v5300 = vpop.permute.xlu0 %5299
      %5301 = vrot.lane.b32.xlu0 %v5080, 16
      %v5302 = vpop.permute.xlu0 %5301
      %5303 = vrot.lane.b32.xlu0 %v5083, 16
      %v5304 = vpop.permute.xlu0 %5303
      %5305 = vrot.lane.b32.xlu0 %v5086, 16
      %v5306 = vpop.permute.xlu0 %5305
      %5307 = vrot.lane.b32.xlu0 %v5089, 16
      %v5308 = vpop.permute.xlu0 %5307
      %5309 = vrot.lane.b32.xlu0 %v5092, 16
      %v5310 = vpop.permute.xlu0 %5309
      %5311 = vrot.lane.b32.xlu0 %v5095, 16
      %v5312 = vpop.permute.xlu0 %5311
      %5313 = vrot.lane.b32.xlu0 %v5098, 16
      %v5314 = vpop.permute.xlu0 %5313
      %5315 = vrot.lane.b32.xlu0 %v5101, 16
      %v5316 = vpop.permute.xlu0 %5315
      %5317 = vrot.lane.b32.xlu0 %v5104, 16
      %v5318 = vpop.permute.xlu0 %5317
      %5319 = vrot.lane.b32.xlu0 %v5107, 16
      %v5320 = vpop.permute.xlu0 %5319
      %5321 = vrot.lane.b32.xlu0 %v5110, 16
      %v5322 = vpop.permute.xlu0 %5321
      %5323 = vrot.lane.b32.xlu0 %v5113, 16
      %v5324 = vpop.permute.xlu0 %5323
      %5325 = vrot.lane.b32.xlu0 %v5116, 16
      %v5326 = vpop.permute.xlu0 %5325
      %5327 = vrot.lane.b32.xlu0 %v5119, 16
      %v5328 = vpop.permute.xlu0 %5327
      %5329 = vrot.lane.b32.xlu0 %v5122, 16
      %v5330 = vpop.permute.xlu0 %5329
      %5331 = vrot.lane.b32.xlu0 %v5125, 16
      %v5332 = vpop.permute.xlu0 %5331
      %5333 = vrot.lane.b32.xlu0 %v5128, 16
      %v5334 = vpop.permute.xlu0 %5333
      %5335 = vrot.lane.b32.xlu0 %v5131, 16
      %v5336 = vpop.permute.xlu0 %5335
      %5337 = vrot.lane.b32.xlu0 %v5134, 16
      %v5338 = vpop.permute.xlu0 %5337
      %5339 = vrot.lane.b32.xlu0 %v5137, 16
      %v5340 = vpop.permute.xlu0 %5339
      %5341 = vrot.lane.b32.xlu0 %v5140, 16
      %v5342 = vpop.permute.xlu0 %5341
      %5343 = vrot.lane.b32.xlu0 %v5143, 16
      %v5344 = vpop.permute.xlu0 %5343
      %5345 = vrot.lane.b32.xlu0 %v5146, 16
      %v5346 = vpop.permute.xlu0 %5345
      %5347 = vrot.lane.b32.xlu0 %v5149, 16
      %v5348 = vpop.permute.xlu0 %5347
      %5349 = vrot.lane.b32.xlu0 %v5152, 16
      %v5350 = vpop.permute.xlu0 %5349
      %5351 = vrot.lane.b32.xlu0 %v5155, 16
      %v5352 = vpop.permute.xlu0 %5351
      %5353 = vrot.lane.b32.xlu0 %v5158, 16
      %v5354 = vpop.permute.xlu0 %5353
      %5355 = vrot.lane.b32.xlu0 %v5161, 16
      %v5356 = vpop.permute.xlu0 %5355
      %5357 = vrot.lane.b32.xlu0 %v5164, 16
      %v5358 = vpop.permute.xlu0 %5357
      %5359 = vrot.lane.b32.xlu0 %v5167, 16
      %v5360 = vpop.permute.xlu0 %5359
      %5361 = vrot.lane.b32.xlu0 %v5170, 16
      %v5362 = vpop.permute.xlu0 %5361
      %5363 = vrot.lane.b32.xlu0 %v5173, 16
      %v5364 = vpop.permute.xlu0 %5363
      %5365 = vrot.lane.b32.xlu0 %v5176, 16
      %v5366 = vpop.permute.xlu0 %5365
      %5367 = vrot.lane.b32.xlu0 %v5179, 16
      %v5368 = vpop.permute.xlu0 %5367
      %5369 = vrot.lane.b32.xlu0 %v5182, 16
      %v5370 = vpop.permute.xlu0 %5369
      %5371 = vrot.lane.b32.xlu0 %v5185, 16
      %v5372 = vpop.permute.xlu0 %5371
      %5373 = vrot.lane.b32.xlu0 %v5188, 16
      %v5374 = vpop.permute.xlu0 %5373
      %5375 = vrot.lane.b32.xlu0 %v5191, 16
      %v5376 = vpop.permute.xlu0 %5375
      %5377 = vrot.lane.b32.xlu0 %v5194, 16
      %v5378 = vpop.permute.xlu0 %5377
      %5379 = vrot.lane.b32.xlu0 %v5197, 16
      %v5380 = vpop.permute.xlu0 %5379
      %5381 = vrot.lane.b32.xlu0 %v5200, 16
      %v5382 = vpop.permute.xlu0 %5381
      %5383 = vrot.lane.b32.xlu0 %v5203, 16
      %v5384 = vpop.permute.xlu0 %5383
      %5385 = vrot.lane.b32.xlu0 %v5206, 16
      %v5386 = vpop.permute.xlu0 %5385
      %5387 = vrot.lane.b32.xlu0 %v5209, 16
      %v5388 = vpop.permute.xlu0 %5387
      %5389 = vrot.lane.b32.xlu0 %v5212, 16
      %v5390 = vpop.permute.xlu0 %5389
      %5391 = vrot.lane.b32.xlu0 %v5215, 16
      %v5392 = vpop.permute.xlu0 %5391
      %5393 = vrot.lane.b32.xlu0 %v5218, 16
      %v5394 = vpop.permute.xlu0 %5393
      %5395 = vrot.lane.b32.xlu0 %v5221, 16
      %v5396 = vpop.permute.xlu0 %5395
      %5397 = vrot.lane.b32.xlu0 %v5224, 16
      %v5398 = vpop.permute.xlu0 %5397
      %5399 = vrot.lane.b32.xlu0 %v5227, 16
      %v5400 = vpop.permute.xlu0 %5399
      %5401 = vrot.lane.b32.xlu0 %v5230, 16
      %v5402 = vpop.permute.xlu0 %5401
      %5403 = vrot.lane.b32.xlu0 %v5233, 16
      %v5404 = vpop.permute.xlu0 %5403
      %5405 = vrot.lane.b32.xlu0 %v5236, 16
      %v5406 = vpop.permute.xlu0 %5405
      %5407 = vrot.lane.b32.xlu0 %v5239, 16
      %v5408 = vpop.permute.xlu0 %5407
      %5409 = vrot.lane.b32.xlu0 %v5242, 16
      %v5410 = vpop.permute.xlu0 %5409
      %5411 = vrot.lane.b32.xlu0 %v5245, 16
      %v5412 = vpop.permute.xlu0 %5411
      %5413 = vrot.lane.b32.xlu0 %v5248, 16
      %v5414 = vpop.permute.xlu0 %5413
      %5415 = vrot.lane.b32.xlu0 %v5251, 16
      %v5416 = vpop.permute.xlu0 %5415
      %5417 = vrot.lane.b32.xlu0 %v5254, 16
      %v5418 = vpop.permute.xlu0 %5417
      %5419 = vrot.lane.b32.xlu0 %v5257, 16
      %v5420 = vpop.permute.xlu0 %5419
      %5421 = vrot.lane.b32.xlu0 %v5260, 16
      %v5422 = vpop.permute.xlu0 %5421
      %5423 = vrot.lane.b32.xlu0 %v5263, 16
      %v5424 = vpop.permute.xlu0 %5423
      %5425 = vrot.lane.b32.xlu0 %v5266, 16
      %v5426 = vpop.permute.xlu0 %5425
      %vm5507 = vcmask 130048
      %v5508 = vsel %vm5507, %v3987, %v5268
      %v5509 = vsel %vm5507, %v3988, %v5270
      %v5510 = vsel %vm5507, %v3989, %v5272
      %v5511 = vsel %vm5507, %v3990, %v5274
      %v5512 = vsel %vm5507, %v3991, %v5276
      %v5513 = vsel %vm5507, %v3992, %v5278
      %v5514 = vsel %vm5507, %v3993, %v5280
      %v5515 = vsel %vm5507, %v3994, %v5282
      %v5516 = vsel %vm5507, %v3995, %v5284
      %v5517 = vsel %vm5507, %v3996, %v5286
      %v5518 = vsel %vm5507, %v3997, %v5288
      %v5519 = vsel %vm5507, %v3998, %v5290
      %v5520 = vsel %vm5507, %v3999, %v5292
      %v5521 = vsel %vm5507, %v4000, %v5294
      %v5522 = vsel %vm5507, %v4001, %v5296
      %v5523 = vsel %vm5507, %v4002, %v5298
      %v5524 = vsel %vm5507, %v4003, %v5300
      %v5525 = vsel %vm5507, %v4004, %v5302
      %v5526 = vsel %vm5507, %v4005, %v5304
      %v5527 = vsel %vm5507, %v4006, %v5306
      %v5528 = vsel %vm5507, %v4007, %v5308
      %v5529 = vsel %vm5507, %v4008, %v5310
      %v5530 = vsel %vm5507, %v4009, %v5312
      %v5531 = vsel %vm5507, %v4010, %v5314
      %v5532 = vsel %vm5507, %v4011, %v5316
      %v5533 = vsel %vm5507, %v4012, %v5318
      %v5534 = vsel %vm5507, %v4013, %v5320
      %v5535 = vsel %vm5507, %v4014, %v5322
      %v5536 = vsel %vm5507, %v4015, %v5324
      %v5537 = vsel %vm5507, %v4016, %v5326
      %v5538 = vsel %vm5507, %v4017, %v5328
      %v5539 = vsel %vm5507, %v4018, %v5330
      %v5540 = vsel %vm5507, %v4019, %v5332
      %v5541 = vsel %vm5507, %v4020, %v5334
      %v5542 = vsel %vm5507, %v4021, %v5336
      %v5543 = vsel %vm5507, %v4022, %v5338
      %v5544 = vsel %vm5507, %v4023, %v5340
      %v5545 = vsel %vm5507, %v4024, %v5342
      %v5546 = vsel %vm5507, %v4025, %v5344
      %v5547 = vsel %vm5507, %v4026, %v5346
      %v5548 = vsel %vm5507, %v4027, %v5348
      %v5549 = vsel %vm5507, %v4028, %v5350
      %v5550 = vsel %vm5507, %v4029, %v5352
      %v5551 = vsel %vm5507, %v4030, %v5354
      %v5552 = vsel %vm5507, %v4031, %v5356
      %v5553 = vsel %vm5507, %v4032, %v5358
      %v5554 = vsel %vm5507, %v4033, %v5360
      %v5555 = vsel %vm5507, %v4034, %v5362
      %v5556 = vsel %vm5507, %v4035, %v5364
      %v5557 = vsel %vm5507, %v4036, %v5366
      %v5558 = vsel %vm5507, %v4037, %v5368
      %v5559 = vsel %vm5507, %v4038, %v5370
      %v5560 = vsel %vm5507, %v4039, %v5372
      %v5561 = vsel %vm5507, %v4040, %v5374
      %v5562 = vsel %vm5507, %v4041, %v5376
      %v5563 = vsel %vm5507, %v4042, %v5378
      %v5564 = vsel %vm5507, %v4043, %v5380
      %v5565 = vsel %vm5507, %v4044, %v5382
      %v5566 = vsel %vm5507, %v4045, %v5384
      %v5567 = vsel %vm5507, %v4046, %v5386
      %v5568 = vsel %vm5507, %v4047, %v5388
      %v5569 = vsel %vm5507, %v4048, %v5390
      %v5570 = vsel %vm5507, %v4049, %v5392
      %v5571 = vsel %vm5507, %v4050, %v5394
      %v5572 = vsel %vm5507, %v4051, %v5396
      %v5573 = vsel %vm5507, %v4052, %v5398
      %v5574 = vsel %vm5507, %v4053, %v5400
      %v5575 = vsel %vm5507, %v4054, %v5402
      %v5576 = vsel %vm5507, %v4055, %v5404
      %v5577 = vsel %vm5507, %v4056, %v5406
      %v5578 = vsel %vm5507, %v4057, %v5408
      %v5579 = vsel %vm5507, %v4058, %v5410
      %v5580 = vsel %vm5507, %v4059, %v5412
      %v5581 = vsel %vm5507, %v4060, %v5414
      %v5582 = vsel %vm5507, %v4061, %v5416
      %v5583 = vsel %vm5507, %v4062, %v5418
      %v5584 = vsel %vm5507, %v4063, %v5420
      %v5585 = vsel %vm5507, %v4064, %v5422
      %v5586 = vsel %vm5507, %v4065, %v5424
      %v5587 = vsel %vm5507, %v4066, %v5426
      %v5588 = vmul.f32 %v5508, 0.25
      %v5589 = vmul.f32 %v5509, 0.25
      %v5590 = vmul.f32 %v5510, 0.25
      %v5591 = vmul.f32 %v5511, 0.25
      %v5592 = vmul.f32 %v5512, 0.25
      %v5593 = vmul.f32 %v5513, 0.25
      %v5594 = vmul.f32 %v5514, 0.25
      %v5595 = vmul.f32 %v5515, 0.25
      %v5596 = vmul.f32 %v5518, 0.25
      %v5597 = vmul.f32 %v5519, 0.25
      %v5598 = vmul.f32 %v5520, 0.25
      %v5599 = vmul.f32 %v5521, 0.25
      %v5600 = vmul.f32 %v5522, 0.25
      %v5601 = vmul.f32 %v5523, 0.25
      %v5602 = vmul.f32 %v5524, 0.25
      %v5603 = vmul.f32 %v5525, 0.25
      %v5604 = vmul.f32 %v5528, 0.25
      %v5605 = vmul.f32 %v5529, 0.25
      %v5606 = vmul.f32 %v5530, 0.25
      %v5607 = vmul.f32 %v5531, 0.25
      %v5608 = vmul.f32 %v5532, 0.25
      %v5609 = vmul.f32 %v5533, 0.25
      %v5610 = vmul.f32 %v5534, 0.25
      %v5611 = vmul.f32 %v5535, 0.25
      %v5612 = vmul.f32 %v5538, 0.25
      %v5613 = vmul.f32 %v5539, 0.25
      %v5614 = vmul.f32 %v5540, 0.25
      %v5615 = vmul.f32 %v5541, 0.25
      %v5616 = vmul.f32 %v5542, 0.25
      %v5617 = vmul.f32 %v5543, 0.25
      %v5618 = vmul.f32 %v5544, 0.25
      %v5619 = vmul.f32 %v5545, 0.25
      %v5620 = vmul.f32 %v5548, 0.25
      %v5621 = vmul.f32 %v5549, 0.25
      %v5622 = vmul.f32 %v5550, 0.25
      %v5623 = vmul.f32 %v5551, 0.25
      %v5624 = vmul.f32 %v5552, 0.25
      %v5625 = vmul.f32 %v5553, 0.25
      %v5626 = vmul.f32 %v5554, 0.25
      %v5627 = vmul.f32 %v5555, 0.25
      %v5628 = vmul.f32 %v5558, 0.25
      %v5629 = vmul.f32 %v5559, 0.25
      %v5630 = vmul.f32 %v5560, 0.25
      %v5631 = vmul.f32 %v5561, 0.25
      %v5632 = vmul.f32 %v5562, 0.25
      %v5633 = vmul.f32 %v5563, 0.25
      %v5634 = vmul.f32 %v5564, 0.25
      %v5635 = vmul.f32 %v5565, 0.25
      %v5636 = vmul.f32 %v5568, 0.25
      %v5637 = vmul.f32 %v5569, 0.25
      %v5638 = vmul.f32 %v5570, 0.25
      %v5639 = vmul.f32 %v5571, 0.25
      %v5640 = vmul.f32 %v5572, 0.25
      %v5641 = vmul.f32 %v5573, 0.25
      %v5642 = vmul.f32 %v5574, 0.25
      %v5643 = vmul.f32 %v5575, 0.25
      %v5644 = vmul.f32 %v5578, 0.25
      %v5645 = vmul.f32 %v5579, 0.25
      %v5646 = vmul.f32 %v5580, 0.25
      %v5647 = vmul.f32 %v5581, 0.25
      %v5648 = vmul.f32 %v5582, 0.25
      %v5649 = vmul.f32 %v5583, 0.25
      %v5650 = vmul.f32 %v5584, 0.25
      %v5651 = vmul.f32 %v5585, 0.25
      %v5652 = vmul.f32 %v5509, 0.75
      %v5653 = vmul.f32 %v5510, 0.75
      %v5654 = vmul.f32 %v5511, 0.75
      %v5655 = vmul.f32 %v5512, 0.75
      %v5656 = vmul.f32 %v5513, 0.75
      %v5657 = vmul.f32 %v5514, 0.75
      %v5658 = vmul.f32 %v5515, 0.75
      %v5659 = vmul.f32 %v5516, 0.75
      %v5660 = vmul.f32 %v5519, 0.75
      %v5661 = vmul.f32 %v5520, 0.75
      %v5662 = vmul.f32 %v5521, 0.75
      %v5663 = vmul.f32 %v5522, 0.75
      %v5664 = vmul.f32 %v5523, 0.75
      %v5665 = vmul.f32 %v5524, 0.75
      %v5666 = vmul.f32 %v5525, 0.75
      %v5667 = vmul.f32 %v5526, 0.75
      %v5668 = vmul.f32 %v5529, 0.75
      %v5669 = vmul.f32 %v5530, 0.75
      %v5670 = vmul.f32 %v5531, 0.75
      %v5671 = vmul.f32 %v5532, 0.75
      %v5672 = vmul.f32 %v5533, 0.75
      %v5673 = vmul.f32 %v5534, 0.75
      %v5674 = vmul.f32 %v5535, 0.75
      %v5675 = vmul.f32 %v5536, 0.75
      %v5676 = vmul.f32 %v5539, 0.75
      %v5677 = vmul.f32 %v5540, 0.75
      %v5678 = vmul.f32 %v5541, 0.75
      %v5679 = vmul.f32 %v5542, 0.75
      %v5680 = vmul.f32 %v5543, 0.75
      %v5681 = vmul.f32 %v5544, 0.75
      %v5682 = vmul.f32 %v5545, 0.75
      %v5683 = vmul.f32 %v5546, 0.75
      %v5684 = vmul.f32 %v5549, 0.75
      %v5685 = vmul.f32 %v5550, 0.75
      %v5686 = vmul.f32 %v5551, 0.75
      %v5687 = vmul.f32 %v5552, 0.75
      %v5688 = vmul.f32 %v5553, 0.75
      %v5689 = vmul.f32 %v5554, 0.75
      %v5690 = vmul.f32 %v5555, 0.75
      %v5691 = vmul.f32 %v5556, 0.75
      %v5692 = vmul.f32 %v5559, 0.75
      %v5693 = vmul.f32 %v5560, 0.75
      %v5694 = vmul.f32 %v5561, 0.75
      %v5695 = vmul.f32 %v5562, 0.75
      %v5696 = vmul.f32 %v5563, 0.75
      %v5697 = vmul.f32 %v5564, 0.75
      %v5698 = vmul.f32 %v5565, 0.75
      %v5699 = vmul.f32 %v5566, 0.75
      %v5700 = vmul.f32 %v5569, 0.75
      %v5701 = vmul.f32 %v5570, 0.75
      %v5702 = vmul.f32 %v5571, 0.75
      %v5703 = vmul.f32 %v5572, 0.75
      %v5704 = vmul.f32 %v5573, 0.75
      %v5705 = vmul.f32 %v5574, 0.75
      %v5706 = vmul.f32 %v5575, 0.75
      %v5707 = vmul.f32 %v5576, 0.75
      %v5708 = vmul.f32 %v5579, 0.75
      %v5709 = vmul.f32 %v5580, 0.75
      %v5710 = vmul.f32 %v5581, 0.75
      %v5711 = vmul.f32 %v5582, 0.75
      %v5712 = vmul.f32 %v5583, 0.75
      %v5713 = vmul.f32 %v5584, 0.75
      %v5714 = vmul.f32 %v5585, 0.75
      %v5715 = vmul.f32 %v5586, 0.75
      %v5716 = vadd.f32 %v5588, %v5652
      %v5717 = vadd.f32 %v5589, %v5653
      %v5718 = vadd.f32 %v5590, %v5654
      %v5719 = vadd.f32 %v5591, %v5655
      %v5720 = vadd.f32 %v5592, %v5656
      %v5721 = vadd.f32 %v5593, %v5657
      %v5722 = vadd.f32 %v5594, %v5658
      %v5723 = vadd.f32 %v5595, %v5659
      %v5724 = vadd.f32 %v5596, %v5660
      %v5725 = vadd.f32 %v5597, %v5661
      %v5726 = vadd.f32 %v5598, %v5662
      %v5727 = vadd.f32 %v5599, %v5663
      %v5728 = vadd.f32 %v5600, %v5664
      %v5729 = vadd.f32 %v5601, %v5665
      %v5730 = vadd.f32 %v5602, %v5666
      %v5731 = vadd.f32 %v5603, %v5667
      %v5732 = vadd.f32 %v5604, %v5668
      %v5733 = vadd.f32 %v5605, %v5669
      %v5734 = vadd.f32 %v5606, %v5670
      %v5735 = vadd.f32 %v5607, %v5671
      %v5736 = vadd.f32 %v5608, %v5672
      %v5737 = vadd.f32 %v5609, %v5673
      %v5738 = vadd.f32 %v5610, %v5674
      %v5739 = vadd.f32 %v5611, %v5675
      %v5740 = vadd.f32 %v5612, %v5676
      %v5741 = vadd.f32 %v5613, %v5677
      %v5742 = vadd.f32 %v5614, %v5678
      %v5743 = vadd.f32 %v5615, %v5679
      %v5744 = vadd.f32 %v5616, %v5680
      %v5745 = vadd.f32 %v5617, %v5681
      %v5746 = vadd.f32 %v5618, %v5682
      %v5747 = vadd.f32 %v5619, %v5683
      %v5748 = vadd.f32 %v5620, %v5684
      %v5749 = vadd.f32 %v5621, %v5685
      %v5750 = vadd.f32 %v5622, %v5686
      %v5751 = vadd.f32 %v5623, %v5687
      %v5752 = vadd.f32 %v5624, %v5688
      %v5753 = vadd.f32 %v5625, %v5689
      %v5754 = vadd.f32 %v5626, %v5690
      %v5755 = vadd.f32 %v5627, %v5691
      %v5756 = vadd.f32 %v5628, %v5692
      %v5757 = vadd.f32 %v5629, %v5693
      %v5758 = vadd.f32 %v5630, %v5694
      %v5759 = vadd.f32 %v5631, %v5695
      %v5760 = vadd.f32 %v5632, %v5696
      %v5761 = vadd.f32 %v5633, %v5697
      %v5762 = vadd.f32 %v5634, %v5698
      %v5763 = vadd.f32 %v5635, %v5699
      %v5764 = vadd.f32 %v5636, %v5700
      %v5765 = vadd.f32 %v5637, %v5701
      %v5766 = vadd.f32 %v5638, %v5702
      %v5767 = vadd.f32 %v5639, %v5703
      %v5768 = vadd.f32 %v5640, %v5704
      %v5769 = vadd.f32 %v5641, %v5705
      %v5770 = vadd.f32 %v5642, %v5706
      %v5771 = vadd.f32 %v5643, %v5707
      %v5772 = vadd.f32 %v5644, %v5708
      %v5773 = vadd.f32 %v5645, %v5709
      %v5774 = vadd.f32 %v5646, %v5710
      %v5775 = vadd.f32 %v5647, %v5711
      %v5776 = vadd.f32 %v5648, %v5712
      %v5777 = vadd.f32 %v5649, %v5713
      %v5778 = vadd.f32 %v5650, %v5714
      %v5779 = vadd.f32 %v5651, %v5715
      %v5780 = vmul.f32 %v5516, 0.25
      %v5781 = vmul.f32 %v5517, 0.25
      %v5782 = vmul.f32 %v5526, 0.25
      %v5783 = vmul.f32 %v5527, 0.25
      %v5784 = vmul.f32 %v5536, 0.25
      %v5785 = vmul.f32 %v5537, 0.25
      %v5786 = vmul.f32 %v5546, 0.25
      %v5787 = vmul.f32 %v5547, 0.25
      %v5788 = vmul.f32 %v5556, 0.25
      %v5789 = vmul.f32 %v5557, 0.25
      %v5790 = vmul.f32 %v5566, 0.25
      %v5791 = vmul.f32 %v5567, 0.25
      %v5792 = vmul.f32 %v5576, 0.25
      %v5793 = vmul.f32 %v5577, 0.25
      %v5794 = vmul.f32 %v5586, 0.25
      %v5795 = vmul.f32 %v5587, 0.25
      %v5796 = vadd.f32 %v5652, %v5590
      %v5797 = vadd.f32 %v5653, %v5591
      %v5798 = vadd.f32 %v5654, %v5592
      %v5799 = vadd.f32 %v5655, %v5593
      %v5800 = vadd.f32 %v5656, %v5594
      %v5801 = vadd.f32 %v5657, %v5595
      %v5802 = vadd.f32 %v5658, %v5780
      %v5803 = vadd.f32 %v5659, %v5781
      %v5804 = vadd.f32 %v5660, %v5598
      %v5805 = vadd.f32 %v5661, %v5599
      %v5806 = vadd.f32 %v5662, %v5600
      %v5807 = vadd.f32 %v5663, %v5601
      %v5808 = vadd.f32 %v5664, %v5602
      %v5809 = vadd.f32 %v5665, %v5603
      %v5810 = vadd.f32 %v5666, %v5782
      %v5811 = vadd.f32 %v5667, %v5783
      %v5812 = vadd.f32 %v5668, %v5606
      %v5813 = vadd.f32 %v5669, %v5607
      %v5814 = vadd.f32 %v5670, %v5608
      %v5815 = vadd.f32 %v5671, %v5609
      %v5816 = vadd.f32 %v5672, %v5610
      %v5817 = vadd.f32 %v5673, %v5611
      %v5818 = vadd.f32 %v5674, %v5784
      %v5819 = vadd.f32 %v5675, %v5785
      %v5820 = vadd.f32 %v5676, %v5614
      %v5821 = vadd.f32 %v5677, %v5615
      %v5822 = vadd.f32 %v5678, %v5616
      %v5823 = vadd.f32 %v5679, %v5617
      %v5824 = vadd.f32 %v5680, %v5618
      %v5825 = vadd.f32 %v5681, %v5619
      %v5826 = vadd.f32 %v5682, %v5786
      %v5827 = vadd.f32 %v5683, %v5787
      %v5828 = vadd.f32 %v5684, %v5622
      %v5829 = vadd.f32 %v5685, %v5623
      %v5830 = vadd.f32 %v5686, %v5624
      %v5831 = vadd.f32 %v5687, %v5625
      %v5832 = vadd.f32 %v5688, %v5626
      %v5833 = vadd.f32 %v5689, %v5627
      %v5834 = vadd.f32 %v5690, %v5788
      %v5835 = vadd.f32 %v5691, %v5789
      %v5836 = vadd.f32 %v5692, %v5630
      %v5837 = vadd.f32 %v5693, %v5631
      %v5838 = vadd.f32 %v5694, %v5632
      %v5839 = vadd.f32 %v5695, %v5633
      %v5840 = vadd.f32 %v5696, %v5634
      %v5841 = vadd.f32 %v5697, %v5635
      %v5842 = vadd.f32 %v5698, %v5790
      %v5843 = vadd.f32 %v5699, %v5791
      %v5844 = vadd.f32 %v5700, %v5638
      %v5845 = vadd.f32 %v5701, %v5639
      %v5846 = vadd.f32 %v5702, %v5640
      %v5847 = vadd.f32 %v5703, %v5641
      %v5848 = vadd.f32 %v5704, %v5642
      %v5849 = vadd.f32 %v5705, %v5643
      %v5850 = vadd.f32 %v5706, %v5792
      %v5851 = vadd.f32 %v5707, %v5793
      %v5852 = vadd.f32 %v5708, %v5646
      %v5853 = vadd.f32 %v5709, %v5647
      %v5854 = vadd.f32 %v5710, %v5648
      %v5855 = vadd.f32 %v5711, %v5649
      %v5856 = vadd.f32 %v5712, %v5650
      %v5857 = vadd.f32 %v5713, %v5651
      %v5858 = vadd.f32 %v5714, %v5794
      %v5859 = vadd.f32 %v5715, %v5795
      %5924 = vrot.lane.b32.xlu0 %v5796, 32
      %v5925 = vpop.permute.xlu0 %5924
      %5926 = vrot.lane.b32.xlu0 %v5797, 32
      %v5927 = vpop.permute.xlu0 %5926
      %5928 = vrot.lane.b32.xlu0 %v5798, 32
      %v5929 = vpop.permute.xlu0 %5928
      %5930 = vrot.lane.b32.xlu0 %v5799, 32
      %v5931 = vpop.permute.xlu0 %5930
      %5932 = vrot.lane.b32.xlu0 %v5800, 32
      %v5933 = vpop.permute.xlu0 %5932
      %5934 = vrot.lane.b32.xlu0 %v5801, 32
      %v5935 = vpop.permute.xlu0 %5934
      %5936 = vrot.lane.b32.xlu0 %v5802, 32
      %v5937 = vpop.permute.xlu0 %5936
      %5938 = vrot.lane.b32.xlu0 %v5803, 32
      %v5939 = vpop.permute.xlu0 %5938
      %5940 = vrot.lane.b32.xlu0 %v5804, 32
      %v5941 = vpop.permute.xlu0 %5940
      %5942 = vrot.lane.b32.xlu0 %v5805, 32
      %v5943 = vpop.permute.xlu0 %5942
      %5944 = vrot.lane.b32.xlu0 %v5806, 32
      %v5945 = vpop.permute.xlu0 %5944
      %5946 = vrot.lane.b32.xlu0 %v5807, 32
      %v5947 = vpop.permute.xlu0 %5946
      %5948 = vrot.lane.b32.xlu0 %v5808, 32
      %v5949 = vpop.permute.xlu0 %5948
      %5950 = vrot.lane.b32.xlu0 %v5809, 32
      %v5951 = vpop.permute.xlu0 %5950
      %5952 = vrot.lane.b32.xlu0 %v5810, 32
      %v5953 = vpop.permute.xlu0 %5952
      %5954 = vrot.lane.b32.xlu0 %v5811, 32
      %v5955 = vpop.permute.xlu0 %5954
      %5956 = vrot.lane.b32.xlu0 %v5812, 32
      %v5957 = vpop.permute.xlu0 %5956
      %5958 = vrot.lane.b32.xlu0 %v5813, 32
      %v5959 = vpop.permute.xlu0 %5958
      %5960 = vrot.lane.b32.xlu0 %v5814, 32
      %v5961 = vpop.permute.xlu0 %5960
      %5962 = vrot.lane.b32.xlu0 %v5815, 32
      %v5963 = vpop.permute.xlu0 %5962
      %5964 = vrot.lane.b32.xlu0 %v5816, 32
      %v5965 = vpop.permute.xlu0 %5964
      %5966 = vrot.lane.b32.xlu0 %v5817, 32
      %v5967 = vpop.permute.xlu0 %5966
      %5968 = vrot.lane.b32.xlu0 %v5818, 32
      %v5969 = vpop.permute.xlu0 %5968
      %5970 = vrot.lane.b32.xlu0 %v5819, 32
      %v5971 = vpop.permute.xlu0 %5970
      %5972 = vrot.lane.b32.xlu0 %v5820, 32
      %v5973 = vpop.permute.xlu0 %5972
      %5974 = vrot.lane.b32.xlu0 %v5821, 32
      %v5975 = vpop.permute.xlu0 %5974
      %5976 = vrot.lane.b32.xlu0 %v5822, 32
      %v5977 = vpop.permute.xlu0 %5976
      %5978 = vrot.lane.b32.xlu0 %v5823, 32
      %v5979 = vpop.permute.xlu0 %5978
      %5980 = vrot.lane.b32.xlu0 %v5824, 32
      %v5981 = vpop.permute.xlu0 %5980
      %5982 = vrot.lane.b32.xlu0 %v5825, 32
      %v5983 = vpop.permute.xlu0 %5982
      %5984 = vrot.lane.b32.xlu0 %v5826, 32
      %v5985 = vpop.permute.xlu0 %5984
      %5986 = vrot.lane.b32.xlu0 %v5827, 32
      %v5987 = vpop.permute.xlu0 %5986
      %5988 = vrot.lane.b32.xlu0 %v5828, 32
      %v5989 = vpop.permute.xlu0 %5988
      %5990 = vrot.lane.b32.xlu0 %v5829, 32
      %v5991 = vpop.permute.xlu0 %5990
      %5992 = vrot.lane.b32.xlu0 %v5830, 32
      %v5993 = vpop.permute.xlu0 %5992
      %5994 = vrot.lane.b32.xlu0 %v5831, 32
      %v5995 = vpop.permute.xlu0 %5994
      %5996 = vrot.lane.b32.xlu0 %v5832, 32
      %v5997 = vpop.permute.xlu0 %5996
      %5998 = vrot.lane.b32.xlu0 %v5833, 32
      %v5999 = vpop.permute.xlu0 %5998
      %6000 = vrot.lane.b32.xlu0 %v5834, 32
      %v6001 = vpop.permute.xlu0 %6000
      %6002 = vrot.lane.b32.xlu0 %v5835, 32
      %v6003 = vpop.permute.xlu0 %6002
      %6004 = vrot.lane.b32.xlu0 %v5836, 32
      %v6005 = vpop.permute.xlu0 %6004
      %6006 = vrot.lane.b32.xlu0 %v5837, 32
      %v6007 = vpop.permute.xlu0 %6006
      %6008 = vrot.lane.b32.xlu0 %v5838, 32
      %v6009 = vpop.permute.xlu0 %6008
      %6010 = vrot.lane.b32.xlu0 %v5839, 32
      %v6011 = vpop.permute.xlu0 %6010
      %6012 = vrot.lane.b32.xlu0 %v5840, 32
      %v6013 = vpop.permute.xlu0 %6012
      %6014 = vrot.lane.b32.xlu0 %v5841, 32
      %v6015 = vpop.permute.xlu0 %6014
      %6016 = vrot.lane.b32.xlu0 %v5842, 32
      %v6017 = vpop.permute.xlu0 %6016
      %6018 = vrot.lane.b32.xlu0 %v5843, 32
      %v6019 = vpop.permute.xlu0 %6018
      %6020 = vrot.lane.b32.xlu0 %v5844, 32
      %v6021 = vpop.permute.xlu0 %6020
      %6022 = vrot.lane.b32.xlu0 %v5845, 32
      %v6023 = vpop.permute.xlu0 %6022
      %6024 = vrot.lane.b32.xlu0 %v5846, 32
      %v6025 = vpop.permute.xlu0 %6024
      %6026 = vrot.lane.b32.xlu0 %v5847, 32
      %v6027 = vpop.permute.xlu0 %6026
      %6028 = vrot.lane.b32.xlu0 %v5848, 32
      %v6029 = vpop.permute.xlu0 %6028
      %6030 = vrot.lane.b32.xlu0 %v5849, 32
      %v6031 = vpop.permute.xlu0 %6030
      %6032 = vrot.lane.b32.xlu0 %v5850, 32
      %v6033 = vpop.permute.xlu0 %6032
      %6034 = vrot.lane.b32.xlu0 %v5851, 32
      %v6035 = vpop.permute.xlu0 %6034
      %6036 = vrot.lane.b32.xlu0 %v5852, 32
      %v6037 = vpop.permute.xlu0 %6036
      %6038 = vrot.lane.b32.xlu0 %v5853, 32
      %v6039 = vpop.permute.xlu0 %6038
      %6040 = vrot.lane.b32.xlu0 %v5854, 32
      %v6041 = vpop.permute.xlu0 %6040
      %6042 = vrot.lane.b32.xlu0 %v5855, 32
      %v6043 = vpop.permute.xlu0 %6042
      %6044 = vrot.lane.b32.xlu0 %v5856, 32
      %v6045 = vpop.permute.xlu0 %6044
      %6046 = vrot.lane.b32.xlu0 %v5857, 32
      %v6047 = vpop.permute.xlu0 %6046
      %6048 = vrot.lane.b32.xlu0 %v5858, 32
      %v6049 = vpop.permute.xlu0 %6048
      %6050 = vrot.lane.b32.xlu0 %v5859, 32
      %v6051 = vpop.permute.xlu0 %6050
      %vm6116 = vcmask 261120
      %v6117 = vsel %vm6116, %v5716, %v5925
      %v6118 = vsel %vm6116, %v5717, %v5927
      %v6119 = vsel %vm6116, %v5718, %v5929
      %v6120 = vsel %vm6116, %v5719, %v5931
      %v6121 = vsel %vm6116, %v5720, %v5933
      %v6122 = vsel %vm6116, %v5721, %v5935
      %v6123 = vsel %vm6116, %v5722, %v5937
      %v6124 = vsel %vm6116, %v5723, %v5939
      %v6125 = vsel %vm6116, %v5724, %v5941
      %v6126 = vsel %vm6116, %v5725, %v5943
      %v6127 = vsel %vm6116, %v5726, %v5945
      %v6128 = vsel %vm6116, %v5727, %v5947
      %v6129 = vsel %vm6116, %v5728, %v5949
      %v6130 = vsel %vm6116, %v5729, %v5951
      %v6131 = vsel %vm6116, %v5730, %v5953
      %v6132 = vsel %vm6116, %v5731, %v5955
      %v6133 = vsel %vm6116, %v5732, %v5957
      %v6134 = vsel %vm6116, %v5733, %v5959
      %v6135 = vsel %vm6116, %v5734, %v5961
      %v6136 = vsel %vm6116, %v5735, %v5963
      %v6137 = vsel %vm6116, %v5736, %v5965
      %v6138 = vsel %vm6116, %v5737, %v5967
      %v6139 = vsel %vm6116, %v5738, %v5969
      %v6140 = vsel %vm6116, %v5739, %v5971
      %v6141 = vsel %vm6116, %v5740, %v5973
      %v6142 = vsel %vm6116, %v5741, %v5975
      %v6143 = vsel %vm6116, %v5742, %v5977
      %v6144 = vsel %vm6116, %v5743, %v5979
      %v6145 = vsel %vm6116, %v5744, %v5981
      %v6146 = vsel %vm6116, %v5745, %v5983
      %v6147 = vsel %vm6116, %v5746, %v5985
      %v6148 = vsel %vm6116, %v5747, %v5987
      %v6149 = vsel %vm6116, %v5748, %v5989
      %v6150 = vsel %vm6116, %v5749, %v5991
      %v6151 = vsel %vm6116, %v5750, %v5993
      %v6152 = vsel %vm6116, %v5751, %v5995
      %v6153 = vsel %vm6116, %v5752, %v5997
      %v6154 = vsel %vm6116, %v5753, %v5999
      %v6155 = vsel %vm6116, %v5754, %v6001
      %v6156 = vsel %vm6116, %v5755, %v6003
      %v6157 = vsel %vm6116, %v5756, %v6005
      %v6158 = vsel %vm6116, %v5757, %v6007
      %v6159 = vsel %vm6116, %v5758, %v6009
      %v6160 = vsel %vm6116, %v5759, %v6011
      %v6161 = vsel %vm6116, %v5760, %v6013
      %v6162 = vsel %vm6116, %v5761, %v6015
      %v6163 = vsel %vm6116, %v5762, %v6017
      %v6164 = vsel %vm6116, %v5763, %v6019
      %v6165 = vsel %vm6116, %v5764, %v6021
      %v6166 = vsel %vm6116, %v5765, %v6023
      %v6167 = vsel %vm6116, %v5766, %v6025
      %v6168 = vsel %vm6116, %v5767, %v6027
      %v6169 = vsel %vm6116, %v5768, %v6029
      %v6170 = vsel %vm6116, %v5769, %v6031
      %v6171 = vsel %vm6116, %v5770, %v6033
      %v6172 = vsel %vm6116, %v5771, %v6035
      %v6173 = vsel %vm6116, %v5772, %v6037
      %v6174 = vsel %vm6116, %v5773, %v6039
      %v6175 = vsel %vm6116, %v5774, %v6041
      %v6176 = vsel %vm6116, %v5775, %v6043
      %v6177 = vsel %vm6116, %v5776, %v6045
      %v6178 = vsel %vm6116, %v5777, %v6047
      %v6179 = vsel %vm6116, %v5778, %v6049
      %v6180 = vsel %vm6116, %v5779, %v6051
      %v6245 = vrot.slane 0.0, 7
      %v6246 = vrot.slane %v6117, 7
      %v6247 = vrot.slane %v6118, 7
      %v6248 = vrot.slane %v6119, 7
      %v6249 = vrot.slane %v6120, 7
      %v6250 = vrot.slane %v6121, 7
      %v6251 = vrot.slane %v6122, 7
      %v6252 = vrot.slane %v6123, 7
      %v6253 = vrot.slane %v6124, 7
      %v6254 = vrot.slane %v6125, 7
      %v6255 = vrot.slane %v6126, 7
      %v6256 = vrot.slane %v6127, 7
      %v6257 = vrot.slane %v6128, 7
      %v6258 = vrot.slane %v6129, 7
      %v6259 = vrot.slane %v6130, 7
      %v6260 = vrot.slane %v6131, 7
      %v6261 = vrot.slane %v6132, 7
      %v6262 = vrot.slane %v6133, 7
      %v6263 = vrot.slane %v6134, 7
      %v6264 = vrot.slane %v6135, 7
      %v6265 = vrot.slane %v6136, 7
      %v6266 = vrot.slane %v6137, 7
      %v6267 = vrot.slane %v6138, 7
      %v6268 = vrot.slane %v6139, 7
      %v6269 = vrot.slane %v6140, 7
      %v6270 = vrot.slane %v6141, 7
      %v6271 = vrot.slane %v6142, 7
      %v6272 = vrot.slane %v6143, 7
      %v6273 = vrot.slane %v6144, 7
      %v6274 = vrot.slane %v6145, 7
      %v6275 = vrot.slane %v6146, 7
      %v6276 = vrot.slane %v6147, 7
      %v6277 = vrot.slane %v6148, 7
      %v6278 = vrot.slane %v6149, 7
      %v6279 = vrot.slane %v6150, 7
      %v6280 = vrot.slane %v6151, 7
      %v6281 = vrot.slane %v6152, 7
      %v6282 = vrot.slane %v6153, 7
      %v6283 = vrot.slane %v6154, 7
      %v6284 = vrot.slane %v6155, 7
      %v6285 = vrot.slane %v6156, 7
      %v6286 = vrot.slane %v6157, 7
      %v6287 = vrot.slane %v6158, 7
      %v6288 = vrot.slane %v6159, 7
      %v6289 = vrot.slane %v6160, 7
      %v6290 = vrot.slane %v6161, 7
      %v6291 = vrot.slane %v6162, 7
      %v6292 = vrot.slane %v6163, 7
      %v6293 = vrot.slane %v6164, 7
      %v6294 = vrot.slane %v6165, 7
      %v6295 = vrot.slane %v6166, 7
      %v6296 = vrot.slane %v6167, 7
      %v6297 = vrot.slane %v6168, 7
      %v6298 = vrot.slane %v6169, 7
      %v6299 = vrot.slane %v6170, 7
      %v6300 = vrot.slane %v6171, 7
      %v6301 = vrot.slane %v6172, 7
      %v6302 = vrot.slane %v6173, 7
      %v6303 = vrot.slane %v6174, 7
      %v6304 = vrot.slane %v6175, 7
      %v6305 = vrot.slane %v6176, 7
      %v6306 = vrot.slane %v6177, 7
      %v6307 = vrot.slane %v6178, 7
      %v6308 = vrot.slane %v6179, 7
      %v6309 = vrot.slane %v6180, 7
      %vm6375 = vcmask 1040384
      %v6376 = vsel %vm6375, 0.0, %v6245
      %v6377 = vsel %vm6375, 0.0, %v6246
      %v6378 = vsel %vm6375, 0.0, %v6247
      %v6379 = vsel %vm6375, 0.0, %v6248
      %v6380 = vsel %vm6375, 0.0, %v6249
      %v6381 = vsel %vm6375, 0.0, %v6250
      %v6382 = vsel %vm6375, 0.0, %v6251
      %v6383 = vsel %vm6375, 0.0, %v6252
      %v6384 = vsel %vm6375, 0.0, %v6253
      %v6385 = vsel %vm6375, 0.0, %v6254
      %v6386 = vsel %vm6375, 0.0, %v6255
      %v6387 = vsel %vm6375, 0.0, %v6256
      %v6388 = vsel %vm6375, 0.0, %v6257
      %v6389 = vsel %vm6375, 0.0, %v6258
      %v6390 = vsel %vm6375, 0.0, %v6259
      %v6391 = vsel %vm6375, 0.0, %v6260
      %v6392 = vsel %vm6375, 0.0, %v6261
      %v6393 = vsel %vm6375, 0.0, %v6262
      %v6394 = vsel %vm6375, 0.0, %v6263
      %v6395 = vsel %vm6375, 0.0, %v6264
      %v6396 = vsel %vm6375, 0.0, %v6265
      %v6397 = vsel %vm6375, 0.0, %v6266
      %v6398 = vsel %vm6375, 0.0, %v6267
      %v6399 = vsel %vm6375, 0.0, %v6268
      %v6400 = vsel %vm6375, 0.0, %v6269
      %v6401 = vsel %vm6375, 0.0, %v6270
      %v6402 = vsel %vm6375, 0.0, %v6271
      %v6403 = vsel %vm6375, 0.0, %v6272
      %v6404 = vsel %vm6375, 0.0, %v6273
      %v6405 = vsel %vm6375, 0.0, %v6274
      %v6406 = vsel %vm6375, 0.0, %v6275
      %v6407 = vsel %vm6375, 0.0, %v6276
      %v6408 = vsel %vm6375, 0.0, %v6277
      %v6409 = vsel %vm6375, 0.0, %v6278
      %v6410 = vsel %vm6375, 0.0, %v6279
      %v6411 = vsel %vm6375, 0.0, %v6280
      %v6412 = vsel %vm6375, 0.0, %v6281
      %v6413 = vsel %vm6375, 0.0, %v6282
      %v6414 = vsel %vm6375, 0.0, %v6283
      %v6415 = vsel %vm6375, 0.0, %v6284
      %v6416 = vsel %vm6375, 0.0, %v6285
      %v6417 = vsel %vm6375, 0.0, %v6286
      %v6418 = vsel %vm6375, 0.0, %v6287
      %v6419 = vsel %vm6375, 0.0, %v6288
      %v6420 = vsel %vm6375, 0.0, %v6289
      %v6421 = vsel %vm6375, 0.0, %v6290
      %v6422 = vsel %vm6375, 0.0, %v6291
      %v6423 = vsel %vm6375, 0.0, %v6292
      %v6424 = vsel %vm6375, 0.0, %v6293
      %v6425 = vsel %vm6375, 0.0, %v6294
      %v6426 = vsel %vm6375, 0.0, %v6295
      %v6427 = vsel %vm6375, 0.0, %v6296
      %v6428 = vsel %vm6375, 0.0, %v6297
      %v6429 = vsel %vm6375, 0.0, %v6298
      %v6430 = vsel %vm6375, 0.0, %v6299
      %v6431 = vsel %vm6375, 0.0, %v6300
      %v6432 = vsel %vm6375, 0.0, %v6301
      %v6433 = vsel %vm6375, 0.0, %v6302
      %v6434 = vsel %vm6375, 0.0, %v6303
      %v6435 = vsel %vm6375, 0.0, %v6304
      %v6436 = vsel %vm6375, 0.0, %v6305
      %v6437 = vsel %vm6375, 0.0, %v6306
      %v6438 = vsel %vm6375, 0.0, %v6307
      %v6439 = vsel %vm6375, 0.0, %v6308
      %v6440 = vsel %vm6375, 0.0, %v6309
      %v6441 = vsel %vm6375, %v6245, 0.0
      %v6442 = vsel %vm6375, %v6246, 0.0
      %v6443 = vsel %vm6375, %v6247, 0.0
      %v6444 = vsel %vm6375, %v6248, 0.0
      %v6445 = vsel %vm6375, %v6249, 0.0
      %v6446 = vsel %vm6375, %v6250, 0.0
      %v6447 = vsel %vm6375, %v6251, 0.0
      %v6448 = vsel %vm6375, %v6252, 0.0
      %v6449 = vsel %vm6375, %v6253, 0.0
      %v6450 = vsel %vm6375, %v6254, 0.0
      %v6451 = vsel %vm6375, %v6255, 0.0
      %v6452 = vsel %vm6375, %v6256, 0.0
      %v6453 = vsel %vm6375, %v6257, 0.0
      %v6454 = vsel %vm6375, %v6258, 0.0
      %v6455 = vsel %vm6375, %v6259, 0.0
      %v6456 = vsel %vm6375, %v6260, 0.0
      %v6457 = vsel %vm6375, %v6261, 0.0
      %v6458 = vsel %vm6375, %v6262, 0.0
      %v6459 = vsel %vm6375, %v6263, 0.0
      %v6460 = vsel %vm6375, %v6264, 0.0
      %v6461 = vsel %vm6375, %v6265, 0.0
      %v6462 = vsel %vm6375, %v6266, 0.0
      %v6463 = vsel %vm6375, %v6267, 0.0
      %v6464 = vsel %vm6375, %v6268, 0.0
      %v6465 = vsel %vm6375, %v6269, 0.0
      %v6466 = vsel %vm6375, %v6270, 0.0
      %v6467 = vsel %vm6375, %v6271, 0.0
      %v6468 = vsel %vm6375, %v6272, 0.0
      %v6469 = vsel %vm6375, %v6273, 0.0
      %v6470 = vsel %vm6375, %v6274, 0.0
      %v6471 = vsel %vm6375, %v6275, 0.0
      %v6472 = vsel %vm6375, %v6276, 0.0
      %v6473 = vsel %vm6375, %v6277, 0.0
      %v6474 = vsel %vm6375, %v6278, 0.0
      %v6475 = vsel %vm6375, %v6279, 0.0
      %v6476 = vsel %vm6375, %v6280, 0.0
      %v6477 = vsel %vm6375, %v6281, 0.0
      %v6478 = vsel %vm6375, %v6282, 0.0
      %v6479 = vsel %vm6375, %v6283, 0.0
      %v6480 = vsel %vm6375, %v6284, 0.0
      %v6481 = vsel %vm6375, %v6285, 0.0
      %v6482 = vsel %vm6375, %v6286, 0.0
      %v6483 = vsel %vm6375, %v6287, 0.0
      %v6484 = vsel %vm6375, %v6288, 0.0
      %v6485 = vsel %vm6375, %v6289, 0.0
      %v6486 = vsel %vm6375, %v6290, 0.0
      %v6487 = vsel %vm6375, %v6291, 0.0
      %v6488 = vsel %vm6375, %v6292, 0.0
      %v6489 = vsel %vm6375, %v6293, 0.0
      %v6490 = vsel %vm6375, %v6294, 0.0
      %v6491 = vsel %vm6375, %v6295, 0.0
      %v6492 = vsel %vm6375, %v6296, 0.0
      %v6493 = vsel %vm6375, %v6297, 0.0
      %v6494 = vsel %vm6375, %v6298, 0.0
      %v6495 = vsel %vm6375, %v6299, 0.0
      %v6496 = vsel %vm6375, %v6300, 0.0
      %v6497 = vsel %vm6375, %v6301, 0.0
      %v6498 = vsel %vm6375, %v6302, 0.0
      %v6499 = vsel %vm6375, %v6303, 0.0
      %v6500 = vsel %vm6375, %v6304, 0.0
      %v6501 = vsel %vm6375, %v6305, 0.0
      %v6502 = vsel %vm6375, %v6306, 0.0
      %v6503 = vsel %vm6375, %v6307, 0.0
      %v6504 = vsel %vm6375, %v6308, 0.0
      %v6505 = vsel %vm6375, %v6309, 0.0
      %v6636 = vrot.slane %v6376, 1
      %v6637 = vrot.slane %v6441, 1
      %v6638 = vsel %vm3666, %v6636, %v6637
      %v6639 = vrot.slane %v6377, 1
      %v6640 = vrot.slane %v6442, 1
      %v6641 = vsel %vm3666, %v6639, %v6640
      %v6642 = vrot.slane %v6378, 1
      %v6643 = vrot.slane %v6443, 1
      %v6644 = vsel %vm3666, %v6642, %v6643
      %v6645 = vrot.slane %v6379, 1
      %v6646 = vrot.slane %v6444, 1
      %v6647 = vsel %vm3666, %v6645, %v6646
      %v6648 = vrot.slane %v6380, 1
      %v6649 = vrot.slane %v6445, 1
      %v6650 = vsel %vm3666, %v6648, %v6649
      %v6651 = vrot.slane %v6381, 1
      %v6652 = vrot.slane %v6446, 1
      %v6653 = vsel %vm3666, %v6651, %v6652
      %v6654 = vrot.slane %v6382, 1
      %v6655 = vrot.slane %v6447, 1
      %v6656 = vsel %vm3666, %v6654, %v6655
      %v6657 = vrot.slane %v6383, 1
      %v6658 = vrot.slane %v6448, 1
      %v6659 = vsel %vm3666, %v6657, %v6658
      %v6660 = vrot.slane %v6384, 1
      %v6661 = vrot.slane %v6449, 1
      %v6662 = vsel %vm3666, %v6660, %v6661
      %v6663 = vrot.slane %v6385, 1
      %v6664 = vrot.slane %v6450, 1
      %v6665 = vsel %vm3666, %v6663, %v6664
      %v6666 = vrot.slane %v6386, 1
      %v6667 = vrot.slane %v6451, 1
      %v6668 = vsel %vm3666, %v6666, %v6667
      %v6669 = vrot.slane %v6387, 1
      %v6670 = vrot.slane %v6452, 1
      %v6671 = vsel %vm3666, %v6669, %v6670
      %v6672 = vrot.slane %v6388, 1
      %v6673 = vrot.slane %v6453, 1
      %v6674 = vsel %vm3666, %v6672, %v6673
      %v6675 = vrot.slane %v6389, 1
      %v6676 = vrot.slane %v6454, 1
      %v6677 = vsel %vm3666, %v6675, %v6676
      %v6678 = vrot.slane %v6390, 1
      %v6679 = vrot.slane %v6455, 1
      %v6680 = vsel %vm3666, %v6678, %v6679
      %v6681 = vrot.slane %v6391, 1
      %v6682 = vrot.slane %v6456, 1
      %v6683 = vsel %vm3666, %v6681, %v6682
      %v6684 = vrot.slane %v6392, 1
      %v6685 = vrot.slane %v6457, 1
      %v6686 = vsel %vm3666, %v6684, %v6685
      %v6687 = vrot.slane %v6393, 1
      %v6688 = vrot.slane %v6458, 1
      %v6689 = vsel %vm3666, %v6687, %v6688
      %v6690 = vrot.slane %v6394, 1
      %v6691 = vrot.slane %v6459, 1
      %v6692 = vsel %vm3666, %v6690, %v6691
      %v6693 = vrot.slane %v6395, 1
      %v6694 = vrot.slane %v6460, 1
      %v6695 = vsel %vm3666, %v6693, %v6694
      %v6696 = vrot.slane %v6396, 1
      %v6697 = vrot.slane %v6461, 1
      %v6698 = vsel %vm3666, %v6696, %v6697
      %v6699 = vrot.slane %v6397, 1
      %v6700 = vrot.slane %v6462, 1
      %v6701 = vsel %vm3666, %v6699, %v6700
      %v6702 = vrot.slane %v6398, 1
      %v6703 = vrot.slane %v6463, 1
      %v6704 = vsel %vm3666, %v6702, %v6703
      %v6705 = vrot.slane %v6399, 1
      %v6706 = vrot.slane %v6464, 1
      %v6707 = vsel %vm3666, %v6705, %v6706
      %v6708 = vrot.slane %v6400, 1
      %v6709 = vrot.slane %v6465, 1
      %v6710 = vsel %vm3666, %v6708, %v6709
      %v6711 = vrot.slane %v6401, 1
      %v6712 = vrot.slane %v6466, 1
      %v6713 = vsel %vm3666, %v6711, %v6712
      %v6714 = vrot.slane %v6402, 1
      %v6715 = vrot.slane %v6467, 1
      %v6716 = vsel %vm3666, %v6714, %v6715
      %v6717 = vrot.slane %v6403, 1
      %v6718 = vrot.slane %v6468, 1
      %v6719 = vsel %vm3666, %v6717, %v6718
      %v6720 = vrot.slane %v6404, 1
      %v6721 = vrot.slane %v6469, 1
      %v6722 = vsel %vm3666, %v6720, %v6721
      %v6723 = vrot.slane %v6405, 1
      %v6724 = vrot.slane %v6470, 1
      %v6725 = vsel %vm3666, %v6723, %v6724
      %v6726 = vrot.slane %v6406, 1
      %v6727 = vrot.slane %v6471, 1
      %v6728 = vsel %vm3666, %v6726, %v6727
      %v6729 = vrot.slane %v6407, 1
      %v6730 = vrot.slane %v6472, 1
      %v6731 = vsel %vm3666, %v6729, %v6730
      %v6732 = vrot.slane %v6408, 1
      %v6733 = vrot.slane %v6473, 1
      %v6734 = vsel %vm3666, %v6732, %v6733
      %v6735 = vrot.slane %v6409, 1
      %v6736 = vrot.slane %v6474, 1
      %v6737 = vsel %vm3666, %v6735, %v6736
      %v6738 = vrot.slane %v6410, 1
      %v6739 = vrot.slane %v6475, 1
      %v6740 = vsel %vm3666, %v6738, %v6739
      %v6741 = vrot.slane %v6411, 1
      %v6742 = vrot.slane %v6476, 1
      %v6743 = vsel %vm3666, %v6741, %v6742
      %v6744 = vrot.slane %v6412, 1
      %v6745 = vrot.slane %v6477, 1
      %v6746 = vsel %vm3666, %v6744, %v6745
      %v6747 = vrot.slane %v6413, 1
      %v6748 = vrot.slane %v6478, 1
      %v6749 = vsel %vm3666, %v6747, %v6748
      %v6750 = vrot.slane %v6414, 1
      %v6751 = vrot.slane %v6479, 1
      %v6752 = vsel %vm3666, %v6750, %v6751
      %v6753 = vrot.slane %v6415, 1
      %v6754 = vrot.slane %v6480, 1
      %v6755 = vsel %vm3666, %v6753, %v6754
      %v6756 = vrot.slane %v6416, 1
      %v6757 = vrot.slane %v6481, 1
      %v6758 = vsel %vm3666, %v6756, %v6757
      %v6759 = vrot.slane %v6417, 1
      %v6760 = vrot.slane %v6482, 1
      %v6761 = vsel %vm3666, %v6759, %v6760
      %v6762 = vrot.slane %v6418, 1
      %v6763 = vrot.slane %v6483, 1
      %v6764 = vsel %vm3666, %v6762, %v6763
      %v6765 = vrot.slane %v6419, 1
      %v6766 = vrot.slane %v6484, 1
      %v6767 = vsel %vm3666, %v6765, %v6766
      %v6768 = vrot.slane %v6420, 1
      %v6769 = vrot.slane %v6485, 1
      %v6770 = vsel %vm3666, %v6768, %v6769
      %v6771 = vrot.slane %v6421, 1
      %v6772 = vrot.slane %v6486, 1
      %v6773 = vsel %vm3666, %v6771, %v6772
      %v6774 = vrot.slane %v6422, 1
      %v6775 = vrot.slane %v6487, 1
      %v6776 = vsel %vm3666, %v6774, %v6775
      %v6777 = vrot.slane %v6423, 1
      %v6778 = vrot.slane %v6488, 1
      %v6779 = vsel %vm3666, %v6777, %v6778
      %v6780 = vrot.slane %v6424, 1
      %v6781 = vrot.slane %v6489, 1
      %v6782 = vsel %vm3666, %v6780, %v6781
      %v6783 = vrot.slane %v6425, 1
      %v6784 = vrot.slane %v6490, 1
      %v6785 = vsel %vm3666, %v6783, %v6784
      %v6786 = vrot.slane %v6426, 1
      %v6787 = vrot.slane %v6491, 1
      %v6788 = vsel %vm3666, %v6786, %v6787
      %v6789 = vrot.slane %v6427, 1
      %v6790 = vrot.slane %v6492, 1
      %v6791 = vsel %vm3666, %v6789, %v6790
      %v6792 = vrot.slane %v6428, 1
      %v6793 = vrot.slane %v6493, 1
      %v6794 = vsel %vm3666, %v6792, %v6793
      %v6795 = vrot.slane %v6429, 1
      %v6796 = vrot.slane %v6494, 1
      %v6797 = vsel %vm3666, %v6795, %v6796
      %v6798 = vrot.slane %v6430, 1
      %v6799 = vrot.slane %v6495, 1
      %v6800 = vsel %vm3666, %v6798, %v6799
      %v6801 = vrot.slane %v6431, 1
      %v6802 = vrot.slane %v6496, 1
      %v6803 = vsel %vm3666, %v6801, %v6802
      %v6804 = vrot.slane %v6432, 1
      %v6805 = vrot.slane %v6497, 1
      %v6806 = vsel %vm3666, %v6804, %v6805
      %v6807 = vrot.slane %v6433, 1
      %v6808 = vrot.slane %v6498, 1
      %v6809 = vsel %vm3666, %v6807, %v6808
      %v6810 = vrot.slane %v6434, 1
      %v6811 = vrot.slane %v6499, 1
      %v6812 = vsel %vm3666, %v6810, %v6811
      %v6813 = vrot.slane %v6435, 1
      %v6814 = vrot.slane %v6500, 1
      %v6815 = vsel %vm3666, %v6813, %v6814
      %v6816 = vrot.slane %v6436, 1
      %v6817 = vrot.slane %v6501, 1
      %v6818 = vsel %vm3666, %v6816, %v6817
      %v6819 = vrot.slane %v6437, 1
      %v6820 = vrot.slane %v6502, 1
      %v6821 = vsel %vm3666, %v6819, %v6820
      %v6822 = vrot.slane %v6438, 1
      %v6823 = vrot.slane %v6503, 1
      %v6824 = vsel %vm3666, %v6822, %v6823
      %v6825 = vrot.slane %v6439, 1
      %v6826 = vrot.slane %v6504, 1
      %v6827 = vsel %vm3666, %v6825, %v6826
      %v6828 = vrot.slane %v6440, 1
      %v6829 = vrot.slane %v6505, 1
      %v6830 = vsel %vm3666, %v6828, %v6829
      %6831 = vrot.lane.b32.xlu0 %v6638, 64
      %v6832 = vpop.permute.xlu0 %6831
      %6833 = vrot.lane.b32.xlu0 %v6641, 64
      %v6834 = vpop.permute.xlu0 %6833
      %6835 = vrot.lane.b32.xlu0 %v6644, 64
      %v6836 = vpop.permute.xlu0 %6835
      %6837 = vrot.lane.b32.xlu0 %v6647, 64
      %v6838 = vpop.permute.xlu0 %6837
      %6839 = vrot.lane.b32.xlu0 %v6650, 64
      %v6840 = vpop.permute.xlu0 %6839
      %6841 = vrot.lane.b32.xlu0 %v6653, 64
      %v6842 = vpop.permute.xlu0 %6841
      %6843 = vrot.lane.b32.xlu0 %v6656, 64
      %v6844 = vpop.permute.xlu0 %6843
      %6845 = vrot.lane.b32.xlu0 %v6659, 64
      %v6846 = vpop.permute.xlu0 %6845
      %6847 = vrot.lane.b32.xlu0 %v6662, 64
      %v6848 = vpop.permute.xlu0 %6847
      %6849 = vrot.lane.b32.xlu0 %v6665, 64
      %v6850 = vpop.permute.xlu0 %6849
      %6851 = vrot.lane.b32.xlu0 %v6668, 64
      %v6852 = vpop.permute.xlu0 %6851
      %6853 = vrot.lane.b32.xlu0 %v6671, 64
      %v6854 = vpop.permute.xlu0 %6853
      %6855 = vrot.lane.b32.xlu0 %v6674, 64
      %v6856 = vpop.permute.xlu0 %6855
      %6857 = vrot.lane.b32.xlu0 %v6677, 64
      %v6858 = vpop.permute.xlu0 %6857
      %6859 = vrot.lane.b32.xlu0 %v6680, 64
      %v6860 = vpop.permute.xlu0 %6859
      %6861 = vrot.lane.b32.xlu0 %v6683, 64
      %v6862 = vpop.permute.xlu0 %6861
      %6863 = vrot.lane.b32.xlu0 %v6686, 64
      %v6864 = vpop.permute.xlu0 %6863
      %6865 = vrot.lane.b32.xlu0 %v6689, 64
      %v6866 = vpop.permute.xlu0 %6865
      %6867 = vrot.lane.b32.xlu0 %v6692, 64
      %v6868 = vpop.permute.xlu0 %6867
      %6869 = vrot.lane.b32.xlu0 %v6695, 64
      %v6870 = vpop.permute.xlu0 %6869
      %6871 = vrot.lane.b32.xlu0 %v6698, 64
      %v6872 = vpop.permute.xlu0 %6871
      %6873 = vrot.lane.b32.xlu0 %v6701, 64
      %v6874 = vpop.permute.xlu0 %6873
      %6875 = vrot.lane.b32.xlu0 %v6704, 64
      %v6876 = vpop.permute.xlu0 %6875
      %6877 = vrot.lane.b32.xlu0 %v6707, 64
      %v6878 = vpop.permute.xlu0 %6877
      %6879 = vrot.lane.b32.xlu0 %v6710, 64
      %v6880 = vpop.permute.xlu0 %6879
      %6881 = vrot.lane.b32.xlu0 %v6713, 64
      %v6882 = vpop.permute.xlu0 %6881
      %6883 = vrot.lane.b32.xlu0 %v6716, 64
      %v6884 = vpop.permute.xlu0 %6883
      %6885 = vrot.lane.b32.xlu0 %v6719, 64
      %v6886 = vpop.permute.xlu0 %6885
      %6887 = vrot.lane.b32.xlu0 %v6722, 64
      %v6888 = vpop.permute.xlu0 %6887
      %6889 = vrot.lane.b32.xlu0 %v6725, 64
      %v6890 = vpop.permute.xlu0 %6889
      %6891 = vrot.lane.b32.xlu0 %v6728, 64
      %v6892 = vpop.permute.xlu0 %6891
      %6893 = vrot.lane.b32.xlu0 %v6731, 64
      %v6894 = vpop.permute.xlu0 %6893
      %6895 = vrot.lane.b32.xlu0 %v6734, 64
      %v6896 = vpop.permute.xlu0 %6895
      %6897 = vrot.lane.b32.xlu0 %v6737, 64
      %v6898 = vpop.permute.xlu0 %6897
      %6899 = vrot.lane.b32.xlu0 %v6740, 64
      %v6900 = vpop.permute.xlu0 %6899
      %6901 = vrot.lane.b32.xlu0 %v6743, 64
      %v6902 = vpop.permute.xlu0 %6901
      %6903 = vrot.lane.b32.xlu0 %v6746, 64
      %v6904 = vpop.permute.xlu0 %6903
      %6905 = vrot.lane.b32.xlu0 %v6749, 64
      %v6906 = vpop.permute.xlu0 %6905
      %6907 = vrot.lane.b32.xlu0 %v6752, 64
      %v6908 = vpop.permute.xlu0 %6907
      %6909 = vrot.lane.b32.xlu0 %v6755, 64
      %v6910 = vpop.permute.xlu0 %6909
      %6911 = vrot.lane.b32.xlu0 %v6758, 64
      %v6912 = vpop.permute.xlu0 %6911
      %6913 = vrot.lane.b32.xlu0 %v6761, 64
      %v6914 = vpop.permute.xlu0 %6913
      %6915 = vrot.lane.b32.xlu0 %v6764, 64
      %v6916 = vpop.permute.xlu0 %6915
      %6917 = vrot.lane.b32.xlu0 %v6767, 64
      %v6918 = vpop.permute.xlu0 %6917
      %6919 = vrot.lane.b32.xlu0 %v6770, 64
      %v6920 = vpop.permute.xlu0 %6919
      %6921 = vrot.lane.b32.xlu0 %v6773, 64
      %v6922 = vpop.permute.xlu0 %6921
      %6923 = vrot.lane.b32.xlu0 %v6776, 64
      %v6924 = vpop.permute.xlu0 %6923
      %6925 = vrot.lane.b32.xlu0 %v6779, 64
      %v6926 = vpop.permute.xlu0 %6925
      %6927 = vrot.lane.b32.xlu0 %v6782, 64
      %v6928 = vpop.permute.xlu0 %6927
      %6929 = vrot.lane.b32.xlu0 %v6785, 64
      %v6930 = vpop.permute.xlu0 %6929
      %6931 = vrot.lane.b32.xlu0 %v6788, 64
      %v6932 = vpop.permute.xlu0 %6931
      %6933 = vrot.lane.b32.xlu0 %v6791, 64
      %v6934 = vpop.permute.xlu0 %6933
      %6935 = vrot.lane.b32.xlu0 %v6794, 64
      %v6936 = vpop.permute.xlu0 %6935
      %6937 = vrot.lane.b32.xlu0 %v6797, 64
      %v6938 = vpop.permute.xlu0 %6937
      %6939 = vrot.lane.b32.xlu0 %v6800, 64
      %v6940 = vpop.permute.xlu0 %6939
      %6941 = vrot.lane.b32.xlu0 %v6803, 64
      %v6942 = vpop.permute.xlu0 %6941
      %6943 = vrot.lane.b32.xlu0 %v6806, 64
      %v6944 = vpop.permute.xlu0 %6943
      %6945 = vrot.lane.b32.xlu0 %v6809, 64
      %v6946 = vpop.permute.xlu0 %6945
      %6947 = vrot.lane.b32.xlu0 %v6812, 64
      %v6948 = vpop.permute.xlu0 %6947
      %6949 = vrot.lane.b32.xlu0 %v6815, 64
      %v6950 = vpop.permute.xlu0 %6949
      %6951 = vrot.lane.b32.xlu0 %v6818, 64
      %v6952 = vpop.permute.xlu0 %6951
      %6953 = vrot.lane.b32.xlu0 %v6821, 64
      %v6954 = vpop.permute.xlu0 %6953
      %6955 = vrot.lane.b32.xlu0 %v6824, 64
      %v6956 = vpop.permute.xlu0 %6955
      %6957 = vrot.lane.b32.xlu0 %v6827, 64
      %v6958 = vpop.permute.xlu0 %6957
      %6959 = vrot.lane.b32.xlu0 %v6830, 64
      %v6960 = vpop.permute.xlu0 %6959
      %vm7026 = vcmask 1045504
      %v7027 = vrot.slane %v6376, 2
      %v7028 = vrot.slane %v6441, 2
      %v7029 = vsel %vm7026, %v7027, %v7028
      %v7030 = vrot.slane %v6377, 2
      %v7031 = vrot.slane %v6442, 2
      %v7032 = vsel %vm7026, %v7030, %v7031
      %v7033 = vrot.slane %v6378, 2
      %v7034 = vrot.slane %v6443, 2
      %v7035 = vsel %vm7026, %v7033, %v7034
      %v7036 = vrot.slane %v6379, 2
      %v7037 = vrot.slane %v6444, 2
      %v7038 = vsel %vm7026, %v7036, %v7037
      %v7039 = vrot.slane %v6380, 2
      %v7040 = vrot.slane %v6445, 2
      %v7041 = vsel %vm7026, %v7039, %v7040
      %v7042 = vrot.slane %v6381, 2
      %v7043 = vrot.slane %v6446, 2
      %v7044 = vsel %vm7026, %v7042, %v7043
      %v7045 = vrot.slane %v6382, 2
      %v7046 = vrot.slane %v6447, 2
      %v7047 = vsel %vm7026, %v7045, %v7046
      %v7048 = vrot.slane %v6383, 2
      %v7049 = vrot.slane %v6448, 2
      %v7050 = vsel %vm7026, %v7048, %v7049
      %v7051 = vrot.slane %v6384, 2
      %v7052 = vrot.slane %v6449, 2
      %v7053 = vsel %vm7026, %v7051, %v7052
      %v7054 = vrot.slane %v6385, 2
      %v7055 = vrot.slane %v6450, 2
      %v7056 = vsel %vm7026, %v7054, %v7055
      %v7057 = vrot.slane %v6386, 2
      %v7058 = vrot.slane %v6451, 2
      %v7059 = vsel %vm7026, %v7057, %v7058
      %v7060 = vrot.slane %v6387, 2
      %v7061 = vrot.slane %v6452, 2
      %v7062 = vsel %vm7026, %v7060, %v7061
      %v7063 = vrot.slane %v6388, 2
      %v7064 = vrot.slane %v6453, 2
      %v7065 = vsel %vm7026, %v7063, %v7064
      %v7066 = vrot.slane %v6389, 2
      %v7067 = vrot.slane %v6454, 2
      %v7068 = vsel %vm7026, %v7066, %v7067
      %v7069 = vrot.slane %v6390, 2
      %v7070 = vrot.slane %v6455, 2
      %v7071 = vsel %vm7026, %v7069, %v7070
      %v7072 = vrot.slane %v6391, 2
      %v7073 = vrot.slane %v6456, 2
      %v7074 = vsel %vm7026, %v7072, %v7073
      %v7075 = vrot.slane %v6392, 2
      %v7076 = vrot.slane %v6457, 2
      %v7077 = vsel %vm7026, %v7075, %v7076
      %v7078 = vrot.slane %v6393, 2
      %v7079 = vrot.slane %v6458, 2
      %v7080 = vsel %vm7026, %v7078, %v7079
      %v7081 = vrot.slane %v6394, 2
      %v7082 = vrot.slane %v6459, 2
      %v7083 = vsel %vm7026, %v7081, %v7082
      %v7084 = vrot.slane %v6395, 2
      %v7085 = vrot.slane %v6460, 2
      %v7086 = vsel %vm7026, %v7084, %v7085
      %v7087 = vrot.slane %v6396, 2
      %v7088 = vrot.slane %v6461, 2
      %v7089 = vsel %vm7026, %v7087, %v7088
      %v7090 = vrot.slane %v6397, 2
      %v7091 = vrot.slane %v6462, 2
      %v7092 = vsel %vm7026, %v7090, %v7091
      %v7093 = vrot.slane %v6398, 2
      %v7094 = vrot.slane %v6463, 2
      %v7095 = vsel %vm7026, %v7093, %v7094
      %v7096 = vrot.slane %v6399, 2
      %v7097 = vrot.slane %v6464, 2
      %v7098 = vsel %vm7026, %v7096, %v7097
      %v7099 = vrot.slane %v6400, 2
      %v7100 = vrot.slane %v6465, 2
      %v7101 = vsel %vm7026, %v7099, %v7100
      %v7102 = vrot.slane %v6401, 2
      %v7103 = vrot.slane %v6466, 2
      %v7104 = vsel %vm7026, %v7102, %v7103
      %v7105 = vrot.slane %v6402, 2
      %v7106 = vrot.slane %v6467, 2
      %v7107 = vsel %vm7026, %v7105, %v7106
      %v7108 = vrot.slane %v6403, 2
      %v7109 = vrot.slane %v6468, 2
      %v7110 = vsel %vm7026, %v7108, %v7109
      %v7111 = vrot.slane %v6404, 2
      %v7112 = vrot.slane %v6469, 2
      %v7113 = vsel %vm7026, %v7111, %v7112
      %v7114 = vrot.slane %v6405, 2
      %v7115 = vrot.slane %v6470, 2
      %v7116 = vsel %vm7026, %v7114, %v7115
      %v7117 = vrot.slane %v6406, 2
      %v7118 = vrot.slane %v6471, 2
      %v7119 = vsel %vm7026, %v7117, %v7118
      %v7120 = vrot.slane %v6407, 2
      %v7121 = vrot.slane %v6472, 2
      %v7122 = vsel %vm7026, %v7120, %v7121
      %v7123 = vrot.slane %v6408, 2
      %v7124 = vrot.slane %v6473, 2
      %v7125 = vsel %vm7026, %v7123, %v7124
      %v7126 = vrot.slane %v6409, 2
      %v7127 = vrot.slane %v6474, 2
      %v7128 = vsel %vm7026, %v7126, %v7127
      %v7129 = vrot.slane %v6410, 2
      %v7130 = vrot.slane %v6475, 2
      %v7131 = vsel %vm7026, %v7129, %v7130
      %v7132 = vrot.slane %v6411, 2
      %v7133 = vrot.slane %v6476, 2
      %v7134 = vsel %vm7026, %v7132, %v7133
      %v7135 = vrot.slane %v6412, 2
      %v7136 = vrot.slane %v6477, 2
      %v7137 = vsel %vm7026, %v7135, %v7136
      %v7138 = vrot.slane %v6413, 2
      %v7139 = vrot.slane %v6478, 2
      %v7140 = vsel %vm7026, %v7138, %v7139
      %v7141 = vrot.slane %v6414, 2
      %v7142 = vrot.slane %v6479, 2
      %v7143 = vsel %vm7026, %v7141, %v7142
      %v7144 = vrot.slane %v6415, 2
      %v7145 = vrot.slane %v6480, 2
      %v7146 = vsel %vm7026, %v7144, %v7145
      %v7147 = vrot.slane %v6416, 2
      %v7148 = vrot.slane %v6481, 2
      %v7149 = vsel %vm7026, %v7147, %v7148
      %v7150 = vrot.slane %v6417, 2
      %v7151 = vrot.slane %v6482, 2
      %v7152 = vsel %vm7026, %v7150, %v7151
      %v7153 = vrot.slane %v6418, 2
      %v7154 = vrot.slane %v6483, 2
      %v7155 = vsel %vm7026, %v7153, %v7154
      %v7156 = vrot.slane %v6419, 2
      %v7157 = vrot.slane %v6484, 2
      %v7158 = vsel %vm7026, %v7156, %v7157
      %v7159 = vrot.slane %v6420, 2
      %v7160 = vrot.slane %v6485, 2
      %v7161 = vsel %vm7026, %v7159, %v7160
      %v7162 = vrot.slane %v6421, 2
      %v7163 = vrot.slane %v6486, 2
      %v7164 = vsel %vm7026, %v7162, %v7163
      %v7165 = vrot.slane %v6422, 2
      %v7166 = vrot.slane %v6487, 2
      %v7167 = vsel %vm7026, %v7165, %v7166
      %v7168 = vrot.slane %v6423, 2
      %v7169 = vrot.slane %v6488, 2
      %v7170 = vsel %vm7026, %v7168, %v7169
      %v7171 = vrot.slane %v6424, 2
      %v7172 = vrot.slane %v6489, 2
      %v7173 = vsel %vm7026, %v7171, %v7172
      %v7174 = vrot.slane %v6425, 2
      %v7175 = vrot.slane %v6490, 2
      %v7176 = vsel %vm7026, %v7174, %v7175
      %v7177 = vrot.slane %v6426, 2
      %v7178 = vrot.slane %v6491, 2
      %v7179 = vsel %vm7026, %v7177, %v7178
      %v7180 = vrot.slane %v6427, 2
      %v7181 = vrot.slane %v6492, 2
      %v7182 = vsel %vm7026, %v7180, %v7181
      %v7183 = vrot.slane %v6428, 2
      %v7184 = vrot.slane %v6493, 2
      %v7185 = vsel %vm7026, %v7183, %v7184
      %v7186 = vrot.slane %v6429, 2
      %v7187 = vrot.slane %v6494, 2
      %v7188 = vsel %vm7026, %v7186, %v7187
      %v7189 = vrot.slane %v6430, 2
      %v7190 = vrot.slane %v6495, 2
      %v7191 = vsel %vm7026, %v7189, %v7190
      %v7192 = vrot.slane %v6431, 2
      %v7193 = vrot.slane %v6496, 2
      %v7194 = vsel %vm7026, %v7192, %v7193
      %v7195 = vrot.slane %v6432, 2
      %v7196 = vrot.slane %v6497, 2
      %v7197 = vsel %vm7026, %v7195, %v7196
      %v7198 = vrot.slane %v6433, 2
      %v7199 = vrot.slane %v6498, 2
      %v7200 = vsel %vm7026, %v7198, %v7199
      %v7201 = vrot.slane %v6434, 2
      %v7202 = vrot.slane %v6499, 2
      %v7203 = vsel %vm7026, %v7201, %v7202
      %v7204 = vrot.slane %v6435, 2
      %v7205 = vrot.slane %v6500, 2
      %v7206 = vsel %vm7026, %v7204, %v7205
      %v7207 = vrot.slane %v6436, 2
      %v7208 = vrot.slane %v6501, 2
      %v7209 = vsel %vm7026, %v7207, %v7208
      %v7210 = vrot.slane %v6437, 2
      %v7211 = vrot.slane %v6502, 2
      %v7212 = vsel %vm7026, %v7210, %v7211
      %v7213 = vrot.slane %v6438, 2
      %v7214 = vrot.slane %v6503, 2
      %v7215 = vsel %vm7026, %v7213, %v7214
      %v7216 = vrot.slane %v6439, 2
      %v7217 = vrot.slane %v6504, 2
      %v7218 = vsel %vm7026, %v7216, %v7217
      %v7219 = vrot.slane %v6440, 2
      %v7220 = vrot.slane %v6505, 2
      %v7221 = vsel %vm7026, %v7219, %v7220
      %vm7287 = vcmask 523264
      %v7288 = vsel %vm7287, %v6376, %v6832
      %v7289 = vsel %vm7287, %v6377, %v6834
      %v7290 = vsel %vm7287, %v6378, %v6836
      %v7291 = vsel %vm7287, %v6379, %v6838
      %v7292 = vsel %vm7287, %v6380, %v6840
      %v7293 = vsel %vm7287, %v6381, %v6842
      %v7294 = vsel %vm7287, %v6382, %v6844
      %v7295 = vsel %vm7287, %v6383, %v6846
      %v7296 = vsel %vm7287, %v6384, %v6848
      %v7297 = vsel %vm7287, %v6385, %v6850
      %v7298 = vsel %vm7287, %v6386, %v6852
      %v7299 = vsel %vm7287, %v6387, %v6854
      %v7300 = vsel %vm7287, %v6388, %v6856
      %v7301 = vsel %vm7287, %v6389, %v6858
      %v7302 = vsel %vm7287, %v6390, %v6860
      %v7303 = vsel %vm7287, %v6391, %v6862
      %v7304 = vsel %vm7287, %v6392, %v6864
      %v7305 = vsel %vm7287, %v6393, %v6866
      %v7306 = vsel %vm7287, %v6394, %v6868
      %v7307 = vsel %vm7287, %v6395, %v6870
      %v7308 = vsel %vm7287, %v6396, %v6872
      %v7309 = vsel %vm7287, %v6397, %v6874
      %v7310 = vsel %vm7287, %v6398, %v6876
      %v7311 = vsel %vm7287, %v6399, %v6878
      %v7312 = vsel %vm7287, %v6400, %v6880
      %v7313 = vsel %vm7287, %v6401, %v6882
      %v7314 = vsel %vm7287, %v6402, %v6884
      %v7315 = vsel %vm7287, %v6403, %v6886
      %v7316 = vsel %vm7287, %v6404, %v6888
      %v7317 = vsel %vm7287, %v6405, %v6890
      %v7318 = vsel %vm7287, %v6406, %v6892
      %v7319 = vsel %vm7287, %v6407, %v6894
      %v7320 = vsel %vm7287, %v6408, %v6896
      %v7321 = vsel %vm7287, %v6409, %v6898
      %v7322 = vsel %vm7287, %v6410, %v6900
      %v7323 = vsel %vm7287, %v6411, %v6902
      %v7324 = vsel %vm7287, %v6412, %v6904
      %v7325 = vsel %vm7287, %v6413, %v6906
      %v7326 = vsel %vm7287, %v6414, %v6908
      %v7327 = vsel %vm7287, %v6415, %v6910
      %v7328 = vsel %vm7287, %v6416, %v6912
      %v7329 = vsel %vm7287, %v6417, %v6914
      %v7330 = vsel %vm7287, %v6418, %v6916
      %v7331 = vsel %vm7287, %v6419, %v6918
      %v7332 = vsel %vm7287, %v6420, %v6920
      %v7333 = vsel %vm7287, %v6421, %v6922
      %v7334 = vsel %vm7287, %v6422, %v6924
      %v7335 = vsel %vm7287, %v6423, %v6926
      %v7336 = vsel %vm7287, %v6424, %v6928
      %v7337 = vsel %vm7287, %v6425, %v6930
      %v7338 = vsel %vm7287, %v6426, %v6932
      %v7339 = vsel %vm7287, %v6427, %v6934
      %v7340 = vsel %vm7287, %v6428, %v6936
      %v7341 = vsel %vm7287, %v6429, %v6938
      %v7342 = vsel %vm7287, %v6430, %v6940
      %v7343 = vsel %vm7287, %v6431, %v6942
      %v7344 = vsel %vm7287, %v6432, %v6944
      %v7345 = vsel %vm7287, %v6433, %v6946
      %v7346 = vsel %vm7287, %v6434, %v6948
      %v7347 = vsel %vm7287, %v6435, %v6950
      %v7348 = vsel %vm7287, %v6436, %v6952
      %v7349 = vsel %vm7287, %v6437, %v6954
      %v7350 = vsel %vm7287, %v6438, %v6956
      %v7351 = vsel %vm7287, %v6439, %v6958
      %v7352 = vsel %vm7287, %v6440, %v6960
      %7417 = vrot.lane.b32.xlu0 %v7289, 64
      %v7418 = vpop.permute.xlu0 %7417
      %7419 = vrot.lane.b32.xlu0 %v7032, 64
      %v7420 = vpop.permute.xlu0 %7419
      %7421 = vrot.lane.b32.xlu0 %v7290, 64
      %v7422 = vpop.permute.xlu0 %7421
      %7423 = vrot.lane.b32.xlu0 %v7035, 64
      %v7424 = vpop.permute.xlu0 %7423
      %7425 = vrot.lane.b32.xlu0 %v7291, 64
      %v7426 = vpop.permute.xlu0 %7425
      %7427 = vrot.lane.b32.xlu0 %v7038, 64
      %v7428 = vpop.permute.xlu0 %7427
      %7429 = vrot.lane.b32.xlu0 %v7292, 64
      %v7430 = vpop.permute.xlu0 %7429
      %7431 = vrot.lane.b32.xlu0 %v7041, 64
      %v7432 = vpop.permute.xlu0 %7431
      %7433 = vrot.lane.b32.xlu0 %v7293, 64
      %v7434 = vpop.permute.xlu0 %7433
      %7435 = vrot.lane.b32.xlu0 %v7044, 64
      %v7436 = vpop.permute.xlu0 %7435
      %7437 = vrot.lane.b32.xlu0 %v7294, 64
      %v7438 = vpop.permute.xlu0 %7437
      %7439 = vrot.lane.b32.xlu0 %v7047, 64
      %v7440 = vpop.permute.xlu0 %7439
      %7441 = vrot.lane.b32.xlu0 %v7295, 64
      %v7442 = vpop.permute.xlu0 %7441
      %7443 = vrot.lane.b32.xlu0 %v7050, 64
      %v7444 = vpop.permute.xlu0 %7443
      %7445 = vrot.lane.b32.xlu0 %v7296, 64
      %v7446 = vpop.permute.xlu0 %7445
      %7447 = vrot.lane.b32.xlu0 %v7053, 64
      %v7448 = vpop.permute.xlu0 %7447
      %7449 = vrot.lane.b32.xlu0 %v7297, 64
      %v7450 = vpop.permute.xlu0 %7449
      %7451 = vrot.lane.b32.xlu0 %v7056, 64
      %v7452 = vpop.permute.xlu0 %7451
      %7453 = vrot.lane.b32.xlu0 %v7298, 64
      %v7454 = vpop.permute.xlu0 %7453
      %7455 = vrot.lane.b32.xlu0 %v7059, 64
      %v7456 = vpop.permute.xlu0 %7455
      %7457 = vrot.lane.b32.xlu0 %v7299, 64
      %v7458 = vpop.permute.xlu0 %7457
      %7459 = vrot.lane.b32.xlu0 %v7062, 64
      %v7460 = vpop.permute.xlu0 %7459
      %7461 = vrot.lane.b32.xlu0 %v7300, 64
      %v7462 = vpop.permute.xlu0 %7461
      %7463 = vrot.lane.b32.xlu0 %v7065, 64
      %v7464 = vpop.permute.xlu0 %7463
      %7465 = vrot.lane.b32.xlu0 %v7301, 64
      %v7466 = vpop.permute.xlu0 %7465
      %7467 = vrot.lane.b32.xlu0 %v7068, 64
      %v7468 = vpop.permute.xlu0 %7467
      %7469 = vrot.lane.b32.xlu0 %v7302, 64
      %v7470 = vpop.permute.xlu0 %7469
      %7471 = vrot.lane.b32.xlu0 %v7071, 64
      %v7472 = vpop.permute.xlu0 %7471
      %7473 = vrot.lane.b32.xlu0 %v7303, 64
      %v7474 = vpop.permute.xlu0 %7473
      %7475 = vrot.lane.b32.xlu0 %v7074, 64
      %v7476 = vpop.permute.xlu0 %7475
      %7477 = vrot.lane.b32.xlu0 %v7304, 64
      %v7478 = vpop.permute.xlu0 %7477
      %7479 = vrot.lane.b32.xlu0 %v7077, 64
      %v7480 = vpop.permute.xlu0 %7479
      %7481 = vrot.lane.b32.xlu0 %v7305, 64
      %v7482 = vpop.permute.xlu0 %7481
      %7483 = vrot.lane.b32.xlu0 %v7080, 64
      %v7484 = vpop.permute.xlu0 %7483
      %7485 = vrot.lane.b32.xlu0 %v7306, 64
      %v7486 = vpop.permute.xlu0 %7485
      %7487 = vrot.lane.b32.xlu0 %v7083, 64
      %v7488 = vpop.permute.xlu0 %7487
      %7489 = vrot.lane.b32.xlu0 %v7307, 64
      %v7490 = vpop.permute.xlu0 %7489
      %7491 = vrot.lane.b32.xlu0 %v7086, 64
      %v7492 = vpop.permute.xlu0 %7491
      %7493 = vrot.lane.b32.xlu0 %v7308, 64
      %v7494 = vpop.permute.xlu0 %7493
      %7495 = vrot.lane.b32.xlu0 %v7089, 64
      %v7496 = vpop.permute.xlu0 %7495
      %7497 = vrot.lane.b32.xlu0 %v7309, 64
      %v7498 = vpop.permute.xlu0 %7497
      %7499 = vrot.lane.b32.xlu0 %v7092, 64
      %v7500 = vpop.permute.xlu0 %7499
      %7501 = vrot.lane.b32.xlu0 %v7310, 64
      %v7502 = vpop.permute.xlu0 %7501
      %7503 = vrot.lane.b32.xlu0 %v7095, 64
      %v7504 = vpop.permute.xlu0 %7503
      %7505 = vrot.lane.b32.xlu0 %v7311, 64
      %v7506 = vpop.permute.xlu0 %7505
      %7507 = vrot.lane.b32.xlu0 %v7098, 64
      %v7508 = vpop.permute.xlu0 %7507
      %7509 = vrot.lane.b32.xlu0 %v7312, 64
      %v7510 = vpop.permute.xlu0 %7509
      %7511 = vrot.lane.b32.xlu0 %v7101, 64
      %v7512 = vpop.permute.xlu0 %7511
      %7513 = vrot.lane.b32.xlu0 %v7313, 64
      %v7514 = vpop.permute.xlu0 %7513
      %7515 = vrot.lane.b32.xlu0 %v7104, 64
      %v7516 = vpop.permute.xlu0 %7515
      %7517 = vrot.lane.b32.xlu0 %v7314, 64
      %v7518 = vpop.permute.xlu0 %7517
      %7519 = vrot.lane.b32.xlu0 %v7107, 64
      %v7520 = vpop.permute.xlu0 %7519
      %7521 = vrot.lane.b32.xlu0 %v7315, 64
      %v7522 = vpop.permute.xlu0 %7521
      %7523 = vrot.lane.b32.xlu0 %v7110, 64
      %v7524 = vpop.permute.xlu0 %7523
      %7525 = vrot.lane.b32.xlu0 %v7316, 64
      %v7526 = vpop.permute.xlu0 %7525
      %7527 = vrot.lane.b32.xlu0 %v7113, 64
      %v7528 = vpop.permute.xlu0 %7527
      %7529 = vrot.lane.b32.xlu0 %v7317, 64
      %v7530 = vpop.permute.xlu0 %7529
      %7531 = vrot.lane.b32.xlu0 %v7116, 64
      %v7532 = vpop.permute.xlu0 %7531
      %7533 = vrot.lane.b32.xlu0 %v7318, 64
      %v7534 = vpop.permute.xlu0 %7533
      %7535 = vrot.lane.b32.xlu0 %v7119, 64
      %v7536 = vpop.permute.xlu0 %7535
      %7537 = vrot.lane.b32.xlu0 %v7319, 64
      %v7538 = vpop.permute.xlu0 %7537
      %7539 = vrot.lane.b32.xlu0 %v7122, 64
      %v7540 = vpop.permute.xlu0 %7539
      %7541 = vrot.lane.b32.xlu0 %v7320, 64
      %v7542 = vpop.permute.xlu0 %7541
      %7543 = vrot.lane.b32.xlu0 %v7125, 64
      %v7544 = vpop.permute.xlu0 %7543
      %7545 = vrot.lane.b32.xlu0 %v7321, 64
      %v7546 = vpop.permute.xlu0 %7545
      %7547 = vrot.lane.b32.xlu0 %v7128, 64
      %v7548 = vpop.permute.xlu0 %7547
      %7549 = vrot.lane.b32.xlu0 %v7322, 64
      %v7550 = vpop.permute.xlu0 %7549
      %7551 = vrot.lane.b32.xlu0 %v7131, 64
      %v7552 = vpop.permute.xlu0 %7551
      %7553 = vrot.lane.b32.xlu0 %v7323, 64
      %v7554 = vpop.permute.xlu0 %7553
      %7555 = vrot.lane.b32.xlu0 %v7134, 64
      %v7556 = vpop.permute.xlu0 %7555
      %7557 = vrot.lane.b32.xlu0 %v7324, 64
      %v7558 = vpop.permute.xlu0 %7557
      %7559 = vrot.lane.b32.xlu0 %v7137, 64
      %v7560 = vpop.permute.xlu0 %7559
      %7561 = vrot.lane.b32.xlu0 %v7325, 64
      %v7562 = vpop.permute.xlu0 %7561
      %7563 = vrot.lane.b32.xlu0 %v7140, 64
      %v7564 = vpop.permute.xlu0 %7563
      %7565 = vrot.lane.b32.xlu0 %v7326, 64
      %v7566 = vpop.permute.xlu0 %7565
      %7567 = vrot.lane.b32.xlu0 %v7143, 64
      %v7568 = vpop.permute.xlu0 %7567
      %7569 = vrot.lane.b32.xlu0 %v7327, 64
      %v7570 = vpop.permute.xlu0 %7569
      %7571 = vrot.lane.b32.xlu0 %v7146, 64
      %v7572 = vpop.permute.xlu0 %7571
      %7573 = vrot.lane.b32.xlu0 %v7328, 64
      %v7574 = vpop.permute.xlu0 %7573
      %7575 = vrot.lane.b32.xlu0 %v7149, 64
      %v7576 = vpop.permute.xlu0 %7575
      %7577 = vrot.lane.b32.xlu0 %v7329, 64
      %v7578 = vpop.permute.xlu0 %7577
      %7579 = vrot.lane.b32.xlu0 %v7152, 64
      %v7580 = vpop.permute.xlu0 %7579
      %7581 = vrot.lane.b32.xlu0 %v7330, 64
      %v7582 = vpop.permute.xlu0 %7581
      %7583 = vrot.lane.b32.xlu0 %v7155, 64
      %v7584 = vpop.permute.xlu0 %7583
      %7585 = vrot.lane.b32.xlu0 %v7331, 64
      %v7586 = vpop.permute.xlu0 %7585
      %7587 = vrot.lane.b32.xlu0 %v7158, 64
      %v7588 = vpop.permute.xlu0 %7587
      %7589 = vrot.lane.b32.xlu0 %v7332, 64
      %v7590 = vpop.permute.xlu0 %7589
      %7591 = vrot.lane.b32.xlu0 %v7161, 64
      %v7592 = vpop.permute.xlu0 %7591
      %7593 = vrot.lane.b32.xlu0 %v7333, 64
      %v7594 = vpop.permute.xlu0 %7593
      %7595 = vrot.lane.b32.xlu0 %v7164, 64
      %v7596 = vpop.permute.xlu0 %7595
      %7597 = vrot.lane.b32.xlu0 %v7334, 64
      %v7598 = vpop.permute.xlu0 %7597
      %7599 = vrot.lane.b32.xlu0 %v7167, 64
      %v7600 = vpop.permute.xlu0 %7599
      %7601 = vrot.lane.b32.xlu0 %v7335, 64
      %v7602 = vpop.permute.xlu0 %7601
      %7603 = vrot.lane.b32.xlu0 %v7170, 64
      %v7604 = vpop.permute.xlu0 %7603
      %7605 = vrot.lane.b32.xlu0 %v7336, 64
      %v7606 = vpop.permute.xlu0 %7605
      %7607 = vrot.lane.b32.xlu0 %v7173, 64
      %v7608 = vpop.permute.xlu0 %7607
      %7609 = vrot.lane.b32.xlu0 %v7337, 64
      %v7610 = vpop.permute.xlu0 %7609
      %7611 = vrot.lane.b32.xlu0 %v7176, 64
      %v7612 = vpop.permute.xlu0 %7611
      %7613 = vrot.lane.b32.xlu0 %v7338, 64
      %v7614 = vpop.permute.xlu0 %7613
      %7615 = vrot.lane.b32.xlu0 %v7179, 64
      %v7616 = vpop.permute.xlu0 %7615
      %7617 = vrot.lane.b32.xlu0 %v7339, 64
      %v7618 = vpop.permute.xlu0 %7617
      %7619 = vrot.lane.b32.xlu0 %v7182, 64
      %v7620 = vpop.permute.xlu0 %7619
      %7621 = vrot.lane.b32.xlu0 %v7340, 64
      %v7622 = vpop.permute.xlu0 %7621
      %7623 = vrot.lane.b32.xlu0 %v7185, 64
      %v7624 = vpop.permute.xlu0 %7623
      %7625 = vrot.lane.b32.xlu0 %v7341, 64
      %v7626 = vpop.permute.xlu0 %7625
      %7627 = vrot.lane.b32.xlu0 %v7188, 64
      %v7628 = vpop.permute.xlu0 %7627
      %7629 = vrot.lane.b32.xlu0 %v7342, 64
      %v7630 = vpop.permute.xlu0 %7629
      %7631 = vrot.lane.b32.xlu0 %v7191, 64
      %v7632 = vpop.permute.xlu0 %7631
      %7633 = vrot.lane.b32.xlu0 %v7343, 64
      %v7634 = vpop.permute.xlu0 %7633
      %7635 = vrot.lane.b32.xlu0 %v7194, 64
      %v7636 = vpop.permute.xlu0 %7635
      %7637 = vrot.lane.b32.xlu0 %v7344, 64
      %v7638 = vpop.permute.xlu0 %7637
      %7639 = vrot.lane.b32.xlu0 %v7197, 64
      %v7640 = vpop.permute.xlu0 %7639
      %7641 = vrot.lane.b32.xlu0 %v7345, 64
      %v7642 = vpop.permute.xlu0 %7641
      %7643 = vrot.lane.b32.xlu0 %v7200, 64
      %v7644 = vpop.permute.xlu0 %7643
      %7645 = vrot.lane.b32.xlu0 %v7346, 64
      %v7646 = vpop.permute.xlu0 %7645
      %7647 = vrot.lane.b32.xlu0 %v7203, 64
      %v7648 = vpop.permute.xlu0 %7647
      %7649 = vrot.lane.b32.xlu0 %v7347, 64
      %v7650 = vpop.permute.xlu0 %7649
      %7651 = vrot.lane.b32.xlu0 %v7206, 64
      %v7652 = vpop.permute.xlu0 %7651
      %7653 = vrot.lane.b32.xlu0 %v7348, 64
      %v7654 = vpop.permute.xlu0 %7653
      %7655 = vrot.lane.b32.xlu0 %v7209, 64
      %v7656 = vpop.permute.xlu0 %7655
      %7657 = vrot.lane.b32.xlu0 %v7349, 64
      %v7658 = vpop.permute.xlu0 %7657
      %7659 = vrot.lane.b32.xlu0 %v7212, 64
      %v7660 = vpop.permute.xlu0 %7659
      %7661 = vrot.lane.b32.xlu0 %v7350, 64
      %v7662 = vpop.permute.xlu0 %7661
      %7663 = vrot.lane.b32.xlu0 %v7215, 64
      %v7664 = vpop.permute.xlu0 %7663
      %7665 = vrot.lane.b32.xlu0 %v7351, 64
      %v7666 = vpop.permute.xlu0 %7665
      %7667 = vrot.lane.b32.xlu0 %v7218, 64
      %v7668 = vpop.permute.xlu0 %7667
      %7669 = vrot.lane.b32.xlu0 %v7352, 64
      %v7670 = vpop.permute.xlu0 %7669
      %7671 = vrot.lane.b32.xlu0 %v7221, 64
      %v7672 = vpop.permute.xlu0 %7671
      %v7673 = vsel %vm7287, %v7418, %v7420
      %v7674 = vsel %vm7287, %v7422, %v7424
      %v7675 = vsel %vm7287, %v7426, %v7428
      %v7676 = vsel %vm7287, %v7430, %v7432
      %v7677 = vsel %vm7287, %v7434, %v7436
      %v7678 = vsel %vm7287, %v7438, %v7440
      %v7679 = vsel %vm7287, %v7442, %v7444
      %v7680 = vsel %vm7287, %v7446, %v7448
      %v7681 = vsel %vm7287, %v7450, %v7452
      %v7682 = vsel %vm7287, %v7454, %v7456
      %v7683 = vsel %vm7287, %v7458, %v7460
      %v7684 = vsel %vm7287, %v7462, %v7464
      %v7685 = vsel %vm7287, %v7466, %v7468
      %v7686 = vsel %vm7287, %v7470, %v7472
      %v7687 = vsel %vm7287, %v7474, %v7476
      %v7688 = vsel %vm7287, %v7478, %v7480
      %v7689 = vsel %vm7287, %v7482, %v7484
      %v7690 = vsel %vm7287, %v7486, %v7488
      %v7691 = vsel %vm7287, %v7490, %v7492
      %v7692 = vsel %vm7287, %v7494, %v7496
      %v7693 = vsel %vm7287, %v7498, %v7500
      %v7694 = vsel %vm7287, %v7502, %v7504
      %v7695 = vsel %vm7287, %v7506, %v7508
      %v7696 = vsel %vm7287, %v7510, %v7512
      %v7697 = vsel %vm7287, %v7514, %v7516
      %v7698 = vsel %vm7287, %v7518, %v7520
      %v7699 = vsel %vm7287, %v7522, %v7524
      %v7700 = vsel %vm7287, %v7526, %v7528
      %v7701 = vsel %vm7287, %v7530, %v7532
      %v7702 = vsel %vm7287, %v7534, %v7536
      %v7703 = vsel %vm7287, %v7538, %v7540
      %v7704 = vsel %vm7287, %v7542, %v7544
      %v7705 = vsel %vm7287, %v7546, %v7548
      %v7706 = vsel %vm7287, %v7550, %v7552
      %v7707 = vsel %vm7287, %v7554, %v7556
      %v7708 = vsel %vm7287, %v7558, %v7560
      %v7709 = vsel %vm7287, %v7562, %v7564
      %v7710 = vsel %vm7287, %v7566, %v7568
      %v7711 = vsel %vm7287, %v7570, %v7572
      %v7712 = vsel %vm7287, %v7574, %v7576
      %v7713 = vsel %vm7287, %v7578, %v7580
      %v7714 = vsel %vm7287, %v7582, %v7584
      %v7715 = vsel %vm7287, %v7586, %v7588
      %v7716 = vsel %vm7287, %v7590, %v7592
      %v7717 = vsel %vm7287, %v7594, %v7596
      %v7718 = vsel %vm7287, %v7598, %v7600
      %v7719 = vsel %vm7287, %v7602, %v7604
      %v7720 = vsel %vm7287, %v7606, %v7608
      %v7721 = vsel %vm7287, %v7610, %v7612
      %v7722 = vsel %vm7287, %v7614, %v7616
      %v7723 = vsel %vm7287, %v7618, %v7620
      %v7724 = vsel %vm7287, %v7622, %v7624
      %v7725 = vsel %vm7287, %v7626, %v7628
      %v7726 = vsel %vm7287, %v7630, %v7632
      %v7727 = vsel %vm7287, %v7634, %v7636
      %v7728 = vsel %vm7287, %v7638, %v7640
      %v7729 = vsel %vm7287, %v7642, %v7644
      %v7730 = vsel %vm7287, %v7646, %v7648
      %v7731 = vsel %vm7287, %v7650, %v7652
      %v7732 = vsel %vm7287, %v7654, %v7656
      %v7733 = vsel %vm7287, %v7658, %v7660
      %v7734 = vsel %vm7287, %v7662, %v7664
      %v7735 = vsel %vm7287, %v7666, %v7668
      %v7736 = vsel %vm7287, %v7670, %v7672
      %v7865 = vsel %vm7287, %v7029, %v7418
      %v7866 = vsel %vm7287, %v7032, %v7422
      %v7867 = vsel %vm7287, %v7035, %v7426
      %v7868 = vsel %vm7287, %v7038, %v7430
      %v7869 = vsel %vm7287, %v7041, %v7434
      %v7870 = vsel %vm7287, %v7044, %v7438
      %v7871 = vsel %vm7287, %v7047, %v7442
      %v7872 = vsel %vm7287, %v7050, %v7446
      %v7873 = vsel %vm7287, %v7029, %v7450
      %v7874 = vsel %vm7287, %v7056, %v7454
      %v7875 = vsel %vm7287, %v7059, %v7458
      %v7876 = vsel %vm7287, %v7062, %v7462
      %v7877 = vsel %vm7287, %v7065, %v7466
      %v7878 = vsel %vm7287, %v7068, %v7470
      %v7879 = vsel %vm7287, %v7071, %v7474
      %v7880 = vsel %vm7287, %v7074, %v7478
      %v7881 = vsel %vm7287, %v7029, %v7482
      %v7882 = vsel %vm7287, %v7080, %v7486
      %v7883 = vsel %vm7287, %v7083, %v7490
      %v7884 = vsel %vm7287, %v7086, %v7494
      %v7885 = vsel %vm7287, %v7089, %v7498
      %v7886 = vsel %vm7287, %v7092, %v7502
      %v7887 = vsel %vm7287, %v7095, %v7506
      %v7888 = vsel %vm7287, %v7098, %v7510
      %v7889 = vsel %vm7287, %v7029, %v7514
      %v7890 = vsel %vm7287, %v7104, %v7518
      %v7891 = vsel %vm7287, %v7107, %v7522
      %v7892 = vsel %vm7287, %v7110, %v7526
      %v7893 = vsel %vm7287, %v7113, %v7530
      %v7894 = vsel %vm7287, %v7116, %v7534
      %v7895 = vsel %vm7287, %v7119, %v7538
      %v7896 = vsel %vm7287, %v7122, %v7542
      %v7897 = vsel %vm7287, %v7029, %v7546
      %v7898 = vsel %vm7287, %v7128, %v7550
      %v7899 = vsel %vm7287, %v7131, %v7554
      %v7900 = vsel %vm7287, %v7134, %v7558
      %v7901 = vsel %vm7287, %v7137, %v7562
      %v7902 = vsel %vm7287, %v7140, %v7566
      %v7903 = vsel %vm7287, %v7143, %v7570
      %v7904 = vsel %vm7287, %v7146, %v7574
      %v7905 = vsel %vm7287, %v7029, %v7578
      %v7906 = vsel %vm7287, %v7152, %v7582
      %v7907 = vsel %vm7287, %v7155, %v7586
      %v7908 = vsel %vm7287, %v7158, %v7590
      %v7909 = vsel %vm7287, %v7161, %v7594
      %v7910 = vsel %vm7287, %v7164, %v7598
      %v7911 = vsel %vm7287, %v7167, %v7602
      %v7912 = vsel %vm7287, %v7170, %v7606
      %v7913 = vsel %vm7287, %v7029, %v7610
      %v7914 = vsel %vm7287, %v7176, %v7614
      %v7915 = vsel %vm7287, %v7179, %v7618
      %v7916 = vsel %vm7287, %v7182, %v7622
      %v7917 = vsel %vm7287, %v7185, %v7626
      %v7918 = vsel %vm7287, %v7188, %v7630
      %v7919 = vsel %vm7287, %v7191, %v7634
      %v7920 = vsel %vm7287, %v7194, %v7638
      %v7921 = vsel %vm7287, %v7029, %v7642
      %v7922 = vsel %vm7287, %v7200, %v7646
      %v7923 = vsel %vm7287, %v7203, %v7650
      %v7924 = vsel %vm7287, %v7206, %v7654
      %v7925 = vsel %vm7287, %v7209, %v7658
      %v7926 = vsel %vm7287, %v7212, %v7662
      %v7927 = vsel %vm7287, %v7215, %v7666
      %v7928 = vsel %vm7287, %v7218, %v7670
      %v7929 = vpack.c.bf16 %v7289, %v7288
      %v7930 = vpack.c.bf16 %v7866, %v7865
      %v7931 = vpack.c.bf16 %v7674, %v7673
      %v7932 = vpack.c.bf16 %v7291, %v7290
      %v7933 = vpack.c.bf16 %v7038, %v7035
      %v7934 = vpack.c.bf16 %v7868, %v7867
      %v7935 = vpack.c.bf16 %v7676, %v7675
      %v7936 = vpack.c.bf16 %v7293, %v7292
      %v7937 = vpack.c.bf16 %v7044, %v7041
      %v7938 = vpack.c.bf16 %v7870, %v7869
      %v7939 = vpack.c.bf16 %v7678, %v7677
      %v7940 = vpack.c.bf16 %v7295, %v7294
      %v7941 = vpack.c.bf16 %v7050, %v7047
      %v7942 = vpack.c.bf16 %v7872, %v7871
      %v7943 = vpack.c.bf16 %v7680, %v7679
      %v7944 = vpack.c.bf16 %v7288, %v7296
      %v7945 = vpack.c.bf16 %v7029, %v7053
      %v7946 = vpack.c.bf16 %v7297, %v7288
      %v7947 = vpack.c.bf16 %v7874, %v7873
      %v7948 = vpack.c.bf16 %v7682, %v7681
      %v7949 = vpack.c.bf16 %v7299, %v7298
      %v7950 = vpack.c.bf16 %v7062, %v7059
      %v7951 = vpack.c.bf16 %v7876, %v7875
      %v7952 = vpack.c.bf16 %v7684, %v7683
      %v7953 = vpack.c.bf16 %v7301, %v7300
      %v7954 = vpack.c.bf16 %v7068, %v7065
      %v7955 = vpack.c.bf16 %v7878, %v7877
      %v7956 = vpack.c.bf16 %v7686, %v7685
      %v7957 = vpack.c.bf16 %v7303, %v7302
      %v7958 = vpack.c.bf16 %v7074, %v7071
      %v7959 = vpack.c.bf16 %v7880, %v7879
      %v7960 = vpack.c.bf16 %v7688, %v7687
      %v7961 = vpack.c.bf16 %v7288, %v7304
      %v7962 = vpack.c.bf16 %v7029, %v7077
      %v7963 = vpack.c.bf16 %v7305, %v7288
      %v7964 = vpack.c.bf16 %v7882, %v7881
      %v7965 = vpack.c.bf16 %v7690, %v7689
      %v7966 = vpack.c.bf16 %v7307, %v7306
      %v7967 = vpack.c.bf16 %v7086, %v7083
      %v7968 = vpack.c.bf16 %v7884, %v7883
      %v7969 = vpack.c.bf16 %v7692, %v7691
      %v7970 = vpack.c.bf16 %v7309, %v7308
      %v7971 = vpack.c.bf16 %v7092, %v7089
      %v7972 = vpack.c.bf16 %v7886, %v7885
      %v7973 = vpack.c.bf16 %v7694, %v7693
      %v7974 = vpack.c.bf16 %v7311, %v7310
      %v7975 = vpack.c.bf16 %v7098, %v7095
      %v7976 = vpack.c.bf16 %v7888, %v7887
      %v7977 = vpack.c.bf16 %v7696, %v7695
      %v7978 = vpack.c.bf16 %v7288, %v7312
      %v7979 = vpack.c.bf16 %v7029, %v7101
      %v7980 = vpack.c.bf16 %v7313, %v7288
      %v7981 = vpack.c.bf16 %v7890, %v7889
      %v7982 = vpack.c.bf16 %v7698, %v7697
      %v7983 = vpack.c.bf16 %v7315, %v7314
      %v7984 = vpack.c.bf16 %v7110, %v7107
      %v7985 = vpack.c.bf16 %v7892, %v7891
      %v7986 = vpack.c.bf16 %v7700, %v7699
      %v7987 = vpack.c.bf16 %v7317, %v7316
      %v7988 = vpack.c.bf16 %v7116, %v7113
      %v7989 = vpack.c.bf16 %v7894, %v7893
      %v7990 = vpack.c.bf16 %v7702, %v7701
      %v7991 = vpack.c.bf16 %v7319, %v7318
      %v7992 = vpack.c.bf16 %v7122, %v7119
      %v7993 = vpack.c.bf16 %v7896, %v7895
      %v7994 = vpack.c.bf16 %v7704, %v7703
      %v7995 = vpack.c.bf16 %v7288, %v7320
      %v7996 = vpack.c.bf16 %v7029, %v7125
      %v7997 = vpack.c.bf16 %v7321, %v7288
      %v7998 = vpack.c.bf16 %v7898, %v7897
      %v7999 = vpack.c.bf16 %v7706, %v7705
      %v8000 = vpack.c.bf16 %v7323, %v7322
      %v8001 = vpack.c.bf16 %v7134, %v7131
      %v8002 = vpack.c.bf16 %v7900, %v7899
      %v8003 = vpack.c.bf16 %v7708, %v7707
      %v8004 = vpack.c.bf16 %v7325, %v7324
      %v8005 = vpack.c.bf16 %v7140, %v7137
      %v8006 = vpack.c.bf16 %v7902, %v7901
      %v8007 = vpack.c.bf16 %v7710, %v7709
      %v8008 = vpack.c.bf16 %v7327, %v7326
      %v8009 = vpack.c.bf16 %v7146, %v7143
      %v8010 = vpack.c.bf16 %v7904, %v7903
      %v8011 = vpack.c.bf16 %v7712, %v7711
      %v8012 = vpack.c.bf16 %v7288, %v7328
      %v8013 = vpack.c.bf16 %v7029, %v7149
      %v8014 = vpack.c.bf16 %v7329, %v7288
      %v8015 = vpack.c.bf16 %v7906, %v7905
      %v8016 = vpack.c.bf16 %v7714, %v7713
      %v8017 = vpack.c.bf16 %v7331, %v7330
      %v8018 = vpack.c.bf16 %v7158, %v7155
      %v8019 = vpack.c.bf16 %v7908, %v7907
      %v8020 = vpack.c.bf16 %v7716, %v7715
      %v8021 = vpack.c.bf16 %v7333, %v7332
      %v8022 = vpack.c.bf16 %v7164, %v7161
      %v8023 = vpack.c.bf16 %v7910, %v7909
      %v8024 = vpack.c.bf16 %v7718, %v7717
      %v8025 = vpack.c.bf16 %v7335, %v7334
      %v8026 = vpack.c.bf16 %v7170, %v7167
      %v8027 = vpack.c.bf16 %v7912, %v7911
      %v8028 = vpack.c.bf16 %v7720, %v7719
      %v8029 = vpack.c.bf16 %v7288, %v7336
      %v8030 = vpack.c.bf16 %v7029, %v7173
      %v8031 = vpack.c.bf16 %v7337, %v7288
      %v8032 = vpack.c.bf16 %v7914, %v7913
      %v8033 = vpack.c.bf16 %v7722, %v7721
      %v8034 = vpack.c.bf16 %v7339, %v7338
      %v8035 = vpack.c.bf16 %v7182, %v7179
      %v8036 = vpack.c.bf16 %v7916, %v7915
      %v8037 = vpack.c.bf16 %v7724, %v7723
      %v8038 = vpack.c.bf16 %v7341, %v7340
      %v8039 = vpack.c.bf16 %v7188, %v7185
      %v8040 = vpack.c.bf16 %v7918, %v7917
      %v8041 = vpack.c.bf16 %v7726, %v7725
      %v8042 = vpack.c.bf16 %v7343, %v7342
      %v8043 = vpack.c.bf16 %v7194, %v7191
      %v8044 = vpack.c.bf16 %v7920, %v7919
      %v8045 = vpack.c.bf16 %v7728, %v7727
      %v8046 = vpack.c.bf16 %v7288, %v7344
      %v8047 = vpack.c.bf16 %v7029, %v7197
      %v8048 = vpack.c.bf16 %v7345, %v7288
      %v8049 = vpack.c.bf16 %v7922, %v7921
      %v8050 = vpack.c.bf16 %v7730, %v7729
      %v8051 = vpack.c.bf16 %v7347, %v7346
      %v8052 = vpack.c.bf16 %v7206, %v7203
      %v8053 = vpack.c.bf16 %v7924, %v7923
      %v8054 = vpack.c.bf16 %v7732, %v7731
      %v8055 = vpack.c.bf16 %v7349, %v7348
      %v8056 = vpack.c.bf16 %v7212, %v7209
      %v8057 = vpack.c.bf16 %v7926, %v7925
      %v8058 = vpack.c.bf16 %v7734, %v7733
      %v8059 = vpack.c.bf16 %v7351, %v7350
      %v8060 = vpack.c.bf16 %v7218, %v7215
      %v8061 = vpack.c.bf16 %v7928, %v7927
      %v8062 = vpack.c.bf16 %v7736, %v7735
      %v8063 = vpack.c.bf16 %v7288, %v7352
      %v8064 = vpack.c.bf16 %v7029, %v7221
      %v8065 = vunpack.c.l.bf16 %v7929
      %v8066 = vunpack.c.l.bf16 %v7930
      %v8067 = vunpack.c.l.bf16 %v7931
      %v8068 = vunpack.c.l.bf16 %v7932
      %v8069 = vunpack.c.l.bf16 %v7933
      %v8070 = vunpack.c.h.bf16 %v7929
      %v8071 = vunpack.c.h.bf16 %v7930
      %v8072 = vunpack.c.h.bf16 %v7931
      %v8073 = vunpack.c.h.bf16 %v7932
      %v8074 = vunpack.c.h.bf16 %v7933
      %v8075 = vunpack.c.l.bf16 %v7934
      %v8076 = vunpack.c.l.bf16 %v7935
      %v8077 = vunpack.c.l.bf16 %v7936
      %v8078 = vunpack.c.l.bf16 %v7937
      %v8079 = vunpack.c.h.bf16 %v7934
      %v8080 = vunpack.c.h.bf16 %v7935
      %v8081 = vunpack.c.h.bf16 %v7936
      %v8082 = vunpack.c.h.bf16 %v7937
      %v8083 = vunpack.c.l.bf16 %v7938
      %v8084 = vunpack.c.l.bf16 %v7939
      %v8085 = vunpack.c.l.bf16 %v7940
      %v8086 = vunpack.c.l.bf16 %v7941
      %v8087 = vunpack.c.h.bf16 %v7938
      %v8088 = vunpack.c.h.bf16 %v7939
      %v8089 = vunpack.c.h.bf16 %v7940
      %v8090 = vunpack.c.h.bf16 %v7941
      %v8091 = vunpack.c.l.bf16 %v7942
      %v8092 = vunpack.c.l.bf16 %v7943
      %v8093 = vunpack.c.l.bf16 %v7944
      %v8094 = vunpack.c.l.bf16 %v7945
      %v8095 = vunpack.c.h.bf16 %v7942
      %v8096 = vunpack.c.h.bf16 %v7943
      %v8097 = vunpack.c.h.bf16 %v7944
      %v8098 = vunpack.c.h.bf16 %v7945
      %v8099 = vunpack.c.l.bf16 %v7946
      %v8100 = vunpack.c.l.bf16 %v7947
      %v8101 = vunpack.c.l.bf16 %v7948
      %v8102 = vunpack.c.l.bf16 %v7949
      %v8103 = vunpack.c.l.bf16 %v7950
      %v8104 = vunpack.c.h.bf16 %v7946
      %v8105 = vunpack.c.h.bf16 %v7947
      %v8106 = vunpack.c.h.bf16 %v7948
      %v8107 = vunpack.c.h.bf16 %v7949
      %v8108 = vunpack.c.h.bf16 %v7950
      %v8109 = vunpack.c.l.bf16 %v7951
      %v8110 = vunpack.c.l.bf16 %v7952
      %v8111 = vunpack.c.l.bf16 %v7953
      %v8112 = vunpack.c.l.bf16 %v7954
      %v8113 = vunpack.c.h.bf16 %v7951
      %v8114 = vunpack.c.h.bf16 %v7952
      %v8115 = vunpack.c.h.bf16 %v7953
      %v8116 = vunpack.c.h.bf16 %v7954
      %v8117 = vunpack.c.l.bf16 %v7955
      %v8118 = vunpack.c.l.bf16 %v7956
      %v8119 = vunpack.c.l.bf16 %v7957
      %v8120 = vunpack.c.l.bf16 %v7958
      %v8121 = vunpack.c.h.bf16 %v7955
      %v8122 = vunpack.c.h.bf16 %v7956
      %v8123 = vunpack.c.h.bf16 %v7957
      %v8124 = vunpack.c.h.bf16 %v7958
      %v8125 = vunpack.c.l.bf16 %v7959
      %v8126 = vunpack.c.l.bf16 %v7960
      %v8127 = vunpack.c.l.bf16 %v7961
      %v8128 = vunpack.c.l.bf16 %v7962
      %v8129 = vunpack.c.h.bf16 %v7959
      %v8130 = vunpack.c.h.bf16 %v7960
      %v8131 = vunpack.c.h.bf16 %v7961
      %v8132 = vunpack.c.h.bf16 %v7962
      %v8133 = vunpack.c.l.bf16 %v7963
      %v8134 = vunpack.c.l.bf16 %v7964
      %v8135 = vunpack.c.l.bf16 %v7965
      %v8136 = vunpack.c.l.bf16 %v7966
      %v8137 = vunpack.c.l.bf16 %v7967
      %v8138 = vunpack.c.h.bf16 %v7963
      %v8139 = vunpack.c.h.bf16 %v7964
      %v8140 = vunpack.c.h.bf16 %v7965
      %v8141 = vunpack.c.h.bf16 %v7966
      %v8142 = vunpack.c.h.bf16 %v7967
      %v8143 = vunpack.c.l.bf16 %v7968
      %v8144 = vunpack.c.l.bf16 %v7969
      %v8145 = vunpack.c.l.bf16 %v7970
      %v8146 = vunpack.c.l.bf16 %v7971
      %v8147 = vunpack.c.h.bf16 %v7968
      %v8148 = vunpack.c.h.bf16 %v7969
      %v8149 = vunpack.c.h.bf16 %v7970
      %v8150 = vunpack.c.h.bf16 %v7971
      %v8151 = vunpack.c.l.bf16 %v7972
      %v8152 = vunpack.c.l.bf16 %v7973
      %v8153 = vunpack.c.l.bf16 %v7974
      %v8154 = vunpack.c.l.bf16 %v7975
      %v8155 = vunpack.c.h.bf16 %v7972
      %v8156 = vunpack.c.h.bf16 %v7973
      %v8157 = vunpack.c.h.bf16 %v7974
      %v8158 = vunpack.c.h.bf16 %v7975
      %v8159 = vunpack.c.l.bf16 %v7976
      %v8160 = vunpack.c.l.bf16 %v7977
      %v8161 = vunpack.c.l.bf16 %v7978
      %v8162 = vunpack.c.l.bf16 %v7979
      %v8163 = vunpack.c.h.bf16 %v7976
      %v8164 = vunpack.c.h.bf16 %v7977
      %v8165 = vunpack.c.h.bf16 %v7978
      %v8166 = vunpack.c.h.bf16 %v7979
      %v8167 = vunpack.c.l.bf16 %v7980
      %v8168 = vunpack.c.l.bf16 %v7981
      %v8169 = vunpack.c.l.bf16 %v7982
      %v8170 = vunpack.c.l.bf16 %v7983
      %v8171 = vunpack.c.l.bf16 %v7984
      %v8172 = vunpack.c.h.bf16 %v7980
      %v8173 = vunpack.c.h.bf16 %v7981
      %v8174 = vunpack.c.h.bf16 %v7982
      %v8175 = vunpack.c.h.bf16 %v7983
      %v8176 = vunpack.c.h.bf16 %v7984
      %v8177 = vunpack.c.l.bf16 %v7985
      %v8178 = vunpack.c.l.bf16 %v7986
      %v8179 = vunpack.c.l.bf16 %v7987
      %v8180 = vunpack.c.l.bf16 %v7988
      %v8181 = vunpack.c.h.bf16 %v7985
      %v8182 = vunpack.c.h.bf16 %v7986
      %v8183 = vunpack.c.h.bf16 %v7987
      %v8184 = vunpack.c.h.bf16 %v7988
      %v8185 = vunpack.c.l.bf16 %v7989
      %v8186 = vunpack.c.l.bf16 %v7990
      %v8187 = vunpack.c.l.bf16 %v7991
      %v8188 = vunpack.c.l.bf16 %v7992
      %v8189 = vunpack.c.h.bf16 %v7989
      %v8190 = vunpack.c.h.bf16 %v7990
      %v8191 = vunpack.c.h.bf16 %v7991
      %v8192 = vunpack.c.h.bf16 %v7992
      %v8193 = vunpack.c.l.bf16 %v7993
      %v8194 = vunpack.c.l.bf16 %v7994
      %v8195 = vunpack.c.l.bf16 %v7995
      %v8196 = vunpack.c.l.bf16 %v7996
      %v8197 = vunpack.c.h.bf16 %v7993
      %v8198 = vunpack.c.h.bf16 %v7994
      %v8199 = vunpack.c.h.bf16 %v7995
      %v8200 = vunpack.c.h.bf16 %v7996
      %v8201 = vunpack.c.l.bf16 %v7997
      %v8202 = vunpack.c.l.bf16 %v7998
      %v8203 = vunpack.c.l.bf16 %v7999
      %v8204 = vunpack.c.l.bf16 %v8000
      %v8205 = vunpack.c.l.bf16 %v8001
      %v8206 = vunpack.c.h.bf16 %v7997
      %v8207 = vunpack.c.h.bf16 %v7998
      %v8208 = vunpack.c.h.bf16 %v7999
      %v8209 = vunpack.c.h.bf16 %v8000
      %v8210 = vunpack.c.h.bf16 %v8001
      %v8211 = vunpack.c.l.bf16 %v8002
      %v8212 = vunpack.c.l.bf16 %v8003
      %v8213 = vunpack.c.l.bf16 %v8004
      %v8214 = vunpack.c.l.bf16 %v8005
      %v8215 = vunpack.c.h.bf16 %v8002
      %v8216 = vunpack.c.h.bf16 %v8003
      %v8217 = vunpack.c.h.bf16 %v8004
      %v8218 = vunpack.c.h.bf16 %v8005
      %v8219 = vunpack.c.l.bf16 %v8006
      %v8220 = vunpack.c.l.bf16 %v8007
      %v8221 = vunpack.c.l.bf16 %v8008
      %v8222 = vunpack.c.l.bf16 %v8009
      %v8223 = vunpack.c.h.bf16 %v8006
      %v8224 = vunpack.c.h.bf16 %v8007
      %v8225 = vunpack.c.h.bf16 %v8008
      %v8226 = vunpack.c.h.bf16 %v8009
      %v8227 = vunpack.c.l.bf16 %v8010
      %v8228 = vunpack.c.l.bf16 %v8011
      %v8229 = vunpack.c.l.bf16 %v8012
      %v8230 = vunpack.c.l.bf16 %v8013
      %v8231 = vunpack.c.h.bf16 %v8010
      %v8232 = vunpack.c.h.bf16 %v8011
      %v8233 = vunpack.c.h.bf16 %v8012
      %v8234 = vunpack.c.h.bf16 %v8013
      %v8235 = vunpack.c.l.bf16 %v8014
      %v8236 = vunpack.c.l.bf16 %v8015
      %v8237 = vunpack.c.l.bf16 %v8016
      %v8238 = vunpack.c.l.bf16 %v8017
      %v8239 = vunpack.c.l.bf16 %v8018
      %v8240 = vunpack.c.h.bf16 %v8014
      %v8241 = vunpack.c.h.bf16 %v8015
      %v8242 = vunpack.c.h.bf16 %v8016
      %v8243 = vunpack.c.h.bf16 %v8017
      %v8244 = vunpack.c.h.bf16 %v8018
      %v8245 = vunpack.c.l.bf16 %v8019
      %v8246 = vunpack.c.l.bf16 %v8020
      %v8247 = vunpack.c.l.bf16 %v8021
      %v8248 = vunpack.c.l.bf16 %v8022
      %v8249 = vunpack.c.h.bf16 %v8019
      %v8250 = vunpack.c.h.bf16 %v8020
      %v8251 = vunpack.c.h.bf16 %v8021
      %v8252 = vunpack.c.h.bf16 %v8022
      %v8253 = vunpack.c.l.bf16 %v8023
      %v8254 = vunpack.c.l.bf16 %v8024
      %v8255 = vunpack.c.l.bf16 %v8025
      %v8256 = vunpack.c.l.bf16 %v8026
      %v8257 = vunpack.c.h.bf16 %v8023
      %v8258 = vunpack.c.h.bf16 %v8024
      %v8259 = vunpack.c.h.bf16 %v8025
      %v8260 = vunpack.c.h.bf16 %v8026
      %v8261 = vunpack.c.l.bf16 %v8027
      %v8262 = vunpack.c.l.bf16 %v8028
      %v8263 = vunpack.c.l.bf16 %v8029
      %v8264 = vunpack.c.l.bf16 %v8030
      %v8265 = vunpack.c.h.bf16 %v8027
      %v8266 = vunpack.c.h.bf16 %v8028
      %v8267 = vunpack.c.h.bf16 %v8029
      %v8268 = vunpack.c.h.bf16 %v8030
      %v8269 = vunpack.c.l.bf16 %v8031
      %v8270 = vunpack.c.l.bf16 %v8032
      %v8271 = vunpack.c.l.bf16 %v8033
      %v8272 = vunpack.c.l.bf16 %v8034
      %v8273 = vunpack.c.l.bf16 %v8035
      %v8274 = vunpack.c.h.bf16 %v8031
      %v8275 = vunpack.c.h.bf16 %v8032
      %v8276 = vunpack.c.h.bf16 %v8033
      %v8277 = vunpack.c.h.bf16 %v8034
      %v8278 = vunpack.c.h.bf16 %v8035
      %v8279 = vunpack.c.l.bf16 %v8036
      %v8280 = vunpack.c.l.bf16 %v8037
      %v8281 = vunpack.c.l.bf16 %v8038
      %v8282 = vunpack.c.l.bf16 %v8039
      %v8283 = vunpack.c.h.bf16 %v8036
      %v8284 = vunpack.c.h.bf16 %v8037
      %v8285 = vunpack.c.h.bf16 %v8038
      %v8286 = vunpack.c.h.bf16 %v8039
      %v8287 = vunpack.c.l.bf16 %v8040
      %v8288 = vunpack.c.l.bf16 %v8041
      %v8289 = vunpack.c.l.bf16 %v8042
      %v8290 = vunpack.c.l.bf16 %v8043
      %v8291 = vunpack.c.h.bf16 %v8040
      %v8292 = vunpack.c.h.bf16 %v8041
      %v8293 = vunpack.c.h.bf16 %v8042
      %v8294 = vunpack.c.h.bf16 %v8043
      %v8295 = vunpack.c.l.bf16 %v8044
      %v8296 = vunpack.c.l.bf16 %v8045
      %v8297 = vunpack.c.l.bf16 %v8046
      %v8298 = vunpack.c.l.bf16 %v8047
      %v8299 = vunpack.c.h.bf16 %v8044
      %v8300 = vunpack.c.h.bf16 %v8045
      %v8301 = vunpack.c.h.bf16 %v8046
      %v8302 = vunpack.c.h.bf16 %v8047
      %v8303 = vunpack.c.l.bf16 %v8048
      %v8304 = vunpack.c.l.bf16 %v8049
      %v8305 = vunpack.c.l.bf16 %v8050
      %v8306 = vunpack.c.l.bf16 %v8051
      %v8307 = vunpack.c.l.bf16 %v8052
      %v8308 = vunpack.c.h.bf16 %v8048
      %v8309 = vunpack.c.h.bf16 %v8049
      %v8310 = vunpack.c.h.bf16 %v8050
      %v8311 = vunpack.c.h.bf16 %v8051
      %v8312 = vunpack.c.h.bf16 %v8052
      %v8313 = vunpack.c.l.bf16 %v8053
      %v8314 = vunpack.c.l.bf16 %v8054
      %v8315 = vunpack.c.l.bf16 %v8055
      %v8316 = vunpack.c.l.bf16 %v8056
      %v8317 = vunpack.c.h.bf16 %v8053
      %v8318 = vunpack.c.h.bf16 %v8054
      %v8319 = vunpack.c.h.bf16 %v8055
      %v8320 = vunpack.c.h.bf16 %v8056
      %v8321 = vunpack.c.l.bf16 %v8057
      %v8322 = vunpack.c.l.bf16 %v8058
      %v8323 = vunpack.c.l.bf16 %v8059
      %v8324 = vunpack.c.l.bf16 %v8060
      %v8325 = vunpack.c.h.bf16 %v8057
      %v8326 = vunpack.c.h.bf16 %v8058
      %v8327 = vunpack.c.h.bf16 %v8059
      %v8328 = vunpack.c.h.bf16 %v8060
      %v8329 = vunpack.c.l.bf16 %v8061
      %v8330 = vunpack.c.l.bf16 %v8062
      %v8331 = vunpack.c.l.bf16 %v8063
      %v8332 = vunpack.c.l.bf16 %v8064
      %v8333 = vunpack.c.h.bf16 %v8061
      %v8334 = vunpack.c.h.bf16 %v8062
      %v8335 = vunpack.c.h.bf16 %v8063
      %v8336 = vunpack.c.h.bf16 %v8064
      %v8337 = vsub.f32 %v7288, %v8065
      %v8338 = vsub.f32 %v7865, %v8066
      %v8339 = vsub.f32 %v7673, %v8067
      %v8340 = vsub.f32 %v7290, %v8068
      %v8341 = vsub.f32 %v7035, %v8069
      %v8342 = vsub.f32 %v7289, %v8070
      %v8343 = vsub.f32 %v7866, %v8071
      %v8344 = vsub.f32 %v7674, %v8072
      %v8345 = vsub.f32 %v7291, %v8073
      %v8346 = vsub.f32 %v7038, %v8074
      %v8347 = vsub.f32 %v7867, %v8075
      %v8348 = vsub.f32 %v7675, %v8076
      %v8349 = vsub.f32 %v7292, %v8077
      %v8350 = vsub.f32 %v7041, %v8078
      %v8351 = vsub.f32 %v7868, %v8079
      %v8352 = vsub.f32 %v7676, %v8080
      %v8353 = vsub.f32 %v7293, %v8081
      %v8354 = vsub.f32 %v7044, %v8082
      %v8355 = vsub.f32 %v7869, %v8083
      %v8356 = vsub.f32 %v7677, %v8084
      %v8357 = vsub.f32 %v7294, %v8085
      %v8358 = vsub.f32 %v7047, %v8086
      %v8359 = vsub.f32 %v7870, %v8087
      %v8360 = vsub.f32 %v7678, %v8088
      %v8361 = vsub.f32 %v7295, %v8089
      %v8362 = vsub.f32 %v7050, %v8090
      %v8363 = vsub.f32 %v7871, %v8091
      %v8364 = vsub.f32 %v7679, %v8092
      %v8365 = vsub.f32 %v7296, %v8093
      %v8366 = vsub.f32 %v7053, %v8094
      %v8367 = vsub.f32 %v7872, %v8095
      %v8368 = vsub.f32 %v7680, %v8096
      %v8369 = vsub.f32 %v7288, %v8097
      %v8370 = vsub.f32 %v7029, %v8098
      %v8371 = vsub.f32 %v7288, %v8099
      %v8372 = vsub.f32 %v7873, %v8100
      %v8373 = vsub.f32 %v7681, %v8101
      %v8374 = vsub.f32 %v7298, %v8102
      %v8375 = vsub.f32 %v7059, %v8103
      %v8376 = vsub.f32 %v7297, %v8104
      %v8377 = vsub.f32 %v7874, %v8105
      %v8378 = vsub.f32 %v7682, %v8106
      %v8379 = vsub.f32 %v7299, %v8107
      %v8380 = vsub.f32 %v7062, %v8108
      %v8381 = vsub.f32 %v7875, %v8109
      %v8382 = vsub.f32 %v7683, %v8110
      %v8383 = vsub.f32 %v7300, %v8111
      %v8384 = vsub.f32 %v7065, %v8112
      %v8385 = vsub.f32 %v7876, %v8113
      %v8386 = vsub.f32 %v7684, %v8114
      %v8387 = vsub.f32 %v7301, %v8115
      %v8388 = vsub.f32 %v7068, %v8116
      %v8389 = vsub.f32 %v7877, %v8117
      %v8390 = vsub.f32 %v7685, %v8118
      %v8391 = vsub.f32 %v7302, %v8119
      %v8392 = vsub.f32 %v7071, %v8120
      %v8393 = vsub.f32 %v7878, %v8121
      %v8394 = vsub.f32 %v7686, %v8122
      %v8395 = vsub.f32 %v7303, %v8123
      %v8396 = vsub.f32 %v7074, %v8124
      %v8397 = vsub.f32 %v7879, %v8125
      %v8398 = vsub.f32 %v7687, %v8126
      %v8399 = vsub.f32 %v7304, %v8127
      %v8400 = vsub.f32 %v7077, %v8128
      %v8401 = vsub.f32 %v7880, %v8129
      %v8402 = vsub.f32 %v7688, %v8130
      %v8403 = vsub.f32 %v7288, %v8131
      %v8404 = vsub.f32 %v7029, %v8132
      %v8405 = vsub.f32 %v7288, %v8133
      %v8406 = vsub.f32 %v7881, %v8134
      %v8407 = vsub.f32 %v7689, %v8135
      %v8408 = vsub.f32 %v7306, %v8136
      %v8409 = vsub.f32 %v7083, %v8137
      %v8410 = vsub.f32 %v7305, %v8138
      %v8411 = vsub.f32 %v7882, %v8139
      %v8412 = vsub.f32 %v7690, %v8140
      %v8413 = vsub.f32 %v7307, %v8141
      %v8414 = vsub.f32 %v7086, %v8142
      %v8415 = vsub.f32 %v7883, %v8143
      %v8416 = vsub.f32 %v7691, %v8144
      %v8417 = vsub.f32 %v7308, %v8145
      %v8418 = vsub.f32 %v7089, %v8146
      %v8419 = vsub.f32 %v7884, %v8147
      %v8420 = vsub.f32 %v7692, %v8148
      %v8421 = vsub.f32 %v7309, %v8149
      %v8422 = vsub.f32 %v7092, %v8150
      %v8423 = vsub.f32 %v7885, %v8151
      %v8424 = vsub.f32 %v7693, %v8152
      %v8425 = vsub.f32 %v7310, %v8153
      %v8426 = vsub.f32 %v7095, %v8154
      %v8427 = vsub.f32 %v7886, %v8155
      %v8428 = vsub.f32 %v7694, %v8156
      %v8429 = vsub.f32 %v7311, %v8157
      %v8430 = vsub.f32 %v7098, %v8158
      %v8431 = vsub.f32 %v7887, %v8159
      %v8432 = vsub.f32 %v7695, %v8160
      %v8433 = vsub.f32 %v7312, %v8161
      %v8434 = vsub.f32 %v7101, %v8162
      %v8435 = vsub.f32 %v7888, %v8163
      %v8436 = vsub.f32 %v7696, %v8164
      %v8437 = vsub.f32 %v7288, %v8165
      %v8438 = vsub.f32 %v7029, %v8166
      %v8439 = vsub.f32 %v7288, %v8167
      %v8440 = vsub.f32 %v7889, %v8168
      %v8441 = vsub.f32 %v7697, %v8169
      %v8442 = vsub.f32 %v7314, %v8170
      %v8443 = vsub.f32 %v7107, %v8171
      %v8444 = vsub.f32 %v7313, %v8172
      %v8445 = vsub.f32 %v7890, %v8173
      %v8446 = vsub.f32 %v7698, %v8174
      %v8447 = vsub.f32 %v7315, %v8175
      %v8448 = vsub.f32 %v7110, %v8176
      %v8449 = vsub.f32 %v7891, %v8177
      %v8450 = vsub.f32 %v7699, %v8178
      %v8451 = vsub.f32 %v7316, %v8179
      %v8452 = vsub.f32 %v7113, %v8180
      %v8453 = vsub.f32 %v7892, %v8181
      %v8454 = vsub.f32 %v7700, %v8182
      %v8455 = vsub.f32 %v7317, %v8183
      %v8456 = vsub.f32 %v7116, %v8184
      %v8457 = vsub.f32 %v7893, %v8185
      %v8458 = vsub.f32 %v7701, %v8186
      %v8459 = vsub.f32 %v7318, %v8187
      %v8460 = vsub.f32 %v7119, %v8188
      %v8461 = vsub.f32 %v7894, %v8189
      %v8462 = vsub.f32 %v7702, %v8190
      %v8463 = vsub.f32 %v7319, %v8191
      %v8464 = vsub.f32 %v7122, %v8192
      %v8465 = vsub.f32 %v7895, %v8193
      %v8466 = vsub.f32 %v7703, %v8194
      %v8467 = vsub.f32 %v7320, %v8195
      %v8468 = vsub.f32 %v7125, %v8196
      %v8469 = vsub.f32 %v7896, %v8197
      %v8470 = vsub.f32 %v7704, %v8198
      %v8471 = vsub.f32 %v7288, %v8199
      %v8472 = vsub.f32 %v7029, %v8200
      %v8473 = vsub.f32 %v7288, %v8201
      %v8474 = vsub.f32 %v7897, %v8202
      %v8475 = vsub.f32 %v7705, %v8203
      %v8476 = vsub.f32 %v7322, %v8204
      %v8477 = vsub.f32 %v7131, %v8205
      %v8478 = vsub.f32 %v7321, %v8206
      %v8479 = vsub.f32 %v7898, %v8207
      %v8480 = vsub.f32 %v7706, %v8208
      %v8481 = vsub.f32 %v7323, %v8209
      %v8482 = vsub.f32 %v7134, %v8210
      %v8483 = vsub.f32 %v7899, %v8211
      %v8484 = vsub.f32 %v7707, %v8212
      %v8485 = vsub.f32 %v7324, %v8213
      %v8486 = vsub.f32 %v7137, %v8214
      %v8487 = vsub.f32 %v7900, %v8215
      %v8488 = vsub.f32 %v7708, %v8216
      %v8489 = vsub.f32 %v7325, %v8217
      %v8490 = vsub.f32 %v7140, %v8218
      %v8491 = vsub.f32 %v7901, %v8219
      %v8492 = vsub.f32 %v7709, %v8220
      %v8493 = vsub.f32 %v7326, %v8221
      %v8494 = vsub.f32 %v7143, %v8222
      %v8495 = vsub.f32 %v7902, %v8223
      %v8496 = vsub.f32 %v7710, %v8224
      %v8497 = vsub.f32 %v7327, %v8225
      %v8498 = vsub.f32 %v7146, %v8226
      %v8499 = vsub.f32 %v7903, %v8227
      %v8500 = vsub.f32 %v7711, %v8228
      %v8501 = vsub.f32 %v7328, %v8229
      %v8502 = vsub.f32 %v7149, %v8230
      %v8503 = vsub.f32 %v7904, %v8231
      %v8504 = vsub.f32 %v7712, %v8232
      %v8505 = vsub.f32 %v7288, %v8233
      %v8506 = vsub.f32 %v7029, %v8234
      %v8507 = vsub.f32 %v7288, %v8235
      %v8508 = vsub.f32 %v7905, %v8236
      %v8509 = vsub.f32 %v7713, %v8237
      %v8510 = vsub.f32 %v7330, %v8238
      %v8511 = vsub.f32 %v7155, %v8239
      %v8512 = vsub.f32 %v7329, %v8240
      %v8513 = vsub.f32 %v7906, %v8241
      %v8514 = vsub.f32 %v7714, %v8242
      %v8515 = vsub.f32 %v7331, %v8243
      %v8516 = vsub.f32 %v7158, %v8244
      %v8517 = vsub.f32 %v7907, %v8245
      %v8518 = vsub.f32 %v7715, %v8246
      %v8519 = vsub.f32 %v7332, %v8247
      %v8520 = vsub.f32 %v7161, %v8248
      %v8521 = vsub.f32 %v7908, %v8249
      %v8522 = vsub.f32 %v7716, %v8250
      %v8523 = vsub.f32 %v7333, %v8251
      %v8524 = vsub.f32 %v7164, %v8252
      %v8525 = vsub.f32 %v7909, %v8253
      %v8526 = vsub.f32 %v7717, %v8254
      %v8527 = vsub.f32 %v7334, %v8255
      %v8528 = vsub.f32 %v7167, %v8256
      %v8529 = vsub.f32 %v7910, %v8257
      %v8530 = vsub.f32 %v7718, %v8258
      %v8531 = vsub.f32 %v7335, %v8259
      %v8532 = vsub.f32 %v7170, %v8260
      %v8533 = vsub.f32 %v7911, %v8261
      %v8534 = vsub.f32 %v7719, %v8262
      %v8535 = vsub.f32 %v7336, %v8263
      %v8536 = vsub.f32 %v7173, %v8264
      %v8537 = vsub.f32 %v7912, %v8265
      %v8538 = vsub.f32 %v7720, %v8266
      %v8539 = vsub.f32 %v7288, %v8267
      %v8540 = vsub.f32 %v7029, %v8268
      %v8541 = vsub.f32 %v7288, %v8269
      %v8542 = vsub.f32 %v7913, %v8270
      %v8543 = vsub.f32 %v7721, %v8271
      %v8544 = vsub.f32 %v7338, %v8272
      %v8545 = vsub.f32 %v7179, %v8273
      %v8546 = vsub.f32 %v7337, %v8274
      %v8547 = vsub.f32 %v7914, %v8275
      %v8548 = vsub.f32 %v7722, %v8276
      %v8549 = vsub.f32 %v7339, %v8277
      %v8550 = vsub.f32 %v7182, %v8278
      %v8551 = vsub.f32 %v7915, %v8279
      %v8552 = vsub.f32 %v7723, %v8280
      %v8553 = vsub.f32 %v7340, %v8281
      %v8554 = vsub.f32 %v7185, %v8282
      %v8555 = vsub.f32 %v7916, %v8283
      %v8556 = vsub.f32 %v7724, %v8284
      %v8557 = vsub.f32 %v7341, %v8285
      %v8558 = vsub.f32 %v7188, %v8286
      %v8559 = vsub.f32 %v7917, %v8287
      %v8560 = vsub.f32 %v7725, %v8288
      %v8561 = vsub.f32 %v7342, %v8289
      %v8562 = vsub.f32 %v7191, %v8290
      %v8563 = vsub.f32 %v7918, %v8291
      %v8564 = vsub.f32 %v7726, %v8292
      %v8565 = vsub.f32 %v7343, %v8293
      %v8566 = vsub.f32 %v7194, %v8294
      %v8567 = vsub.f32 %v7919, %v8295
      %v8568 = vsub.f32 %v7727, %v8296
      %v8569 = vsub.f32 %v7344, %v8297
      %v8570 = vsub.f32 %v7197, %v8298
      %v8571 = vsub.f32 %v7920, %v8299
      %v8572 = vsub.f32 %v7728, %v8300
      %v8573 = vsub.f32 %v7288, %v8301
      %v8574 = vsub.f32 %v7029, %v8302
      %v8575 = vsub.f32 %v7288, %v8303
      %v8576 = vsub.f32 %v7921, %v8304
      %v8577 = vsub.f32 %v7729, %v8305
      %v8578 = vsub.f32 %v7346, %v8306
      %v8579 = vsub.f32 %v7203, %v8307
      %v8580 = vsub.f32 %v7345, %v8308
      %v8581 = vsub.f32 %v7922, %v8309
      %v8582 = vsub.f32 %v7730, %v8310
      %v8583 = vsub.f32 %v7347, %v8311
      %v8584 = vsub.f32 %v7206, %v8312
      %v8585 = vsub.f32 %v7923, %v8313
      %v8586 = vsub.f32 %v7731, %v8314
      %v8587 = vsub.f32 %v7348, %v8315
      %v8588 = vsub.f32 %v7209, %v8316
      %v8589 = vsub.f32 %v7924, %v8317
      %v8590 = vsub.f32 %v7732, %v8318
      %v8591 = vsub.f32 %v7349, %v8319
      %v8592 = vsub.f32 %v7212, %v8320
      %v8593 = vsub.f32 %v7925, %v8321
      %v8594 = vsub.f32 %v7733, %v8322
      %v8595 = vsub.f32 %v7350, %v8323
      %v8596 = vsub.f32 %v7215, %v8324
      %v8597 = vsub.f32 %v7926, %v8325
      %v8598 = vsub.f32 %v7734, %v8326
      %v8599 = vsub.f32 %v7351, %v8327
      %v8600 = vsub.f32 %v7218, %v8328
      %v8601 = vsub.f32 %v7927, %v8329
      %v8602 = vsub.f32 %v7735, %v8330
      %v8603 = vsub.f32 %v7352, %v8331
      %v8604 = vsub.f32 %v7221, %v8332
      %v8605 = vsub.f32 %v7928, %v8333
      %v8606 = vsub.f32 %v7736, %v8334
      %v8607 = vsub.f32 %v7288, %v8335
      %v8608 = vsub.f32 %v7029, %v8336
      %v8609 = vpack.c.bf16 %v8342, %v8337
      %v8610 = vpack.c.bf16 %v8343, %v8338
      %v8611 = vpack.c.bf16 %v8344, %v8339
      %v8612 = vpack.c.bf16 %v8345, %v8340
      %v8613 = vpack.c.bf16 %v8346, %v8341
      %v8614 = vpack.c.bf16 %v8351, %v8347
      %v8615 = vpack.c.bf16 %v8352, %v8348
      %v8616 = vpack.c.bf16 %v8353, %v8349
      %v8617 = vpack.c.bf16 %v8354, %v8350
      %v8618 = vpack.c.bf16 %v8359, %v8355
      %v8619 = vpack.c.bf16 %v8360, %v8356
      %v8620 = vpack.c.bf16 %v8361, %v8357
      %v8621 = vpack.c.bf16 %v8362, %v8358
      %v8622 = vpack.c.bf16 %v8367, %v8363
      %v8623 = vpack.c.bf16 %v8368, %v8364
      %v8624 = vpack.c.bf16 %v8369, %v8365
      %v8625 = vpack.c.bf16 %v8370, %v8366
      %v8626 = vpack.c.bf16 %v8376, %v8371
      %v8627 = vpack.c.bf16 %v8377, %v8372
      %v8628 = vpack.c.bf16 %v8378, %v8373
      %v8629 = vpack.c.bf16 %v8379, %v8374
      %v8630 = vpack.c.bf16 %v8380, %v8375
      %v8631 = vpack.c.bf16 %v8385, %v8381
      %v8632 = vpack.c.bf16 %v8386, %v8382
      %v8633 = vpack.c.bf16 %v8387, %v8383
      %v8634 = vpack.c.bf16 %v8388, %v8384
      %v8635 = vpack.c.bf16 %v8393, %v8389
      %v8636 = vpack.c.bf16 %v8394, %v8390
      %v8637 = vpack.c.bf16 %v8395, %v8391
      %v8638 = vpack.c.bf16 %v8396, %v8392
      %v8639 = vpack.c.bf16 %v8401, %v8397
      %v8640 = vpack.c.bf16 %v8402, %v8398
      %v8641 = vpack.c.bf16 %v8403, %v8399
      %v8642 = vpack.c.bf16 %v8404, %v8400
      %v8643 = vpack.c.bf16 %v8410, %v8405
      %v8644 = vpack.c.bf16 %v8411, %v8406
      %v8645 = vpack.c.bf16 %v8412, %v8407
      %v8646 = vpack.c.bf16 %v8413, %v8408
      %v8647 = vpack.c.bf16 %v8414, %v8409
      %v8648 = vpack.c.bf16 %v8419, %v8415
      %v8649 = vpack.c.bf16 %v8420, %v8416
      %v8650 = vpack.c.bf16 %v8421, %v8417
      %v8651 = vpack.c.bf16 %v8422, %v8418
      %v8652 = vpack.c.bf16 %v8427, %v8423
      %v8653 = vpack.c.bf16 %v8428, %v8424
      %v8654 = vpack.c.bf16 %v8429, %v8425
      %v8655 = vpack.c.bf16 %v8430, %v8426
      %v8656 = vpack.c.bf16 %v8435, %v8431
      %v8657 = vpack.c.bf16 %v8436, %v8432
      %v8658 = vpack.c.bf16 %v8437, %v8433
      %v8659 = vpack.c.bf16 %v8438, %v8434
      %v8660 = vpack.c.bf16 %v8444, %v8439
      %v8661 = vpack.c.bf16 %v8445, %v8440
      %v8662 = vpack.c.bf16 %v8446, %v8441
      %v8663 = vpack.c.bf16 %v8447, %v8442
      %v8664 = vpack.c.bf16 %v8448, %v8443
      %v8665 = vpack.c.bf16 %v8453, %v8449
      %v8666 = vpack.c.bf16 %v8454, %v8450
      %v8667 = vpack.c.bf16 %v8455, %v8451
      %v8668 = vpack.c.bf16 %v8456, %v8452
      %v8669 = vpack.c.bf16 %v8461, %v8457
      %v8670 = vpack.c.bf16 %v8462, %v8458
      %v8671 = vpack.c.bf16 %v8463, %v8459
      %v8672 = vpack.c.bf16 %v8464, %v8460
      %v8673 = vpack.c.bf16 %v8469, %v8465
      %v8674 = vpack.c.bf16 %v8470, %v8466
      %v8675 = vpack.c.bf16 %v8471, %v8467
      %v8676 = vpack.c.bf16 %v8472, %v8468
      %v8677 = vpack.c.bf16 %v8478, %v8473
      %v8678 = vpack.c.bf16 %v8479, %v8474
      %v8679 = vpack.c.bf16 %v8480, %v8475
      %v8680 = vpack.c.bf16 %v8481, %v8476
      %v8681 = vpack.c.bf16 %v8482, %v8477
      %v8682 = vpack.c.bf16 %v8487, %v8483
      %v8683 = vpack.c.bf16 %v8488, %v8484
      %v8684 = vpack.c.bf16 %v8489, %v8485
      %v8685 = vpack.c.bf16 %v8490, %v8486
      %v8686 = vpack.c.bf16 %v8495, %v8491
      %v8687 = vpack.c.bf16 %v8496, %v8492
      %v8688 = vpack.c.bf16 %v8497, %v8493
      %v8689 = vpack.c.bf16 %v8498, %v8494
      %v8690 = vpack.c.bf16 %v8503, %v8499
      %v8691 = vpack.c.bf16 %v8504, %v8500
      %v8692 = vpack.c.bf16 %v8505, %v8501
      %v8693 = vpack.c.bf16 %v8506, %v8502
      %v8694 = vpack.c.bf16 %v8512, %v8507
      %v8695 = vpack.c.bf16 %v8513, %v8508
      %v8696 = vpack.c.bf16 %v8514, %v8509
      %v8697 = vpack.c.bf16 %v8515, %v8510
      %v8698 = vpack.c.bf16 %v8516, %v8511
      %v8699 = vpack.c.bf16 %v8521, %v8517
      %v8700 = vpack.c.bf16 %v8522, %v8518
      %v8701 = vpack.c.bf16 %v8523, %v8519
      %v8702 = vpack.c.bf16 %v8524, %v8520
      %v8703 = vpack.c.bf16 %v8529, %v8525
      %v8704 = vpack.c.bf16 %v8530, %v8526
      %v8705 = vpack.c.bf16 %v8531, %v8527
      %v8706 = vpack.c.bf16 %v8532, %v8528
      %v8707 = vpack.c.bf16 %v8537, %v8533
      %v8708 = vpack.c.bf16 %v8538, %v8534
      %v8709 = vpack.c.bf16 %v8539, %v8535
      %v8710 = vpack.c.bf16 %v8540, %v8536
      %v8711 = vpack.c.bf16 %v8546, %v8541
      %v8712 = vpack.c.bf16 %v8547, %v8542
      %v8713 = vpack.c.bf16 %v8548, %v8543
      %v8714 = vpack.c.bf16 %v8549, %v8544
      %v8715 = vpack.c.bf16 %v8550, %v8545
      %v8716 = vpack.c.bf16 %v8555, %v8551
      %v8717 = vpack.c.bf16 %v8556, %v8552
      %v8718 = vpack.c.bf16 %v8557, %v8553
      %v8719 = vpack.c.bf16 %v8558, %v8554
      %v8720 = vpack.c.bf16 %v8563, %v8559
      %v8721 = vpack.c.bf16 %v8564, %v8560
      %v8722 = vpack.c.bf16 %v8565, %v8561
      %v8723 = vpack.c.bf16 %v8566, %v8562
      %v8724 = vpack.c.bf16 %v8571, %v8567
      %v8725 = vpack.c.bf16 %v8572, %v8568
      %v8726 = vpack.c.bf16 %v8573, %v8569
      %v8727 = vpack.c.bf16 %v8574, %v8570
      %v8728 = vpack.c.bf16 %v8580, %v8575
      %v8729 = vpack.c.bf16 %v8581, %v8576
      %v8730 = vpack.c.bf16 %v8582, %v8577
      %v8731 = vpack.c.bf16 %v8583, %v8578
      %v8732 = vpack.c.bf16 %v8584, %v8579
      %v8733 = vpack.c.bf16 %v8589, %v8585
      %v8734 = vpack.c.bf16 %v8590, %v8586
      %v8735 = vpack.c.bf16 %v8591, %v8587
      %v8736 = vpack.c.bf16 %v8592, %v8588
      %v8737 = vpack.c.bf16 %v8597, %v8593
      %v8738 = vpack.c.bf16 %v8598, %v8594
      %v8739 = vpack.c.bf16 %v8599, %v8595
      %v8740 = vpack.c.bf16 %v8600, %v8596
      %v8741 = vpack.c.bf16 %v8605, %v8601
      %v8742 = vpack.c.bf16 %v8606, %v8602
      %v8743 = vpack.c.bf16 %v8607, %v8603
      %v8744 = vpack.c.bf16 %v8608, %v8604
      %v8745 = vld [vmem:[%s1] sm:$0xf]
      %v8746 = vld [vmem:[%s1 + $0x4] sm:$0xf]
      %v8747 = vld [vmem:[%s1 + $0x8] sm:$0xf]
      %v8748 = vld [vmem:[%s1 + $0xc] sm:$0xf]
      %v8749 = vld [vmem:[%s1 + $0x10] sm:$0xf]
      %v8750 = vld [vmem:[%s1 + $0x14] sm:$0xf]
      %v8751 = vld [vmem:[%s1 + $0x18] sm:$0xf]
      %v8752 = vld [vmem:[%s1 + $0x1c] sm:$0xf]
      %v8753 = vld [vmem:[%s1 + $0x20] sm:$0xf]
      %v8754 = vld [vmem:[%s1 + $0x24] sm:$0xf]
      %v8755 = vld [vmem:[%s1 + $0x28] sm:$0xf]
      %v8756 = vld [vmem:[%s1 + $0x2c] sm:$0xf]
      %v8757 = vld [vmem:[%s1 + $0x30] sm:$0xf]
      %v8758 = vld [vmem:[%s1 + $0x34] sm:$0xf]
      %v8759 = vld [vmem:[%s1 + $0x38] sm:$0xf]
      %v8760 = vld [vmem:[%s1 + $0x3c] sm:$0xf]
      %v8761 = vld [vmem:[%s1 + $0x40] sm:$0xf]
      %v8762 = vld [vmem:[%s1 + $0x44] sm:$0xf]
      %v8763 = vld [vmem:[%s1 + $0x48] sm:$0xf]
      %v8764 = vld [vmem:[%s1 + $0x4c] sm:$0xf]
      %v8765 = vld [vmem:[%s1 + $0x50] sm:$0xf]
      %v8766 = vld [vmem:[%s1 + $0x54] sm:$0xf]
      %v8767 = vld [vmem:[%s1 + $0x58] sm:$0xf]
      %v8768 = vld [vmem:[%s1 + $0x5c] sm:$0xf]
      %v8769 = vld [vmem:[%s1 + $0x60] sm:$0xf]
      %v8770 = vld [vmem:[%s1 + $0x64] sm:$0xf]
      %v8771 = vld [vmem:[%s1 + $0x68] sm:$0xf]
      %v8772 = vld [vmem:[%s1 + $0x6c] sm:$0xf]
      %v8773 = vld [vmem:[%s1 + $0x70] sm:$0xf]
      %v8774 = vld [vmem:[%s1 + $0x74] sm:$0xf]
      %v8775 = vld [vmem:[%s1 + $0x78] sm:$0xf]
      %v8776 = vld [vmem:[%s1 + $0x7c] sm:$0xf]
      %v8777 = vld [vmem:[%s1 + $0x80] sm:$0xf]
      %v8778 = vld [vmem:[%s1 + $0x84] sm:$0xf]
      %v8779 = vld [vmem:[%s1 + $0x88] sm:$0xf]
      %v8780 = vld [vmem:[%s1 + $0x8c] sm:$0xf]
      %v8781 = vld [vmem:[%s1 + $0x90] sm:$0xf]
      %v8782 = vld [vmem:[%s1 + $0x94] sm:$0xf]
      %v8783 = vld [vmem:[%s1 + $0x98] sm:$0xf]
      %v8784 = vld [vmem:[%s1 + $0x9c] sm:$0xf]
      %v8785 = vld [vmem:[%s1 + $0xa0] sm:$0xf]
      %v8786 = vld [vmem:[%s1 + $0xa4] sm:$0xf]
      %v8787 = vld [vmem:[%s1 + $0xa8] sm:$0xf]
      %v8788 = vld [vmem:[%s1 + $0xac] sm:$0xf]
      %v8789 = vld [vmem:[%s1 + $0xb0] sm:$0xf]
      %v8790 = vld [vmem:[%s1 + $0xb4] sm:$0xf]
      %v8791 = vld [vmem:[%s1 + $0xb8] sm:$0xf]
      %v8792 = vld [vmem:[%s1 + $0xbc] sm:$0xf]
      %v8793 = vld [vmem:[%s1 + $0xc0] sm:$0xf]
      %v8794 = vld [vmem:[%s1 + $0xc4] sm:$0xf]
      %v8795 = vld [vmem:[%s1 + $0xc8] sm:$0xf]
      %v8796 = vld [vmem:[%s1 + $0xcc] sm:$0xf]
      %v8797 = vld [vmem:[%s1 + $0xd0] sm:$0xf]
      %v8798 = vld [vmem:[%s1 + $0xd4] sm:$0xf]
      %v8799 = vld [vmem:[%s1 + $0xd8] sm:$0xf]
      %v8800 = vld [vmem:[%s1 + $0xdc] sm:$0xf]
      %v8801 = vld [vmem:[%s1 + $0xe0] sm:$0xf]
      %v8802 = vld [vmem:[%s1 + $0xe4] sm:$0xf]
      %v8803 = vld [vmem:[%s1 + $0xe8] sm:$0xf]
      %v8804 = vld [vmem:[%s1 + $0xec] sm:$0xf]
      %v8805 = vld [vmem:[%s1 + $0xf0] sm:$0xf]
      %v8806 = vld [vmem:[%s1 + $0xf4] sm:$0xf]
      %v8807 = vld [vmem:[%s1 + $0xf8] sm:$0xf]
      %v8808 = vld [vmem:[%s1 + $0xfc] sm:$0xf]
      %v8809 = vld [vmem:[%s1 + $0x100] sm:$0xf]
      %v8810 = vld [vmem:[%s1 + $0x104] sm:$0xf]
      %v8811 = vld [vmem:[%s1 + $0x108] sm:$0xf]
      %v8812 = vld [vmem:[%s1 + $0x10c] sm:$0xf]
      %v8813 = vld [vmem:[%s1 + $0x110] sm:$0xf]
      %v8814 = vld [vmem:[%s1 + $0x114] sm:$0xf]
      %v8815 = vld [vmem:[%s1 + $0x118] sm:$0xf]
      %v8816 = vld [vmem:[%s1 + $0x11c] sm:$0xf]
      %v8889 = vunpack.c.l.b16 %v8745
      %v8890 = vunpack.c.l.b16 %v8746
      %v8891 = vunpack.c.l.b16 %v8747
      %v8892 = vunpack.c.l.b16 %v8748
      %v8893 = vunpack.c.l.b16 %v8749
      %v8894 = vunpack.c.l.b16 %v8750
      %v8895 = vunpack.c.l.b16 %v8751
      %v8896 = vunpack.c.l.b16 %v8752
      %v8897 = vunpack.c.l.b16 %v8753
      %v8898 = vunpack.c.l.b16 %v8754
      %v8899 = vunpack.c.l.b16 %v8755
      %v8900 = vunpack.c.l.b16 %v8756
      %v8901 = vunpack.c.l.b16 %v8757
      %v8902 = vunpack.c.l.b16 %v8758
      %v8903 = vunpack.c.l.b16 %v8759
      %v8904 = vunpack.c.l.b16 %v8760
      %v8905 = vunpack.c.l.b16 %v8761
      %v8906 = vunpack.c.l.b16 %v8762
      %v8907 = vunpack.c.l.b16 %v8763
      %v8908 = vunpack.c.l.b16 %v8764
      %v8909 = vunpack.c.l.b16 %v8765
      %v8910 = vunpack.c.l.b16 %v8766
      %v8911 = vunpack.c.l.b16 %v8767
      %v8912 = vunpack.c.l.b16 %v8768
      %v8913 = vunpack.c.l.b16 %v8769
      %v8914 = vunpack.c.l.b16 %v8770
      %v8915 = vunpack.c.l.b16 %v8771
      %v8916 = vunpack.c.l.b16 %v8772
      %v8917 = vunpack.c.l.b16 %v8773
      %v8918 = vunpack.c.l.b16 %v8774
      %v8919 = vunpack.c.l.b16 %v8775
      %v8920 = vunpack.c.l.b16 %v8776
      %v8921 = vunpack.c.l.b16 %v8777
      %v8922 = vunpack.c.l.b16 %v8778
      %v8923 = vunpack.c.l.b16 %v8779
      %v8924 = vunpack.c.l.b16 %v8780
      %v8925 = vunpack.c.l.b16 %v8781
      %v8926 = vunpack.c.l.b16 %v8782
      %v8927 = vunpack.c.l.b16 %v8783
      %v8928 = vunpack.c.l.b16 %v8784
      %v8929 = vunpack.c.l.b16 %v8785
      %v8930 = vunpack.c.l.b16 %v8786
      %v8931 = vunpack.c.l.b16 %v8787
      %v8932 = vunpack.c.l.b16 %v8788
      %v8933 = vunpack.c.l.b16 %v8789
      %v8934 = vunpack.c.l.b16 %v8790
      %v8935 = vunpack.c.l.b16 %v8791
      %v8936 = vunpack.c.l.b16 %v8792
      %v8937 = vunpack.c.l.b16 %v8793
      %v8938 = vunpack.c.l.b16 %v8794
      %v8939 = vunpack.c.l.b16 %v8795
      %v8940 = vunpack.c.l.b16 %v8796
      %v8941 = vunpack.c.l.b16 %v8797
      %v8942 = vunpack.c.l.b16 %v8798
      %v8943 = vunpack.c.l.b16 %v8799
      %v8944 = vunpack.c.l.b16 %v8800
      %v8945 = vunpack.c.l.b16 %v8801
      %v8946 = vunpack.c.l.b16 %v8802
      %v8947 = vunpack.c.l.b16 %v8803
      %v8948 = vunpack.c.l.b16 %v8804
      %v8949 = vunpack.c.l.b16 %v8805
      %v8950 = vunpack.c.l.b16 %v8806
      %v8951 = vunpack.c.l.b16 %v8807
      %v8952 = vunpack.c.l.b16 %v8808
      %v8953 = vunpack.c.l.b16 %v8809
      %v8954 = vunpack.c.l.b16 %v8810
      %v8955 = vunpack.c.l.b16 %v8811
      %v8956 = vunpack.c.l.b16 %v8812
      %v8957 = vunpack.c.l.b16 %v8813
      %v8958 = vunpack.c.l.b16 %v8814
      %v8959 = vunpack.c.l.b16 %v8815
      %v8960 = vunpack.c.l.b16 %v8816
      %v8961 = vpack.c.b16 %v8890, %v8889
      %v8962 = vpack.c.b16 %v8892, %v8891
      %v8963 = vpack.c.b16 %v8894, %v8893
      %v8964 = vpack.c.b16 %v8896, %v8895
      %v8965 = vpack.c.b16 %v8898, %v8897
      %v8966 = vpack.c.b16 %v8900, %v8899
      %v8967 = vpack.c.b16 %v8902, %v8901
      %v8968 = vpack.c.b16 %v8904, %v8903
      %v8969 = vpack.c.b16 %v8906, %v8905
      %v8970 = vpack.c.b16 %v8908, %v8907
      %v8971 = vpack.c.b16 %v8910, %v8909
      %v8972 = vpack.c.b16 %v8912, %v8911
      %v8973 = vpack.c.b16 %v8914, %v8913
      %v8974 = vpack.c.b16 %v8916, %v8915
      %v8975 = vpack.c.b16 %v8918, %v8917
      %v8976 = vpack.c.b16 %v8920, %v8919
      %v8977 = vpack.c.b16 %v8922, %v8921
      %v8978 = vpack.c.b16 %v8924, %v8923
      %v8979 = vpack.c.b16 %v8926, %v8925
      %v8980 = vpack.c.b16 %v8928, %v8927
      %v8981 = vpack.c.b16 %v8930, %v8929
      %v8982 = vpack.c.b16 %v8932, %v8931
      %v8983 = vpack.c.b16 %v8934, %v8933
      %v8984 = vpack.c.b16 %v8936, %v8935
      %v8985 = vpack.c.b16 %v8938, %v8937
      %v8986 = vpack.c.b16 %v8940, %v8939
      %v8987 = vpack.c.b16 %v8942, %v8941
      %v8988 = vpack.c.b16 %v8944, %v8943
      %v8989 = vpack.c.b16 %v8946, %v8945
      %v8990 = vpack.c.b16 %v8948, %v8947
      %v8991 = vpack.c.b16 %v8950, %v8949
      %v8992 = vpack.c.b16 %v8952, %v8951
      %v8993 = vpack.c.b16 %v8954, %v8953
      %v8994 = vpack.c.b16 %v8956, %v8955
      %v8995 = vpack.c.b16 %v8958, %v8957
      %v8996 = vpack.c.b16 %v8960, %v8959
      %v9034 = vsel %vm7287, %v8613, 0
      %v9037 = vsel %vm7287, %v8617, 0
      %v9040 = vsel %vm7287, %v8621, 0
      %v9043 = vsel %vm7287, %v8625, 0
      %v9046 = vsel %vm7287, %v8630, 0
      %v9049 = vsel %vm7287, %v8634, 0
      %v9052 = vsel %vm7287, %v8638, 0
      %v9055 = vsel %vm7287, %v8642, 0
      %v9058 = vsel %vm7287, %v8647, 0
      %v9061 = vsel %vm7287, %v8651, 0
      %v9064 = vsel %vm7287, %v8655, 0
      %v9067 = vsel %vm7287, %v8659, 0
      %v9070 = vsel %vm7287, %v8664, 0
      %v9073 = vsel %vm7287, %v8668, 0
      %v9076 = vsel %vm7287, %v8672, 0
      %v9079 = vsel %vm7287, %v8676, 0
      %v9082 = vsel %vm7287, %v8681, 0
      %v9085 = vsel %vm7287, %v8685, 0
      %v9088 = vsel %vm7287, %v8689, 0
      %v9091 = vsel %vm7287, %v8693, 0
      %v9094 = vsel %vm7287, %v8698, 0
      %v9097 = vsel %vm7287, %v8702, 0
      %v9100 = vsel %vm7287, %v8706, 0
      %v9103 = vsel %vm7287, %v8710, 0
      %v9106 = vsel %vm7287, %v8715, 0
      %v9109 = vsel %vm7287, %v8719, 0
      %v9112 = vsel %vm7287, %v8723, 0
      %v9115 = vsel %vm7287, %v8727, 0
      %v9118 = vsel %vm7287, %v8732, 0
      %v9121 = vsel %vm7287, %v8736, 0
      %v9124 = vsel %vm7287, %v8740, 0
      %v9127 = vsel %vm7287, %v8744, 0
      %9129 = vmatprep.subr.bf16.mxu0 0
      %9130 = vmatpush1.bf16.msra.mxu0 %v8961
      %9131 = vmatprep.subr.bf16.mxu0 0
      %9132 = vmatpush1.bf16.msra.mxu0 %v8962
      %9133 = vmatprep.subr.bf16.mxu0 0
      %9134 = vmatpush1.bf16.msra.mxu0 %v8963
      %9135 = vmatprep.subr.bf16.mxu0 0
      %9136 = vmatpush1.bf16.msra.mxu0 %v8964
      %9137 = vmatprep.subr.bf16.mxu0 0
      %9138 = vmatpush1.bf16.msra.mxu0 %v8965
      %9139 = vmatprep.subr.bf16.mxu0 0
      %9140 = vmatpush1.bf16.msra.mxu0 %v8966
      %9141 = vmatprep.subr.bf16.mxu0 0
      %9142 = vmatpush1.bf16.msra.mxu0 %v8967
      %9143 = vmatprep.subr.bf16.mxu0 0
      %9144 = vmatpush1.bf16.msra.mxu0 %v8968
      %9145 = vmatprep.subr.bf16.mxu0 0
      %9146 = vmatpush1.bf16.msra.mxu0 %v8969
      %9147 = vmatprep.subr.bf16.mxu0 0
      %9148 = vmatpush1.bf16.msra.mxu0 %v8970
      %9149 = vmatprep.subr.bf16.mxu0 0
      %9150 = vmatpush1.bf16.msra.mxu0 %v8971
      %9151 = vmatprep.subr.bf16.mxu0 0
      %9152 = vmatpush1.bf16.msra.mxu0 %v8972
      %9153 = vmatprep.subr.bf16.mxu0 0
      %9154 = vmatpush1.bf16.msra.mxu0 %v8973
      %9155 = vmatprep.subr.bf16.mxu0 0
      %9156 = vmatpush1.bf16.msra.mxu0 %v8974
      %9157 = vmatprep.subr.bf16.mxu0 0
      %9158 = vmatpush1.bf16.msra.mxu0 %v8975
      %9159 = vmatprep.subr.bf16.mxu0 0
      %9160 = vmatpush1.bf16.msra.mxu0 %v8976
      %9161 = vmatprep.mubr.bf16.mxu0 %v8610
      %9162 = vmatmul.mubr.bf16.gmra.mrb[0].mxu0 %v8609
      %v9163 = vpop.f32.mrb[0].mxu0
      %v9164 = vadd.f32 0.0, %v9163
      %v9165 = vpop.f32.mrb[0].mxu0
      %v9166 = vpop.f32.mrb[0].mxu0
      %v9167 = vadd.f32 0.0, %v9166
      %v9168 = vpop.f32.mrb[0].mxu0
      %9169 = vmatprep.mubr.bf16.mxu0 %v8614
      %9170 = vmatmul.mubr.bf16.gmra.mrb[0].mxu0 %v8612
      %v9171 = vpop.f32.mrb[0].mxu0
      %v9172 = vadd.f32 0.0, %v9171
      %v9173 = vpop.f32.mrb[0].mxu0
      %v9174 = vpop.f32.mrb[0].mxu0
      %v9175 = vadd.f32 0.0, %v9174
      %v9176 = vpop.f32.mrb[0].mxu0
      %9177 = vmatprep.mubr.bf16.mxu0 %v8618
      %9178 = vmatmul.mubr.bf16.gmra.mrb[0].mxu0 %v8616
      %v9179 = vpop.f32.mrb[0].mxu0
      %v9180 = vadd.f32 0.0, %v9179
      %v9181 = vpop.f32.mrb[0].mxu0
      %v9182 = vpop.f32.mrb[0].mxu0
      %v9183 = vadd.f32 0.0, %v9182
      %v9184 = vpop.f32.mrb[0].mxu0
      %9185 = vmatprep.mubr.bf16.mxu0 %v8622
      %9186 = vmatmul.mubr.bf16.gmra.mrb[0].mxu0 %v8620
      %v9187 = vpop.f32.mrb[0].mxu0
      %v9188 = vadd.f32 0.0, %v9187
      %v9189 = vpop.f32.mrb[0].mxu0
      %v9190 = vpop.f32.mrb[0].mxu0
      %v9191 = vadd.f32 0.0, %v9190
      %v9192 = vpop.f32.mrb[0].mxu0
      %9193 = vmatprep.mubr.bf16.mxu0 %v8627
      %9194 = vmatmul.mubr.bf16.gmra.mrb[0].mxu0 %v8626
      %v9195 = vpop.f32.mrb[0].mxu0
      %v9196 = vadd.f32 0.0, %v9195
      %v9197 = vpop.f32.mrb[0].mxu0
      %v9198 = vpop.f32.mrb[0].mxu0
      %v9199 = vadd.f32 0.0, %v9198
      %v9200 = vpop.f32.mrb[0].mxu0
      %9201 = vmatprep.mubr.bf16.mxu0 %v8631
      %9202 = vmatmul.mubr.bf16.gmra.mrb[0].mxu0 %v8629
      %v9203 = vpop.f32.mrb[0].mxu0
      %v9204 = vadd.f32 0.0, %v9203
      %v9205 = vpop.f32.mrb[0].mxu0
      %v9206 = vpop.f32.mrb[0].mxu0
      %v9207 = vadd.f32 0.0, %v9206
      %v9208 = vpop.f32.mrb[0].mxu0
      %9209 = vmatprep.mubr.bf16.mxu0 %v8635
      %9210 = vmatmul.mubr.bf16.gmra.mrb[0].mxu0 %v8633
      %v9211 = vpop.f32.mrb[0].mxu0
      %v9212 = vadd.f32 0.0, %v9211
      %v9213 = vpop.f32.mrb[0].mxu0
      %v9214 = vpop.f32.mrb[0].mxu0
      %v9215 = vadd.f32 0.0, %v9214
      %v9216 = vpop.f32.mrb[0].mxu0
      %9217 = vmatprep.mubr.bf16.mxu0 %v8639
      %9218 = vmatmul.mubr.bf16.gmra.mrb[0].mxu0 %v8637
      %v9219 = vpop.f32.mrb[0].mxu0
      %v9220 = vadd.f32 0.0, %v9219
      %v9221 = vpop.f32.mrb[0].mxu0
      %v9222 = vpop.f32.mrb[0].mxu0
      %v9223 = vadd.f32 0.0, %v9222
      %v9224 = vpop.f32.mrb[0].mxu0
      %9225 = vmatprep.mubr.bf16.mxu0 %v8644
      %9226 = vmatmul.mubr.bf16.gmra.mrb[0].mxu0 %v8643
      %v9227 = vpop.f32.mrb[0].mxu0
      %v9228 = vadd.f32 0.0, %v9227
      %v9229 = vpop.f32.mrb[0].mxu0
      %v9230 = vpop.f32.mrb[0].mxu0
      %v9231 = vadd.f32 0.0, %v9230
      %v9232 = vpop.f32.mrb[0].mxu0
      %9233 = vmatprep.mubr.bf16.mxu0 %v8648
      %9234 = vmatmul.mubr.bf16.gmra.mrb[0].mxu0 %v8646
      %v9235 = vpop.f32.mrb[0].mxu0
      %v9236 = vadd.f32 0.0, %v9235
      %v9237 = vpop.f32.mrb[0].mxu0
      %v9238 = vpop.f32.mrb[0].mxu0
      %v9239 = vadd.f32 0.0, %v9238
      %v9240 = vpop.f32.mrb[0].mxu0
      %9241 = vmatprep.mubr.bf16.mxu0 %v8652
      %9242 = vmatmul.mubr.bf16.gmra.mrb[0].mxu0 %v8650
      %v9243 = vpop.f32.mrb[0].mxu0
      %v9244 = vadd.f32 0.0, %v9243
      %v9245 = vpop.f32.mrb[0].mxu0
      %v9246 = vpop.f32.mrb[0].mxu0
      %v9247 = vadd.f32 0.0, %v9246
      %v9248 = vpop.f32.mrb[0].mxu0
      %9249 = vmatprep.mubr.bf16.mxu0 %v8656
      %9250 = vmatmul.mubr.bf16.gmra.mrb[0].mxu0 %v8654
      %v9251 = vpop.f32.mrb[0].mxu0
      %v9252 = vadd.f32 0.0, %v9251
      %v9253 = vpop.f32.mrb[0].mxu0
      %v9254 = vpop.f32.mrb[0].mxu0
      %v9255 = vadd.f32 0.0, %v9254
      %v9256 = vpop.f32.mrb[0].mxu0
      %9257 = vmatprep.mubr.bf16.mxu0 %v8661
      %9258 = vmatmul.mubr.bf16.gmra.mrb[0].mxu0 %v8660
      %v9259 = vpop.f32.mrb[0].mxu0
      %v9260 = vadd.f32 0.0, %v9259
      %v9261 = vpop.f32.mrb[0].mxu0
      %v9262 = vpop.f32.mrb[0].mxu0
      %v9263 = vadd.f32 0.0, %v9262
      %v9264 = vpop.f32.mrb[0].mxu0
      %9265 = vmatprep.mubr.bf16.mxu0 %v8665
      %9266 = vmatmul.mubr.bf16.gmra.mrb[0].mxu0 %v8663
      %v9267 = vpop.f32.mrb[0].mxu0
      %v9268 = vadd.f32 0.0, %v9267
      %v9269 = vpop.f32.mrb[0].mxu0
      %v9270 = vpop.f32.mrb[0].mxu0
      %v9271 = vadd.f32 0.0, %v9270
      %v9272 = vpop.f32.mrb[0].mxu0
      %9273 = vmatprep.mubr.bf16.mxu0 %v8669
      %9274 = vmatmul.mubr.bf16.gmra.mrb[0].mxu0 %v8667
      %v9275 = vpop.f32.mrb[0].mxu0
      %v9276 = vadd.f32 0.0, %v9275
      %v9277 = vpop.f32.mrb[0].mxu0
      %v9278 = vpop.f32.mrb[0].mxu0
      %v9279 = vadd.f32 0.0, %v9278
      %v9280 = vpop.f32.mrb[0].mxu0
      %9281 = vmatprep.mubr.bf16.mxu0 %v8673
      %9282 = vmatmul.mubr.bf16.gmra.mrb[0].mxu0 %v8671
      %v9283 = vpop.f32.mrb[0].mxu0
      %v9284 = vadd.f32 0.0, %v9283
      %v9285 = vpop.f32.mrb[0].mxu0
      %v9286 = vpop.f32.mrb[0].mxu0
      %v9287 = vadd.f32 0.0, %v9286
      %v9288 = vpop.f32.mrb[0].mxu0
      %9289 = vmatprep.mubr.bf16.mxu0 %v8678
      %9290 = vmatmul.mubr.bf16.gmra.mrb[0].mxu0 %v8677
      %v9291 = vpop.f32.mrb[0].mxu0
      %v9292 = vadd.f32 0.0, %v9291
      %v9293 = vpop.f32.mrb[0].mxu0
      %v9294 = vpop.f32.mrb[0].mxu0
      %v9295 = vadd.f32 0.0, %v9294
      %v9296 = vpop.f32.mrb[0].mxu0
      %9297 = vmatprep.mubr.bf16.mxu0 %v8682
      %9298 = vmatmul.mubr.bf16.gmra.mrb[0].mxu0 %v8680
      %v9299 = vpop.f32.mrb[0].mxu0
      %v9300 = vadd.f32 0.0, %v9299
      %v9301 = vpop.f32.mrb[0].mxu0
      %v9302 = vpop.f32.mrb[0].mxu0
      %v9303 = vadd.f32 0.0, %v9302
      %v9304 = vpop.f32.mrb[0].mxu0
      %9305 = vmatprep.mubr.bf16.mxu0 %v8686
      %9306 = vmatmul.mubr.bf16.gmra.mrb[0].mxu0 %v8684
      %v9307 = vpop.f32.mrb[0].mxu0
      %v9308 = vadd.f32 0.0, %v9307
      %v9309 = vpop.f32.mrb[0].mxu0
      %v9310 = vpop.f32.mrb[0].mxu0
      %v9311 = vadd.f32 0.0, %v9310
      %v9312 = vpop.f32.mrb[0].mxu0
      %9313 = vmatprep.mubr.bf16.mxu0 %v8690
      %9314 = vmatmul.mubr.bf16.gmra.mrb[0].mxu0 %v8688
      %v9315 = vpop.f32.mrb[0].mxu0
      %v9316 = vadd.f32 0.0, %v9315
      %v9317 = vpop.f32.mrb[0].mxu0
      %v9318 = vpop.f32.mrb[0].mxu0
      %v9319 = vadd.f32 0.0, %v9318
      %v9320 = vpop.f32.mrb[0].mxu0
      %9321 = vmatprep.mubr.bf16.mxu0 %v8695
      %9322 = vmatmul.mubr.bf16.gmra.mrb[0].mxu0 %v8694
      %v9323 = vpop.f32.mrb[0].mxu0
      %v9324 = vadd.f32 0.0, %v9323
      %v9325 = vpop.f32.mrb[0].mxu0
      %v9326 = vpop.f32.mrb[0].mxu0
      %v9327 = vadd.f32 0.0, %v9326
      %v9328 = vpop.f32.mrb[0].mxu0
      %9329 = vmatprep.mubr.bf16.mxu0 %v8699
      %9330 = vmatmul.mubr.bf16.gmra.mrb[0].mxu0 %v8697
      %v9331 = vpop.f32.mrb[0].mxu0
      %v9332 = vadd.f32 0.0, %v9331
      %v9333 = vpop.f32.mrb[0].mxu0
      %v9334 = vpop.f32.mrb[0].mxu0
      %v9335 = vadd.f32 0.0, %v9334
      %v9336 = vpop.f32.mrb[0].mxu0
      %9337 = vmatprep.mubr.bf16.mxu0 %v8703
      %9338 = vmatmul.mubr.bf16.gmra.mrb[0].mxu0 %v8701
      %v9339 = vpop.f32.mrb[0].mxu0
      %v9340 = vadd.f32 0.0, %v9339
      %v9341 = vpop.f32.mrb[0].mxu0
      %v9342 = vpop.f32.mrb[0].mxu0
      %v9343 = vadd.f32 0.0, %v9342
      %v9344 = vpop.f32.mrb[0].mxu0
      %9345 = vmatprep.mubr.bf16.mxu0 %v8707
      %9346 = vmatmul.mubr.bf16.gmra.mrb[0].mxu0 %v8705
      %v9347 = vpop.f32.mrb[0].mxu0
      %v9348 = vadd.f32 0.0, %v9347
      %v9349 = vpop.f32.mrb[0].mxu0
      %v9350 = vpop.f32.mrb[0].mxu0
      %v9351 = vadd.f32 0.0, %v9350
      %v9352 = vpop.f32.mrb[0].mxu0
      %9353 = vmatprep.mubr.bf16.mxu0 %v8712
      %9354 = vmatmul.mubr.bf16.gmra.mrb[0].mxu0 %v8711
      %v9355 = vpop.f32.mrb[0].mxu0
      %v9356 = vadd.f32 0.0, %v9355
      %v9357 = vpop.f32.mrb[0].mxu0
      %v9358 = vpop.f32.mrb[0].mxu0
      %v9359 = vadd.f32 0.0, %v9358
      %v9360 = vpop.f32.mrb[0].mxu0
      %9361 = vmatprep.mubr.bf16.mxu0 %v8716
      %9362 = vmatmul.mubr.bf16.gmra.mrb[0].mxu0 %v8714
      %v9363 = vpop.f32.mrb[0].mxu0
      %v9364 = vadd.f32 0.0, %v9363
      %v9365 = vpop.f32.mrb[0].mxu0
      %v9366 = vpop.f32.mrb[0].mxu0
      %v9367 = vadd.f32 0.0, %v9366
      %v9368 = vpop.f32.mrb[0].mxu0
      %9369 = vmatprep.mubr.bf16.mxu0 %v8720
      %9370 = vmatmul.mubr.bf16.gmra.mrb[0].mxu0 %v8718
      %v9371 = vpop.f32.mrb[0].mxu0
      %v9372 = vadd.f32 0.0, %v9371
      %v9373 = vpop.f32.mrb[0].mxu0
      %v9374 = vpop.f32.mrb[0].mxu0
      %v9375 = vadd.f32 0.0, %v9374
      %v9376 = vpop.f32.mrb[0].mxu0
      %9377 = vmatprep.mubr.bf16.mxu0 %v8724
      %9378 = vmatmul.mubr.bf16.gmra.mrb[0].mxu0 %v8722
      %v9379 = vpop.f32.mrb[0].mxu0
      %v9380 = vadd.f32 0.0, %v9379
      %v9381 = vpop.f32.mrb[0].mxu0
      %v9382 = vpop.f32.mrb[0].mxu0
      %v9383 = vadd.f32 0.0, %v9382
      %v9384 = vpop.f32.mrb[0].mxu0
      %9385 = vmatprep.mubr.bf16.mxu0 %v8729
      %9386 = vmatmul.mubr.bf16.gmra.mrb[0].mxu0 %v8728
      %v9387 = vpop.f32.mrb[0].mxu0
      %v9388 = vadd.f32 0.0, %v9387
      %v9389 = vpop.f32.mrb[0].mxu0
      %v9390 = vpop.f32.mrb[0].mxu0
      %v9391 = vadd.f32 0.0, %v9390
      %v9392 = vpop.f32.mrb[0].mxu0
      %9393 = vmatprep.mubr.bf16.mxu0 %v8733
      %9394 = vmatmul.mubr.bf16.gmra.mrb[0].mxu0 %v8731
      %v9395 = vpop.f32.mrb[0].mxu0
      %v9396 = vadd.f32 0.0, %v9395
      %v9397 = vpop.f32.mrb[0].mxu0
      %v9398 = vpop.f32.mrb[0].mxu0
      %v9399 = vadd.f32 0.0, %v9398
      %v9400 = vpop.f32.mrb[0].mxu0
      %9401 = vmatprep.mubr.bf16.mxu0 %v8737
      %9402 = vmatmul.mubr.bf16.gmra.mrb[0].mxu0 %v8735
      %v9403 = vpop.f32.mrb[0].mxu0
      %v9404 = vadd.f32 0.0, %v9403
      %v9405 = vpop.f32.mrb[0].mxu0
      %v9406 = vpop.f32.mrb[0].mxu0
      %v9407 = vadd.f32 0.0, %v9406
      %v9408 = vpop.f32.mrb[0].mxu0
      %9409 = vmatprep.mubr.bf16.mxu0 %v8741
      %9410 = vmatmul.mubr.bf16.gmra.mrb[0].mxu0 %v8739
      %v9411 = vpop.f32.mrb[0].mxu0
      %v9412 = vadd.f32 0.0, %v9411
      %v9413 = vpop.f32.mrb[0].mxu0
      %v9414 = vpop.f32.mrb[0].mxu0
      %v9415 = vadd.f32 0.0, %v9414
      %v9416 = vpop.f32.mrb[0].mxu0
      %9417 = vdwg.mxu0
      %9418 = vmatprep.subr.bf16.mxu0 0
      %9419 = vmatpush1.bf16.msra.mxu0 %v8977
      %9420 = vmatprep.subr.bf16.mxu0 0
      %9421 = vmatpush1.bf16.msra.mxu0 %v8978
      %9422 = vmatprep.subr.bf16.mxu0 0
      %9423 = vmatpush1.bf16.msra.mxu0 %v8979
      %9424 = vmatprep.subr.bf16.mxu0 0
      %9425 = vmatpush1.bf16.msra.mxu0 %v8980
      %9426 = vmatprep.subr.bf16.mxu0 0
      %9427 = vmatpush1.bf16.msra.mxu0 %v8981
      %9428 = vmatprep.subr.bf16.mxu0 0
      %9429 = vmatpush1.bf16.msra.mxu0 %v8982
      %9430 = vmatprep.subr.bf16.mxu0 0
      %9431 = vmatpush1.bf16.msra.mxu0 %v8983
      %9432 = vmatprep.subr.bf16.mxu0 0
      %9433 = vmatpush1.bf16.msra.mxu0 %v8984
      %9434 = vmatprep.subr.bf16.mxu0 0
      %9435 = vmatpush1.bf16.msra.mxu0 %v8985
      %9436 = vmatprep.subr.bf16.mxu0 0
      %9437 = vmatpush1.bf16.msra.mxu0 %v8986
      %9438 = vmatprep.subr.bf16.mxu0 0
      %9439 = vmatpush1.bf16.msra.mxu0 %v8987
      %9440 = vmatprep.subr.bf16.mxu0 0
      %9441 = vmatpush1.bf16.msra.mxu0 %v8988
      %9442 = vmatprep.subr.bf16.mxu0 0
      %9443 = vmatpush1.bf16.msra.mxu0 %v8989
      %9444 = vmatprep.subr.bf16.mxu0 0
      %9445 = vmatpush1.bf16.msra.mxu0 %v8990
      %9446 = vmatprep.subr.bf16.mxu0 0
      %9447 = vmatpush1.bf16.msra.mxu0 %v8991
      %9448 = vmatprep.subr.bf16.mxu0 0
      %9449 = vmatpush1.bf16.msra.mxu0 %v8992
      %9450 = vmatprep.mubr.bf16.mxu0 %v8612
      %9451 = vmatmul.mubr.bf16.gmra.mrb[0].mxu0 %v8611
      %v9452 = vpop.f32.mrb[0].mxu0
      %v9453 = vadd.f32 %v9164, %v9452
      %v9454 = vpop.f32.mrb[0].mxu0
      %v9455 = vpop.f32.mrb[0].mxu0
      %v9456 = vadd.f32 %v9167, %v9455
      %v9457 = vpop.f32.mrb[0].mxu0
      %9458 = vmatprep.mubr.bf16.mxu0 %v8616
      %9459 = vmatmul.mubr.bf16.gmra.mrb[0].mxu0 %v8615
      %v9460 = vpop.f32.mrb[0].mxu0
      %v9461 = vadd.f32 %v9172, %v9460
      %v9462 = vpop.f32.mrb[0].mxu0
      %v9463 = vpop.f32.mrb[0].mxu0
      %v9464 = vadd.f32 %v9175, %v9463
      %v9465 = vpop.f32.mrb[0].mxu0
      %9466 = vmatprep.mubr.bf16.mxu0 %v8620
      %9467 = vmatmul.mubr.bf16.gmra.mrb[0].mxu0 %v8619
      %v9468 = vpop.f32.mrb[0].mxu0
      %v9469 = vadd.f32 %v9180, %v9468
      %v9470 = vpop.f32.mrb[0].mxu0
      %v9471 = vpop.f32.mrb[0].mxu0
      %v9472 = vadd.f32 %v9183, %v9471
      %v9473 = vpop.f32.mrb[0].mxu0
      %9474 = vmatprep.mubr.bf16.mxu0 %v8624
      %9475 = vmatmul.mubr.bf16.gmra.mrb[0].mxu0 %v8623
      %v9476 = vpop.f32.mrb[0].mxu0
      %v9477 = vadd.f32 %v9188, %v9476
      %v9478 = vpop.f32.mrb[0].mxu0
      %v9479 = vpop.f32.mrb[0].mxu0
      %v9480 = vadd.f32 %v9191, %v9479
      %v9481 = vpop.f32.mrb[0].mxu0
      %9482 = vmatprep.mubr.bf16.mxu0 %v8629
      %9483 = vmatmul.mubr.bf16.gmra.mrb[0].mxu0 %v8628
      %v9484 = vpop.f32.mrb[0].mxu0
      %v9485 = vadd.f32 %v9196, %v9484
      %v9486 = vpop.f32.mrb[0].mxu0
      %v9487 = vpop.f32.mrb[0].mxu0
      %v9488 = vadd.f32 %v9199, %v9487
      %v9489 = vpop.f32.mrb[0].mxu0
      %9490 = vmatprep.mubr.bf16.mxu0 %v8633
      %9491 = vmatmul.mubr.bf16.gmra.mrb[0].mxu0 %v8632
      %v9492 = vpop.f32.mrb[0].mxu0
      %v9493 = vadd.f32 %v9204, %v9492
      %v9494 = vpop.f32.mrb[0].mxu0
      %v9495 = vpop.f32.mrb[0].mxu0
      %v9496 = vadd.f32 %v9207, %v9495
      %v9497 = vpop.f32.mrb[0].mxu0
      %9498 = vmatprep.mubr.bf16.mxu0 %v8637
      %9499 = vmatmul.mubr.bf16.gmra.mrb[0].mxu0 %v8636
      %v9500 = vpop.f32.mrb[0].mxu0
      %v9501 = vadd.f32 %v9212, %v9500
      %v9502 = vpop.f32.mrb[0].mxu0
      %v9503 = vpop.f32.mrb[0].mxu0
      %v9504 = vadd.f32 %v9215, %v9503
      %v9505 = vpop.f32.mrb[0].mxu0
      %9506 = vmatprep.mubr.bf16.mxu0 %v8641
      %9507 = vmatmul.mubr.bf16.gmra.mrb[0].mxu0 %v8640
      %v9508 = vpop.f32.mrb[0].mxu0
      %v9509 = vadd.f32 %v9220, %v9508
      %v9510 = vpop.f32.mrb[0].mxu0
      %v9511 = vpop.f32.mrb[0].mxu0
      %v9512 = vadd.f32 %v9223, %v9511
      %v9513 = vpop.f32.mrb[0].mxu0
      %9514 = vmatprep.mubr.bf16.mxu0 %v8646
      %9515 = vmatmul.mubr.bf16.gmra.mrb[0].mxu0 %v8645
      %v9516 = vpop.f32.mrb[0].mxu0
      %v9517 = vadd.f32 %v9228, %v9516
      %v9518 = vpop.f32.mrb[0].mxu0
      %v9519 = vpop.f32.mrb[0].mxu0
      %v9520 = vadd.f32 %v9231, %v9519
      %v9521 = vpop.f32.mrb[0].mxu0
      %9522 = vmatprep.mubr.bf16.mxu0 %v8650
      %9523 = vmatmul.mubr.bf16.gmra.mrb[0].mxu0 %v8649
      %v9524 = vpop.f32.mrb[0].mxu0
      %v9525 = vadd.f32 %v9236, %v9524
      %v9526 = vpop.f32.mrb[0].mxu0
      %v9527 = vpop.f32.mrb[0].mxu0
      %v9528 = vadd.f32 %v9239, %v9527
      %v9529 = vpop.f32.mrb[0].mxu0
      %9530 = vmatprep.mubr.bf16.mxu0 %v8654
      %9531 = vmatmul.mubr.bf16.gmra.mrb[0].mxu0 %v8653
      %v9532 = vpop.f32.mrb[0].mxu0
      %v9533 = vadd.f32 %v9244, %v9532
      %v9534 = vpop.f32.mrb[0].mxu0
      %v9535 = vpop.f32.mrb[0].mxu0
      %v9536 = vadd.f32 %v9247, %v9535
      %v9537 = vpop.f32.mrb[0].mxu0
      %9538 = vmatprep.mubr.bf16.mxu0 %v8658
      %9539 = vmatmul.mubr.bf16.gmra.mrb[0].mxu0 %v8657
      %v9540 = vpop.f32.mrb[0].mxu0
      %v9541 = vadd.f32 %v9252, %v9540
      %v9542 = vpop.f32.mrb[0].mxu0
      %v9543 = vpop.f32.mrb[0].mxu0
      %v9544 = vadd.f32 %v9255, %v9543
      %v9545 = vpop.f32.mrb[0].mxu0
      %9546 = vmatprep.mubr.bf16.mxu0 %v8663
      %9547 = vmatmul.mubr.bf16.gmra.mrb[0].mxu0 %v8662
      %v9548 = vpop.f32.mrb[0].mxu0
      %v9549 = vadd.f32 %v9260, %v9548
      %v9550 = vpop.f32.mrb[0].mxu0
      %v9551 = vpop.f32.mrb[0].mxu0
      %v9552 = vadd.f32 %v9263, %v9551
      %v9553 = vpop.f32.mrb[0].mxu0
      %9554 = vmatprep.mubr.bf16.mxu0 %v8667
      %9555 = vmatmul.mubr.bf16.gmra.mrb[0].mxu0 %v8666
      %v9556 = vpop.f32.mrb[0].mxu0
      %v9557 = vadd.f32 %v9268, %v9556
      %v9558 = vpop.f32.mrb[0].mxu0
      %v9559 = vpop.f32.mrb[0].mxu0
      %v9560 = vadd.f32 %v9271, %v9559
      %v9561 = vpop.f32.mrb[0].mxu0
      %9562 = vmatprep.mubr.bf16.mxu0 %v8671
      %9563 = vmatmul.mubr.bf16.gmra.mrb[0].mxu0 %v8670
      %v9564 = vpop.f32.mrb[0].mxu0
      %v9565 = vadd.f32 %v9276, %v9564
      %v9566 = vpop.f32.mrb[0].mxu0
      %v9567 = vpop.f32.mrb[0].mxu0
      %v9568 = vadd.f32 %v9279, %v9567
      %v9569 = vpop.f32.mrb[0].mxu0
      %9570 = vmatprep.mubr.bf16.mxu0 %v8675
      %9571 = vmatmul.mubr.bf16.gmra.mrb[0].mxu0 %v8674
      %v9572 = vpop.f32.mrb[0].mxu0
      %v9573 = vadd.f32 %v9284, %v9572
      %v9574 = vpop.f32.mrb[0].mxu0
      %v9575 = vpop.f32.mrb[0].mxu0
      %v9576 = vadd.f32 %v9287, %v9575
      %v9577 = vpop.f32.mrb[0].mxu0
      %9578 = vmatprep.mubr.bf16.mxu0 %v8680
      %9579 = vmatmul.mubr.bf16.gmra.mrb[0].mxu0 %v8679
      %v9580 = vpop.f32.mrb[0].mxu0
      %v9581 = vadd.f32 %v9292, %v9580
      %v9582 = vpop.f32.mrb[0].mxu0
      %v9583 = vpop.f32.mrb[0].mxu0
      %v9584 = vadd.f32 %v9295, %v9583
      %v9585 = vpop.f32.mrb[0].mxu0
      %9586 = vmatprep.mubr.bf16.mxu0 %v8684
      %9587 = vmatmul.mubr.bf16.gmra.mrb[0].mxu0 %v8683
      %v9588 = vpop.f32.mrb[0].mxu0
      %v9589 = vadd.f32 %v9300, %v9588
      %v9590 = vpop.f32.mrb[0].mxu0
      %v9591 = vpop.f32.mrb[0].mxu0
      %v9592 = vadd.f32 %v9303, %v9591
      %v9593 = vpop.f32.mrb[0].mxu0
      %9594 = vmatprep.mubr.bf16.mxu0 %v8688
      %9595 = vmatmul.mubr.bf16.gmra.mrb[0].mxu0 %v8687
      %v9596 = vpop.f32.mrb[0].mxu0
      %v9597 = vadd.f32 %v9308, %v9596
      %v9598 = vpop.f32.mrb[0].mxu0
      %v9599 = vpop.f32.mrb[0].mxu0
      %v9600 = vadd.f32 %v9311, %v9599
      %v9601 = vpop.f32.mrb[0].mxu0
      %9602 = vmatprep.mubr.bf16.mxu0 %v8692
      %9603 = vmatmul.mubr.bf16.gmra.mrb[0].mxu0 %v8691
      %v9604 = vpop.f32.mrb[0].mxu0
      %v9605 = vadd.f32 %v9316, %v9604
      %v9606 = vpop.f32.mrb[0].mxu0
      %v9607 = vpop.f32.mrb[0].mxu0
      %v9608 = vadd.f32 %v9319, %v9607
      %v9609 = vpop.f32.mrb[0].mxu0
      %9610 = vmatprep.mubr.bf16.mxu0 %v8697
      %9611 = vmatmul.mubr.bf16.gmra.mrb[0].mxu0 %v8696
      %v9612 = vpop.f32.mrb[0].mxu0
      %v9613 = vadd.f32 %v9324, %v9612
      %v9614 = vpop.f32.mrb[0].mxu0
      %v9615 = vpop.f32.mrb[0].mxu0
      %v9616 = vadd.f32 %v9327, %v9615
      %v9617 = vpop.f32.mrb[0].mxu0
      %9618 = vmatprep.mubr.bf16.mxu0 %v8701
      %9619 = vmatmul.mubr.bf16.gmra.mrb[0].mxu0 %v8700
      %v9620 = vpop.f32.mrb[0].mxu0
      %v9621 = vadd.f32 %v9332, %v9620
      %v9622 = vpop.f32.mrb[0].mxu0
      %v9623 = vpop.f32.mrb[0].mxu0
      %v9624 = vadd.f32 %v9335, %v9623
      %v9625 = vpop.f32.mrb[0].mxu0
      %9626 = vmatprep.mubr.bf16.mxu0 %v8705
      %9627 = vmatmul.mubr.bf16.gmra.mrb[0].mxu0 %v8704
      %v9628 = vpop.f32.mrb[0].mxu0
      %v9629 = vadd.f32 %v9340, %v9628
      %v9630 = vpop.f32.mrb[0].mxu0
      %v9631 = vpop.f32.mrb[0].mxu0
      %v9632 = vadd.f32 %v9343, %v9631
      %v9633 = vpop.f32.mrb[0].mxu0
      %9634 = vmatprep.mubr.bf16.mxu0 %v8709
      %9635 = vmatmul.mubr.bf16.gmra.mrb[0].mxu0 %v8708
      %v9636 = vpop.f32.mrb[0].mxu0
      %v9637 = vadd.f32 %v9348, %v9636
      %v9638 = vpop.f32.mrb[0].mxu0
      %v9639 = vpop.f32.mrb[0].mxu0
      %v9640 = vadd.f32 %v9351, %v9639
      %v9641 = vpop.f32.mrb[0].mxu0
      %9642 = vmatprep.mubr.bf16.mxu0 %v8714
      %9643 = vmatmul.mubr.bf16.gmra.mrb[0].mxu0 %v8713
      %v9644 = vpop.f32.mrb[0].mxu0
      %v9645 = vadd.f32 %v9356, %v9644
      %v9646 = vpop.f32.mrb[0].mxu0
      %v9647 = vpop.f32.mrb[0].mxu0
      %v9648 = vadd.f32 %v9359, %v9647
      %v9649 = vpop.f32.mrb[0].mxu0
      %9650 = vmatprep.mubr.bf16.mxu0 %v8718
      %9651 = vmatmul.mubr.bf16.gmra.mrb[0].mxu0 %v8717
      %v9652 = vpop.f32.mrb[0].mxu0
      %v9653 = vadd.f32 %v9364, %v9652
      %v9654 = vpop.f32.mrb[0].mxu0
      %v9655 = vpop.f32.mrb[0].mxu0
      %v9656 = vadd.f32 %v9367, %v9655
      %v9657 = vpop.f32.mrb[0].mxu0
      %9658 = vmatprep.mubr.bf16.mxu0 %v8722
      %9659 = vmatmul.mubr.bf16.gmra.mrb[0].mxu0 %v8721
      %v9660 = vpop.f32.mrb[0].mxu0
      %v9661 = vadd.f32 %v9372, %v9660
      %v9662 = vpop.f32.mrb[0].mxu0
      %v9663 = vpop.f32.mrb[0].mxu0
      %v9664 = vadd.f32 %v9375, %v9663
      %v9665 = vpop.f32.mrb[0].mxu0
      %9666 = vmatprep.mubr.bf16.mxu0 %v8726
      %9667 = vmatmul.mubr.bf16.gmra.mrb[0].mxu0 %v8725
      %v9668 = vpop.f32.mrb[0].mxu0
      %v9669 = vadd.f32 %v9380, %v9668
      %v9670 = vpop.f32.mrb[0].mxu0
      %v9671 = vpop.f32.mrb[0].mxu0
      %v9672 = vadd.f32 %v9383, %v9671
      %v9673 = vpop.f32.mrb[0].mxu0
      %9674 = vmatprep.mubr.bf16.mxu0 %v8731
      %9675 = vmatmul.mubr.bf16.gmra.mrb[0].mxu0 %v8730
      %v9676 = vpop.f32.mrb[0].mxu0
      %v9677 = vadd.f32 %v9388, %v9676
      %v9678 = vpop.f32.mrb[0].mxu0
      %v9679 = vpop.f32.mrb[0].mxu0
      %v9680 = vadd.f32 %v9391, %v9679
      %v9681 = vpop.f32.mrb[0].mxu0
      %9682 = vmatprep.mubr.bf16.mxu0 %v8735
      %9683 = vmatmul.mubr.bf16.gmra.mrb[0].mxu0 %v8734
      %v9684 = vpop.f32.mrb[0].mxu0
      %v9685 = vadd.f32 %v9396, %v9684
      %v9686 = vpop.f32.mrb[0].mxu0
      %v9687 = vpop.f32.mrb[0].mxu0
      %v9688 = vadd.f32 %v9399, %v9687
      %v9689 = vpop.f32.mrb[0].mxu0
      %9690 = vmatprep.mubr.bf16.mxu0 %v8739
      %9691 = vmatmul.mubr.bf16.gmra.mrb[0].mxu0 %v8738
      %v9692 = vpop.f32.mrb[0].mxu0
      %v9693 = vadd.f32 %v9404, %v9692
      %v9694 = vpop.f32.mrb[0].mxu0
      %v9695 = vpop.f32.mrb[0].mxu0
      %v9696 = vadd.f32 %v9407, %v9695
      %v9697 = vpop.f32.mrb[0].mxu0
      %9698 = vmatprep.mubr.bf16.mxu0 %v8743
      %9699 = vmatmul.mubr.bf16.gmra.mrb[0].mxu0 %v8742
      %v9700 = vpop.f32.mrb[0].mxu0
      %v9701 = vadd.f32 %v9412, %v9700
      %v9702 = vpop.f32.mrb[0].mxu0
      %v9703 = vpop.f32.mrb[0].mxu0
      %v9704 = vadd.f32 %v9415, %v9703
      %v9705 = vpop.f32.mrb[0].mxu0
      %9706 = vdwg.mxu0
      %9707 = vmatprep.subr.bf16.mxu0 0
      %9708 = vmatpush1.bf16.msra.mxu0 %v8993
      %9709 = vmatprep.subr.bf16.mxu0 0
      %9710 = vmatpush1.bf16.msra.mxu0 %v8994
      %9711 = vmatprep.subr.bf16.mxu0 0
      %9712 = vmatpush1.bf16.msra.mxu0 %v8995
      %9713 = vmatprep.subr.bf16.mxu0 0
      %9714 = vmatpush1.bf16.msra.mxu0 %v8996
      %9715 = vmatprep.subr.bf16.mxu0 0
      %9716 = vmatpush1.bf16.msra.mxu0 0
      %9717 = vmatprep.subr.bf16.mxu0 0
      %9718 = vmatpush1.bf16.msra.mxu0 0
      %9719 = vmatprep.subr.bf16.mxu0 0
      %9720 = vmatpush1.bf16.msra.mxu0 0
      %9721 = vmatprep.subr.bf16.mxu0 0
      %9722 = vmatpush1.bf16.msra.mxu0 0
      %9723 = vmatprep.subr.bf16.mxu0 0
      %9724 = vmatpush1.bf16.msra.mxu0 0
      %9725 = vmatprep.subr.bf16.mxu0 0
      %9726 = vmatpush1.bf16.msra.mxu0 0
      %9727 = vmatprep.subr.bf16.mxu0 0
      %9728 = vmatpush1.bf16.msra.mxu0 0
      %9729 = vmatprep.subr.bf16.mxu0 0
      %9730 = vmatpush1.bf16.msra.mxu0 0
      %9731 = vmatprep.subr.bf16.mxu0 0
      %9732 = vmatpush1.bf16.msra.mxu0 0
      %9733 = vmatprep.subr.bf16.mxu0 0
      %9734 = vmatpush1.bf16.msra.mxu0 0
      %9735 = vmatprep.subr.bf16.mxu0 0
      %9736 = vmatpush1.bf16.msra.mxu0 0
      %9737 = vmatprep.subr.bf16.mxu0 0
      %9738 = vmatpush1.bf16.msra.mxu0 0
      %9739 = vmatprep.mubr.bf16.mxu0 0
      %9740 = vmatmul.mubr.bf16.gmra.mrb[0].mxu0 %v9034
      %v9741 = vpop.f32.mrb[0].mxu0
      %v9742 = vadd.f32 %v9453, %v9741
      %v9743 = vpop.f32.mrb[0].mxu0
      %v9744 = vpop.f32.mrb[0].mxu0
      %v9745 = vadd.f32 %v9456, %v9744
      %v9746 = vpop.f32.mrb[0].mxu0
      %9747 = vmatprep.mubr.bf16.mxu0 0
      %9748 = vmatmul.mubr.bf16.gmra.mrb[0].mxu0 %v9037
      %v9749 = vpop.f32.mrb[0].mxu0
      %v9750 = vadd.f32 %v9461, %v9749
      %v9751 = vpop.f32.mrb[0].mxu0
      %v9752 = vpop.f32.mrb[0].mxu0
      %v9753 = vadd.f32 %v9464, %v9752
      %v9754 = vpop.f32.mrb[0].mxu0
      %9755 = vmatprep.mubr.bf16.mxu0 0
      %9756 = vmatmul.mubr.bf16.gmra.mrb[0].mxu0 %v9040
      %v9757 = vpop.f32.mrb[0].mxu0
      %v9758 = vadd.f32 %v9469, %v9757
      %v9759 = vpop.f32.mrb[0].mxu0
      %v9760 = vpop.f32.mrb[0].mxu0
      %v9761 = vadd.f32 %v9472, %v9760
      %v9762 = vpop.f32.mrb[0].mxu0
      %9763 = vmatprep.mubr.bf16.mxu0 0
      %9764 = vmatmul.mubr.bf16.gmra.mrb[0].mxu0 %v9043
      %v9765 = vpop.f32.mrb[0].mxu0
      %v9766 = vadd.f32 %v9477, %v9765
      %v9767 = vpop.f32.mrb[0].mxu0
      %v9768 = vpop.f32.mrb[0].mxu0
      %v9769 = vadd.f32 %v9480, %v9768
      %v9770 = vpop.f32.mrb[0].mxu0
      %9771 = vmatprep.mubr.bf16.mxu0 0
      %9772 = vmatmul.mubr.bf16.gmra.mrb[0].mxu0 %v9046
      %v9773 = vpop.f32.mrb[0].mxu0
      %v9774 = vadd.f32 %v9485, %v9773
      %v9775 = vpop.f32.mrb[0].mxu0
      %v9776 = vpop.f32.mrb[0].mxu0
      %v9777 = vadd.f32 %v9488, %v9776
      %v9778 = vpop.f32.mrb[0].mxu0
      %9779 = vmatprep.mubr.bf16.mxu0 0
      %9780 = vmatmul.mubr.bf16.gmra.mrb[0].mxu0 %v9049
      %v9781 = vpop.f32.mrb[0].mxu0
      %v9782 = vadd.f32 %v9493, %v9781
      %v9783 = vpop.f32.mrb[0].mxu0
      %v9784 = vpop.f32.mrb[0].mxu0
      %v9785 = vadd.f32 %v9496, %v9784
      %v9786 = vpop.f32.mrb[0].mxu0
      %9787 = vmatprep.mubr.bf16.mxu0 0
      %9788 = vmatmul.mubr.bf16.gmra.mrb[0].mxu0 %v9052
      %v9789 = vpop.f32.mrb[0].mxu0
      %v9790 = vadd.f32 %v9501, %v9789
      %v9791 = vpop.f32.mrb[0].mxu0
      %v9792 = vpop.f32.mrb[0].mxu0
      %v9793 = vadd.f32 %v9504, %v9792
      %v9794 = vpop.f32.mrb[0].mxu0
      %9795 = vmatprep.mubr.bf16.mxu0 0
      %9796 = vmatmul.mubr.bf16.gmra.mrb[0].mxu0 %v9055
      %v9797 = vpop.f32.mrb[0].mxu0
      %v9798 = vadd.f32 %v9509, %v9797
      %v9799 = vpop.f32.mrb[0].mxu0
      %v9800 = vpop.f32.mrb[0].mxu0
      %v9801 = vadd.f32 %v9512, %v9800
      %v9802 = vpop.f32.mrb[0].mxu0
      %9803 = vmatprep.mubr.bf16.mxu0 0
      %9804 = vmatmul.mubr.bf16.gmra.mrb[0].mxu0 %v9058
      %v9805 = vpop.f32.mrb[0].mxu0
      %v9806 = vadd.f32 %v9517, %v9805
      %v9807 = vpop.f32.mrb[0].mxu0
      %v9808 = vpop.f32.mrb[0].mxu0
      %v9809 = vadd.f32 %v9520, %v9808
      %v9810 = vpop.f32.mrb[0].mxu0
      %9811 = vmatprep.mubr.bf16.mxu0 0
      %9812 = vmatmul.mubr.bf16.gmra.mrb[0].mxu0 %v9061
      %v9813 = vpop.f32.mrb[0].mxu0
      %v9814 = vadd.f32 %v9525, %v9813
      %v9815 = vpop.f32.mrb[0].mxu0
      %v9816 = vpop.f32.mrb[0].mxu0
      %v9817 = vadd.f32 %v9528, %v9816
      %v9818 = vpop.f32.mrb[0].mxu0
      %9819 = vmatprep.mubr.bf16.mxu0 0
      %9820 = vmatmul.mubr.bf16.gmra.mrb[0].mxu0 %v9064
      %v9821 = vpop.f32.mrb[0].mxu0
      %v9822 = vadd.f32 %v9533, %v9821
      %v9823 = vpop.f32.mrb[0].mxu0
      %v9824 = vpop.f32.mrb[0].mxu0
      %v9825 = vadd.f32 %v9536, %v9824
      %v9826 = vpop.f32.mrb[0].mxu0
      %9827 = vmatprep.mubr.bf16.mxu0 0
      %9828 = vmatmul.mubr.bf16.gmra.mrb[0].mxu0 %v9067
      %v9829 = vpop.f32.mrb[0].mxu0
      %v9830 = vadd.f32 %v9541, %v9829
      %v9831 = vpop.f32.mrb[0].mxu0
      %v9832 = vpop.f32.mrb[0].mxu0
      %v9833 = vadd.f32 %v9544, %v9832
      %v9834 = vpop.f32.mrb[0].mxu0
      %9835 = vmatprep.mubr.bf16.mxu0 0
      %9836 = vmatmul.mubr.bf16.gmra.mrb[0].mxu0 %v9070
      %v9837 = vpop.f32.mrb[0].mxu0
      %v9838 = vadd.f32 %v9549, %v9837
      %v9839 = vpop.f32.mrb[0].mxu0
      %v9840 = vpop.f32.mrb[0].mxu0
      %v9841 = vadd.f32 %v9552, %v9840
      %v9842 = vpop.f32.mrb[0].mxu0
      %9843 = vmatprep.mubr.bf16.mxu0 0
      %9844 = vmatmul.mubr.bf16.gmra.mrb[0].mxu0 %v9073
      %v9845 = vpop.f32.mrb[0].mxu0
      %v9846 = vadd.f32 %v9557, %v9845
      %v9847 = vpop.f32.mrb[0].mxu0
      %v9848 = vpop.f32.mrb[0].mxu0
      %v9849 = vadd.f32 %v9560, %v9848
      %v9850 = vpop.f32.mrb[0].mxu0
      %9851 = vmatprep.mubr.bf16.mxu0 0
      %9852 = vmatmul.mubr.bf16.gmra.mrb[0].mxu0 %v9076
      %v9853 = vpop.f32.mrb[0].mxu0
      %v9854 = vadd.f32 %v9565, %v9853
      %v9855 = vpop.f32.mrb[0].mxu0
      %v9856 = vpop.f32.mrb[0].mxu0
      %v9857 = vadd.f32 %v9568, %v9856
      %v9858 = vpop.f32.mrb[0].mxu0
      %9859 = vmatprep.mubr.bf16.mxu0 0
      %9860 = vmatmul.mubr.bf16.gmra.mrb[0].mxu0 %v9079
      %v9861 = vpop.f32.mrb[0].mxu0
      %v9862 = vadd.f32 %v9573, %v9861
      %v9863 = vpop.f32.mrb[0].mxu0
      %v9864 = vpop.f32.mrb[0].mxu0
      %v9865 = vadd.f32 %v9576, %v9864
      %v9866 = vpop.f32.mrb[0].mxu0
      %9867 = vmatprep.mubr.bf16.mxu0 0
      %9868 = vmatmul.mubr.bf16.gmra.mrb[0].mxu0 %v9082
      %v9869 = vpop.f32.mrb[0].mxu0
      %v9870 = vadd.f32 %v9581, %v9869
      %v9871 = vpop.f32.mrb[0].mxu0
      %v9872 = vpop.f32.mrb[0].mxu0
      %v9873 = vadd.f32 %v9584, %v9872
      %v9874 = vpop.f32.mrb[0].mxu0
      %9875 = vmatprep.mubr.bf16.mxu0 0
      %9876 = vmatmul.mubr.bf16.gmra.mrb[0].mxu0 %v9085
      %v9877 = vpop.f32.mrb[0].mxu0
      %v9878 = vadd.f32 %v9589, %v9877
      %v9879 = vpop.f32.mrb[0].mxu0
      %v9880 = vpop.f32.mrb[0].mxu0
      %v9881 = vadd.f32 %v9592, %v9880
      %v9882 = vpop.f32.mrb[0].mxu0
      %9883 = vmatprep.mubr.bf16.mxu0 0
      %9884 = vmatmul.mubr.bf16.gmra.mrb[0].mxu0 %v9088
      %v9885 = vpop.f32.mrb[0].mxu0
      %v9886 = vadd.f32 %v9597, %v9885
      %v9887 = vpop.f32.mrb[0].mxu0
      %v9888 = vpop.f32.mrb[0].mxu0
      %v9889 = vadd.f32 %v9600, %v9888
      %v9890 = vpop.f32.mrb[0].mxu0
      %9891 = vmatprep.mubr.bf16.mxu0 0
      %9892 = vmatmul.mubr.bf16.gmra.mrb[0].mxu0 %v9091
      %v9893 = vpop.f32.mrb[0].mxu0
      %v9894 = vadd.f32 %v9605, %v9893
      %v9895 = vpop.f32.mrb[0].mxu0
      %v9896 = vpop.f32.mrb[0].mxu0
      %v9897 = vadd.f32 %v9608, %v9896
      %v9898 = vpop.f32.mrb[0].mxu0
      %9899 = vmatprep.mubr.bf16.mxu0 0
      %9900 = vmatmul.mubr.bf16.gmra.mrb[0].mxu0 %v9094
      %v9901 = vpop.f32.mrb[0].mxu0
      %v9902 = vadd.f32 %v9613, %v9901
      %v9903 = vpop.f32.mrb[0].mxu0
      %v9904 = vpop.f32.mrb[0].mxu0
      %v9905 = vadd.f32 %v9616, %v9904
      %v9906 = vpop.f32.mrb[0].mxu0
      %9907 = vmatprep.mubr.bf16.mxu0 0
      %9908 = vmatmul.mubr.bf16.gmra.mrb[0].mxu0 %v9097
      %v9909 = vpop.f32.mrb[0].mxu0
      %v9910 = vadd.f32 %v9621, %v9909
      %v9911 = vpop.f32.mrb[0].mxu0
      %v9912 = vpop.f32.mrb[0].mxu0
      %v9913 = vadd.f32 %v9624, %v9912
      %v9914 = vpop.f32.mrb[0].mxu0
      %9915 = vmatprep.mubr.bf16.mxu0 0
      %9916 = vmatmul.mubr.bf16.gmra.mrb[0].mxu0 %v9100
      %v9917 = vpop.f32.mrb[0].mxu0
      %v9918 = vadd.f32 %v9629, %v9917
      %v9919 = vpop.f32.mrb[0].mxu0
      %v9920 = vpop.f32.mrb[0].mxu0
      %v9921 = vadd.f32 %v9632, %v9920
      %v9922 = vpop.f32.mrb[0].mxu0
      %9923 = vmatprep.mubr.bf16.mxu0 0
      %9924 = vmatmul.mubr.bf16.gmra.mrb[0].mxu0 %v9103
      %v9925 = vpop.f32.mrb[0].mxu0
      %v9926 = vadd.f32 %v9637, %v9925
      %v9927 = vpop.f32.mrb[0].mxu0
      %v9928 = vpop.f32.mrb[0].mxu0
      %v9929 = vadd.f32 %v9640, %v9928
      %v9930 = vpop.f32.mrb[0].mxu0
      %9931 = vmatprep.mubr.bf16.mxu0 0
      %9932 = vmatmul.mubr.bf16.gmra.mrb[0].mxu0 %v9106
      %v9933 = vpop.f32.mrb[0].mxu0
      %v9934 = vadd.f32 %v9645, %v9933
      %v9935 = vpop.f32.mrb[0].mxu0
      %v9936 = vpop.f32.mrb[0].mxu0
      %v9937 = vadd.f32 %v9648, %v9936
      %v9938 = vpop.f32.mrb[0].mxu0
      %9939 = vmatprep.mubr.bf16.mxu0 0
      %9940 = vmatmul.mubr.bf16.gmra.mrb[0].mxu0 %v9109
      %v9941 = vpop.f32.mrb[0].mxu0
      %v9942 = vadd.f32 %v9653, %v9941
      %v9943 = vpop.f32.mrb[0].mxu0
      %v9944 = vpop.f32.mrb[0].mxu0
      %v9945 = vadd.f32 %v9656, %v9944
      %v9946 = vpop.f32.mrb[0].mxu0
      %9947 = vmatprep.mubr.bf16.mxu0 0
      %9948 = vmatmul.mubr.bf16.gmra.mrb[0].mxu0 %v9112
      %v9949 = vpop.f32.mrb[0].mxu0
      %v9950 = vadd.f32 %v9661, %v9949
      %v9951 = vpop.f32.mrb[0].mxu0
      %v9952 = vpop.f32.mrb[0].mxu0
      %v9953 = vadd.f32 %v9664, %v9952
      %v9954 = vpop.f32.mrb[0].mxu0
      %9955 = vmatprep.mubr.bf16.mxu0 0
      %9956 = vmatmul.mubr.bf16.gmra.mrb[0].mxu0 %v9115
      %v9957 = vpop.f32.mrb[0].mxu0
      %v9958 = vadd.f32 %v9669, %v9957
      %v9959 = vpop.f32.mrb[0].mxu0
      %v9960 = vpop.f32.mrb[0].mxu0
      %v9961 = vadd.f32 %v9672, %v9960
      %v9962 = vpop.f32.mrb[0].mxu0
      %9963 = vmatprep.mubr.bf16.mxu0 0
      %9964 = vmatmul.mubr.bf16.gmra.mrb[0].mxu0 %v9118
      %v9965 = vpop.f32.mrb[0].mxu0
      %v9966 = vadd.f32 %v9677, %v9965
      %v9967 = vpop.f32.mrb[0].mxu0
      %v9968 = vpop.f32.mrb[0].mxu0
      %v9969 = vadd.f32 %v9680, %v9968
      %v9970 = vpop.f32.mrb[0].mxu0
      %9971 = vmatprep.mubr.bf16.mxu0 0
      %9972 = vmatmul.mubr.bf16.gmra.mrb[0].mxu0 %v9121
      %v9973 = vpop.f32.mrb[0].mxu0
      %v9974 = vadd.f32 %v9685, %v9973
      %v9975 = vpop.f32.mrb[0].mxu0
      %v9976 = vpop.f32.mrb[0].mxu0
      %v9977 = vadd.f32 %v9688, %v9976
      %v9978 = vpop.f32.mrb[0].mxu0
      %9979 = vmatprep.mubr.bf16.mxu0 0
      %9980 = vmatmul.mubr.bf16.gmra.mrb[0].mxu0 %v9124
      %v9981 = vpop.f32.mrb[0].mxu0
      %v9982 = vadd.f32 %v9693, %v9981
      %v9983 = vpop.f32.mrb[0].mxu0
      %v9984 = vpop.f32.mrb[0].mxu0
      %v9985 = vadd.f32 %v9696, %v9984
      %v9986 = vpop.f32.mrb[0].mxu0
      %9987 = vmatprep.mubr.bf16.mxu0 0
      %9988 = vmatmul.mubr.bf16.gmra.mrb[0].mxu0 %v9127
      %v9989 = vpop.f32.mrb[0].mxu0
      %v9990 = vadd.f32 %v9701, %v9989
      %v9991 = vpop.f32.mrb[0].mxu0
      %v9992 = vpop.f32.mrb[0].mxu0
      %v9993 = vadd.f32 %v9704, %v9992
      %v9994 = vpop.f32.mrb[0].mxu0
      %9995 = vdwg.mxu0
      %v9997 = vsel %vm7287, %v7933, 0
      %v10000 = vsel %vm7287, %v7937, 0
      %v10003 = vsel %vm7287, %v7941, 0
      %v10006 = vsel %vm7287, %v7945, 0
      %v10009 = vsel %vm7287, %v7950, 0
      %v10012 = vsel %vm7287, %v7954, 0
      %v10015 = vsel %vm7287, %v7958, 0
      %v10018 = vsel %vm7287, %v7962, 0
      %v10021 = vsel %vm7287, %v7967, 0
      %v10024 = vsel %vm7287, %v7971, 0
      %v10027 = vsel %vm7287, %v7975, 0
      %v10030 = vsel %vm7287, %v7979, 0
      %v10033 = vsel %vm7287, %v7984, 0
      %v10036 = vsel %vm7287, %v7988, 0
      %v10039 = vsel %vm7287, %v7992, 0
      %v10042 = vsel %vm7287, %v7996, 0
      %v10045 = vsel %vm7287, %v8001, 0
      %v10048 = vsel %vm7287, %v8005, 0
      %v10051 = vsel %vm7287, %v8009, 0
      %v10054 = vsel %vm7287, %v8013, 0
      %v10057 = vsel %vm7287, %v8018, 0
      %v10060 = vsel %vm7287, %v8022, 0
      %v10063 = vsel %vm7287, %v8026, 0
      %v10066 = vsel %vm7287, %v8030, 0
      %v10069 = vsel %vm7287, %v8035, 0
      %v10072 = vsel %vm7287, %v8039, 0
      %v10075 = vsel %vm7287, %v8043, 0
      %v10078 = vsel %vm7287, %v8047, 0
      %v10081 = vsel %vm7287, %v8052, 0
      %v10084 = vsel %vm7287, %v8056, 0
      %v10087 = vsel %vm7287, %v8060, 0
      %v10090 = vsel %vm7287, %v8064, 0
      %10092 = vmatprep.subr.bf16.mxu0 0
      %10093 = vmatpush1.bf16.msra.mxu0 %v8961
      %10094 = vmatprep.subr.bf16.mxu0 0
      %10095 = vmatpush1.bf16.msra.mxu0 %v8962
      %10096 = vmatprep.subr.bf16.mxu0 0
      %10097 = vmatpush1.bf16.msra.mxu0 %v8963
      %10098 = vmatprep.subr.bf16.mxu0 0
      %10099 = vmatpush1.bf16.msra.mxu0 %v8964
      %10100 = vmatprep.subr.bf16.mxu0 0
      %10101 = vmatpush1.bf16.msra.mxu0 %v8965
      %10102 = vmatprep.subr.bf16.mxu0 0
      %10103 = vmatpush1.bf16.msra.mxu0 %v8966
      %10104 = vmatprep.subr.bf16.mxu0 0
      %10105 = vmatpush1.bf16.msra.mxu0 %v8967
      %10106 = vmatprep.subr.bf16.mxu0 0
      %10107 = vmatpush1.bf16.msra.mxu0 %v8968
      %10108 = vmatprep.subr.bf16.mxu0 0
      %10109 = vmatpush1.bf16.msra.mxu0 %v8969
      %10110 = vmatprep.subr.bf16.mxu0 0
      %10111 = vmatpush1.bf16.msra.mxu0 %v8970
      %10112 = vmatprep.subr.bf16.mxu0 0
      %10113 = vmatpush1.bf16.msra.mxu0 %v8971
      %10114 = vmatprep.subr.bf16.mxu0 0
      %10115 = vmatpush1.bf16.msra.mxu0 %v8972
      %10116 = vmatprep.subr.bf16.mxu0 0
      %10117 = vmatpush1.bf16.msra.mxu0 %v8973
      %10118 = vmatprep.subr.bf16.mxu0 0
      %10119 = vmatpush1.bf16.msra.mxu0 %v8974
      %10120 = vmatprep.subr.bf16.mxu0 0
      %10121 = vmatpush1.bf16.msra.mxu0 %v8975
      %10122 = vmatprep.subr.bf16.mxu0 0
      %10123 = vmatpush1.bf16.msra.mxu0 %v8976
      %10124 = vmatprep.mubr.bf16.mxu0 %v7930
      %10125 = vmatmul.mubr.bf16.gmra.mrb[0].mxu0 %v7929
      %v10126 = vpop.f32.mrb[0].mxu0
      %v10127 = vadd.f32 %v9742, %v10126
      %v10128 = vpop.f32.mrb[0].mxu0
      %v10129 = vpop.f32.mrb[0].mxu0
      %v10130 = vadd.f32 %v9745, %v10129
      %v10131 = vpop.f32.mrb[0].mxu0
      %10132 = vmatprep.mubr.bf16.mxu0 %v7934
      %10133 = vmatmul.mubr.bf16.gmra.mrb[0].mxu0 %v7932
      %v10134 = vpop.f32.mrb[0].mxu0
      %v10135 = vadd.f32 %v9750, %v10134
      %v10136 = vpop.f32.mrb[0].mxu0
      %v10137 = vpop.f32.mrb[0].mxu0
      %v10138 = vadd.f32 %v9753, %v10137
      %v10139 = vpop.f32.mrb[0].mxu0
      %10140 = vmatprep.mubr.bf16.mxu0 %v7938
      %10141 = vmatmul.mubr.bf16.gmra.mrb[0].mxu0 %v7936
      %v10142 = vpop.f32.mrb[0].mxu0
      %v10143 = vadd.f32 %v9758, %v10142
      %v10144 = vpop.f32.mrb[0].mxu0
      %v10145 = vpop.f32.mrb[0].mxu0
      %v10146 = vadd.f32 %v9761, %v10145
      %v10147 = vpop.f32.mrb[0].mxu0
      %10148 = vmatprep.mubr.bf16.mxu0 %v7942
      %10149 = vmatmul.mubr.bf16.gmra.mrb[0].mxu0 %v7940
      %v10150 = vpop.f32.mrb[0].mxu0
      %v10151 = vadd.f32 %v9766, %v10150
      %v10152 = vpop.f32.mrb[0].mxu0
      %v10153 = vpop.f32.mrb[0].mxu0
      %v10154 = vadd.f32 %v9769, %v10153
      %v10155 = vpop.f32.mrb[0].mxu0
      %10156 = vmatprep.mubr.bf16.mxu0 %v7947
      %10157 = vmatmul.mubr.bf16.gmra.mrb[0].mxu0 %v7946
      %v10158 = vpop.f32.mrb[0].mxu0
      %v10159 = vadd.f32 %v9774, %v10158
      %v10160 = vpop.f32.mrb[0].mxu0
      %v10161 = vpop.f32.mrb[0].mxu0
      %v10162 = vadd.f32 %v9777, %v10161
      %v10163 = vpop.f32.mrb[0].mxu0
      %10164 = vmatprep.mubr.bf16.mxu0 %v7951
      %10165 = vmatmul.mubr.bf16.gmra.mrb[0].mxu0 %v7949
      %v10166 = vpop.f32.mrb[0].mxu0
      %v10167 = vadd.f32 %v9782, %v10166
      %v10168 = vpop.f32.mrb[0].mxu0
      %v10169 = vpop.f32.mrb[0].mxu0
      %v10170 = vadd.f32 %v9785, %v10169
      %v10171 = vpop.f32.mrb[0].mxu0
      %10172 = vmatprep.mubr.bf16.mxu0 %v7955
      %10173 = vmatmul.mubr.bf16.gmra.mrb[0].mxu0 %v7953
      %v10174 = vpop.f32.mrb[0].mxu0
      %v10175 = vadd.f32 %v9790, %v10174
      %v10176 = vpop.f32.mrb[0].mxu0
      %v10177 = vpop.f32.mrb[0].mxu0
      %v10178 = vadd.f32 %v9793, %v10177
      %v10179 = vpop.f32.mrb[0].mxu0
      %10180 = vmatprep.mubr.bf16.mxu0 %v7959
      %10181 = vmatmul.mubr.bf16.gmra.mrb[0].mxu0 %v7957
      %v10182 = vpop.f32.mrb[0].mxu0
      %v10183 = vadd.f32 %v9798, %v10182
      %v10184 = vpop.f32.mrb[0].mxu0
      %v10185 = vpop.f32.mrb[0].mxu0
      %v10186 = vadd.f32 %v9801, %v10185
      %v10187 = vpop.f32.mrb[0].mxu0
      %10188 = vmatprep.mubr.bf16.mxu0 %v7964
      %10189 = vmatmul.mubr.bf16.gmra.mrb[0].mxu0 %v7963
      %v10190 = vpop.f32.mrb[0].mxu0
      %v10191 = vadd.f32 %v9806, %v10190
      %v10192 = vpop.f32.mrb[0].mxu0
      %v10193 = vpop.f32.mrb[0].mxu0
      %v10194 = vadd.f32 %v9809, %v10193
      %v10195 = vpop.f32.mrb[0].mxu0
      %10196 = vmatprep.mubr.bf16.mxu0 %v7968
      %10197 = vmatmul.mubr.bf16.gmra.mrb[0].mxu0 %v7966
      %v10198 = vpop.f32.mrb[0].mxu0
      %v10199 = vadd.f32 %v9814, %v10198
      %v10200 = vpop.f32.mrb[0].mxu0
      %v10201 = vpop.f32.mrb[0].mxu0
      %v10202 = vadd.f32 %v9817, %v10201
      %v10203 = vpop.f32.mrb[0].mxu0
      %10204 = vmatprep.mubr.bf16.mxu0 %v7972
      %10205 = vmatmul.mubr.bf16.gmra.mrb[0].mxu0 %v7970
      %v10206 = vpop.f32.mrb[0].mxu0
      %v10207 = vadd.f32 %v9822, %v10206
      %v10208 = vpop.f32.mrb[0].mxu0
      %v10209 = vpop.f32.mrb[0].mxu0
      %v10210 = vadd.f32 %v9825, %v10209
      %v10211 = vpop.f32.mrb[0].mxu0
      %10212 = vmatprep.mubr.bf16.mxu0 %v7976
      %10213 = vmatmul.mubr.bf16.gmra.mrb[0].mxu0 %v7974
      %v10214 = vpop.f32.mrb[0].mxu0
      %v10215 = vadd.f32 %v9830, %v10214
      %v10216 = vpop.f32.mrb[0].mxu0
      %v10217 = vpop.f32.mrb[0].mxu0
      %v10218 = vadd.f32 %v9833, %v10217
      %v10219 = vpop.f32.mrb[0].mxu0
      %10220 = vmatprep.mubr.bf16.mxu0 %v7981
      %10221 = vmatmul.mubr.bf16.gmra.mrb[0].mxu0 %v7980
      %v10222 = vpop.f32.mrb[0].mxu0
      %v10223 = vadd.f32 %v9838, %v10222
      %v10224 = vpop.f32.mrb[0].mxu0
      %v10225 = vpop.f32.mrb[0].mxu0
      %v10226 = vadd.f32 %v9841, %v10225
      %v10227 = vpop.f32.mrb[0].mxu0
      %10228 = vmatprep.mubr.bf16.mxu0 %v7985
      %10229 = vmatmul.mubr.bf16.gmra.mrb[0].mxu0 %v7983
      %v10230 = vpop.f32.mrb[0].mxu0
      %v10231 = vadd.f32 %v9846, %v10230
      %v10232 = vpop.f32.mrb[0].mxu0
      %v10233 = vpop.f32.mrb[0].mxu0
      %v10234 = vadd.f32 %v9849, %v10233
      %v10235 = vpop.f32.mrb[0].mxu0
      %10236 = vmatprep.mubr.bf16.mxu0 %v7989
      %10237 = vmatmul.mubr.bf16.gmra.mrb[0].mxu0 %v7987
      %v10238 = vpop.f32.mrb[0].mxu0
      %v10239 = vadd.f32 %v9854, %v10238
      %v10240 = vpop.f32.mrb[0].mxu0
      %v10241 = vpop.f32.mrb[0].mxu0
      %v10242 = vadd.f32 %v9857, %v10241
      %v10243 = vpop.f32.mrb[0].mxu0
      %10244 = vmatprep.mubr.bf16.mxu0 %v7993
      %10245 = vmatmul.mubr.bf16.gmra.mrb[0].mxu0 %v7991
      %v10246 = vpop.f32.mrb[0].mxu0
      %v10247 = vadd.f32 %v9862, %v10246
      %v10248 = vpop.f32.mrb[0].mxu0
      %v10249 = vpop.f32.mrb[0].mxu0
      %v10250 = vadd.f32 %v9865, %v10249
      %v10251 = vpop.f32.mrb[0].mxu0
      %10252 = vmatprep.mubr.bf16.mxu0 %v7998
      %10253 = vmatmul.mubr.bf16.gmra.mrb[0].mxu0 %v7997
      %v10254 = vpop.f32.mrb[0].mxu0
      %v10255 = vadd.f32 %v9870, %v10254
      %v10256 = vpop.f32.mrb[0].mxu0
      %v10257 = vpop.f32.mrb[0].mxu0
      %v10258 = vadd.f32 %v9873, %v10257
      %v10259 = vpop.f32.mrb[0].mxu0
      %10260 = vmatprep.mubr.bf16.mxu0 %v8002
      %10261 = vmatmul.mubr.bf16.gmra.mrb[0].mxu0 %v8000
      %v10262 = vpop.f32.mrb[0].mxu0
      %v10263 = vadd.f32 %v9878, %v10262
      %v10264 = vpop.f32.mrb[0].mxu0
      %v10265 = vpop.f32.mrb[0].mxu0
      %v10266 = vadd.f32 %v9881, %v10265
      %v10267 = vpop.f32.mrb[0].mxu0
      %10268 = vmatprep.mubr.bf16.mxu0 %v8006
      %10269 = vmatmul.mubr.bf16.gmra.mrb[0].mxu0 %v8004
      %v10270 = vpop.f32.mrb[0].mxu0
      %v10271 = vadd.f32 %v9886, %v10270
      %v10272 = vpop.f32.mrb[0].mxu0
      %v10273 = vpop.f32.mrb[0].mxu0
      %v10274 = vadd.f32 %v9889, %v10273
      %v10275 = vpop.f32.mrb[0].mxu0
      %10276 = vmatprep.mubr.bf16.mxu0 %v8010
      %10277 = vmatmul.mubr.bf16.gmra.mrb[0].mxu0 %v8008
      %v10278 = vpop.f32.mrb[0].mxu0
      %v10279 = vadd.f32 %v9894, %v10278
      %v10280 = vpop.f32.mrb[0].mxu0
      %v10281 = vpop.f32.mrb[0].mxu0
      %v10282 = vadd.f32 %v9897, %v10281
      %v10283 = vpop.f32.mrb[0].mxu0
      %10284 = vmatprep.mubr.bf16.mxu0 %v8015
      %10285 = vmatmul.mubr.bf16.gmra.mrb[0].mxu0 %v8014
      %v10286 = vpop.f32.mrb[0].mxu0
      %v10287 = vadd.f32 %v9902, %v10286
      %v10288 = vpop.f32.mrb[0].mxu0
      %v10289 = vpop.f32.mrb[0].mxu0
      %v10290 = vadd.f32 %v9905, %v10289
      %v10291 = vpop.f32.mrb[0].mxu0
      %10292 = vmatprep.mubr.bf16.mxu0 %v8019
      %10293 = vmatmul.mubr.bf16.gmra.mrb[0].mxu0 %v8017
      %v10294 = vpop.f32.mrb[0].mxu0
      %v10295 = vadd.f32 %v9910, %v10294
      %v10296 = vpop.f32.mrb[0].mxu0
      %v10297 = vpop.f32.mrb[0].mxu0
      %v10298 = vadd.f32 %v9913, %v10297
      %v10299 = vpop.f32.mrb[0].mxu0
      %10300 = vmatprep.mubr.bf16.mxu0 %v8023
      %10301 = vmatmul.mubr.bf16.gmra.mrb[0].mxu0 %v8021
      %v10302 = vpop.f32.mrb[0].mxu0
      %v10303 = vadd.f32 %v9918, %v10302
      %v10304 = vpop.f32.mrb[0].mxu0
      %v10305 = vpop.f32.mrb[0].mxu0
      %v10306 = vadd.f32 %v9921, %v10305
      %v10307 = vpop.f32.mrb[0].mxu0
      %10308 = vmatprep.mubr.bf16.mxu0 %v8027
      %10309 = vmatmul.mubr.bf16.gmra.mrb[0].mxu0 %v8025
      %v10310 = vpop.f32.mrb[0].mxu0
      %v10311 = vadd.f32 %v9926, %v10310
      %v10312 = vpop.f32.mrb[0].mxu0
      %v10313 = vpop.f32.mrb[0].mxu0
      %v10314 = vadd.f32 %v9929, %v10313
      %v10315 = vpop.f32.mrb[0].mxu0
      %10316 = vmatprep.mubr.bf16.mxu0 %v8032
      %10317 = vmatmul.mubr.bf16.gmra.mrb[0].mxu0 %v8031
      %v10318 = vpop.f32.mrb[0].mxu0
      %v10319 = vadd.f32 %v9934, %v10318
      %v10320 = vpop.f32.mrb[0].mxu0
      %v10321 = vpop.f32.mrb[0].mxu0
      %v10322 = vadd.f32 %v9937, %v10321
      %v10323 = vpop.f32.mrb[0].mxu0
      %10324 = vmatprep.mubr.bf16.mxu0 %v8036
      %10325 = vmatmul.mubr.bf16.gmra.mrb[0].mxu0 %v8034
      %v10326 = vpop.f32.mrb[0].mxu0
      %v10327 = vadd.f32 %v9942, %v10326
      %v10328 = vpop.f32.mrb[0].mxu0
      %v10329 = vpop.f32.mrb[0].mxu0
      %v10330 = vadd.f32 %v9945, %v10329
      %v10331 = vpop.f32.mrb[0].mxu0
      %10332 = vmatprep.mubr.bf16.mxu0 %v8040
      %10333 = vmatmul.mubr.bf16.gmra.mrb[0].mxu0 %v8038
      %v10334 = vpop.f32.mrb[0].mxu0
      %v10335 = vadd.f32 %v9950, %v10334
      %v10336 = vpop.f32.mrb[0].mxu0
      %v10337 = vpop.f32.mrb[0].mxu0
      %v10338 = vadd.f32 %v9953, %v10337
      %v10339 = vpop.f32.mrb[0].mxu0
      %10340 = vmatprep.mubr.bf16.mxu0 %v8044
      %10341 = vmatmul.mubr.bf16.gmra.mrb[0].mxu0 %v8042
      %v10342 = vpop.f32.mrb[0].mxu0
      %v10343 = vadd.f32 %v9958, %v10342
      %v10344 = vpop.f32.mrb[0].mxu0
      %v10345 = vpop.f32.mrb[0].mxu0
      %v10346 = vadd.f32 %v9961, %v10345
      %v10347 = vpop.f32.mrb[0].mxu0
      %10348 = vmatprep.mubr.bf16.mxu0 %v8049
      %10349 = vmatmul.mubr.bf16.gmra.mrb[0].mxu0 %v8048
      %v10350 = vpop.f32.mrb[0].mxu0
      %v10351 = vadd.f32 %v9966, %v10350
      %v10352 = vpop.f32.mrb[0].mxu0
      %v10353 = vpop.f32.mrb[0].mxu0
      %v10354 = vadd.f32 %v9969, %v10353
      %v10355 = vpop.f32.mrb[0].mxu0
      %10356 = vmatprep.mubr.bf16.mxu0 %v8053
      %10357 = vmatmul.mubr.bf16.gmra.mrb[0].mxu0 %v8051
      %v10358 = vpop.f32.mrb[0].mxu0
      %v10359 = vadd.f32 %v9974, %v10358
      %v10360 = vpop.f32.mrb[0].mxu0
      %v10361 = vpop.f32.mrb[0].mxu0
      %v10362 = vadd.f32 %v9977, %v10361
      %v10363 = vpop.f32.mrb[0].mxu0
      %10364 = vmatprep.mubr.bf16.mxu0 %v8057
      %10365 = vmatmul.mubr.bf16.gmra.mrb[0].mxu0 %v8055
      %v10366 = vpop.f32.mrb[0].mxu0
      %v10367 = vadd.f32 %v9982, %v10366
      %v10368 = vpop.f32.mrb[0].mxu0
      %v10369 = vpop.f32.mrb[0].mxu0
      %v10370 = vadd.f32 %v9985, %v10369
      %v10371 = vpop.f32.mrb[0].mxu0
      %10372 = vmatprep.mubr.bf16.mxu0 %v8061
      %10373 = vmatmul.mubr.bf16.gmra.mrb[0].mxu0 %v8059
      %v10374 = vpop.f32.mrb[0].mxu0
      %v10375 = vadd.f32 %v9990, %v10374
      %v10376 = vpop.f32.mrb[0].mxu0
      %v10377 = vpop.f32.mrb[0].mxu0
      %v10378 = vadd.f32 %v9993, %v10377
      %v10379 = vpop.f32.mrb[0].mxu0
      %10380 = vdwg.mxu0
      %10381 = vmatprep.subr.bf16.mxu0 0
      %10382 = vmatpush1.bf16.msra.mxu0 %v8977
      %10383 = vmatprep.subr.bf16.mxu0 0
      %10384 = vmatpush1.bf16.msra.mxu0 %v8978
      %10385 = vmatprep.subr.bf16.mxu0 0
      %10386 = vmatpush1.bf16.msra.mxu0 %v8979
      %10387 = vmatprep.subr.bf16.mxu0 0
      %10388 = vmatpush1.bf16.msra.mxu0 %v8980
      %10389 = vmatprep.subr.bf16.mxu0 0
      %10390 = vmatpush1.bf16.msra.mxu0 %v8981
      %10391 = vmatprep.subr.bf16.mxu0 0
      %10392 = vmatpush1.bf16.msra.mxu0 %v8982
      %10393 = vmatprep.subr.bf16.mxu0 0
      %10394 = vmatpush1.bf16.msra.mxu0 %v8983
      %10395 = vmatprep.subr.bf16.mxu0 0
      %10396 = vmatpush1.bf16.msra.mxu0 %v8984
      %10397 = vmatprep.subr.bf16.mxu0 0
      %10398 = vmatpush1.bf16.msra.mxu0 %v8985
      %10399 = vmatprep.subr.bf16.mxu0 0
      %10400 = vmatpush1.bf16.msra.mxu0 %v8986
      %10401 = vmatprep.subr.bf16.mxu0 0
      %10402 = vmatpush1.bf16.msra.mxu0 %v8987
      %10403 = vmatprep.subr.bf16.mxu0 0
      %10404 = vmatpush1.bf16.msra.mxu0 %v8988
      %10405 = vmatprep.subr.bf16.mxu0 0
      %10406 = vmatpush1.bf16.msra.mxu0 %v8989
      %10407 = vmatprep.subr.bf16.mxu0 0
      %10408 = vmatpush1.bf16.msra.mxu0 %v8990
      %10409 = vmatprep.subr.bf16.mxu0 0
      %10410 = vmatpush1.bf16.msra.mxu0 %v8991
      %10411 = vmatprep.subr.bf16.mxu0 0
      %10412 = vmatpush1.bf16.msra.mxu0 %v8992
      %10413 = vmatprep.mubr.bf16.mxu0 %v7932
      %10414 = vmatmul.mubr.bf16.gmra.mrb[0].mxu0 %v7931
      %v10415 = vpop.f32.mrb[0].mxu0
      %v10416 = vadd.f32 %v10127, %v10415
      %v10417 = vpop.f32.mrb[0].mxu0
      %v10418 = vpop.f32.mrb[0].mxu0
      %v10419 = vadd.f32 %v10130, %v10418
      %v10420 = vpop.f32.mrb[0].mxu0
      %10421 = vmatprep.mubr.bf16.mxu0 %v7936
      %10422 = vmatmul.mubr.bf16.gmra.mrb[0].mxu0 %v7935
      %v10423 = vpop.f32.mrb[0].mxu0
      %v10424 = vadd.f32 %v10135, %v10423
      %v10425 = vpop.f32.mrb[0].mxu0
      %v10426 = vpop.f32.mrb[0].mxu0
      %v10427 = vadd.f32 %v10138, %v10426
      %v10428 = vpop.f32.mrb[0].mxu0
      %10429 = vmatprep.mubr.bf16.mxu0 %v7940
      %10430 = vmatmul.mubr.bf16.gmra.mrb[0].mxu0 %v7939
      %v10431 = vpop.f32.mrb[0].mxu0
      %v10432 = vadd.f32 %v10143, %v10431
      %v10433 = vpop.f32.mrb[0].mxu0
      %v10434 = vpop.f32.mrb[0].mxu0
      %v10435 = vadd.f32 %v10146, %v10434
      %v10436 = vpop.f32.mrb[0].mxu0
      %10437 = vmatprep.mubr.bf16.mxu0 %v7944
      %10438 = vmatmul.mubr.bf16.gmra.mrb[0].mxu0 %v7943
      %v10439 = vpop.f32.mrb[0].mxu0
      %v10440 = vadd.f32 %v10151, %v10439
      %v10441 = vpop.f32.mrb[0].mxu0
      %v10442 = vpop.f32.mrb[0].mxu0
      %v10443 = vadd.f32 %v10154, %v10442
      %v10444 = vpop.f32.mrb[0].mxu0
      %10445 = vmatprep.mubr.bf16.mxu0 %v7949
      %10446 = vmatmul.mubr.bf16.gmra.mrb[0].mxu0 %v7948
      %v10447 = vpop.f32.mrb[0].mxu0
      %v10448 = vadd.f32 %v10159, %v10447
      %v10449 = vpop.f32.mrb[0].mxu0
      %v10450 = vpop.f32.mrb[0].mxu0
      %v10451 = vadd.f32 %v10162, %v10450
      %v10452 = vpop.f32.mrb[0].mxu0
      %10453 = vmatprep.mubr.bf16.mxu0 %v7953
      %10454 = vmatmul.mubr.bf16.gmra.mrb[0].mxu0 %v7952
      %v10455 = vpop.f32.mrb[0].mxu0
      %v10456 = vadd.f32 %v10167, %v10455
      %v10457 = vpop.f32.mrb[0].mxu0
      %v10458 = vpop.f32.mrb[0].mxu0
      %v10459 = vadd.f32 %v10170, %v10458
      %v10460 = vpop.f32.mrb[0].mxu0
      %10461 = vmatprep.mubr.bf16.mxu0 %v7957
      %10462 = vmatmul.mubr.bf16.gmra.mrb[0].mxu0 %v7956
      %v10463 = vpop.f32.mrb[0].mxu0
      %v10464 = vadd.f32 %v10175, %v10463
      %v10465 = vpop.f32.mrb[0].mxu0
      %v10466 = vpop.f32.mrb[0].mxu0
      %v10467 = vadd.f32 %v10178, %v10466
      %v10468 = vpop.f32.mrb[0].mxu0
      %10469 = vmatprep.mubr.bf16.mxu0 %v7961
      %10470 = vmatmul.mubr.bf16.gmra.mrb[0].mxu0 %v7960
      %v10471 = vpop.f32.mrb[0].mxu0
      %v10472 = vadd.f32 %v10183, %v10471
      %v10473 = vpop.f32.mrb[0].mxu0
      %v10474 = vpop.f32.mrb[0].mxu0
      %v10475 = vadd.f32 %v10186, %v10474
      %v10476 = vpop.f32.mrb[0].mxu0
      %10477 = vmatprep.mubr.bf16.mxu0 %v7966
      %10478 = vmatmul.mubr.bf16.gmra.mrb[0].mxu0 %v7965
      %v10479 = vpop.f32.mrb[0].mxu0
      %v10480 = vadd.f32 %v10191, %v10479
      %v10481 = vpop.f32.mrb[0].mxu0
      %v10482 = vpop.f32.mrb[0].mxu0
      %v10483 = vadd.f32 %v10194, %v10482
      %v10484 = vpop.f32.mrb[0].mxu0
      %10485 = vmatprep.mubr.bf16.mxu0 %v7970
      %10486 = vmatmul.mubr.bf16.gmra.mrb[0].mxu0 %v7969
      %v10487 = vpop.f32.mrb[0].mxu0
      %v10488 = vadd.f32 %v10199, %v10487
      %v10489 = vpop.f32.mrb[0].mxu0
      %v10490 = vpop.f32.mrb[0].mxu0
      %v10491 = vadd.f32 %v10202, %v10490
      %v10492 = vpop.f32.mrb[0].mxu0
      %10493 = vmatprep.mubr.bf16.mxu0 %v7974
      %10494 = vmatmul.mubr.bf16.gmra.mrb[0].mxu0 %v7973
      %v10495 = vpop.f32.mrb[0].mxu0
      %v10496 = vadd.f32 %v10207, %v10495
      %v10497 = vpop.f32.mrb[0].mxu0
      %v10498 = vpop.f32.mrb[0].mxu0
      %v10499 = vadd.f32 %v10210, %v10498
      %v10500 = vpop.f32.mrb[0].mxu0
      %10501 = vmatprep.mubr.bf16.mxu0 %v7978
      %10502 = vmatmul.mubr.bf16.gmra.mrb[0].mxu0 %v7977
      %v10503 = vpop.f32.mrb[0].mxu0
      %v10504 = vadd.f32 %v10215, %v10503
      %v10505 = vpop.f32.mrb[0].mxu0
      %v10506 = vpop.f32.mrb[0].mxu0
      %v10507 = vadd.f32 %v10218, %v10506
      %v10508 = vpop.f32.mrb[0].mxu0
      %10509 = vmatprep.mubr.bf16.mxu0 %v7983
      %10510 = vmatmul.mubr.bf16.gmra.mrb[0].mxu0 %v7982
      %v10511 = vpop.f32.mrb[0].mxu0
      %v10512 = vadd.f32 %v10223, %v10511
      %v10513 = vpop.f32.mrb[0].mxu0
      %v10514 = vpop.f32.mrb[0].mxu0
      %v10515 = vadd.f32 %v10226, %v10514
      %v10516 = vpop.f32.mrb[0].mxu0
      %10517 = vmatprep.mubr.bf16.mxu0 %v7987
      %10518 = vmatmul.mubr.bf16.gmra.mrb[0].mxu0 %v7986
      %v10519 = vpop.f32.mrb[0].mxu0
      %v10520 = vadd.f32 %v10231, %v10519
      %v10521 = vpop.f32.mrb[0].mxu0
      %v10522 = vpop.f32.mrb[0].mxu0
      %v10523 = vadd.f32 %v10234, %v10522
      %v10524 = vpop.f32.mrb[0].mxu0
      %10525 = vmatprep.mubr.bf16.mxu0 %v7991
      %10526 = vmatmul.mubr.bf16.gmra.mrb[0].mxu0 %v7990
      %v10527 = vpop.f32.mrb[0].mxu0
      %v10528 = vadd.f32 %v10239, %v10527
      %v10529 = vpop.f32.mrb[0].mxu0
      %v10530 = vpop.f32.mrb[0].mxu0
      %v10531 = vadd.f32 %v10242, %v10530
      %v10532 = vpop.f32.mrb[0].mxu0
      %10533 = vmatprep.mubr.bf16.mxu0 %v7995
      %10534 = vmatmul.mubr.bf16.gmra.mrb[0].mxu0 %v7994
      %v10535 = vpop.f32.mrb[0].mxu0
      %v10536 = vadd.f32 %v10247, %v10535
      %v10537 = vpop.f32.mrb[0].mxu0
      %v10538 = vpop.f32.mrb[0].mxu0
      %v10539 = vadd.f32 %v10250, %v10538
      %v10540 = vpop.f32.mrb[0].mxu0
      %10541 = vmatprep.mubr.bf16.mxu0 %v8000
      %10542 = vmatmul.mubr.bf16.gmra.mrb[0].mxu0 %v7999
      %v10543 = vpop.f32.mrb[0].mxu0
      %v10544 = vadd.f32 %v10255, %v10543
      %v10545 = vpop.f32.mrb[0].mxu0
      %v10546 = vpop.f32.mrb[0].mxu0
      %v10547 = vadd.f32 %v10258, %v10546
      %v10548 = vpop.f32.mrb[0].mxu0
      %10549 = vmatprep.mubr.bf16.mxu0 %v8004
      %10550 = vmatmul.mubr.bf16.gmra.mrb[0].mxu0 %v8003
      %v10551 = vpop.f32.mrb[0].mxu0
      %v10552 = vadd.f32 %v10263, %v10551
      %v10553 = vpop.f32.mrb[0].mxu0
      %v10554 = vpop.f32.mrb[0].mxu0
      %v10555 = vadd.f32 %v10266, %v10554
      %v10556 = vpop.f32.mrb[0].mxu0
      %10557 = vmatprep.mubr.bf16.mxu0 %v8008
      %10558 = vmatmul.mubr.bf16.gmra.mrb[0].mxu0 %v8007
      %v10559 = vpop.f32.mrb[0].mxu0
      %v10560 = vadd.f32 %v10271, %v10559
      %v10561 = vpop.f32.mrb[0].mxu0
      %v10562 = vpop.f32.mrb[0].mxu0
      %v10563 = vadd.f32 %v10274, %v10562
      %v10564 = vpop.f32.mrb[0].mxu0
      %10565 = vmatprep.mubr.bf16.mxu0 %v8012
      %10566 = vmatmul.mubr.bf16.gmra.mrb[0].mxu0 %v8011
      %v10567 = vpop.f32.mrb[0].mxu0
      %v10568 = vadd.f32 %v10279, %v10567
      %v10569 = vpop.f32.mrb[0].mxu0
      %v10570 = vpop.f32.mrb[0].mxu0
      %v10571 = vadd.f32 %v10282, %v10570
      %v10572 = vpop.f32.mrb[0].mxu0
      %10573 = vmatprep.mubr.bf16.mxu0 %v8017
      %10574 = vmatmul.mubr.bf16.gmra.mrb[0].mxu0 %v8016
      %v10575 = vpop.f32.mrb[0].mxu0
      %v10576 = vadd.f32 %v10287, %v10575
      %v10577 = vpop.f32.mrb[0].mxu0
      %v10578 = vpop.f32.mrb[0].mxu0
      %v10579 = vadd.f32 %v10290, %v10578
      %v10580 = vpop.f32.mrb[0].mxu0
      %10581 = vmatprep.mubr.bf16.mxu0 %v8021
      %10582 = vmatmul.mubr.bf16.gmra.mrb[0].mxu0 %v8020
      %v10583 = vpop.f32.mrb[0].mxu0
      %v10584 = vadd.f32 %v10295, %v10583
      %v10585 = vpop.f32.mrb[0].mxu0
      %v10586 = vpop.f32.mrb[0].mxu0
      %v10587 = vadd.f32 %v10298, %v10586
      %v10588 = vpop.f32.mrb[0].mxu0
      %10589 = vmatprep.mubr.bf16.mxu0 %v8025
      %10590 = vmatmul.mubr.bf16.gmra.mrb[0].mxu0 %v8024
      %v10591 = vpop.f32.mrb[0].mxu0
      %v10592 = vadd.f32 %v10303, %v10591
      %v10593 = vpop.f32.mrb[0].mxu0
      %v10594 = vpop.f32.mrb[0].mxu0
      %v10595 = vadd.f32 %v10306, %v10594
      %v10596 = vpop.f32.mrb[0].mxu0
      %10597 = vmatprep.mubr.bf16.mxu0 %v8029
      %10598 = vmatmul.mubr.bf16.gmra.mrb[0].mxu0 %v8028
      %v10599 = vpop.f32.mrb[0].mxu0
      %v10600 = vadd.f32 %v10311, %v10599
      %v10601 = vpop.f32.mrb[0].mxu0
      %v10602 = vpop.f32.mrb[0].mxu0
      %v10603 = vadd.f32 %v10314, %v10602
      %v10604 = vpop.f32.mrb[0].mxu0
      %10605 = vmatprep.mubr.bf16.mxu0 %v8034
      %10606 = vmatmul.mubr.bf16.gmra.mrb[0].mxu0 %v8033
      %v10607 = vpop.f32.mrb[0].mxu0
      %v10608 = vadd.f32 %v10319, %v10607
      %v10609 = vpop.f32.mrb[0].mxu0
      %v10610 = vpop.f32.mrb[0].mxu0
      %v10611 = vadd.f32 %v10322, %v10610
      %v10612 = vpop.f32.mrb[0].mxu0
      %10613 = vmatprep.mubr.bf16.mxu0 %v8038
      %10614 = vmatmul.mubr.bf16.gmra.mrb[0].mxu0 %v8037
      %v10615 = vpop.f32.mrb[0].mxu0
      %v10616 = vadd.f32 %v10327, %v10615
      %v10617 = vpop.f32.mrb[0].mxu0
      %v10618 = vpop.f32.mrb[0].mxu0
      %v10619 = vadd.f32 %v10330, %v10618
      %v10620 = vpop.f32.mrb[0].mxu0
      %10621 = vmatprep.mubr.bf16.mxu0 %v8042
      %10622 = vmatmul.mubr.bf16.gmra.mrb[0].mxu0 %v8041
      %v10623 = vpop.f32.mrb[0].mxu0
      %v10624 = vadd.f32 %v10335, %v10623
      %v10625 = vpop.f32.mrb[0].mxu0
      %v10626 = vpop.f32.mrb[0].mxu0
      %v10627 = vadd.f32 %v10338, %v10626
      %v10628 = vpop.f32.mrb[0].mxu0
      %10629 = vmatprep.mubr.bf16.mxu0 %v8046
      %10630 = vmatmul.mubr.bf16.gmra.mrb[0].mxu0 %v8045
      %v10631 = vpop.f32.mrb[0].mxu0
      %v10632 = vadd.f32 %v10343, %v10631
      %v10633 = vpop.f32.mrb[0].mxu0
      %v10634 = vpop.f32.mrb[0].mxu0
      %v10635 = vadd.f32 %v10346, %v10634
      %v10636 = vpop.f32.mrb[0].mxu0
      %10637 = vmatprep.mubr.bf16.mxu0 %v8051
      %10638 = vmatmul.mubr.bf16.gmra.mrb[0].mxu0 %v8050
      %v10639 = vpop.f32.mrb[0].mxu0
      %v10640 = vadd.f32 %v10351, %v10639
      %v10641 = vpop.f32.mrb[0].mxu0
      %v10642 = vpop.f32.mrb[0].mxu0
      %v10643 = vadd.f32 %v10354, %v10642
      %v10644 = vpop.f32.mrb[0].mxu0
      %10645 = vmatprep.mubr.bf16.mxu0 %v8055
      %10646 = vmatmul.mubr.bf16.gmra.mrb[0].mxu0 %v8054
      %v10647 = vpop.f32.mrb[0].mxu0
      %v10648 = vadd.f32 %v10359, %v10647
      %v10649 = vpop.f32.mrb[0].mxu0
      %v10650 = vpop.f32.mrb[0].mxu0
      %v10651 = vadd.f32 %v10362, %v10650
      %v10652 = vpop.f32.mrb[0].mxu0
      %10653 = vmatprep.mubr.bf16.mxu0 %v8059
      %10654 = vmatmul.mubr.bf16.gmra.mrb[0].mxu0 %v8058
      %v10655 = vpop.f32.mrb[0].mxu0
      %v10656 = vadd.f32 %v10367, %v10655
      %v10657 = vpop.f32.mrb[0].mxu0
      %v10658 = vpop.f32.mrb[0].mxu0
      %v10659 = vadd.f32 %v10370, %v10658
      %v10660 = vpop.f32.mrb[0].mxu0
      %10661 = vmatprep.mubr.bf16.mxu0 %v8063
      %10662 = vmatmul.mubr.bf16.gmra.mrb[0].mxu0 %v8062
      %v10663 = vpop.f32.mrb[0].mxu0
      %v10664 = vadd.f32 %v10375, %v10663
      %v10665 = vpop.f32.mrb[0].mxu0
      %v10666 = vpop.f32.mrb[0].mxu0
      %v10667 = vadd.f32 %v10378, %v10666
      %v10668 = vpop.f32.mrb[0].mxu0
      %10669 = vdwg.mxu0
      %10670 = vmatprep.subr.bf16.mxu0 0
      %10671 = vmatpush1.bf16.msra.mxu0 %v8993
      %10672 = vmatprep.subr.bf16.mxu0 0
      %10673 = vmatpush1.bf16.msra.mxu0 %v8994
      %10674 = vmatprep.subr.bf16.mxu0 0
      %10675 = vmatpush1.bf16.msra.mxu0 %v8995
      %10676 = vmatprep.subr.bf16.mxu0 0
      %10677 = vmatpush1.bf16.msra.mxu0 %v8996
      %10678 = vmatprep.subr.bf16.mxu0 0
      %10679 = vmatpush1.bf16.msra.mxu0 0
      %10680 = vmatprep.subr.bf16.mxu0 0
      %10681 = vmatpush1.bf16.msra.mxu0 0
      %10682 = vmatprep.subr.bf16.mxu0 0
      %10683 = vmatpush1.bf16.msra.mxu0 0
      %10684 = vmatprep.subr.bf16.mxu0 0
      %10685 = vmatpush1.bf16.msra.mxu0 0
      %10686 = vmatprep.subr.bf16.mxu0 0
      %10687 = vmatpush1.bf16.msra.mxu0 0
      %10688 = vmatprep.subr.bf16.mxu0 0
      %10689 = vmatpush1.bf16.msra.mxu0 0
      %10690 = vmatprep.subr.bf16.mxu0 0
      %10691 = vmatpush1.bf16.msra.mxu0 0
      %10692 = vmatprep.subr.bf16.mxu0 0
      %10693 = vmatpush1.bf16.msra.mxu0 0
      %10694 = vmatprep.subr.bf16.mxu0 0
      %10695 = vmatpush1.bf16.msra.mxu0 0
      %10696 = vmatprep.subr.bf16.mxu0 0
      %10697 = vmatpush1.bf16.msra.mxu0 0
      %10698 = vmatprep.subr.bf16.mxu0 0
      %10699 = vmatpush1.bf16.msra.mxu0 0
      %10700 = vmatprep.subr.bf16.mxu0 0
      %10701 = vmatpush1.bf16.msra.mxu0 0
      %10702 = vmatprep.mubr.bf16.mxu0 0
      %10703 = vmatmul.mubr.bf16.gmra.mrb[0].mxu0 %v9997
      %v10704 = vpop.f32.mrb[0].mxu0
      %v10705 = vadd.f32 %v10416, %v10704
      %v10706 = vpop.f32.mrb[0].mxu0
      %v10707 = vpop.f32.mrb[0].mxu0
      %v10708 = vadd.f32 %v10419, %v10707
      %v10709 = vpop.f32.mrb[0].mxu0
      %10710 = vmatprep.mubr.bf16.mxu0 0
      %10711 = vmatmul.mubr.bf16.gmra.mrb[0].mxu0 %v10000
      %v10712 = vpop.f32.mrb[0].mxu0
      %v10713 = vadd.f32 %v10424, %v10712
      %v10714 = vpop.f32.mrb[0].mxu0
      %v10715 = vpop.f32.mrb[0].mxu0
      %v10716 = vadd.f32 %v10427, %v10715
      %v10717 = vpop.f32.mrb[0].mxu0
      %10718 = vmatprep.mubr.bf16.mxu0 0
      %10719 = vmatmul.mubr.bf16.gmra.mrb[0].mxu0 %v10003
      %v10720 = vpop.f32.mrb[0].mxu0
      %v10721 = vadd.f32 %v10432, %v10720
      %v10722 = vpop.f32.mrb[0].mxu0
      %v10723 = vpop.f32.mrb[0].mxu0
      %v10724 = vadd.f32 %v10435, %v10723
      %v10725 = vpop.f32.mrb[0].mxu0
      %10726 = vmatprep.mubr.bf16.mxu0 0
      %10727 = vmatmul.mubr.bf16.gmra.mrb[0].mxu0 %v10006
      %v10728 = vpop.f32.mrb[0].mxu0
      %v10729 = vadd.f32 %v10440, %v10728
      %v10730 = vpop.f32.mrb[0].mxu0
      %v10731 = vpop.f32.mrb[0].mxu0
      %v10732 = vadd.f32 %v10443, %v10731
      %v10733 = vpop.f32.mrb[0].mxu0
      %10734 = vmatprep.mubr.bf16.mxu0 0
      %10735 = vmatmul.mubr.bf16.gmra.mrb[0].mxu0 %v10009
      %v10736 = vpop.f32.mrb[0].mxu0
      %v10737 = vadd.f32 %v10448, %v10736
      %v10738 = vpop.f32.mrb[0].mxu0
      %v10739 = vpop.f32.mrb[0].mxu0
      %v10740 = vadd.f32 %v10451, %v10739
      %v10741 = vpop.f32.mrb[0].mxu0
      %10742 = vmatprep.mubr.bf16.mxu0 0
      %10743 = vmatmul.mubr.bf16.gmra.mrb[0].mxu0 %v10012
      %v10744 = vpop.f32.mrb[0].mxu0
      %v10745 = vadd.f32 %v10456, %v10744
      %v10746 = vpop.f32.mrb[0].mxu0
      %v10747 = vpop.f32.mrb[0].mxu0
      %v10748 = vadd.f32 %v10459, %v10747
      %v10749 = vpop.f32.mrb[0].mxu0
      %10750 = vmatprep.mubr.bf16.mxu0 0
      %10751 = vmatmul.mubr.bf16.gmra.mrb[0].mxu0 %v10015
      %v10752 = vpop.f32.mrb[0].mxu0
      %v10753 = vadd.f32 %v10464, %v10752
      %v10754 = vpop.f32.mrb[0].mxu0
      %v10755 = vpop.f32.mrb[0].mxu0
      %v10756 = vadd.f32 %v10467, %v10755
      %v10757 = vpop.f32.mrb[0].mxu0
      %10758 = vmatprep.mubr.bf16.mxu0 0
      %10759 = vmatmul.mubr.bf16.gmra.mrb[0].mxu0 %v10018
      %v10760 = vpop.f32.mrb[0].mxu0
      %v10761 = vadd.f32 %v10472, %v10760
      %v10762 = vpop.f32.mrb[0].mxu0
      %v10763 = vpop.f32.mrb[0].mxu0
      %v10764 = vadd.f32 %v10475, %v10763
      %v10765 = vpop.f32.mrb[0].mxu0
      %10766 = vmatprep.mubr.bf16.mxu0 0
      %10767 = vmatmul.mubr.bf16.gmra.mrb[0].mxu0 %v10021
      %v10768 = vpop.f32.mrb[0].mxu0
      %v10769 = vadd.f32 %v10480, %v10768
      %v10770 = vpop.f32.mrb[0].mxu0
      %v10771 = vpop.f32.mrb[0].mxu0
      %v10772 = vadd.f32 %v10483, %v10771
      %v10773 = vpop.f32.mrb[0].mxu0
      %10774 = vmatprep.mubr.bf16.mxu0 0
      %10775 = vmatmul.mubr.bf16.gmra.mrb[0].mxu0 %v10024
      %v10776 = vpop.f32.mrb[0].mxu0
      %v10777 = vadd.f32 %v10488, %v10776
      %v10778 = vpop.f32.mrb[0].mxu0
      %v10779 = vpop.f32.mrb[0].mxu0
      %v10780 = vadd.f32 %v10491, %v10779
      %v10781 = vpop.f32.mrb[0].mxu0
      %10782 = vmatprep.mubr.bf16.mxu0 0
      %10783 = vmatmul.mubr.bf16.gmra.mrb[0].mxu0 %v10027
      %v10784 = vpop.f32.mrb[0].mxu0
      %v10785 = vadd.f32 %v10496, %v10784
      %v10786 = vpop.f32.mrb[0].mxu0
      %v10787 = vpop.f32.mrb[0].mxu0
      %v10788 = vadd.f32 %v10499, %v10787
      %v10789 = vpop.f32.mrb[0].mxu0
      %10790 = vmatprep.mubr.bf16.mxu0 0
      %10791 = vmatmul.mubr.bf16.gmra.mrb[0].mxu0 %v10030
      %v10792 = vpop.f32.mrb[0].mxu0
      %v10793 = vadd.f32 %v10504, %v10792
      %v10794 = vpop.f32.mrb[0].mxu0
      %v10795 = vpop.f32.mrb[0].mxu0
      %v10796 = vadd.f32 %v10507, %v10795
      %v10797 = vpop.f32.mrb[0].mxu0
      %10798 = vmatprep.mubr.bf16.mxu0 0
      %10799 = vmatmul.mubr.bf16.gmra.mrb[0].mxu0 %v10033
      %v10800 = vpop.f32.mrb[0].mxu0
      %v10801 = vadd.f32 %v10512, %v10800
      %v10802 = vpop.f32.mrb[0].mxu0
      %v10803 = vpop.f32.mrb[0].mxu0
      %v10804 = vadd.f32 %v10515, %v10803
      %v10805 = vpop.f32.mrb[0].mxu0
      %10806 = vmatprep.mubr.bf16.mxu0 0
      %10807 = vmatmul.mubr.bf16.gmra.mrb[0].mxu0 %v10036
      %v10808 = vpop.f32.mrb[0].mxu0
      %v10809 = vadd.f32 %v10520, %v10808
      %v10810 = vpop.f32.mrb[0].mxu0
      %v10811 = vpop.f32.mrb[0].mxu0
      %v10812 = vadd.f32 %v10523, %v10811
      %v10813 = vpop.f32.mrb[0].mxu0
      %10814 = vmatprep.mubr.bf16.mxu0 0
      %10815 = vmatmul.mubr.bf16.gmra.mrb[0].mxu0 %v10039
      %v10816 = vpop.f32.mrb[0].mxu0
      %v10817 = vadd.f32 %v10528, %v10816
      %v10818 = vpop.f32.mrb[0].mxu0
      %v10819 = vpop.f32.mrb[0].mxu0
      %v10820 = vadd.f32 %v10531, %v10819
      %v10821 = vpop.f32.mrb[0].mxu0
      %10822 = vmatprep.mubr.bf16.mxu0 0
      %10823 = vmatmul.mubr.bf16.gmra.mrb[0].mxu0 %v10042
      %v10824 = vpop.f32.mrb[0].mxu0
      %v10825 = vadd.f32 %v10536, %v10824
      %v10826 = vpop.f32.mrb[0].mxu0
      %v10827 = vpop.f32.mrb[0].mxu0
      %v10828 = vadd.f32 %v10539, %v10827
      %v10829 = vpop.f32.mrb[0].mxu0
      %10830 = vmatprep.mubr.bf16.mxu0 0
      %10831 = vmatmul.mubr.bf16.gmra.mrb[0].mxu0 %v10045
      %v10832 = vpop.f32.mrb[0].mxu0
      %v10833 = vadd.f32 %v10544, %v10832
      %v10834 = vpop.f32.mrb[0].mxu0
      %v10835 = vpop.f32.mrb[0].mxu0
      %v10836 = vadd.f32 %v10547, %v10835
      %v10837 = vpop.f32.mrb[0].mxu0
      %10838 = vmatprep.mubr.bf16.mxu0 0
      %10839 = vmatmul.mubr.bf16.gmra.mrb[0].mxu0 %v10048
      %v10840 = vpop.f32.mrb[0].mxu0
      %v10841 = vadd.f32 %v10552, %v10840
      %v10842 = vpop.f32.mrb[0].mxu0
      %v10843 = vpop.f32.mrb[0].mxu0
      %v10844 = vadd.f32 %v10555, %v10843
      %v10845 = vpop.f32.mrb[0].mxu0
      %10846 = vmatprep.mubr.bf16.mxu0 0
      %10847 = vmatmul.mubr.bf16.gmra.mrb[0].mxu0 %v10051
      %v10848 = vpop.f32.mrb[0].mxu0
      %v10849 = vadd.f32 %v10560, %v10848
      %v10850 = vpop.f32.mrb[0].mxu0
      %v10851 = vpop.f32.mrb[0].mxu0
      %v10852 = vadd.f32 %v10563, %v10851
      %v10853 = vpop.f32.mrb[0].mxu0
      %10854 = vmatprep.mubr.bf16.mxu0 0
      %10855 = vmatmul.mubr.bf16.gmra.mrb[0].mxu0 %v10054
      %v10856 = vpop.f32.mrb[0].mxu0
      %v10857 = vadd.f32 %v10568, %v10856
      %v10858 = vpop.f32.mrb[0].mxu0
      %v10859 = vpop.f32.mrb[0].mxu0
      %v10860 = vadd.f32 %v10571, %v10859
      %v10861 = vpop.f32.mrb[0].mxu0
      %10862 = vmatprep.mubr.bf16.mxu0 0
      %10863 = vmatmul.mubr.bf16.gmra.mrb[0].mxu0 %v10057
      %v10864 = vpop.f32.mrb[0].mxu0
      %v10865 = vadd.f32 %v10576, %v10864
      %v10866 = vpop.f32.mrb[0].mxu0
      %v10867 = vpop.f32.mrb[0].mxu0
      %v10868 = vadd.f32 %v10579, %v10867
      %v10869 = vpop.f32.mrb[0].mxu0
      %10870 = vmatprep.mubr.bf16.mxu0 0
      %10871 = vmatmul.mubr.bf16.gmra.mrb[0].mxu0 %v10060
      %v10872 = vpop.f32.mrb[0].mxu0
      %v10873 = vadd.f32 %v10584, %v10872
      %v10874 = vpop.f32.mrb[0].mxu0
      %v10875 = vpop.f32.mrb[0].mxu0
      %v10876 = vadd.f32 %v10587, %v10875
      %v10877 = vpop.f32.mrb[0].mxu0
      %10878 = vmatprep.mubr.bf16.mxu0 0
      %10879 = vmatmul.mubr.bf16.gmra.mrb[0].mxu0 %v10063
      %v10880 = vpop.f32.mrb[0].mxu0
      %v10881 = vadd.f32 %v10592, %v10880
      %v10882 = vpop.f32.mrb[0].mxu0
      %v10883 = vpop.f32.mrb[0].mxu0
      %v10884 = vadd.f32 %v10595, %v10883
      %v10885 = vpop.f32.mrb[0].mxu0
      %10886 = vmatprep.mubr.bf16.mxu0 0
      %10887 = vmatmul.mubr.bf16.gmra.mrb[0].mxu0 %v10066
      %v10888 = vpop.f32.mrb[0].mxu0
      %v10889 = vadd.f32 %v10600, %v10888
      %v10890 = vpop.f32.mrb[0].mxu0
      %v10891 = vpop.f32.mrb[0].mxu0
      %v10892 = vadd.f32 %v10603, %v10891
      %v10893 = vpop.f32.mrb[0].mxu0
      %10894 = vmatprep.mubr.bf16.mxu0 0
      %10895 = vmatmul.mubr.bf16.gmra.mrb[0].mxu0 %v10069
      %v10896 = vpop.f32.mrb[0].mxu0
      %v10897 = vadd.f32 %v10608, %v10896
      %v10898 = vpop.f32.mrb[0].mxu0
      %v10899 = vpop.f32.mrb[0].mxu0
      %v10900 = vadd.f32 %v10611, %v10899
      %v10901 = vpop.f32.mrb[0].mxu0
      %10902 = vmatprep.mubr.bf16.mxu0 0
      %10903 = vmatmul.mubr.bf16.gmra.mrb[0].mxu0 %v10072
      %v10904 = vpop.f32.mrb[0].mxu0
      %v10905 = vadd.f32 %v10616, %v10904
      %v10906 = vpop.f32.mrb[0].mxu0
      %v10907 = vpop.f32.mrb[0].mxu0
      %v10908 = vadd.f32 %v10619, %v10907
      %v10909 = vpop.f32.mrb[0].mxu0
      %10910 = vmatprep.mubr.bf16.mxu0 0
      %10911 = vmatmul.mubr.bf16.gmra.mrb[0].mxu0 %v10075
      %v10912 = vpop.f32.mrb[0].mxu0
      %v10913 = vadd.f32 %v10624, %v10912
      %v10914 = vpop.f32.mrb[0].mxu0
      %v10915 = vpop.f32.mrb[0].mxu0
      %v10916 = vadd.f32 %v10627, %v10915
      %v10917 = vpop.f32.mrb[0].mxu0
      %10918 = vmatprep.mubr.bf16.mxu0 0
      %10919 = vmatmul.mubr.bf16.gmra.mrb[0].mxu0 %v10078
      %v10920 = vpop.f32.mrb[0].mxu0
      %v10921 = vadd.f32 %v10632, %v10920
      %v10922 = vpop.f32.mrb[0].mxu0
      %v10923 = vpop.f32.mrb[0].mxu0
      %v10924 = vadd.f32 %v10635, %v10923
      %v10925 = vpop.f32.mrb[0].mxu0
      %10926 = vmatprep.mubr.bf16.mxu0 0
      %10927 = vmatmul.mubr.bf16.gmra.mrb[0].mxu0 %v10081
      %v10928 = vpop.f32.mrb[0].mxu0
      %v10929 = vadd.f32 %v10640, %v10928
      %v10930 = vpop.f32.mrb[0].mxu0
      %v10931 = vpop.f32.mrb[0].mxu0
      %v10932 = vadd.f32 %v10643, %v10931
      %v10933 = vpop.f32.mrb[0].mxu0
      %10934 = vmatprep.mubr.bf16.mxu0 0
      %10935 = vmatmul.mubr.bf16.gmra.mrb[0].mxu0 %v10084
      %v10936 = vpop.f32.mrb[0].mxu0
      %v10937 = vadd.f32 %v10648, %v10936
      %v10938 = vpop.f32.mrb[0].mxu0
      %v10939 = vpop.f32.mrb[0].mxu0
      %v10940 = vadd.f32 %v10651, %v10939
      %v10941 = vpop.f32.mrb[0].mxu0
      %10942 = vmatprep.mubr.bf16.mxu0 0
      %10943 = vmatmul.mubr.bf16.gmra.mrb[0].mxu0 %v10087
      %v10944 = vpop.f32.mrb[0].mxu0
      %v10945 = vadd.f32 %v10656, %v10944
      %v10946 = vpop.f32.mrb[0].mxu0
      %v10947 = vpop.f32.mrb[0].mxu0
      %v10948 = vadd.f32 %v10659, %v10947
      %v10949 = vpop.f32.mrb[0].mxu0
      %10950 = vmatprep.mubr.bf16.mxu0 0
      %10951 = vmatmul.mubr.bf16.gmra.mrb[0].mxu0 %v10090
      %v10952 = vpop.f32.mrb[0].mxu0
      %v10953 = vadd.f32 %v10664, %v10952
      %v10954 = vpop.f32.mrb[0].mxu0
      %v10955 = vpop.f32.mrb[0].mxu0
      %v10956 = vadd.f32 %v10667, %v10955
      %v10957 = vpop.f32.mrb[0].mxu0
      %10958 = vdwg.mxu0
      %v10959 = vld [vmem:[%s2] sm:$0xf]
      %v10960 = vld [vmem:[%s2 + $0x4] sm:$0xf]
      %v10961 = vld [vmem:[%s2 + $0x8] sm:$0xf]
      %v10962 = vld [vmem:[%s2 + $0xc] sm:$0xf]
      %v10963 = vld [vmem:[%s2 + $0x10] sm:$0xf]
      %v10964 = vld [vmem:[%s2 + $0x14] sm:$0xf]
      %v10965 = vld [vmem:[%s2 + $0x18] sm:$0xf]
      %v10966 = vld [vmem:[%s2 + $0x1c] sm:$0xf]
      %v10967 = vld [vmem:[%s2 + $0x20] sm:$0xf]
      %v10968 = vld [vmem:[%s2 + $0x24] sm:$0xf]
      %v10969 = vld [vmem:[%s2 + $0x28] sm:$0xf]
      %v10970 = vld [vmem:[%s2 + $0x2c] sm:$0xf]
      %v10971 = vld [vmem:[%s2 + $0x30] sm:$0xf]
      %v10972 = vld [vmem:[%s2 + $0x34] sm:$0xf]
      %v10973 = vld [vmem:[%s2 + $0x38] sm:$0xf]
      %v10974 = vld [vmem:[%s2 + $0x3c] sm:$0xf]
      %v10975 = vld [vmem:[%s2 + $0x40] sm:$0xf]
      %v10976 = vld [vmem:[%s2 + $0x44] sm:$0xf]
      %v10977 = vld [vmem:[%s2 + $0x48] sm:$0xf]
      %v10978 = vld [vmem:[%s2 + $0x4c] sm:$0xf]
      %v10979 = vld [vmem:[%s2 + $0x50] sm:$0xf]
      %v10980 = vld [vmem:[%s2 + $0x54] sm:$0xf]
      %v10981 = vld [vmem:[%s2 + $0x58] sm:$0xf]
      %v10982 = vld [vmem:[%s2 + $0x5c] sm:$0xf]
      %v10983 = vld [vmem:[%s2 + $0x60] sm:$0xf]
      %v10984 = vld [vmem:[%s2 + $0x64] sm:$0xf]
      %v10985 = vld [vmem:[%s2 + $0x68] sm:$0xf]
      %v10986 = vld [vmem:[%s2 + $0x6c] sm:$0xf]
      %v10987 = vld [vmem:[%s2 + $0x70] sm:$0xf]
      %v10988 = vld [vmem:[%s2 + $0x74] sm:$0xf]
      %v10989 = vld [vmem:[%s2 + $0x78] sm:$0xf]
      %v10990 = vld [vmem:[%s2 + $0x7c] sm:$0xf]
      %v10991 = vld [vmem:[%s2 + $0x80] sm:$0xf]
      %v10992 = vld [vmem:[%s2 + $0x84] sm:$0xf]
      %v10993 = vld [vmem:[%s2 + $0x88] sm:$0xf]
      %v10994 = vld [vmem:[%s2 + $0x8c] sm:$0xf]
      %v10995 = vld [vmem:[%s2 + $0x90] sm:$0xf]
      %v10996 = vld [vmem:[%s2 + $0x94] sm:$0xf]
      %v10997 = vld [vmem:[%s2 + $0x98] sm:$0xf]
      %v10998 = vld [vmem:[%s2 + $0x9c] sm:$0xf]
      %v10999 = vld [vmem:[%s2 + $0xa0] sm:$0xf]
      %v11000 = vld [vmem:[%s2 + $0xa4] sm:$0xf]
      %v11001 = vld [vmem:[%s2 + $0xa8] sm:$0xf]
      %v11002 = vld [vmem:[%s2 + $0xac] sm:$0xf]
      %v11003 = vld [vmem:[%s2 + $0xb0] sm:$0xf]
      %v11004 = vld [vmem:[%s2 + $0xb4] sm:$0xf]
      %v11005 = vld [vmem:[%s2 + $0xb8] sm:$0xf]
      %v11006 = vld [vmem:[%s2 + $0xbc] sm:$0xf]
      %v11007 = vld [vmem:[%s2 + $0xc0] sm:$0xf]
      %v11008 = vld [vmem:[%s2 + $0xc4] sm:$0xf]
      %v11009 = vld [vmem:[%s2 + $0xc8] sm:$0xf]
      %v11010 = vld [vmem:[%s2 + $0xcc] sm:$0xf]
      %v11011 = vld [vmem:[%s2 + $0xd0] sm:$0xf]
      %v11012 = vld [vmem:[%s2 + $0xd4] sm:$0xf]
      %v11013 = vld [vmem:[%s2 + $0xd8] sm:$0xf]
      %v11014 = vld [vmem:[%s2 + $0xdc] sm:$0xf]
      %v11015 = vld [vmem:[%s2 + $0xe0] sm:$0xf]
      %v11016 = vld [vmem:[%s2 + $0xe4] sm:$0xf]
      %v11017 = vld [vmem:[%s2 + $0xe8] sm:$0xf]
      %v11018 = vld [vmem:[%s2 + $0xec] sm:$0xf]
      %v11019 = vld [vmem:[%s2 + $0xf0] sm:$0xf]
      %v11020 = vld [vmem:[%s2 + $0xf4] sm:$0xf]
      %v11021 = vld [vmem:[%s2 + $0xf8] sm:$0xf]
      %v11022 = vld [vmem:[%s2 + $0xfc] sm:$0xf]
      %v11023 = vld [vmem:[%s2 + $0x100] sm:$0xf]
      %v11024 = vld [vmem:[%s2 + $0x104] sm:$0xf]
      %v11025 = vld [vmem:[%s2 + $0x108] sm:$0xf]
      %v11026 = vld [vmem:[%s2 + $0x10c] sm:$0xf]
      %v11027 = vld [vmem:[%s2 + $0x110] sm:$0xf]
      %v11028 = vld [vmem:[%s2 + $0x114] sm:$0xf]
      %v11029 = vld [vmem:[%s2 + $0x118] sm:$0xf]
      %v11030 = vld [vmem:[%s2 + $0x11c] sm:$0xf]
      %v11103 = vunpack.c.l.b16 %v10959
      %v11104 = vunpack.c.l.b16 %v10960
      %v11105 = vunpack.c.l.b16 %v10961
      %v11106 = vunpack.c.l.b16 %v10962
      %v11107 = vunpack.c.l.b16 %v10963
      %v11108 = vunpack.c.l.b16 %v10964
      %v11109 = vunpack.c.l.b16 %v10965
      %v11110 = vunpack.c.l.b16 %v10966
      %v11111 = vunpack.c.l.b16 %v10967
      %v11112 = vunpack.c.l.b16 %v10968
      %v11113 = vunpack.c.l.b16 %v10969
      %v11114 = vunpack.c.l.b16 %v10970
      %v11115 = vunpack.c.l.b16 %v10971
      %v11116 = vunpack.c.l.b16 %v10972
      %v11117 = vunpack.c.l.b16 %v10973
      %v11118 = vunpack.c.l.b16 %v10974
      %v11119 = vunpack.c.l.b16 %v10975
      %v11120 = vunpack.c.l.b16 %v10976
      %v11121 = vunpack.c.l.b16 %v10977
      %v11122 = vunpack.c.l.b16 %v10978
      %v11123 = vunpack.c.l.b16 %v10979
      %v11124 = vunpack.c.l.b16 %v10980
      %v11125 = vunpack.c.l.b16 %v10981
      %v11126 = vunpack.c.l.b16 %v10982
      %v11127 = vunpack.c.l.b16 %v10983
      %v11128 = vunpack.c.l.b16 %v10984
      %v11129 = vunpack.c.l.b16 %v10985
      %v11130 = vunpack.c.l.b16 %v10986
      %v11131 = vunpack.c.l.b16 %v10987
      %v11132 = vunpack.c.l.b16 %v10988
      %v11133 = vunpack.c.l.b16 %v10989
      %v11134 = vunpack.c.l.b16 %v10990
      %v11135 = vunpack.c.l.b16 %v10991
      %v11136 = vunpack.c.l.b16 %v10992
      %v11137 = vunpack.c.l.b16 %v10993
      %v11138 = vunpack.c.l.b16 %v10994
      %v11139 = vunpack.c.l.b16 %v10995
      %v11140 = vunpack.c.l.b16 %v10996
      %v11141 = vunpack.c.l.b16 %v10997
      %v11142 = vunpack.c.l.b16 %v10998
      %v11143 = vunpack.c.l.b16 %v10999
      %v11144 = vunpack.c.l.b16 %v11000
      %v11145 = vunpack.c.l.b16 %v11001
      %v11146 = vunpack.c.l.b16 %v11002
      %v11147 = vunpack.c.l.b16 %v11003
      %v11148 = vunpack.c.l.b16 %v11004
      %v11149 = vunpack.c.l.b16 %v11005
      %v11150 = vunpack.c.l.b16 %v11006
      %v11151 = vunpack.c.l.b16 %v11007
      %v11152 = vunpack.c.l.b16 %v11008
      %v11153 = vunpack.c.l.b16 %v11009
      %v11154 = vunpack.c.l.b16 %v11010
      %v11155 = vunpack.c.l.b16 %v11011
      %v11156 = vunpack.c.l.b16 %v11012
      %v11157 = vunpack.c.l.b16 %v11013
      %v11158 = vunpack.c.l.b16 %v11014
      %v11159 = vunpack.c.l.b16 %v11015
      %v11160 = vunpack.c.l.b16 %v11016
      %v11161 = vunpack.c.l.b16 %v11017
      %v11162 = vunpack.c.l.b16 %v11018
      %v11163 = vunpack.c.l.b16 %v11019
      %v11164 = vunpack.c.l.b16 %v11020
      %v11165 = vunpack.c.l.b16 %v11021
      %v11166 = vunpack.c.l.b16 %v11022
      %v11167 = vunpack.c.l.b16 %v11023
      %v11168 = vunpack.c.l.b16 %v11024
      %v11169 = vunpack.c.l.b16 %v11025
      %v11170 = vunpack.c.l.b16 %v11026
      %v11171 = vunpack.c.l.b16 %v11027
      %v11172 = vunpack.c.l.b16 %v11028
      %v11173 = vunpack.c.l.b16 %v11029
      %v11174 = vunpack.c.l.b16 %v11030
      %v11175 = vpack.c.b16 %v11104, %v11103
      %v11176 = vpack.c.b16 %v11106, %v11105
      %v11177 = vpack.c.b16 %v11108, %v11107
      %v11178 = vpack.c.b16 %v11110, %v11109
      %v11179 = vpack.c.b16 %v11112, %v11111
      %v11180 = vpack.c.b16 %v11114, %v11113
      %v11181 = vpack.c.b16 %v11116, %v11115
      %v11182 = vpack.c.b16 %v11118, %v11117
      %v11183 = vpack.c.b16 %v11120, %v11119
      %v11184 = vpack.c.b16 %v11122, %v11121
      %v11185 = vpack.c.b16 %v11124, %v11123
      %v11186 = vpack.c.b16 %v11126, %v11125
      %v11187 = vpack.c.b16 %v11128, %v11127
      %v11188 = vpack.c.b16 %v11130, %v11129
      %v11189 = vpack.c.b16 %v11132, %v11131
      %v11190 = vpack.c.b16 %v11134, %v11133
      %v11191 = vpack.c.b16 %v11136, %v11135
      %v11192 = vpack.c.b16 %v11138, %v11137
      %v11193 = vpack.c.b16 %v11140, %v11139
      %v11194 = vpack.c.b16 %v11142, %v11141
      %v11195 = vpack.c.b16 %v11144, %v11143
      %v11196 = vpack.c.b16 %v11146, %v11145
      %v11197 = vpack.c.b16 %v11148, %v11147
      %v11198 = vpack.c.b16 %v11150, %v11149
      %v11199 = vpack.c.b16 %v11152, %v11151
      %v11200 = vpack.c.b16 %v11154, %v11153
      %v11201 = vpack.c.b16 %v11156, %v11155
      %v11202 = vpack.c.b16 %v11158, %v11157
      %v11203 = vpack.c.b16 %v11160, %v11159
      %v11204 = vpack.c.b16 %v11162, %v11161
      %v11205 = vpack.c.b16 %v11164, %v11163
      %v11206 = vpack.c.b16 %v11166, %v11165
      %v11207 = vpack.c.b16 %v11168, %v11167
      %v11208 = vpack.c.b16 %v11170, %v11169
      %v11209 = vpack.c.b16 %v11172, %v11171
      %v11210 = vpack.c.b16 %v11174, %v11173
      %11247 = vmatprep.subr.bf16.mxu0 0
      %11248 = vmatpush1.bf16.msra.mxu0 %v11175
      %11249 = vmatprep.subr.bf16.mxu0 0
      %11250 = vmatpush1.bf16.msra.mxu0 %v11176
      %11251 = vmatprep.subr.bf16.mxu0 0
      %11252 = vmatpush1.bf16.msra.mxu0 %v11177
      %11253 = vmatprep.subr.bf16.mxu0 0
      %11254 = vmatpush1.bf16.msra.mxu0 %v11178
      %11255 = vmatprep.subr.bf16.mxu0 0
      %11256 = vmatpush1.bf16.msra.mxu0 %v11179
      %11257 = vmatprep.subr.bf16.mxu0 0
      %11258 = vmatpush1.bf16.msra.mxu0 %v11180
      %11259 = vmatprep.subr.bf16.mxu0 0
      %11260 = vmatpush1.bf16.msra.mxu0 %v11181
      %11261 = vmatprep.subr.bf16.mxu0 0
      %11262 = vmatpush1.bf16.msra.mxu0 %v11182
      %11263 = vmatprep.subr.bf16.mxu0 0
      %11264 = vmatpush1.bf16.msra.mxu0 %v11183
      %11265 = vmatprep.subr.bf16.mxu0 0
      %11266 = vmatpush1.bf16.msra.mxu0 %v11184
      %11267 = vmatprep.subr.bf16.mxu0 0
      %11268 = vmatpush1.bf16.msra.mxu0 %v11185
      %11269 = vmatprep.subr.bf16.mxu0 0
      %11270 = vmatpush1.bf16.msra.mxu0 %v11186
      %11271 = vmatprep.subr.bf16.mxu0 0
      %11272 = vmatpush1.bf16.msra.mxu0 %v11187
      %11273 = vmatprep.subr.bf16.mxu0 0
      %11274 = vmatpush1.bf16.msra.mxu0 %v11188
      %11275 = vmatprep.subr.bf16.mxu0 0
      %11276 = vmatpush1.bf16.msra.mxu0 %v11189
      %11277 = vmatprep.subr.bf16.mxu0 0
      %11278 = vmatpush1.bf16.msra.mxu0 %v11190
      %11279 = vmatprep.mubr.bf16.mxu0 %v7930
      %11280 = vmatmul.mubr.bf16.gmra.mrb[0].mxu0 %v7929
      %v11281 = vpop.f32.mrb[0].mxu0
      %v11282 = vadd.f32 0.0, %v11281
      %v11283 = vpop.f32.mrb[0].mxu0
      %v11284 = vpop.f32.mrb[0].mxu0
      %v11285 = vadd.f32 0.0, %v11284
      %v11286 = vpop.f32.mrb[0].mxu0
      %11287 = vmatprep.mubr.bf16.mxu0 %v7934
      %11288 = vmatmul.mubr.bf16.gmra.mrb[0].mxu0 %v7932
      %v11289 = vpop.f32.mrb[0].mxu0
      %v11290 = vadd.f32 0.0, %v11289
      %v11291 = vpop.f32.mrb[0].mxu0
      %v11292 = vpop.f32.mrb[0].mxu0
      %v11293 = vadd.f32 0.0, %v11292
      %v11294 = vpop.f32.mrb[0].mxu0
      %11295 = vmatprep.mubr.bf16.mxu0 %v7938
      %11296 = vmatmul.mubr.bf16.gmra.mrb[0].mxu0 %v7936
      %v11297 = vpop.f32.mrb[0].mxu0
      %v11298 = vadd.f32 0.0, %v11297
      %v11299 = vpop.f32.mrb[0].mxu0
      %v11300 = vpop.f32.mrb[0].mxu0
      %v11301 = vadd.f32 0.0, %v11300
      %v11302 = vpop.f32.mrb[0].mxu0
      %11303 = vmatprep.mubr.bf16.mxu0 %v7942
      %11304 = vmatmul.mubr.bf16.gmra.mrb[0].mxu0 %v7940
      %v11305 = vpop.f32.mrb[0].mxu0
      %v11306 = vadd.f32 0.0, %v11305
      %v11307 = vpop.f32.mrb[0].mxu0
      %v11308 = vpop.f32.mrb[0].mxu0
      %v11309 = vadd.f32 0.0, %v11308
      %v11310 = vpop.f32.mrb[0].mxu0
      %11311 = vmatprep.mubr.bf16.mxu0 %v7947
      %11312 = vmatmul.mubr.bf16.gmra.mrb[0].mxu0 %v7946
      %v11313 = vpop.f32.mrb[0].mxu0
      %v11314 = vadd.f32 0.0, %v11313
      %v11315 = vpop.f32.mrb[0].mxu0
      %v11316 = vpop.f32.mrb[0].mxu0
      %v11317 = vadd.f32 0.0, %v11316
      %v11318 = vpop.f32.mrb[0].mxu0
      %11319 = vmatprep.mubr.bf16.mxu0 %v7951
      %11320 = vmatmul.mubr.bf16.gmra.mrb[0].mxu0 %v7949
      %v11321 = vpop.f32.mrb[0].mxu0
      %v11322 = vadd.f32 0.0, %v11321
      %v11323 = vpop.f32.mrb[0].mxu0
      %v11324 = vpop.f32.mrb[0].mxu0
      %v11325 = vadd.f32 0.0, %v11324
      %v11326 = vpop.f32.mrb[0].mxu0
      %11327 = vmatprep.mubr.bf16.mxu0 %v7955
      %11328 = vmatmul.mubr.bf16.gmra.mrb[0].mxu0 %v7953
      %v11329 = vpop.f32.mrb[0].mxu0
      %v11330 = vadd.f32 0.0, %v11329
      %v11331 = vpop.f32.mrb[0].mxu0
      %v11332 = vpop.f32.mrb[0].mxu0
      %v11333 = vadd.f32 0.0, %v11332
      %v11334 = vpop.f32.mrb[0].mxu0
      %11335 = vmatprep.mubr.bf16.mxu0 %v7959
      %11336 = vmatmul.mubr.bf16.gmra.mrb[0].mxu0 %v7957
      %v11337 = vpop.f32.mrb[0].mxu0
      %v11338 = vadd.f32 0.0, %v11337
      %v11339 = vpop.f32.mrb[0].mxu0
      %v11340 = vpop.f32.mrb[0].mxu0
      %v11341 = vadd.f32 0.0, %v11340
      %v11342 = vpop.f32.mrb[0].mxu0
      %11343 = vmatprep.mubr.bf16.mxu0 %v7964
      %11344 = vmatmul.mubr.bf16.gmra.mrb[0].mxu0 %v7963
      %v11345 = vpop.f32.mrb[0].mxu0
      %v11346 = vadd.f32 0.0, %v11345
      %v11347 = vpop.f32.mrb[0].mxu0
      %v11348 = vpop.f32.mrb[0].mxu0
      %v11349 = vadd.f32 0.0, %v11348
      %v11350 = vpop.f32.mrb[0].mxu0
      %11351 = vmatprep.mubr.bf16.mxu0 %v7968
      %11352 = vmatmul.mubr.bf16.gmra.mrb[0].mxu0 %v7966
      %v11353 = vpop.f32.mrb[0].mxu0
      %v11354 = vadd.f32 0.0, %v11353
      %v11355 = vpop.f32.mrb[0].mxu0
      %v11356 = vpop.f32.mrb[0].mxu0
      %v11357 = vadd.f32 0.0, %v11356
      %v11358 = vpop.f32.mrb[0].mxu0
      %11359 = vmatprep.mubr.bf16.mxu0 %v7972
      %11360 = vmatmul.mubr.bf16.gmra.mrb[0].mxu0 %v7970
      %v11361 = vpop.f32.mrb[0].mxu0
      %v11362 = vadd.f32 0.0, %v11361
      %v11363 = vpop.f32.mrb[0].mxu0
      %v11364 = vpop.f32.mrb[0].mxu0
      %v11365 = vadd.f32 0.0, %v11364
      %v11366 = vpop.f32.mrb[0].mxu0
      %11367 = vmatprep.mubr.bf16.mxu0 %v7976
      %11368 = vmatmul.mubr.bf16.gmra.mrb[0].mxu0 %v7974
      %v11369 = vpop.f32.mrb[0].mxu0
      %v11370 = vadd.f32 0.0, %v11369
      %v11371 = vpop.f32.mrb[0].mxu0
      %v11372 = vpop.f32.mrb[0].mxu0
      %v11373 = vadd.f32 0.0, %v11372
      %v11374 = vpop.f32.mrb[0].mxu0
      %11375 = vmatprep.mubr.bf16.mxu0 %v7981
      %11376 = vmatmul.mubr.bf16.gmra.mrb[0].mxu0 %v7980
      %v11377 = vpop.f32.mrb[0].mxu0
      %v11378 = vadd.f32 0.0, %v11377
      %v11379 = vpop.f32.mrb[0].mxu0
      %v11380 = vpop.f32.mrb[0].mxu0
      %v11381 = vadd.f32 0.0, %v11380
      %v11382 = vpop.f32.mrb[0].mxu0
      %11383 = vmatprep.mubr.bf16.mxu0 %v7985
      %11384 = vmatmul.mubr.bf16.gmra.mrb[0].mxu0 %v7983
      %v11385 = vpop.f32.mrb[0].mxu0
      %v11386 = vadd.f32 0.0, %v11385
      %v11387 = vpop.f32.mrb[0].mxu0
      %v11388 = vpop.f32.mrb[0].mxu0
      %v11389 = vadd.f32 0.0, %v11388
      %v11390 = vpop.f32.mrb[0].mxu0
      %11391 = vmatprep.mubr.bf16.mxu0 %v7989
      %11392 = vmatmul.mubr.bf16.gmra.mrb[0].mxu0 %v7987
      %v11393 = vpop.f32.mrb[0].mxu0
      %v11394 = vadd.f32 0.0, %v11393
      %v11395 = vpop.f32.mrb[0].mxu0
      %v11396 = vpop.f32.mrb[0].mxu0
      %v11397 = vadd.f32 0.0, %v11396
      %v11398 = vpop.f32.mrb[0].mxu0
      %11399 = vmatprep.mubr.bf16.mxu0 %v7993
      %11400 = vmatmul.mubr.bf16.gmra.mrb[0].mxu0 %v7991
      %v11401 = vpop.f32.mrb[0].mxu0
      %v11402 = vadd.f32 0.0, %v11401
      %v11403 = vpop.f32.mrb[0].mxu0
      %v11404 = vpop.f32.mrb[0].mxu0
      %v11405 = vadd.f32 0.0, %v11404
      %v11406 = vpop.f32.mrb[0].mxu0
      %11407 = vmatprep.mubr.bf16.mxu0 %v7998
      %11408 = vmatmul.mubr.bf16.gmra.mrb[0].mxu0 %v7997
      %v11409 = vpop.f32.mrb[0].mxu0
      %v11410 = vadd.f32 0.0, %v11409
      %v11411 = vpop.f32.mrb[0].mxu0
      %v11412 = vpop.f32.mrb[0].mxu0
      %v11413 = vadd.f32 0.0, %v11412
      %v11414 = vpop.f32.mrb[0].mxu0
      %11415 = vmatprep.mubr.bf16.mxu0 %v8002
      %11416 = vmatmul.mubr.bf16.gmra.mrb[0].mxu0 %v8000
      %v11417 = vpop.f32.mrb[0].mxu0
      %v11418 = vadd.f32 0.0, %v11417
      %v11419 = vpop.f32.mrb[0].mxu0
      %v11420 = vpop.f32.mrb[0].mxu0
      %v11421 = vadd.f32 0.0, %v11420
      %v11422 = vpop.f32.mrb[0].mxu0
      %11423 = vmatprep.mubr.bf16.mxu0 %v8006
      %11424 = vmatmul.mubr.bf16.gmra.mrb[0].mxu0 %v8004
      %v11425 = vpop.f32.mrb[0].mxu0
      %v11426 = vadd.f32 0.0, %v11425
      %v11427 = vpop.f32.mrb[0].mxu0
      %v11428 = vpop.f32.mrb[0].mxu0
      %v11429 = vadd.f32 0.0, %v11428
      %v11430 = vpop.f32.mrb[0].mxu0
      %11431 = vmatprep.mubr.bf16.mxu0 %v8010
      %11432 = vmatmul.mubr.bf16.gmra.mrb[0].mxu0 %v8008
      %v11433 = vpop.f32.mrb[0].mxu0
      %v11434 = vadd.f32 0.0, %v11433
      %v11435 = vpop.f32.mrb[0].mxu0
      %v11436 = vpop.f32.mrb[0].mxu0
      %v11437 = vadd.f32 0.0, %v11436
      %v11438 = vpop.f32.mrb[0].mxu0
      %11439 = vmatprep.mubr.bf16.mxu0 %v8015
      %11440 = vmatmul.mubr.bf16.gmra.mrb[0].mxu0 %v8014
      %v11441 = vpop.f32.mrb[0].mxu0
      %v11442 = vadd.f32 0.0, %v11441
      %v11443 = vpop.f32.mrb[0].mxu0
      %v11444 = vpop.f32.mrb[0].mxu0
      %v11445 = vadd.f32 0.0, %v11444
      %v11446 = vpop.f32.mrb[0].mxu0
      %11447 = vmatprep.mubr.bf16.mxu0 %v8019
      %11448 = vmatmul.mubr.bf16.gmra.mrb[0].mxu0 %v8017
      %v11449 = vpop.f32.mrb[0].mxu0
      %v11450 = vadd.f32 0.0, %v11449
      %v11451 = vpop.f32.mrb[0].mxu0
      %v11452 = vpop.f32.mrb[0].mxu0
      %v11453 = vadd.f32 0.0, %v11452
      %v11454 = vpop.f32.mrb[0].mxu0
      %11455 = vmatprep.mubr.bf16.mxu0 %v8023
      %11456 = vmatmul.mubr.bf16.gmra.mrb[0].mxu0 %v8021
      %v11457 = vpop.f32.mrb[0].mxu0
      %v11458 = vadd.f32 0.0, %v11457
      %v11459 = vpop.f32.mrb[0].mxu0
      %v11460 = vpop.f32.mrb[0].mxu0
      %v11461 = vadd.f32 0.0, %v11460
      %v11462 = vpop.f32.mrb[0].mxu0
      %11463 = vmatprep.mubr.bf16.mxu0 %v8027
      %11464 = vmatmul.mubr.bf16.gmra.mrb[0].mxu0 %v8025
      %v11465 = vpop.f32.mrb[0].mxu0
      %v11466 = vadd.f32 0.0, %v11465
      %v11467 = vpop.f32.mrb[0].mxu0
      %v11468 = vpop.f32.mrb[0].mxu0
      %v11469 = vadd.f32 0.0, %v11468
      %v11470 = vpop.f32.mrb[0].mxu0
      %11471 = vmatprep.mubr.bf16.mxu0 %v8032
      %11472 = vmatmul.mubr.bf16.gmra.mrb[0].mxu0 %v8031
      %v11473 = vpop.f32.mrb[0].mxu0
      %v11474 = vadd.f32 0.0, %v11473
      %v11475 = vpop.f32.mrb[0].mxu0
      %v11476 = vpop.f32.mrb[0].mxu0
      %v11477 = vadd.f32 0.0, %v11476
      %v11478 = vpop.f32.mrb[0].mxu0
      %11479 = vmatprep.mubr.bf16.mxu0 %v8036
      %11480 = vmatmul.mubr.bf16.gmra.mrb[0].mxu0 %v8034
      %v11481 = vpop.f32.mrb[0].mxu0
      %v11482 = vadd.f32 0.0, %v11481
      %v11483 = vpop.f32.mrb[0].mxu0
      %v11484 = vpop.f32.mrb[0].mxu0
      %v11485 = vadd.f32 0.0, %v11484
      %v11486 = vpop.f32.mrb[0].mxu0
      %11487 = vmatprep.mubr.bf16.mxu0 %v8040
      %11488 = vmatmul.mubr.bf16.gmra.mrb[0].mxu0 %v8038
      %v11489 = vpop.f32.mrb[0].mxu0
      %v11490 = vadd.f32 0.0, %v11489
      %v11491 = vpop.f32.mrb[0].mxu0
      %v11492 = vpop.f32.mrb[0].mxu0
      %v11493 = vadd.f32 0.0, %v11492
      %v11494 = vpop.f32.mrb[0].mxu0
      %11495 = vmatprep.mubr.bf16.mxu0 %v8044
      %11496 = vmatmul.mubr.bf16.gmra.mrb[0].mxu0 %v8042
      %v11497 = vpop.f32.mrb[0].mxu0
      %v11498 = vadd.f32 0.0, %v11497
      %v11499 = vpop.f32.mrb[0].mxu0
      %v11500 = vpop.f32.mrb[0].mxu0
      %v11501 = vadd.f32 0.0, %v11500
      %v11502 = vpop.f32.mrb[0].mxu0
      %11503 = vmatprep.mubr.bf16.mxu0 %v8049
      %11504 = vmatmul.mubr.bf16.gmra.mrb[0].mxu0 %v8048
      %v11505 = vpop.f32.mrb[0].mxu0
      %v11506 = vadd.f32 0.0, %v11505
      %v11507 = vpop.f32.mrb[0].mxu0
      %v11508 = vpop.f32.mrb[0].mxu0
      %v11509 = vadd.f32 0.0, %v11508
      %v11510 = vpop.f32.mrb[0].mxu0
      %11511 = vmatprep.mubr.bf16.mxu0 %v8053
      %11512 = vmatmul.mubr.bf16.gmra.mrb[0].mxu0 %v8051
      %v11513 = vpop.f32.mrb[0].mxu0
      %v11514 = vadd.f32 0.0, %v11513
      %v11515 = vpop.f32.mrb[0].mxu0
      %v11516 = vpop.f32.mrb[0].mxu0
      %v11517 = vadd.f32 0.0, %v11516
      %v11518 = vpop.f32.mrb[0].mxu0
      %11519 = vmatprep.mubr.bf16.mxu0 %v8057
      %11520 = vmatmul.mubr.bf16.gmra.mrb[0].mxu0 %v8055
      %v11521 = vpop.f32.mrb[0].mxu0
      %v11522 = vadd.f32 0.0, %v11521
      %v11523 = vpop.f32.mrb[0].mxu0
      %v11524 = vpop.f32.mrb[0].mxu0
      %v11525 = vadd.f32 0.0, %v11524
      %v11526 = vpop.f32.mrb[0].mxu0
      %11527 = vmatprep.mubr.bf16.mxu0 %v8061
      %11528 = vmatmul.mubr.bf16.gmra.mrb[0].mxu0 %v8059
      %v11529 = vpop.f32.mrb[0].mxu0
      %v11530 = vadd.f32 0.0, %v11529
      %v11531 = vpop.f32.mrb[0].mxu0
      %v11532 = vpop.f32.mrb[0].mxu0
      %v11533 = vadd.f32 0.0, %v11532
      %v11534 = vpop.f32.mrb[0].mxu0
      %11535 = vdwg.mxu0
      %11536 = vmatprep.subr.bf16.mxu0 0
      %11537 = vmatpush1.bf16.msra.mxu0 %v11191
      %11538 = vmatprep.subr.bf16.mxu0 0
      %11539 = vmatpush1.bf16.msra.mxu0 %v11192
      %11540 = vmatprep.subr.bf16.mxu0 0
      %11541 = vmatpush1.bf16.msra.mxu0 %v11193
      %11542 = vmatprep.subr.bf16.mxu0 0
      %11543 = vmatpush1.bf16.msra.mxu0 %v11194
      %11544 = vmatprep.subr.bf16.mxu0 0
      %11545 = vmatpush1.bf16.msra.mxu0 %v11195
      %11546 = vmatprep.subr.bf16.mxu0 0
      %11547 = vmatpush1.bf16.msra.mxu0 %v11196
      %11548 = vmatprep.subr.bf16.mxu0 0
      %11549 = vmatpush1.bf16.msra.mxu0 %v11197
      %11550 = vmatprep.subr.bf16.mxu0 0
      %11551 = vmatpush1.bf16.msra.mxu0 %v11198
      %11552 = vmatprep.subr.bf16.mxu0 0
      %11553 = vmatpush1.bf16.msra.mxu0 %v11199
      %11554 = vmatprep.subr.bf16.mxu0 0
      %11555 = vmatpush1.bf16.msra.mxu0 %v11200
      %11556 = vmatprep.subr.bf16.mxu0 0
      %11557 = vmatpush1.bf16.msra.mxu0 %v11201
      %11558 = vmatprep.subr.bf16.mxu0 0
      %11559 = vmatpush1.bf16.msra.mxu0 %v11202
      %11560 = vmatprep.subr.bf16.mxu0 0
      %11561 = vmatpush1.bf16.msra.mxu0 %v11203
      %11562 = vmatprep.subr.bf16.mxu0 0
      %11563 = vmatpush1.bf16.msra.mxu0 %v11204
      %11564 = vmatprep.subr.bf16.mxu0 0
      %11565 = vmatpush1.bf16.msra.mxu0 %v11205
      %11566 = vmatprep.subr.bf16.mxu0 0
      %11567 = vmatpush1.bf16.msra.mxu0 %v11206
      %11568 = vmatprep.mubr.bf16.mxu0 %v7932
      %11569 = vmatmul.mubr.bf16.gmra.mrb[0].mxu0 %v7931
      %v11570 = vpop.f32.mrb[0].mxu0
      %v11571 = vadd.f32 %v11282, %v11570
      %v11572 = vpop.f32.mrb[0].mxu0
      %v11573 = vpop.f32.mrb[0].mxu0
      %v11574 = vadd.f32 %v11285, %v11573
      %v11575 = vpop.f32.mrb[0].mxu0
      %11576 = vmatprep.mubr.bf16.mxu0 %v7936
      %11577 = vmatmul.mubr.bf16.gmra.mrb[0].mxu0 %v7935
      %v11578 = vpop.f32.mrb[0].mxu0
      %v11579 = vadd.f32 %v11290, %v11578
      %v11580 = vpop.f32.mrb[0].mxu0
      %v11581 = vpop.f32.mrb[0].mxu0
      %v11582 = vadd.f32 %v11293, %v11581
      %v11583 = vpop.f32.mrb[0].mxu0
      %11584 = vmatprep.mubr.bf16.mxu0 %v7940
      %11585 = vmatmul.mubr.bf16.gmra.mrb[0].mxu0 %v7939
      %v11586 = vpop.f32.mrb[0].mxu0
      %v11587 = vadd.f32 %v11298, %v11586
      %v11588 = vpop.f32.mrb[0].mxu0
      %v11589 = vpop.f32.mrb[0].mxu0
      %v11590 = vadd.f32 %v11301, %v11589
      %v11591 = vpop.f32.mrb[0].mxu0
      %11592 = vmatprep.mubr.bf16.mxu0 %v7944
      %11593 = vmatmul.mubr.bf16.gmra.mrb[0].mxu0 %v7943
      %v11594 = vpop.f32.mrb[0].mxu0
      %v11595 = vadd.f32 %v11306, %v11594
      %v11596 = vpop.f32.mrb[0].mxu0
      %v11597 = vpop.f32.mrb[0].mxu0
      %v11598 = vadd.f32 %v11309, %v11597
      %v11599 = vpop.f32.mrb[0].mxu0
      %11600 = vmatprep.mubr.bf16.mxu0 %v7949
      %11601 = vmatmul.mubr.bf16.gmra.mrb[0].mxu0 %v7948
      %v11602 = vpop.f32.mrb[0].mxu0
      %v11603 = vadd.f32 %v11314, %v11602
      %v11604 = vpop.f32.mrb[0].mxu0
      %v11605 = vpop.f32.mrb[0].mxu0
      %v11606 = vadd.f32 %v11317, %v11605
      %v11607 = vpop.f32.mrb[0].mxu0
      %11608 = vmatprep.mubr.bf16.mxu0 %v7953
      %11609 = vmatmul.mubr.bf16.gmra.mrb[0].mxu0 %v7952
      %v11610 = vpop.f32.mrb[0].mxu0
      %v11611 = vadd.f32 %v11322, %v11610
      %v11612 = vpop.f32.mrb[0].mxu0
      %v11613 = vpop.f32.mrb[0].mxu0
      %v11614 = vadd.f32 %v11325, %v11613
      %v11615 = vpop.f32.mrb[0].mxu0
      %11616 = vmatprep.mubr.bf16.mxu0 %v7957
      %11617 = vmatmul.mubr.bf16.gmra.mrb[0].mxu0 %v7956
      %v11618 = vpop.f32.mrb[0].mxu0
      %v11619 = vadd.f32 %v11330, %v11618
      %v11620 = vpop.f32.mrb[0].mxu0
      %v11621 = vpop.f32.mrb[0].mxu0
      %v11622 = vadd.f32 %v11333, %v11621
      %v11623 = vpop.f32.mrb[0].mxu0
      %11624 = vmatprep.mubr.bf16.mxu0 %v7961
      %11625 = vmatmul.mubr.bf16.gmra.mrb[0].mxu0 %v7960
      %v11626 = vpop.f32.mrb[0].mxu0
      %v11627 = vadd.f32 %v11338, %v11626
      %v11628 = vpop.f32.mrb[0].mxu0
      %v11629 = vpop.f32.mrb[0].mxu0
      %v11630 = vadd.f32 %v11341, %v11629
      %v11631 = vpop.f32.mrb[0].mxu0
      %11632 = vmatprep.mubr.bf16.mxu0 %v7966
      %11633 = vmatmul.mubr.bf16.gmra.mrb[0].mxu0 %v7965
      %v11634 = vpop.f32.mrb[0].mxu0
      %v11635 = vadd.f32 %v11346, %v11634
      %v11636 = vpop.f32.mrb[0].mxu0
      %v11637 = vpop.f32.mrb[0].mxu0
      %v11638 = vadd.f32 %v11349, %v11637
      %v11639 = vpop.f32.mrb[0].mxu0
      %11640 = vmatprep.mubr.bf16.mxu0 %v7970
      %11641 = vmatmul.mubr.bf16.gmra.mrb[0].mxu0 %v7969
      %v11642 = vpop.f32.mrb[0].mxu0
      %v11643 = vadd.f32 %v11354, %v11642
      %v11644 = vpop.f32.mrb[0].mxu0
      %v11645 = vpop.f32.mrb[0].mxu0
      %v11646 = vadd.f32 %v11357, %v11645
      %v11647 = vpop.f32.mrb[0].mxu0
      %11648 = vmatprep.mubr.bf16.mxu0 %v7974
      %11649 = vmatmul.mubr.bf16.gmra.mrb[0].mxu0 %v7973
      %v11650 = vpop.f32.mrb[0].mxu0
      %v11651 = vadd.f32 %v11362, %v11650
      %v11652 = vpop.f32.mrb[0].mxu0
      %v11653 = vpop.f32.mrb[0].mxu0
      %v11654 = vadd.f32 %v11365, %v11653
      %v11655 = vpop.f32.mrb[0].mxu0
      %11656 = vmatprep.mubr.bf16.mxu0 %v7978
      %11657 = vmatmul.mubr.bf16.gmra.mrb[0].mxu0 %v7977
      %v11658 = vpop.f32.mrb[0].mxu0
      %v11659 = vadd.f32 %v11370, %v11658
      %v11660 = vpop.f32.mrb[0].mxu0
      %v11661 = vpop.f32.mrb[0].mxu0
      %v11662 = vadd.f32 %v11373, %v11661
      %v11663 = vpop.f32.mrb[0].mxu0
      %11664 = vmatprep.mubr.bf16.mxu0 %v7983
      %11665 = vmatmul.mubr.bf16.gmra.mrb[0].mxu0 %v7982
      %v11666 = vpop.f32.mrb[0].mxu0
      %v11667 = vadd.f32 %v11378, %v11666
      %v11668 = vpop.f32.mrb[0].mxu0
      %v11669 = vpop.f32.mrb[0].mxu0
      %v11670 = vadd.f32 %v11381, %v11669
      %v11671 = vpop.f32.mrb[0].mxu0
      %11672 = vmatprep.mubr.bf16.mxu0 %v7987
      %11673 = vmatmul.mubr.bf16.gmra.mrb[0].mxu0 %v7986
      %v11674 = vpop.f32.mrb[0].mxu0
      %v11675 = vadd.f32 %v11386, %v11674
      %v11676 = vpop.f32.mrb[0].mxu0
      %v11677 = vpop.f32.mrb[0].mxu0
      %v11678 = vadd.f32 %v11389, %v11677
      %v11679 = vpop.f32.mrb[0].mxu0
      %11680 = vmatprep.mubr.bf16.mxu0 %v7991
      %11681 = vmatmul.mubr.bf16.gmra.mrb[0].mxu0 %v7990
      %v11682 = vpop.f32.mrb[0].mxu0
      %v11683 = vadd.f32 %v11394, %v11682
      %v11684 = vpop.f32.mrb[0].mxu0
      %v11685 = vpop.f32.mrb[0].mxu0
      %v11686 = vadd.f32 %v11397, %v11685
      %v11687 = vpop.f32.mrb[0].mxu0
      %11688 = vmatprep.mubr.bf16.mxu0 %v7995
      %11689 = vmatmul.mubr.bf16.gmra.mrb[0].mxu0 %v7994
      %v11690 = vpop.f32.mrb[0].mxu0
      %v11691 = vadd.f32 %v11402, %v11690
      %v11692 = vpop.f32.mrb[0].mxu0
      %v11693 = vpop.f32.mrb[0].mxu0
      %v11694 = vadd.f32 %v11405, %v11693
      %v11695 = vpop.f32.mrb[0].mxu0
      %11696 = vmatprep.mubr.bf16.mxu0 %v8000
      %11697 = vmatmul.mubr.bf16.gmra.mrb[0].mxu0 %v7999
      %v11698 = vpop.f32.mrb[0].mxu0
      %v11699 = vadd.f32 %v11410, %v11698
      %v11700 = vpop.f32.mrb[0].mxu0
      %v11701 = vpop.f32.mrb[0].mxu0
      %v11702 = vadd.f32 %v11413, %v11701
      %v11703 = vpop.f32.mrb[0].mxu0
      %11704 = vmatprep.mubr.bf16.mxu0 %v8004
      %11705 = vmatmul.mubr.bf16.gmra.mrb[0].mxu0 %v8003
      %v11706 = vpop.f32.mrb[0].mxu0
      %v11707 = vadd.f32 %v11418, %v11706
      %v11708 = vpop.f32.mrb[0].mxu0
      %v11709 = vpop.f32.mrb[0].mxu0
      %v11710 = vadd.f32 %v11421, %v11709
      %v11711 = vpop.f32.mrb[0].mxu0
      %11712 = vmatprep.mubr.bf16.mxu0 %v8008
      %11713 = vmatmul.mubr.bf16.gmra.mrb[0].mxu0 %v8007
      %v11714 = vpop.f32.mrb[0].mxu0
      %v11715 = vadd.f32 %v11426, %v11714
      %v11716 = vpop.f32.mrb[0].mxu0
      %v11717 = vpop.f32.mrb[0].mxu0
      %v11718 = vadd.f32 %v11429, %v11717
      %v11719 = vpop.f32.mrb[0].mxu0
      %11720 = vmatprep.mubr.bf16.mxu0 %v8012
      %11721 = vmatmul.mubr.bf16.gmra.mrb[0].mxu0 %v8011
      %v11722 = vpop.f32.mrb[0].mxu0
      %v11723 = vadd.f32 %v11434, %v11722
      %v11724 = vpop.f32.mrb[0].mxu0
      %v11725 = vpop.f32.mrb[0].mxu0
      %v11726 = vadd.f32 %v11437, %v11725
      %v11727 = vpop.f32.mrb[0].mxu0
      %11728 = vmatprep.mubr.bf16.mxu0 %v8017
      %11729 = vmatmul.mubr.bf16.gmra.mrb[0].mxu0 %v8016
      %v11730 = vpop.f32.mrb[0].mxu0
      %v11731 = vadd.f32 %v11442, %v11730
      %v11732 = vpop.f32.mrb[0].mxu0
      %v11733 = vpop.f32.mrb[0].mxu0
      %v11734 = vadd.f32 %v11445, %v11733
      %v11735 = vpop.f32.mrb[0].mxu0
      %11736 = vmatprep.mubr.bf16.mxu0 %v8021
      %11737 = vmatmul.mubr.bf16.gmra.mrb[0].mxu0 %v8020
      %v11738 = vpop.f32.mrb[0].mxu0
      %v11739 = vadd.f32 %v11450, %v11738
      %v11740 = vpop.f32.mrb[0].mxu0
      %v11741 = vpop.f32.mrb[0].mxu0
      %v11742 = vadd.f32 %v11453, %v11741
      %v11743 = vpop.f32.mrb[0].mxu0
      %11744 = vmatprep.mubr.bf16.mxu0 %v8025
      %11745 = vmatmul.mubr.bf16.gmra.mrb[0].mxu0 %v8024
      %v11746 = vpop.f32.mrb[0].mxu0
      %v11747 = vadd.f32 %v11458, %v11746
      %v11748 = vpop.f32.mrb[0].mxu0
      %v11749 = vpop.f32.mrb[0].mxu0
      %v11750 = vadd.f32 %v11461, %v11749
      %v11751 = vpop.f32.mrb[0].mxu0
      %11752 = vmatprep.mubr.bf16.mxu0 %v8029
      %11753 = vmatmul.mubr.bf16.gmra.mrb[0].mxu0 %v8028
      %v11754 = vpop.f32.mrb[0].mxu0
      %v11755 = vadd.f32 %v11466, %v11754
      %v11756 = vpop.f32.mrb[0].mxu0
      %v11757 = vpop.f32.mrb[0].mxu0
      %v11758 = vadd.f32 %v11469, %v11757
      %v11759 = vpop.f32.mrb[0].mxu0
      %11760 = vmatprep.mubr.bf16.mxu0 %v8034
      %11761 = vmatmul.mubr.bf16.gmra.mrb[0].mxu0 %v8033
      %v11762 = vpop.f32.mrb[0].mxu0
      %v11763 = vadd.f32 %v11474, %v11762
      %v11764 = vpop.f32.mrb[0].mxu0
      %v11765 = vpop.f32.mrb[0].mxu0
      %v11766 = vadd.f32 %v11477, %v11765
      %v11767 = vpop.f32.mrb[0].mxu0
      %11768 = vmatprep.mubr.bf16.mxu0 %v8038
      %11769 = vmatmul.mubr.bf16.gmra.mrb[0].mxu0 %v8037
      %v11770 = vpop.f32.mrb[0].mxu0
      %v11771 = vadd.f32 %v11482, %v11770
      %v11772 = vpop.f32.mrb[0].mxu0
      %v11773 = vpop.f32.mrb[0].mxu0
      %v11774 = vadd.f32 %v11485, %v11773
      %v11775 = vpop.f32.mrb[0].mxu0
      %11776 = vmatprep.mubr.bf16.mxu0 %v8042
      %11777 = vmatmul.mubr.bf16.gmra.mrb[0].mxu0 %v8041
      %v11778 = vpop.f32.mrb[0].mxu0
      %v11779 = vadd.f32 %v11490, %v11778
      %v11780 = vpop.f32.mrb[0].mxu0
      %v11781 = vpop.f32.mrb[0].mxu0
      %v11782 = vadd.f32 %v11493, %v11781
      %v11783 = vpop.f32.mrb[0].mxu0
      %11784 = vmatprep.mubr.bf16.mxu0 %v8046
      %11785 = vmatmul.mubr.bf16.gmra.mrb[0].mxu0 %v8045
      %v11786 = vpop.f32.mrb[0].mxu0
      %v11787 = vadd.f32 %v11498, %v11786
      %v11788 = vpop.f32.mrb[0].mxu0
      %v11789 = vpop.f32.mrb[0].mxu0
      %v11790 = vadd.f32 %v11501, %v11789
      %v11791 = vpop.f32.mrb[0].mxu0
      %11792 = vmatprep.mubr.bf16.mxu0 %v8051
      %11793 = vmatmul.mubr.bf16.gmra.mrb[0].mxu0 %v8050
      %v11794 = vpop.f32.mrb[0].mxu0
      %v11795 = vadd.f32 %v11506, %v11794
      %v11796 = vpop.f32.mrb[0].mxu0
      %v11797 = vpop.f32.mrb[0].mxu0
      %v11798 = vadd.f32 %v11509, %v11797
      %v11799 = vpop.f32.mrb[0].mxu0
      %11800 = vmatprep.mubr.bf16.mxu0 %v8055
      %11801 = vmatmul.mubr.bf16.gmra.mrb[0].mxu0 %v8054
      %v11802 = vpop.f32.mrb[0].mxu0
      %v11803 = vadd.f32 %v11514, %v11802
      %v11804 = vpop.f32.mrb[0].mxu0
      %v11805 = vpop.f32.mrb[0].mxu0
      %v11806 = vadd.f32 %v11517, %v11805
      %v11807 = vpop.f32.mrb[0].mxu0
      %11808 = vmatprep.mubr.bf16.mxu0 %v8059
      %11809 = vmatmul.mubr.bf16.gmra.mrb[0].mxu0 %v8058
      %v11810 = vpop.f32.mrb[0].mxu0
      %v11811 = vadd.f32 %v11522, %v11810
      %v11812 = vpop.f32.mrb[0].mxu0
      %v11813 = vpop.f32.mrb[0].mxu0
      %v11814 = vadd.f32 %v11525, %v11813
      %v11815 = vpop.f32.mrb[0].mxu0
      %11816 = vmatprep.mubr.bf16.mxu0 %v8063
      %11817 = vmatmul.mubr.bf16.gmra.mrb[0].mxu0 %v8062
      %v11818 = vpop.f32.mrb[0].mxu0
      %v11819 = vadd.f32 %v11530, %v11818
      %v11820 = vpop.f32.mrb[0].mxu0
      %v11821 = vpop.f32.mrb[0].mxu0
      %v11822 = vadd.f32 %v11533, %v11821
      %v11823 = vpop.f32.mrb[0].mxu0
      %11824 = vdwg.mxu0
      %11825 = vmatprep.subr.bf16.mxu0 0
      %11826 = vmatpush1.bf16.msra.mxu0 %v11207
      %11827 = vmatprep.subr.bf16.mxu0 0
      %11828 = vmatpush1.bf16.msra.mxu0 %v11208
      %11829 = vmatprep.subr.bf16.mxu0 0
      %11830 = vmatpush1.bf16.msra.mxu0 %v11209
      %11831 = vmatprep.subr.bf16.mxu0 0
      %11832 = vmatpush1.bf16.msra.mxu0 %v11210
      %11833 = vmatprep.subr.bf16.mxu0 0
      %11834 = vmatpush1.bf16.msra.mxu0 0
      %11835 = vmatprep.subr.bf16.mxu0 0
      %11836 = vmatpush1.bf16.msra.mxu0 0
      %11837 = vmatprep.subr.bf16.mxu0 0
      %11838 = vmatpush1.bf16.msra.mxu0 0
      %11839 = vmatprep.subr.bf16.mxu0 0
      %11840 = vmatpush1.bf16.msra.mxu0 0
      %11841 = vmatprep.subr.bf16.mxu0 0
      %11842 = vmatpush1.bf16.msra.mxu0 0
      %11843 = vmatprep.subr.bf16.mxu0 0
      %11844 = vmatpush1.bf16.msra.mxu0 0
      %11845 = vmatprep.subr.bf16.mxu0 0
      %11846 = vmatpush1.bf16.msra.mxu0 0
      %11847 = vmatprep.subr.bf16.mxu0 0
      %11848 = vmatpush1.bf16.msra.mxu0 0
      %11849 = vmatprep.subr.bf16.mxu0 0
      %11850 = vmatpush1.bf16.msra.mxu0 0
      %11851 = vmatprep.subr.bf16.mxu0 0
      %11852 = vmatpush1.bf16.msra.mxu0 0
      %11853 = vmatprep.subr.bf16.mxu0 0
      %11854 = vmatpush1.bf16.msra.mxu0 0
      %11855 = vmatprep.subr.bf16.mxu0 0
      %11856 = vmatpush1.bf16.msra.mxu0 0
      %11857 = vmatprep.mubr.bf16.mxu0 0
      %11858 = vmatmul.mubr.bf16.gmra.mrb[0].mxu0 %v9997
      %v11859 = vpop.f32.mrb[0].mxu0
      %v11860 = vadd.f32 %v11571, %v11859
      %v11861 = vpop.f32.mrb[0].mxu0
      %v11862 = vpop.f32.mrb[0].mxu0
      %v11863 = vadd.f32 %v11574, %v11862
      %v11864 = vpop.f32.mrb[0].mxu0
      %11865 = vmatprep.mubr.bf16.mxu0 0
      %11866 = vmatmul.mubr.bf16.gmra.mrb[0].mxu0 %v10000
      %v11867 = vpop.f32.mrb[0].mxu0
      %v11868 = vadd.f32 %v11579, %v11867
      %v11869 = vpop.f32.mrb[0].mxu0
      %v11870 = vpop.f32.mrb[0].mxu0
      %v11871 = vadd.f32 %v11582, %v11870
      %v11872 = vpop.f32.mrb[0].mxu0
      %11873 = vmatprep.mubr.bf16.mxu0 0
      %11874 = vmatmul.mubr.bf16.gmra.mrb[0].mxu0 %v10003
      %v11875 = vpop.f32.mrb[0].mxu0
      %v11876 = vadd.f32 %v11587, %v11875
      %v11877 = vpop.f32.mrb[0].mxu0
      %v11878 = vpop.f32.mrb[0].mxu0
      %v11879 = vadd.f32 %v11590, %v11878
      %v11880 = vpop.f32.mrb[0].mxu0
      %11881 = vmatprep.mubr.bf16.mxu0 0
      %11882 = vmatmul.mubr.bf16.gmra.mrb[0].mxu0 %v10006
      %v11883 = vpop.f32.mrb[0].mxu0
      %v11884 = vadd.f32 %v11595, %v11883
      %v11885 = vpop.f32.mrb[0].mxu0
      %v11886 = vpop.f32.mrb[0].mxu0
      %v11887 = vadd.f32 %v11598, %v11886
      %v11888 = vpop.f32.mrb[0].mxu0
      %11889 = vmatprep.mubr.bf16.mxu0 0
      %11890 = vmatmul.mubr.bf16.gmra.mrb[0].mxu0 %v10009
      %v11891 = vpop.f32.mrb[0].mxu0
      %v11892 = vadd.f32 %v11603, %v11891
      %v11893 = vpop.f32.mrb[0].mxu0
      %v11894 = vpop.f32.mrb[0].mxu0
      %v11895 = vadd.f32 %v11606, %v11894
      %v11896 = vpop.f32.mrb[0].mxu0
      %11897 = vmatprep.mubr.bf16.mxu0 0
      %11898 = vmatmul.mubr.bf16.gmra.mrb[0].mxu0 %v10012
      %v11899 = vpop.f32.mrb[0].mxu0
      %v11900 = vadd.f32 %v11611, %v11899
      %v11901 = vpop.f32.mrb[0].mxu0
      %v11902 = vpop.f32.mrb[0].mxu0
      %v11903 = vadd.f32 %v11614, %v11902
      %v11904 = vpop.f32.mrb[0].mxu0
      %11905 = vmatprep.mubr.bf16.mxu0 0
      %11906 = vmatmul.mubr.bf16.gmra.mrb[0].mxu0 %v10015
      %v11907 = vpop.f32.mrb[0].mxu0
      %v11908 = vadd.f32 %v11619, %v11907
      %v11909 = vpop.f32.mrb[0].mxu0
      %v11910 = vpop.f32.mrb[0].mxu0
      %v11911 = vadd.f32 %v11622, %v11910
      %v11912 = vpop.f32.mrb[0].mxu0
      %11913 = vmatprep.mubr.bf16.mxu0 0
      %11914 = vmatmul.mubr.bf16.gmra.mrb[0].mxu0 %v10018
      %v11915 = vpop.f32.mrb[0].mxu0
      %v11916 = vadd.f32 %v11627, %v11915
      %v11917 = vpop.f32.mrb[0].mxu0
      %v11918 = vpop.f32.mrb[0].mxu0
      %v11919 = vadd.f32 %v11630, %v11918
      %v11920 = vpop.f32.mrb[0].mxu0
      %11921 = vmatprep.mubr.bf16.mxu0 0
      %11922 = vmatmul.mubr.bf16.gmra.mrb[0].mxu0 %v10021
      %v11923 = vpop.f32.mrb[0].mxu0
      %v11924 = vadd.f32 %v11635, %v11923
      %v11925 = vpop.f32.mrb[0].mxu0
      %v11926 = vpop.f32.mrb[0].mxu0
      %v11927 = vadd.f32 %v11638, %v11926
      %v11928 = vpop.f32.mrb[0].mxu0
      %11929 = vmatprep.mubr.bf16.mxu0 0
      %11930 = vmatmul.mubr.bf16.gmra.mrb[0].mxu0 %v10024
      %v11931 = vpop.f32.mrb[0].mxu0
      %v11932 = vadd.f32 %v11643, %v11931
      %v11933 = vpop.f32.mrb[0].mxu0
      %v11934 = vpop.f32.mrb[0].mxu0
      %v11935 = vadd.f32 %v11646, %v11934
      %v11936 = vpop.f32.mrb[0].mxu0
      %11937 = vmatprep.mubr.bf16.mxu0 0
      %11938 = vmatmul.mubr.bf16.gmra.mrb[0].mxu0 %v10027
      %v11939 = vpop.f32.mrb[0].mxu0
      %v11940 = vadd.f32 %v11651, %v11939
      %v11941 = vpop.f32.mrb[0].mxu0
      %v11942 = vpop.f32.mrb[0].mxu0
      %v11943 = vadd.f32 %v11654, %v11942
      %v11944 = vpop.f32.mrb[0].mxu0
      %11945 = vmatprep.mubr.bf16.mxu0 0
      %11946 = vmatmul.mubr.bf16.gmra.mrb[0].mxu0 %v10030
      %v11947 = vpop.f32.mrb[0].mxu0
      %v11948 = vadd.f32 %v11659, %v11947
      %v11949 = vpop.f32.mrb[0].mxu0
      %v11950 = vpop.f32.mrb[0].mxu0
      %v11951 = vadd.f32 %v11662, %v11950
      %v11952 = vpop.f32.mrb[0].mxu0
      %11953 = vmatprep.mubr.bf16.mxu0 0
      %11954 = vmatmul.mubr.bf16.gmra.mrb[0].mxu0 %v10033
      %v11955 = vpop.f32.mrb[0].mxu0
      %v11956 = vadd.f32 %v11667, %v11955
      %v11957 = vpop.f32.mrb[0].mxu0
      %v11958 = vpop.f32.mrb[0].mxu0
      %v11959 = vadd.f32 %v11670, %v11958
      %v11960 = vpop.f32.mrb[0].mxu0
      %11961 = vmatprep.mubr.bf16.mxu0 0
      %11962 = vmatmul.mubr.bf16.gmra.mrb[0].mxu0 %v10036
      %v11963 = vpop.f32.mrb[0].mxu0
      %v11964 = vadd.f32 %v11675, %v11963
      %v11965 = vpop.f32.mrb[0].mxu0
      %v11966 = vpop.f32.mrb[0].mxu0
      %v11967 = vadd.f32 %v11678, %v11966
      %v11968 = vpop.f32.mrb[0].mxu0
      %11969 = vmatprep.mubr.bf16.mxu0 0
      %11970 = vmatmul.mubr.bf16.gmra.mrb[0].mxu0 %v10039
      %v11971 = vpop.f32.mrb[0].mxu0
      %v11972 = vadd.f32 %v11683, %v11971
      %v11973 = vpop.f32.mrb[0].mxu0
      %v11974 = vpop.f32.mrb[0].mxu0
      %v11975 = vadd.f32 %v11686, %v11974
      %v11976 = vpop.f32.mrb[0].mxu0
      %11977 = vmatprep.mubr.bf16.mxu0 0
      %11978 = vmatmul.mubr.bf16.gmra.mrb[0].mxu0 %v10042
      %v11979 = vpop.f32.mrb[0].mxu0
      %v11980 = vadd.f32 %v11691, %v11979
      %v11981 = vpop.f32.mrb[0].mxu0
      %v11982 = vpop.f32.mrb[0].mxu0
      %v11983 = vadd.f32 %v11694, %v11982
      %v11984 = vpop.f32.mrb[0].mxu0
      %11985 = vmatprep.mubr.bf16.mxu0 0
      %11986 = vmatmul.mubr.bf16.gmra.mrb[0].mxu0 %v10045
      %v11987 = vpop.f32.mrb[0].mxu0
      %v11988 = vadd.f32 %v11699, %v11987
      %v11989 = vpop.f32.mrb[0].mxu0
      %v11990 = vpop.f32.mrb[0].mxu0
      %v11991 = vadd.f32 %v11702, %v11990
      %v11992 = vpop.f32.mrb[0].mxu0
      %11993 = vmatprep.mubr.bf16.mxu0 0
      %11994 = vmatmul.mubr.bf16.gmra.mrb[0].mxu0 %v10048
      %v11995 = vpop.f32.mrb[0].mxu0
      %v11996 = vadd.f32 %v11707, %v11995
      %v11997 = vpop.f32.mrb[0].mxu0
      %v11998 = vpop.f32.mrb[0].mxu0
      %v11999 = vadd.f32 %v11710, %v11998
      %v12000 = vpop.f32.mrb[0].mxu0
      %12001 = vmatprep.mubr.bf16.mxu0 0
      %12002 = vmatmul.mubr.bf16.gmra.mrb[0].mxu0 %v10051
      %v12003 = vpop.f32.mrb[0].mxu0
      %v12004 = vadd.f32 %v11715, %v12003
      %v12005 = vpop.f32.mrb[0].mxu0
      %v12006 = vpop.f32.mrb[0].mxu0
      %v12007 = vadd.f32 %v11718, %v12006
      %v12008 = vpop.f32.mrb[0].mxu0
      %12009 = vmatprep.mubr.bf16.mxu0 0
      %12010 = vmatmul.mubr.bf16.gmra.mrb[0].mxu0 %v10054
      %v12011 = vpop.f32.mrb[0].mxu0
      %v12012 = vadd.f32 %v11723, %v12011
      %v12013 = vpop.f32.mrb[0].mxu0
      %v12014 = vpop.f32.mrb[0].mxu0
      %v12015 = vadd.f32 %v11726, %v12014
      %v12016 = vpop.f32.mrb[0].mxu0
      %12017 = vmatprep.mubr.bf16.mxu0 0
      %12018 = vmatmul.mubr.bf16.gmra.mrb[0].mxu0 %v10057
      %v12019 = vpop.f32.mrb[0].mxu0
      %v12020 = vadd.f32 %v11731, %v12019
      %v12021 = vpop.f32.mrb[0].mxu0
      %v12022 = vpop.f32.mrb[0].mxu0
      %v12023 = vadd.f32 %v11734, %v12022
      %v12024 = vpop.f32.mrb[0].mxu0
      %12025 = vmatprep.mubr.bf16.mxu0 0
      %12026 = vmatmul.mubr.bf16.gmra.mrb[0].mxu0 %v10060
      %v12027 = vpop.f32.mrb[0].mxu0
      %v12028 = vadd.f32 %v11739, %v12027
      %v12029 = vpop.f32.mrb[0].mxu0
      %v12030 = vpop.f32.mrb[0].mxu0
      %v12031 = vadd.f32 %v11742, %v12030
      %v12032 = vpop.f32.mrb[0].mxu0
      %12033 = vmatprep.mubr.bf16.mxu0 0
      %12034 = vmatmul.mubr.bf16.gmra.mrb[0].mxu0 %v10063
      %v12035 = vpop.f32.mrb[0].mxu0
      %v12036 = vadd.f32 %v11747, %v12035
      %v12037 = vpop.f32.mrb[0].mxu0
      %v12038 = vpop.f32.mrb[0].mxu0
      %v12039 = vadd.f32 %v11750, %v12038
      %v12040 = vpop.f32.mrb[0].mxu0
      %12041 = vmatprep.mubr.bf16.mxu0 0
      %12042 = vmatmul.mubr.bf16.gmra.mrb[0].mxu0 %v10066
      %v12043 = vpop.f32.mrb[0].mxu0
      %v12044 = vadd.f32 %v11755, %v12043
      %v12045 = vpop.f32.mrb[0].mxu0
      %v12046 = vpop.f32.mrb[0].mxu0
      %v12047 = vadd.f32 %v11758, %v12046
      %v12048 = vpop.f32.mrb[0].mxu0
      %12049 = vmatprep.mubr.bf16.mxu0 0
      %12050 = vmatmul.mubr.bf16.gmra.mrb[0].mxu0 %v10069
      %v12051 = vpop.f32.mrb[0].mxu0
      %v12052 = vadd.f32 %v11763, %v12051
      %v12053 = vpop.f32.mrb[0].mxu0
      %v12054 = vpop.f32.mrb[0].mxu0
      %v12055 = vadd.f32 %v11766, %v12054
      %v12056 = vpop.f32.mrb[0].mxu0
      %12057 = vmatprep.mubr.bf16.mxu0 0
      %12058 = vmatmul.mubr.bf16.gmra.mrb[0].mxu0 %v10072
      %v12059 = vpop.f32.mrb[0].mxu0
      %v12060 = vadd.f32 %v11771, %v12059
      %v12061 = vpop.f32.mrb[0].mxu0
      %v12062 = vpop.f32.mrb[0].mxu0
      %v12063 = vadd.f32 %v11774, %v12062
      %v12064 = vpop.f32.mrb[0].mxu0
      %12065 = vmatprep.mubr.bf16.mxu0 0
      %12066 = vmatmul.mubr.bf16.gmra.mrb[0].mxu0 %v10075
      %v12067 = vpop.f32.mrb[0].mxu0
      %v12068 = vadd.f32 %v11779, %v12067
      %v12069 = vpop.f32.mrb[0].mxu0
      %v12070 = vpop.f32.mrb[0].mxu0
      %v12071 = vadd.f32 %v11782, %v12070
      %v12072 = vpop.f32.mrb[0].mxu0
      %12073 = vmatprep.mubr.bf16.mxu0 0
      %12074 = vmatmul.mubr.bf16.gmra.mrb[0].mxu0 %v10078
      %v12075 = vpop.f32.mrb[0].mxu0
      %v12076 = vadd.f32 %v11787, %v12075
      %v12077 = vpop.f32.mrb[0].mxu0
      %v12078 = vpop.f32.mrb[0].mxu0
      %v12079 = vadd.f32 %v11790, %v12078
      %v12080 = vpop.f32.mrb[0].mxu0
      %12081 = vmatprep.mubr.bf16.mxu0 0
      %12082 = vmatmul.mubr.bf16.gmra.mrb[0].mxu0 %v10081
      %v12083 = vpop.f32.mrb[0].mxu0
      %v12084 = vadd.f32 %v11795, %v12083
      %v12085 = vpop.f32.mrb[0].mxu0
      %v12086 = vpop.f32.mrb[0].mxu0
      %v12087 = vadd.f32 %v11798, %v12086
      %v12088 = vpop.f32.mrb[0].mxu0
      %12089 = vmatprep.mubr.bf16.mxu0 0
      %12090 = vmatmul.mubr.bf16.gmra.mrb[0].mxu0 %v10084
      %v12091 = vpop.f32.mrb[0].mxu0
      %v12092 = vadd.f32 %v11803, %v12091
      %v12093 = vpop.f32.mrb[0].mxu0
      %v12094 = vpop.f32.mrb[0].mxu0
      %v12095 = vadd.f32 %v11806, %v12094
      %v12096 = vpop.f32.mrb[0].mxu0
      %12097 = vmatprep.mubr.bf16.mxu0 0
      %12098 = vmatmul.mubr.bf16.gmra.mrb[0].mxu0 %v10087
      %v12099 = vpop.f32.mrb[0].mxu0
      %v12100 = vadd.f32 %v11811, %v12099
      %v12101 = vpop.f32.mrb[0].mxu0
      %v12102 = vpop.f32.mrb[0].mxu0
      %v12103 = vadd.f32 %v11814, %v12102
      %v12104 = vpop.f32.mrb[0].mxu0
      %12105 = vmatprep.mubr.bf16.mxu0 0
      %12106 = vmatmul.mubr.bf16.gmra.mrb[0].mxu0 %v10090
      %v12107 = vpop.f32.mrb[0].mxu0
      %v12108 = vadd.f32 %v11819, %v12107
      %v12109 = vpop.f32.mrb[0].mxu0
      %v12110 = vpop.f32.mrb[0].mxu0
      %v12111 = vadd.f32 %v11822, %v12110
      %v12112 = vpop.f32.mrb[0].mxu0
      %12113 = vdwg.mxu0
      %v12114 = vadd.f32 %v10705, %v11860
      %v12115 = vadd.f32 %v10708, %v11863
      %v12116 = vadd.f32 %v10713, %v11868
      %v12117 = vadd.f32 %v10716, %v11871
      %v12118 = vadd.f32 %v10721, %v11876
      %v12119 = vadd.f32 %v10724, %v11879
      %v12120 = vadd.f32 %v10729, %v11884
      %v12121 = vadd.f32 %v10732, %v11887
      %v12122 = vadd.f32 %v10737, %v11892
      %v12123 = vadd.f32 %v10740, %v11895
      %v12124 = vadd.f32 %v10745, %v11900
      %v12125 = vadd.f32 %v10748, %v11903
      %v12126 = vadd.f32 %v10753, %v11908
      %v12127 = vadd.f32 %v10756, %v11911
      %v12128 = vadd.f32 %v10761, %v11916
      %v12129 = vadd.f32 %v10764, %v11919
      %v12130 = vadd.f32 %v10769, %v11924
      %v12131 = vadd.f32 %v10772, %v11927
      %v12132 = vadd.f32 %v10777, %v11932
      %v12133 = vadd.f32 %v10780, %v11935
      %v12134 = vadd.f32 %v10785, %v11940
      %v12135 = vadd.f32 %v10788, %v11943
      %v12136 = vadd.f32 %v10793, %v11948
      %v12137 = vadd.f32 %v10796, %v11951
      %v12138 = vadd.f32 %v10801, %v11956
      %v12139 = vadd.f32 %v10804, %v11959
      %v12140 = vadd.f32 %v10809, %v11964
      %v12141 = vadd.f32 %v10812, %v11967
      %v12142 = vadd.f32 %v10817, %v11972
      %v12143 = vadd.f32 %v10820, %v11975
      %v12144 = vadd.f32 %v10825, %v11980
      %v12145 = vadd.f32 %v10828, %v11983
      %v12146 = vadd.f32 %v10833, %v11988
      %v12147 = vadd.f32 %v10836, %v11991
      %v12148 = vadd.f32 %v10841, %v11996
      %v12149 = vadd.f32 %v10844, %v11999
      %v12150 = vadd.f32 %v10849, %v12004
      %v12151 = vadd.f32 %v10852, %v12007
      %v12152 = vadd.f32 %v10857, %v12012
      %v12153 = vadd.f32 %v10860, %v12015
      %v12154 = vadd.f32 %v10865, %v12020
      %v12155 = vadd.f32 %v10868, %v12023
      %v12156 = vadd.f32 %v10873, %v12028
      %v12157 = vadd.f32 %v10876, %v12031
      %v12158 = vadd.f32 %v10881, %v12036
      %v12159 = vadd.f32 %v10884, %v12039
      %v12160 = vadd.f32 %v10889, %v12044
      %v12161 = vadd.f32 %v10892, %v12047
      %v12162 = vadd.f32 %v10897, %v12052
      %v12163 = vadd.f32 %v10900, %v12055
      %v12164 = vadd.f32 %v10905, %v12060
      %v12165 = vadd.f32 %v10908, %v12063
      %v12166 = vadd.f32 %v10913, %v12068
      %v12167 = vadd.f32 %v10916, %v12071
      %v12168 = vadd.f32 %v10921, %v12076
      %v12169 = vadd.f32 %v10924, %v12079
      %v12170 = vadd.f32 %v10929, %v12084
      %v12171 = vadd.f32 %v10932, %v12087
      %v12172 = vadd.f32 %v10937, %v12092
      %v12173 = vadd.f32 %v10940, %v12095
      %v12174 = vadd.f32 %v10945, %v12100
      %v12175 = vadd.f32 %v10948, %v12103
      %v12176 = vadd.f32 %v10953, %v12108
      %v12177 = vadd.f32 %v10956, %v12111
      %v12178 = vld [vmem:[%s3] sm:$0x1]
      %v12180 = vlaneseq
      %v12181 = vshrl.u32 %v12180, 7
      %v12182 = vsub.s32 0, %v12181
      %v12183 = vrot.slane %v12178, %v12182
      %v12185 = vadd.f32 %v12114, %v12183
      %v12186 = vadd.f32 %v12115, %v12183
      %v12187 = vadd.f32 %v12116, %v12183
      %v12188 = vadd.f32 %v12117, %v12183
      %v12189 = vadd.f32 %v12118, %v12183
      %v12190 = vadd.f32 %v12119, %v12183
      %v12191 = vadd.f32 %v12120, %v12183
      %v12192 = vadd.f32 %v12121, %v12183
      %v12193 = vadd.f32 %v12122, %v12183
      %v12194 = vadd.f32 %v12123, %v12183
      %v12195 = vadd.f32 %v12124, %v12183
      %v12196 = vadd.f32 %v12125, %v12183
      %v12197 = vadd.f32 %v12126, %v12183
      %v12198 = vadd.f32 %v12127, %v12183
      %v12199 = vadd.f32 %v12128, %v12183
      %v12200 = vadd.f32 %v12129, %v12183
      %v12201 = vadd.f32 %v12130, %v12183
      %v12202 = vadd.f32 %v12131, %v12183
      %v12203 = vadd.f32 %v12132, %v12183
      %v12204 = vadd.f32 %v12133, %v12183
      %v12205 = vadd.f32 %v12134, %v12183
      %v12206 = vadd.f32 %v12135, %v12183
      %v12207 = vadd.f32 %v12136, %v12183
      %v12208 = vadd.f32 %v12137, %v12183
      %v12209 = vadd.f32 %v12138, %v12183
      %v12210 = vadd.f32 %v12139, %v12183
      %v12211 = vadd.f32 %v12140, %v12183
      %v12212 = vadd.f32 %v12141, %v12183
      %v12213 = vadd.f32 %v12142, %v12183
      %v12214 = vadd.f32 %v12143, %v12183
      %v12215 = vadd.f32 %v12144, %v12183
      %v12216 = vadd.f32 %v12145, %v12183
      %v12217 = vadd.f32 %v12146, %v12183
      %v12218 = vadd.f32 %v12147, %v12183
      %v12219 = vadd.f32 %v12148, %v12183
      %v12220 = vadd.f32 %v12149, %v12183
      %v12221 = vadd.f32 %v12150, %v12183
      %v12222 = vadd.f32 %v12151, %v12183
      %v12223 = vadd.f32 %v12152, %v12183
      %v12224 = vadd.f32 %v12153, %v12183
      %v12225 = vadd.f32 %v12154, %v12183
      %v12226 = vadd.f32 %v12155, %v12183
      %v12227 = vadd.f32 %v12156, %v12183
      %v12228 = vadd.f32 %v12157, %v12183
      %v12229 = vadd.f32 %v12158, %v12183
      %v12230 = vadd.f32 %v12159, %v12183
      %v12231 = vadd.f32 %v12160, %v12183
      %v12232 = vadd.f32 %v12161, %v12183
      %v12233 = vadd.f32 %v12162, %v12183
      %v12234 = vadd.f32 %v12163, %v12183
      %v12235 = vadd.f32 %v12164, %v12183
      %v12236 = vadd.f32 %v12165, %v12183
      %v12237 = vadd.f32 %v12166, %v12183
      %v12238 = vadd.f32 %v12167, %v12183
      %v12239 = vadd.f32 %v12168, %v12183
      %v12240 = vadd.f32 %v12169, %v12183
      %v12241 = vadd.f32 %v12170, %v12183
      %v12242 = vadd.f32 %v12171, %v12183
      %v12243 = vadd.f32 %v12172, %v12183
      %v12244 = vadd.f32 %v12173, %v12183
      %v12245 = vadd.f32 %v12174, %v12183
      %v12246 = vadd.f32 %v12175, %v12183
      %v12247 = vadd.f32 %v12176, %v12183
      %v12248 = vadd.f32 %v12177, %v12183
      %12249 = vst [vmem:[%s197] sm:$0xff] %v12185
      %12250 = vst [vmem:[%s197 + $0x8] sm:$0xff] %v12186
      %12251 = vst [vmem:[%s197 + $0x10] sm:$0xff] %v12187
      %12252 = vst [vmem:[%s197 + $0x18] sm:$0xff] %v12188
      %12253 = vst [vmem:[%s197 + $0x20] sm:$0xff] %v12189
      %12254 = vst [vmem:[%s197 + $0x28] sm:$0xff] %v12190
      %12255 = vst [vmem:[%s197 + $0x30] sm:$0xff] %v12191
      %12256 = vst [vmem:[%s197 + $0x38] sm:$0xff] %v12192
      %12257 = vst [vmem:[%s197 + $0x40] sm:$0xff] %v12193
      %12258 = vst [vmem:[%s197 + $0x48] sm:$0xff] %v12194
      %12259 = vst [vmem:[%s197 + $0x50] sm:$0xff] %v12195
      %12260 = vst [vmem:[%s197 + $0x58] sm:$0xff] %v12196
      %12261 = vst [vmem:[%s197 + $0x60] sm:$0xff] %v12197
      %12262 = vst [vmem:[%s197 + $0x68] sm:$0xff] %v12198
      %12263 = vst [vmem:[%s197 + $0x70] sm:$0xff] %v12199
      %12264 = vst [vmem:[%s197 + $0x78] sm:$0xff] %v12200
      %12265 = vst [vmem:[%s197 + $0x80] sm:$0xff] %v12201
      %12266 = vst [vmem:[%s197 + $0x88] sm:$0xff] %v12202
      %12267 = vst [vmem:[%s197 + $0x90] sm:$0xff] %v12203
      %12268 = vst [vmem:[%s197 + $0x98] sm:$0xff] %v12204
      %12269 = vst [vmem:[%s197 + $0xa0] sm:$0xff] %v12205
      %12270 = vst [vmem:[%s197 + $0xa8] sm:$0xff] %v12206
      %12271 = vst [vmem:[%s197 + $0xb0] sm:$0xff] %v12207
      %12272 = vst [vmem:[%s197 + $0xb8] sm:$0xff] %v12208
      %12273 = vst [vmem:[%s197 + $0xc0] sm:$0xff] %v12209
      %12274 = vst [vmem:[%s197 + $0xc8] sm:$0xff] %v12210
      %12275 = vst [vmem:[%s197 + $0xd0] sm:$0xff] %v12211
      %12276 = vst [vmem:[%s197 + $0xd8] sm:$0xff] %v12212
      %12277 = vst [vmem:[%s197 + $0xe0] sm:$0xff] %v12213
      %12278 = vst [vmem:[%s197 + $0xe8] sm:$0xff] %v12214
      %12279 = vst [vmem:[%s197 + $0xf0] sm:$0xff] %v12215
      %12280 = vst [vmem:[%s197 + $0xf8] sm:$0xff] %v12216
      %12281 = vst [vmem:[%s197 + $0x100] sm:$0xff] %v12217
      %12282 = vst [vmem:[%s197 + $0x108] sm:$0xff] %v12218
      %12283 = vst [vmem:[%s197 + $0x110] sm:$0xff] %v12219
      %12284 = vst [vmem:[%s197 + $0x118] sm:$0xff] %v12220
      %12285 = vst [vmem:[%s197 + $0x120] sm:$0xff] %v12221
      %12286 = vst [vmem:[%s197 + $0x128] sm:$0xff] %v12222
      %12287 = vst [vmem:[%s197 + $0x130] sm:$0xff] %v12223
      %12288 = vst [vmem:[%s197 + $0x138] sm:$0xff] %v12224
      %12289 = vst [vmem:[%s197 + $0x140] sm:$0xff] %v12225
      %12290 = vst [vmem:[%s197 + $0x148] sm:$0xff] %v12226
      %12291 = vst [vmem:[%s197 + $0x150] sm:$0xff] %v12227
      %12292 = vst [vmem:[%s197 + $0x158] sm:$0xff] %v12228
      %12293 = vst [vmem:[%s197 + $0x160] sm:$0xff] %v12229
      %12294 = vst [vmem:[%s197 + $0x168] sm:$0xff] %v12230
      %12295 = vst [vmem:[%s197 + $0x170] sm:$0xff] %v12231
      %12296 = vst [vmem:[%s197 + $0x178] sm:$0xff] %v12232
      %12297 = vst [vmem:[%s197 + $0x180] sm:$0xff] %v12233
      %12298 = vst [vmem:[%s197 + $0x188] sm:$0xff] %v12234
      %12299 = vst [vmem:[%s197 + $0x190] sm:$0xff] %v12235
      %12300 = vst [vmem:[%s197 + $0x198] sm:$0xff] %v12236
      %12301 = vst [vmem:[%s197 + $0x1a0] sm:$0xff] %v12237
      %12302 = vst [vmem:[%s197 + $0x1a8] sm:$0xff] %v12238
      %12303 = vst [vmem:[%s197 + $0x1b0] sm:$0xff] %v12239
      %12304 = vst [vmem:[%s197 + $0x1b8] sm:$0xff] %v12240
      %12305 = vst [vmem:[%s197 + $0x1c0] sm:$0xff] %v12241
      %12306 = vst [vmem:[%s197 + $0x1c8] sm:$0xff] %v12242
      %12307 = vst [vmem:[%s197 + $0x1d0] sm:$0xff] %v12243
      %12308 = vst [vmem:[%s197 + $0x1d8] sm:$0xff] %v12244
      %12309 = vst [vmem:[%s197 + $0x1e0] sm:$0xff] %v12245
      %12310 = vst [vmem:[%s197 + $0x1e8] sm:$0xff] %v12246
      %12311 = vst [vmem:[%s197 + $0x1f0] sm:$0xff] %v12247
      %12312 = vst [vmem:[%s197 + $0x1f8] sm:$0xff] %v12248
      %p12313 = scmp.lt.s32.totalorder %s15, 1
      %s12314 = scalar_select %p12313, %s15, 1
      %s12315 = smul.addr %s12314, 64
      %s12316 = smul.addr %s12315, 8
      %s12317 = scalar_lea.vmem %s4, %s12316
      // Predicated region
      $region37: #{upsampling_block3d.1} parent=35 // pred_check
        %p12318 = pneg %p122
      $region38: #{upsampling_block3d.1} parent=35 // pred_check_branch
        %12320 = sbr.rel (%p12318) target = $region40
      $region39: #{upsampling_block3d.1} parent=35 // pred_region
        _
      $region40: #{upsampling_block3d.1} parent=35 // pred_fallthru
        _
    $region36: #{upsampling_block3d.1} parent=5 // pred_fallthru
      _
    %p12321 = scmp.le.s32.totalorder 2, %s10
    // Predicated region
    $region41: #{upsampling_block3d.1} parent=5 // pred_check
      %p12322 = pneg %p12321
    $region42: #{upsampling_block3d.1} parent=5 // pred_check_branch
      %12324 = sbr.rel (%p12322) target = $region44
    $region43: #{upsampling_block3d.1} parent=5 // pred_region
      %s12325 = ssub.s32 %s10, 2
      // Predicated region
      $region45: #{upsampling_block3d.1} parent=43 // pred_check
        %p12326 = pneg %p128
      $region46: #{upsampling_block3d.1} parent=43 // pred_check_branch
        %12328 = sbr.rel (%p12326) target = $region48
      $region47: #{upsampling_block3d.1} parent=43 // pred_region
        %p12329 = scmp.lt.s32.totalorder %s16, 1
        %s12330 = scalar_select %p12329, %s16, 1
        %s12331 = smul.addr %s12330, 64
        %s12332 = smul.addr %s12331, 8
        %s12333 = scalar_lea.vmem %s4, %s12332
      $region48: #{upsampling_block3d.1} parent=43 // pred_fallthru
        _
    $region44: #{upsampling_block3d.1} parent=5 // pred_fallthru
      _
  $region6: #{upsampling_block3d.1} parent=0 // loop_footer
    %s14 = sadd.s32 1, %s10
  $region7: #{upsampling_block3d.1} parent=0 // loop_footer_branch
    %9 = sbr.rel target = $region3
  $region8: #{upsampling_block3d.1} parent=0 // loop_exit
    _

</llo_original>
